<compile_context>
chip_gen: v6e
topology: v6e:2x2x1
jax: 0.10.0
libtpu: 0.0.40
codegen_flags: <defaults>
</compile_context>

<pallas_src>
import numpy as np

import jax
import jax.numpy as jnp
from jax import lax
from jax.experimental import pallas as pl
from jax.experimental.pallas import tpu as pltpu


# ---------------------------------------------------------------------------
# Static network geometry (fc1 = Linear(32*5*5, 128) forces a 47x47, C=1 input)
# ---------------------------------------------------------------------------
H0 = 47
NB = 16                       # images per grid step (keep a multiple of 16)
NLANE = 128                   # lane-padded width of the scalar logit output
FC1_IN, FC1_OUT = 32 * 5 * 5, 128

# Per conv layer: (Cin, Cout, W_in, OW, PH_in, G_out)
#   W_in / OW : input / output spatial width (== height), 3x3, stride 2, VALID
#   PH_in     : stored input rows / 2   (input is stored parity-split, padded)
#   G_out     : stored output rows (OW valid + garbage pad rows so the next
#               layer's parity view is a tile-aligned reshape)
CONVS = (
    (1,  32, 47, 23, 27, 26),
    (32, 32, 23, 11, 13, 12),
    (32, 32, 11,  5,  6,  5),
)
S1 = 2 * CONVS[0][4]          # 54 stored input rows (47 real + zero pad)


# ---------------------------------------------------------------------------
# Fused forward kernel: NB images per grid step, everything resident in VMEM.
# ---------------------------------------------------------------------------
def _disc_kernel(x_ref,
                 m1_ref, b1_ref, m2_ref, b2_ref, m3_ref, b3_ref,
                 wf1_ref, bf1_ref, wf2_ref, bf2_ref,
                 o_ref):
    (_,   c1o, _, ow1, _,   g1) = CONVS[0]
    (_,   c2o, _, ow2, ph2, g2) = CONVS[1]
    (_,   c3o, _, ow3, ph3, g3) = CONVS[2]

    def leaky(v):                                   # nn.LeakyReLU(0.2)
        return jnp.maximum(v, 0.2 * v)

    def conv(xp, m_ref, b_ref, g_out):
        """xp: (PH, 2, NB, W*Cin) bf16 parity-split slab (input row 2p+j lives
        at [p, j]).  Returns (g_out*NB, OW*Cout) bf16 with rows ordered
        (out_row major, image minor).  Stride-2 row selection per conv kernel
        row is a contiguous slice of the parity view -> 3 MXU matmuls with a
        single running f32 accumulator + bias + LeakyReLU epilogue."""
        wc = xp.shape[-1]
        a0 = xp[0:g_out, 0].reshape(g_out * NB, wc)        # input rows 2o
        a1 = xp[0:g_out, 1].reshape(g_out * NB, wc)        # input rows 2o+1
        a2 = xp[1:g_out + 1, 0].reshape(g_out * NB, wc)    # input rows 2o+2
        acc = jnp.dot(a0, m_ref[0], preferred_element_type=jnp.float32)
        acc = acc + jnp.dot(a1, m_ref[1], preferred_element_type=jnp.float32)
        acc = acc + jnp.dot(a2, m_ref[2], preferred_element_type=jnp.float32)
        return leaky(acc + b_ref[...]).astype(jnp.bfloat16)

    x0 = x_ref[...]                                             # (27,2,NB,47)
    y1 = conv(x0, m1_ref, b1_ref, g1)                           # (26*NB, 736)
    y2 = conv(y1.reshape(ph2, 2, NB, ow1 * c1o),
              m2_ref, b2_ref, g2)                               # (12*NB, 352)
    y3 = conv(y2.reshape(ph3, 2, NB, ow2 * c2o),
              m3_ref, b3_ref, g3)                               # ( 5*NB, 160)

    # fc1: sum over the 5 spatial rows h: (NB, 160) @ (160, 128) per row,
    # batch in M.  Row slices are 16-aligned (NB-major blocks of y3).
    acc = bf1_ref[...] + jnp.dot(y3[0:NB], wf1_ref[0],
                                 preferred_element_type=jnp.float32)
    for h in range(1, 5):
        acc = acc + jnp.dot(y3[h * NB:(h + 1) * NB], wf1_ref[h],
                            preferred_element_type=jnp.float32)
    x4 = leaky(acc).astype(jnp.bfloat16)                        # (NB, 128)

    # fc2 + sigmoid.  wf2/bf2 are zero-padded to 128 lanes; lane 0 is real.
    logit = jnp.dot(x4, wf2_ref[...],
                    preferred_element_type=jnp.float32) + bf2_ref[...]
    o_ref[...] = 1.0 / (1.0 + jnp.exp(-logit))                  # (NB, 128)


# ---------------------------------------------------------------------------
# One-time weight preprocessing into the kernel-friendly layout
# ---------------------------------------------------------------------------
def _col_weight(w, win, ow):
    """Scatter torch conv weight (Cout, Cin, 3, 3) into 3 banded matrices of
    shape (win*Cin, ow*Cout): M_i[(2*o+j)*Cin + c, o*Cout + co] = w[co,c,i,j].
    A stride-2 conv then becomes  Y[o_h] = sum_i X[2*o_h + i] @ M_i + b."""
    w = np.asarray(w)
    cout, cin, _, _ = w.shape
    m = np.zeros((3, win * cin, ow * cout), np.float32)
    for i in range(3):
        for j in range(3):
            wij = w[:, :, i, j].T                  # (Cin, Cout)
            for o in range(ow):
                q = (2 * o + j) * cin
                m[i, q:q + cin, o * cout:(o + 1) * cout] = wij
    return m


def prepare_params(params):
    bf16, f32 = jnp.bfloat16, jnp.float32
    prep = {}
    for li, (cin, cout, win, ow, _ph, _g) in enumerate(CONVS, start=1):
        b = np.asarray(params[f"b{li}"])
        prep[f"m{li}"] = jnp.asarray(_col_weight(params[f"w{li}"], win, ow),
                                     bf16)
        prep[f"b{li}"] = jnp.asarray(np.tile(b, ow).reshape(1, ow * cout), f32)
    # fc1: permute columns from torch's NCHW flatten (c,h,w) to the kernel's
    # (h, w, c) activation layout, split by spatial row h.
    wf1 = np.asarray(params["wf1"]).reshape(FC1_OUT, 32, 5, 5)   # (n,c,h,w)
    wf1 = wf1.transpose(2, 3, 1, 0).reshape(5, 5 * 32, FC1_OUT)  # (h, w*32+c, n)
    prep["wf1"] = jnp.asarray(wf1, bf16)
    prep["bf1"] = jnp.asarray(np.asarray(params["bf1"]).reshape(1, FC1_OUT),
                              f32)
    # fc2: pad the single output unit to 128 lanes (lane 0 holds the logit).
    wf2 = np.zeros((FC1_OUT, NLANE), np.float32)
    wf2[:, 0] = np.asarray(params["wf2"])[0]
    bf2 = np.zeros((1, NLANE), np.float32)
    bf2[0, 0] = np.asarray(params["bf2"])[0]
    prep["wf2"] = jnp.asarray(wf2, bf16)
    prep["bf2"] = jnp.asarray(bf2, f32)
    return prep


# ---------------------------------------------------------------------------
# Forward wrapper: single pallas_call, grid over batch tiles of NB images
# ---------------------------------------------------------------------------
def _full_spec(shape):   # full-array block, constant index -> VMEM-resident
    return pl.BlockSpec(shape, lambda b, _n=len(shape): (0,) * _n)


@jax.jit
def discriminator_forward(prep, x):
    """x: (B, 1, 47, 47) float32 -> (B, 1) sigmoid scores."""
    B = x.shape[0]
    b_pad = ((B + NB - 1) // NB) * NB
    n_steps = b_pad // NB
    ph1 = CONVS[0][4]

    c1i, c1o, w1, ow1, _, _ = CONVS[0]
    c2i, c2o, w2, ow2, _, _ = CONVS[1]
    c3i, c3o, w3, ow3, _, _ = CONVS[2]

    # Input relayout: (B,1,47,47) f32 -> (27, 2, B_pad, 47) bf16 parity slab
    # (row h of image n at [h//2, h&1, n, :]); h zero-padded 47 -> 54.
    x2 = x.reshape(B, H0, H0)
    x2 = jnp.pad(x2, ((0, b_pad - B), (0, S1 - H0), (0, 0)))
    xprep = jnp.transpose(x2, (1, 0, 2)).reshape(ph1, 2, b_pad, H0)
    xprep = xprep.astype(jnp.bfloat16)

    out = pl.pallas_call(
        _disc_kernel,
        out_shape=jax.ShapeDtypeStruct((b_pad, NLANE), jnp.float32),
        grid=(n_steps,),
        in_specs=[
            pl.BlockSpec((ph1, 2, NB, H0), lambda b: (0, 0, b, 0)),  # images
            _full_spec((3, w1 * c1i, ow1 * c1o)), _full_spec((1, ow1 * c1o)),
            _full_spec((3, w2 * c2i, ow2 * c2o)), _full_spec((1, ow2 * c2o)),
            _full_spec((3, w3 * c3i, ow3 * c3o)), _full_spec((1, ow3 * c3o)),
            _full_spec((5, 5 * 32, FC1_OUT)), _full_spec((1, FC1_OUT)),
            _full_spec((FC1_OUT, NLANE)), _full_spec((1, NLANE)),
        ],
        out_specs=pl.BlockSpec((NB, NLANE), lambda b: (b, 0)),
        compiler_params=pltpu.CompilerParams(
            dimension_semantics=("parallel",),
            vmem_limit_bytes=48 * 1024 * 1024),
    )(xprep,
      prep["m1"], prep["b1"], prep["m2"], prep["b2"], prep["m3"], prep["b3"],
      prep["wf1"], prep["bf1"], prep["wf2"], prep["bf2"])
    return out[:B, :1]


# ---------------------------------------------------------------------------
# PyTorch-style init + plain-XLA reference (for a loose bf16 sanity check)
# ---------------------------------------------------------------------------
def _init_params(key):
    def uni(k, shape, fan_in):
        bound = 1.0 / np.sqrt(float(fan_in))
        return jax.random.uniform(k, shape, jnp.float32, -bound, bound)

    ks = jax.random.split(key, 10)
    return {
        "w1": uni(ks[0], (32, 1, 3, 3), 9),    "b1": uni(ks[1], (32,), 9),
        "w2": uni(ks[2], (32, 32, 3, 3), 288), "b2": uni(ks[3], (32,), 288),
        "w3": uni(ks[4], (32, 32, 3, 3), 288), "b3": uni(ks[5], (32,), 288),
        "wf1": uni(ks[6], (FC1_OUT, FC1_IN), FC1_IN),
        "bf1": uni(ks[7], (FC1_OUT,), FC1_IN),
        "wf2": uni(ks[8], (1, FC1_OUT), FC1_OUT),
        "bf2": uni(ks[9], (1,), FC1_OUT),
    }


def _reference_forward(params, x):
    leaky = lambda v: jnp.maximum(v, 0.2 * v)

    def conv(v, w, b):
        y = lax.conv_general_dilated(
            v, w, window_strides=(2, 2), padding="VALID",
            dimension_numbers=("NCHW", "OIHW", "NCHW"))
        return y + b.reshape(1, -1, 1, 1)

    x1 = leaky(conv(x, params["w1"], params["b1"]))
    x2 = leaky(conv(x1, params["w2"], params["b2"]))
    x3 = leaky(conv(x2, params["w3"], params["b3"]))
    flat = x3.reshape(x3.shape[0], FC1_IN)
    x4 = leaky(flat @ params["wf1"].T + params["bf1"])
    return jax.nn.sigmoid(x4 @ params["wf2"].T + params["bf2"])


if __name__ == "__main__":
    key = jax.random.PRNGKey(0)
    kp, kx, kx2 = jax.random.split(key, 3)
    params = _init_params(kp)
    prep = prepare_params(params)

    # fc1 expects 32*5*5 features => input spatial must be 47x47, 1 channel.
    x_small = jax.random.normal(kx, (2, 1, H0, H0), dtype=jnp.float32)
    x_big = jax.random.normal(kx2, (32, 1, H0, H0), dtype=jnp.float32)

    ok = True
    for xin in (x_small, x_big):
        out = jax.block_until_ready(discriminator_forward(prep, xin))
        assert out.shape == (xin.shape[0], 1)
        assert bool(jnp.all((out >= 0.0) & (out <= 1.0)))
        ref = jax.block_until_ready(_reference_forward(params, xin))
        err = float(jnp.max(jnp.abs(out - ref)))
        ok = ok and (err < 3e-2)   # bf16 MXU operands vs f32 reference
    assert ok

    print("KERNEL_OK")
</pallas_src>

<mosaic_0001>
module attributes {stable_mosaic.version = 11 : i64} {
  func.func @_disc_kernel(%arg0: i32, %arg1: memref<27x2x16x47xbf16, #tpu.memory_space<vmem>>, %arg2: memref<3x47x736xbf16, #tpu.memory_space<vmem>>, %arg3: memref<1x736xf32, #tpu.memory_space<vmem>>, %arg4: memref<3x736x352xbf16, #tpu.memory_space<vmem>>, %arg5: memref<1x352xf32, #tpu.memory_space<vmem>>, %arg6: memref<3x352x160xbf16, #tpu.memory_space<vmem>>, %arg7: memref<1x160xf32, #tpu.memory_space<vmem>>, %arg8: memref<5x160x128xbf16, #tpu.memory_space<vmem>>, %arg9: memref<1x128xf32, #tpu.memory_space<vmem>>, %arg10: memref<128x128xbf16, #tpu.memory_space<vmem>>, %arg11: memref<1x128xf32, #tpu.memory_space<vmem>>, %arg12: memref<16x128xf32, #tpu.memory_space<vmem>>) attributes {dimension_semantics = [#tpu.dimension_semantics<parallel>], iteration_bounds = array<i64: 1>, scalar_prefetch = 0 : i64, scratch_operands = 0 : i64, tpu.core_type = #tpu.core_type<tc>, window_params = [{transform_indices = @transform_0, window_bounds = array<i64: 27, 2, 16, 47>}, {pipeline_mode = #tpu.pipeline_mode<synchronous>, transform_indices = @transform_1, window_bounds = array<i64: 3, 47, 736>}, {pipeline_mode = #tpu.pipeline_mode<synchronous>, transform_indices = @transform_2, window_bounds = array<i64: 1, 736>}, {pipeline_mode = #tpu.pipeline_mode<synchronous>, transform_indices = @transform_3, window_bounds = array<i64: 3, 736, 352>}, {pipeline_mode = #tpu.pipeline_mode<synchronous>, transform_indices = @transform_4, window_bounds = array<i64: 1, 352>}, {pipeline_mode = #tpu.pipeline_mode<synchronous>, transform_indices = @transform_5, window_bounds = array<i64: 3, 352, 160>}, {pipeline_mode = #tpu.pipeline_mode<synchronous>, transform_indices = @transform_6, window_bounds = array<i64: 1, 160>}, {pipeline_mode = #tpu.pipeline_mode<synchronous>, transform_indices = @transform_7, window_bounds = array<i64: 5, 160, 128>}, {pipeline_mode = #tpu.pipeline_mode<synchronous>, transform_indices = @transform_8, window_bounds = array<i64: 1, 128>}, {pipeline_mode = #tpu.pipeline_mode<synchronous>, transform_indices = @transform_9, window_bounds = array<i64: 128, 128>}, {pipeline_mode = #tpu.pipeline_mode<synchronous>, transform_indices = @transform_10, window_bounds = array<i64: 1, 128>}, {transform_indices = @transform_11, window_bounds = array<i64: 16, 128>}]} {
    %c0 = arith.constant 0 : index
    %c0_0 = arith.constant 0 : index
    %c0_1 = arith.constant 0 : index
    %c0_2 = arith.constant 0 : index
    %0 = vector.load %arg1[%c0, %c0_0, %c0_1, %c0_2] : memref<27x2x16x47xbf16, #tpu.memory_space<vmem>>, vector<27x2x16x47xbf16>
    %1 = vector.extract_strided_slice %0 {offsets = [0, 0, 0, 0], sizes = [26, 1, 16, 47], strides = [1, 1, 1, 1]} : vector<27x2x16x47xbf16> to vector<26x1x16x47xbf16>
    %2 = vector.shape_cast %1 : vector<26x1x16x47xbf16> to vector<26x16x47xbf16>
    %3 = vector.shape_cast %2 : vector<26x16x47xbf16> to vector<416x47xbf16>
    %4 = vector.extract_strided_slice %0 {offsets = [0, 1, 0, 0], sizes = [26, 1, 16, 47], strides = [1, 1, 1, 1]} : vector<27x2x16x47xbf16> to vector<26x1x16x47xbf16>
    %5 = vector.shape_cast %4 : vector<26x1x16x47xbf16> to vector<26x16x47xbf16>
    %6 = vector.shape_cast %5 : vector<26x16x47xbf16> to vector<416x47xbf16>
    %7 = vector.extract_strided_slice %0 {offsets = [1, 0, 0, 0], sizes = [26, 1, 16, 47], strides = [1, 1, 1, 1]} : vector<27x2x16x47xbf16> to vector<26x1x16x47xbf16>
    %8 = vector.shape_cast %7 : vector<26x1x16x47xbf16> to vector<26x16x47xbf16>
    %9 = vector.shape_cast %8 : vector<26x16x47xbf16> to vector<416x47xbf16>
    %c0_3 = arith.constant 0 : index
    %c0_4 = arith.constant 0 : index
    %c0_5 = arith.constant 0 : index
    %10 = vector.load %arg2[%c0_3, %c0_4, %c0_5] : memref<3x47x736xbf16, #tpu.memory_space<vmem>>, vector<1x47x736xbf16>
    %11 = vector.shape_cast %10 : vector<1x47x736xbf16> to vector<47x736xbf16>
    %cst = arith.constant dense<0.000000e+00> : vector<416x736xf32>
    %12 = tpu.matmul %3, %11, %cst {dimension_numbers = #tpu.dot_dimension_numbers<[1], [0], [0], [1], [0, 0, 1, 1], [], []>} : vector<416x47xbf16>, vector<47x736xbf16>, vector<416x736xf32> -> vector<416x736xf32>
    %c1 = arith.constant 1 : index
    %c0_6 = arith.constant 0 : index
    %c0_7 = arith.constant 0 : index
    %13 = vector.load %arg2[%c1, %c0_6, %c0_7] : memref<3x47x736xbf16, #tpu.memory_space<vmem>>, vector<1x47x736xbf16>
    %14 = vector.shape_cast %13 : vector<1x47x736xbf16> to vector<47x736xbf16>
    %cst_8 = arith.constant dense<0.000000e+00> : vector<416x736xf32>
    %15 = tpu.matmul %6, %14, %cst_8 {dimension_numbers = #tpu.dot_dimension_numbers<[1], [0], [0], [1], [0, 0, 1, 1], [], []>} : vector<416x47xbf16>, vector<47x736xbf16>, vector<416x736xf32> -> vector<416x736xf32>
    %16 = arith.addf %12, %15 : vector<416x736xf32>
    %c2 = arith.constant 2 : index
    %c0_9 = arith.constant 0 : index
    %c0_10 = arith.constant 0 : index
    %17 = vector.load %arg2[%c2, %c0_9, %c0_10] : memref<3x47x736xbf16, #tpu.memory_space<vmem>>, vector<1x47x736xbf16>
    %18 = vector.shape_cast %17 : vector<1x47x736xbf16> to vector<47x736xbf16>
    %cst_11 = arith.constant dense<0.000000e+00> : vector<416x736xf32>
    %19 = tpu.matmul %9, %18, %cst_11 {dimension_numbers = #tpu.dot_dimension_numbers<[1], [0], [0], [1], [0, 0, 1, 1], [], []>} : vector<416x47xbf16>, vector<47x736xbf16>, vector<416x736xf32> -> vector<416x736xf32>
    %20 = arith.addf %16, %19 : vector<416x736xf32>
    %c0_12 = arith.constant 0 : index
    %c0_13 = arith.constant 0 : index
    %21 = vector.load %arg3[%c0_12, %c0_13] : memref<1x736xf32, #tpu.memory_space<vmem>>, vector<1x736xf32>
    %22 = vector.broadcast %21 : vector<1x736xf32> to vector<416x736xf32>
    %23 = arith.addf %20, %22 : vector<416x736xf32>
    %cst_14 = arith.constant 2.000000e-01 : f32
    %24 = vector.broadcast %cst_14 : f32 to vector<416x736xf32>
    %25 = arith.mulf %24, %23 : vector<416x736xf32>
    %26 = arith.maximumf %23, %25 : vector<416x736xf32>
    %27 = arith.truncf %26 : vector<416x736xf32> to vector<416x736xbf16>
    %28 = vector.shape_cast %27 : vector<416x736xbf16> to vector<13x2x16x736xbf16>
    %29 = vector.extract_strided_slice %28 {offsets = [0, 0, 0, 0], sizes = [12, 1, 16, 736], strides = [1, 1, 1, 1]} : vector<13x2x16x736xbf16> to vector<12x1x16x736xbf16>
    %30 = vector.shape_cast %29 : vector<12x1x16x736xbf16> to vector<12x16x736xbf16>
    %31 = vector.shape_cast %30 : vector<12x16x736xbf16> to vector<192x736xbf16>
    %32 = vector.extract_strided_slice %28 {offsets = [0, 1, 0, 0], sizes = [12, 1, 16, 736], strides = [1, 1, 1, 1]} : vector<13x2x16x736xbf16> to vector<12x1x16x736xbf16>
    %33 = vector.shape_cast %32 : vector<12x1x16x736xbf16> to vector<12x16x736xbf16>
    %34 = vector.shape_cast %33 : vector<12x16x736xbf16> to vector<192x736xbf16>
    %35 = vector.extract_strided_slice %28 {offsets = [1, 0, 0, 0], sizes = [12, 1, 16, 736], strides = [1, 1, 1, 1]} : vector<13x2x16x736xbf16> to vector<12x1x16x736xbf16>
    %36 = vector.shape_cast %35 : vector<12x1x16x736xbf16> to vector<12x16x736xbf16>
    %37 = vector.shape_cast %36 : vector<12x16x736xbf16> to vector<192x736xbf16>
    %c0_15 = arith.constant 0 : index
    %c0_16 = arith.constant 0 : index
    %c0_17 = arith.constant 0 : index
    %38 = vector.load %arg4[%c0_15, %c0_16, %c0_17] : memref<3x736x352xbf16, #tpu.memory_space<vmem>>, vector<1x736x352xbf16>
    %39 = vector.shape_cast %38 : vector<1x736x352xbf16> to vector<736x352xbf16>
    %cst_18 = arith.constant dense<0.000000e+00> : vector<192x352xf32>
    %40 = tpu.matmul %31, %39, %cst_18 {dimension_numbers = #tpu.dot_dimension_numbers<[1], [0], [0], [1], [0, 0, 1, 1], [], []>} : vector<192x736xbf16>, vector<736x352xbf16>, vector<192x352xf32> -> vector<192x352xf32>
    %c1_19 = arith.constant 1 : index
    %c0_20 = arith.constant 0 : index
    %c0_21 = arith.constant 0 : index
    %41 = vector.load %arg4[%c1_19, %c0_20, %c0_21] : memref<3x736x352xbf16, #tpu.memory_space<vmem>>, vector<1x736x352xbf16>
    %42 = vector.shape_cast %41 : vector<1x736x352xbf16> to vector<736x352xbf16>
    %cst_22 = arith.constant dense<0.000000e+00> : vector<192x352xf32>
    %43 = tpu.matmul %34, %42, %cst_22 {dimension_numbers = #tpu.dot_dimension_numbers<[1], [0], [0], [1], [0, 0, 1, 1], [], []>} : vector<192x736xbf16>, vector<736x352xbf16>, vector<192x352xf32> -> vector<192x352xf32>
    %44 = arith.addf %40, %43 : vector<192x352xf32>
    %c2_23 = arith.constant 2 : index
    %c0_24 = arith.constant 0 : index
    %c0_25 = arith.constant 0 : index
    %45 = vector.load %arg4[%c2_23, %c0_24, %c0_25] : memref<3x736x352xbf16, #tpu.memory_space<vmem>>, vector<1x736x352xbf16>
    %46 = vector.shape_cast %45 : vector<1x736x352xbf16> to vector<736x352xbf16>
    %cst_26 = arith.constant dense<0.000000e+00> : vector<192x352xf32>
    %47 = tpu.matmul %37, %46, %cst_26 {dimension_numbers = #tpu.dot_dimension_numbers<[1], [0], [0], [1], [0, 0, 1, 1], [], []>} : vector<192x736xbf16>, vector<736x352xbf16>, vector<192x352xf32> -> vector<192x352xf32>
    %48 = arith.addf %44, %47 : vector<192x352xf32>
    %c0_27 = arith.constant 0 : index
    %c0_28 = arith.constant 0 : index
    %49 = vector.load %arg5[%c0_27, %c0_28] : memref<1x352xf32, #tpu.memory_space<vmem>>, vector<1x352xf32>
    %50 = vector.broadcast %49 : vector<1x352xf32> to vector<192x352xf32>
    %51 = arith.addf %48, %50 : vector<192x352xf32>
    %cst_29 = arith.constant 2.000000e-01 : f32
    %52 = vector.broadcast %cst_29 : f32 to vector<192x352xf32>
    %53 = arith.mulf %52, %51 : vector<192x352xf32>
    %54 = arith.maximumf %51, %53 : vector<192x352xf32>
    %55 = arith.truncf %54 : vector<192x352xf32> to vector<192x352xbf16>
    %56 = vector.shape_cast %55 : vector<192x352xbf16> to vector<6x2x16x352xbf16>
    %57 = vector.extract_strided_slice %56 {offsets = [0, 0, 0, 0], sizes = [5, 1, 16, 352], strides = [1, 1, 1, 1]} : vector<6x2x16x352xbf16> to vector<5x1x16x352xbf16>
    %58 = vector.shape_cast %57 : vector<5x1x16x352xbf16> to vector<5x16x352xbf16>
    %59 = vector.shape_cast %58 : vector<5x16x352xbf16> to vector<80x352xbf16>
    %60 = vector.extract_strided_slice %56 {offsets = [0, 1, 0, 0], sizes = [5, 1, 16, 352], strides = [1, 1, 1, 1]} : vector<6x2x16x352xbf16> to vector<5x1x16x352xbf16>
    %61 = vector.shape_cast %60 : vector<5x1x16x352xbf16> to vector<5x16x352xbf16>
    %62 = vector.shape_cast %61 : vector<5x16x352xbf16> to vector<80x352xbf16>
    %63 = vector.extract_strided_slice %56 {offsets = [1, 0, 0, 0], sizes = [5, 1, 16, 352], strides = [1, 1, 1, 1]} : vector<6x2x16x352xbf16> to vector<5x1x16x352xbf16>
    %64 = vector.shape_cast %63 : vector<5x1x16x352xbf16> to vector<5x16x352xbf16>
    %65 = vector.shape_cast %64 : vector<5x16x352xbf16> to vector<80x352xbf16>
    %c0_30 = arith.constant 0 : index
    %c0_31 = arith.constant 0 : index
    %c0_32 = arith.constant 0 : index
    %66 = vector.load %arg6[%c0_30, %c0_31, %c0_32] : memref<3x352x160xbf16, #tpu.memory_space<vmem>>, vector<1x352x160xbf16>
    %67 = vector.shape_cast %66 : vector<1x352x160xbf16> to vector<352x160xbf16>
    %cst_33 = arith.constant dense<0.000000e+00> : vector<80x160xf32>
    %68 = tpu.matmul %59, %67, %cst_33 {dimension_numbers = #tpu.dot_dimension_numbers<[1], [0], [0], [1], [0, 0, 1, 1], [], []>} : vector<80x352xbf16>, vector<352x160xbf16>, vector<80x160xf32> -> vector<80x160xf32>
    %c1_34 = arith.constant 1 : index
    %c0_35 = arith.constant 0 : index
    %c0_36 = arith.constant 0 : index
    %69 = vector.load %arg6[%c1_34, %c0_35, %c0_36] : memref<3x352x160xbf16, #tpu.memory_space<vmem>>, vector<1x352x160xbf16>
    %70 = vector.shape_cast %69 : vector<1x352x160xbf16> to vector<352x160xbf16>
    %cst_37 = arith.constant dense<0.000000e+00> : vector<80x160xf32>
    %71 = tpu.matmul %62, %70, %cst_37 {dimension_numbers = #tpu.dot_dimension_numbers<[1], [0], [0], [1], [0, 0, 1, 1], [], []>} : vector<80x352xbf16>, vector<352x160xbf16>, vector<80x160xf32> -> vector<80x160xf32>
    %72 = arith.addf %68, %71 : vector<80x160xf32>
    %c2_38 = arith.constant 2 : index
    %c0_39 = arith.constant 0 : index
    %c0_40 = arith.constant 0 : index
    %73 = vector.load %arg6[%c2_38, %c0_39, %c0_40] : memref<3x352x160xbf16, #tpu.memory_space<vmem>>, vector<1x352x160xbf16>
    %74 = vector.shape_cast %73 : vector<1x352x160xbf16> to vector<352x160xbf16>
    %cst_41 = arith.constant dense<0.000000e+00> : vector<80x160xf32>
    %75 = tpu.matmul %65, %74, %cst_41 {dimension_numbers = #tpu.dot_dimension_numbers<[1], [0], [0], [1], [0, 0, 1, 1], [], []>} : vector<80x352xbf16>, vector<352x160xbf16>, vector<80x160xf32> -> vector<80x160xf32>
    %76 = arith.addf %72, %75 : vector<80x160xf32>
    %c0_42 = arith.constant 0 : index
    %c0_43 = arith.constant 0 : index
    %77 = vector.load %arg7[%c0_42, %c0_43] : memref<1x160xf32, #tpu.memory_space<vmem>>, vector<1x160xf32>
    %78 = vector.broadcast %77 : vector<1x160xf32> to vector<80x160xf32>
    %79 = arith.addf %76, %78 : vector<80x160xf32>
    %cst_44 = arith.constant 2.000000e-01 : f32
    %80 = vector.broadcast %cst_44 : f32 to vector<80x160xf32>
    %81 = arith.mulf %80, %79 : vector<80x160xf32>
    %82 = arith.maximumf %79, %81 : vector<80x160xf32>
    %83 = arith.truncf %82 : vector<80x160xf32> to vector<80x160xbf16>
    %c0_45 = arith.constant 0 : index
    %c0_46 = arith.constant 0 : index
    %84 = vector.load %arg9[%c0_45, %c0_46] : memref<1x128xf32, #tpu.memory_space<vmem>>, vector<1x128xf32>
    %85 = vector.extract_strided_slice %83 {offsets = [0, 0], sizes = [16, 160], strides = [1, 1]} : vector<80x160xbf16> to vector<16x160xbf16>
    %c0_47 = arith.constant 0 : index
    %c0_48 = arith.constant 0 : index
    %c0_49 = arith.constant 0 : index
    %86 = vector.load %arg8[%c0_47, %c0_48, %c0_49] : memref<5x160x128xbf16, #tpu.memory_space<vmem>>, vector<1x160x128xbf16>
    %87 = vector.shape_cast %86 : vector<1x160x128xbf16> to vector<160x128xbf16>
    %cst_50 = arith.constant dense<0.000000e+00> : vector<16x128xf32>
    %88 = tpu.matmul %85, %87, %cst_50 {dimension_numbers = #tpu.dot_dimension_numbers<[1], [0], [0], [1], [0, 0, 1, 1], [], []>} : vector<16x160xbf16>, vector<160x128xbf16>, vector<16x128xf32> -> vector<16x128xf32>
    %89 = vector.broadcast %84 : vector<1x128xf32> to vector<16x128xf32>
    %90 = arith.addf %89, %88 : vector<16x128xf32>
    %91 = vector.extract_strided_slice %83 {offsets = [16, 0], sizes = [16, 160], strides = [1, 1]} : vector<80x160xbf16> to vector<16x160xbf16>
    %c1_51 = arith.constant 1 : index
    %c0_52 = arith.constant 0 : index
    %c0_53 = arith.constant 0 : index
    %92 = vector.load %arg8[%c1_51, %c0_52, %c0_53] : memref<5x160x128xbf16, #tpu.memory_space<vmem>>, vector<1x160x128xbf16>
    %93 = vector.shape_cast %92 : vector<1x160x128xbf16> to vector<160x128xbf16>
    %cst_54 = arith.constant dense<0.000000e+00> : vector<16x128xf32>
    %94 = tpu.matmul %91, %93, %cst_54 {dimension_numbers = #tpu.dot_dimension_numbers<[1], [0], [0], [1], [0, 0, 1, 1], [], []>} : vector<16x160xbf16>, vector<160x128xbf16>, vector<16x128xf32> -> vector<16x128xf32>
    %95 = arith.addf %90, %94 : vector<16x128xf32>
    %96 = vector.extract_strided_slice %83 {offsets = [32, 0], sizes = [16, 160], strides = [1, 1]} : vector<80x160xbf16> to vector<16x160xbf16>
    %c2_55 = arith.constant 2 : index
    %c0_56 = arith.constant 0 : index
    %c0_57 = arith.constant 0 : index
    %97 = vector.load %arg8[%c2_55, %c0_56, %c0_57] : memref<5x160x128xbf16, #tpu.memory_space<vmem>>, vector<1x160x128xbf16>
    %98 = vector.shape_cast %97 : vector<1x160x128xbf16> to vector<160x128xbf16>
    %cst_58 = arith.constant dense<0.000000e+00> : vector<16x128xf32>
    %99 = tpu.matmul %96, %98, %cst_58 {dimension_numbers = #tpu.dot_dimension_numbers<[1], [0], [0], [1], [0, 0, 1, 1], [], []>} : vector<16x160xbf16>, vector<160x128xbf16>, vector<16x128xf32> -> vector<16x128xf32>
    %100 = arith.addf %95, %99 : vector<16x128xf32>
    %101 = vector.extract_strided_slice %83 {offsets = [48, 0], sizes = [16, 160], strides = [1, 1]} : vector<80x160xbf16> to vector<16x160xbf16>
    %c3 = arith.constant 3 : index
    %c0_59 = arith.constant 0 : index
    %c0_60 = arith.constant 0 : index
    %102 = vector.load %arg8[%c3, %c0_59, %c0_60] : memref<5x160x128xbf16, #tpu.memory_space<vmem>>, vector<1x160x128xbf16>
    %103 = vector.shape_cast %102 : vector<1x160x128xbf16> to vector<160x128xbf16>
    %cst_61 = arith.constant dense<0.000000e+00> : vector<16x128xf32>
    %104 = tpu.matmul %101, %103, %cst_61 {dimension_numbers = #tpu.dot_dimension_numbers<[1], [0], [0], [1], [0, 0, 1, 1], [], []>} : vector<16x160xbf16>, vector<160x128xbf16>, vector<16x128xf32> -> vector<16x128xf32>
    %105 = arith.addf %100, %104 : vector<16x128xf32>
    %106 = vector.extract_strided_slice %83 {offsets = [64, 0], sizes = [16, 160], strides = [1, 1]} : vector<80x160xbf16> to vector<16x160xbf16>
    %c4 = arith.constant 4 : index
    %c0_62 = arith.constant 0 : index
    %c0_63 = arith.constant 0 : index
    %107 = vector.load %arg8[%c4, %c0_62, %c0_63] : memref<5x160x128xbf16, #tpu.memory_space<vmem>>, vector<1x160x128xbf16>
    %108 = vector.shape_cast %107 : vector<1x160x128xbf16> to vector<160x128xbf16>
    %cst_64 = arith.constant dense<0.000000e+00> : vector<16x128xf32>
    %109 = tpu.matmul %106, %108, %cst_64 {dimension_numbers = #tpu.dot_dimension_numbers<[1], [0], [0], [1], [0, 0, 1, 1], [], []>} : vector<16x160xbf16>, vector<160x128xbf16>, vector<16x128xf32> -> vector<16x128xf32>
    %110 = arith.addf %105, %109 : vector<16x128xf32>
    %cst_65 = arith.constant 2.000000e-01 : f32
    %111 = vector.broadcast %cst_65 : f32 to vector<16x128xf32>
    %112 = arith.mulf %111, %110 : vector<16x128xf32>
    %113 = arith.maximumf %110, %112 : vector<16x128xf32>
    %114 = arith.truncf %113 : vector<16x128xf32> to vector<16x128xbf16>
    %c0_66 = arith.constant 0 : index
    %c0_67 = arith.constant 0 : index
    %115 = vector.load %arg10[%c0_66, %c0_67] : memref<128x128xbf16, #tpu.memory_space<vmem>>, vector<128x128xbf16>
    %cst_68 = arith.constant dense<0.000000e+00> : vector<16x128xf32>
    %116 = tpu.matmul %114, %115, %cst_68 {dimension_numbers = #tpu.dot_dimension_numbers<[1], [0], [0], [1], [0, 0, 1, 1], [], []>} : vector<16x128xbf16>, vector<128x128xbf16>, vector<16x128xf32> -> vector<16x128xf32>
    %c0_69 = arith.constant 0 : index
    %c0_70 = arith.constant 0 : index
    %117 = vector.load %arg11[%c0_69, %c0_70] : memref<1x128xf32, #tpu.memory_space<vmem>>, vector<1x128xf32>
    %118 = vector.broadcast %117 : vector<1x128xf32> to vector<16x128xf32>
    %119 = arith.addf %116, %118 : vector<16x128xf32>
    %cst_71 = arith.constant 0.000000e+00 : f32
    %120 = vector.broadcast %cst_71 : f32 to vector<16x128xf32>
    %121 = arith.subf %120, %119 : vector<16x128xf32>
    %122 = math.exp %121 : vector<16x128xf32>
    %cst_72 = arith.constant 1.000000e+00 : f32
    %123 = vector.broadcast %cst_72 : f32 to vector<16x128xf32>
    %124 = arith.addf %123, %122 : vector<16x128xf32>
    %cst_73 = arith.constant 1.000000e+00 : f32
    %125 = vector.broadcast %cst_73 : f32 to vector<16x128xf32>
    %126 = arith.divf %125, %124 : vector<16x128xf32>
    %c0_74 = arith.constant 0 : index
    %c0_75 = arith.constant 0 : index
    %127 = vector.load %arg12[%c0_74, %c0_75] : memref<16x128xf32, #tpu.memory_space<vmem>>, vector<16x128xf32>
    tpu.vector_store %arg12[%c0_74, %c0_75], %126 {strides = array<i32>} : memref<16x128xf32, #tpu.memory_space<vmem>>, vector<16x128xf32>,
    return
  }
  func.func @transform_0(%arg0: i32) -> (i32, i32, i32, i32) {
    %c0_i32 = arith.constant 0 : i32
    %c0_i32_0 = arith.constant 0 : i32
    %c0_i32_1 = arith.constant 0 : i32
    %c0_i32_2 = arith.constant 0 : i32
    return %c0_i32, %c0_i32_0, %arg0, %c0_i32_1 : i32, i32, i32, i32
  }
  func.func @transform_1(%arg0: i32) -> (i32, i32, i32) {
    %c0_i32 = arith.constant 0 : i32
    %c0_i32_0 = arith.constant 0 : i32
    %c0_i32_1 = arith.constant 0 : i32
    %c0_i32_2 = arith.constant 0 : i32
    return %c0_i32, %c0_i32_0, %c0_i32_1 : i32, i32, i32
  }
  func.func @transform_2(%arg0: i32) -> (i32, i32) {
    %c0_i32 = arith.constant 0 : i32
    %c0_i32_0 = arith.constant 0 : i32
    %c0_i32_1 = arith.constant 0 : i32
    return %c0_i32, %c0_i32_0 : i32, i32
  }
  func.func @transform_3(%arg0: i32) -> (i32, i32, i32) {
    %c0_i32 = arith.constant 0 : i32
    %c0_i32_0 = arith.constant 0 : i32
    %c0_i32_1 = arith.constant 0 : i32
    %c0_i32_2 = arith.constant 0 : i32
    return %c0_i32, %c0_i32_0, %c0_i32_1 : i32, i32, i32
  }
  func.func @transform_4(%arg0: i32) -> (i32, i32) {
    %c0_i32 = arith.constant 0 : i32
    %c0_i32_0 = arith.constant 0 : i32
    %c0_i32_1 = arith.constant 0 : i32
    return %c0_i32, %c0_i32_0 : i32, i32
  }
  func.func @transform_5(%arg0: i32) -> (i32, i32, i32) {
    %c0_i32 = arith.constant 0 : i32
    %c0_i32_0 = arith.constant 0 : i32
    %c0_i32_1 = arith.constant 0 : i32
    %c0_i32_2 = arith.constant 0 : i32
    return %c0_i32, %c0_i32_0, %c0_i32_1 : i32, i32, i32
  }
  func.func @transform_6(%arg0: i32) -> (i32, i32) {
    %c0_i32 = arith.constant 0 : i32
    %c0_i32_0 = arith.constant 0 : i32
    %c0_i32_1 = arith.constant 0 : i32
    return %c0_i32, %c0_i32_0 : i32, i32
  }
  func.func @transform_7(%arg0: i32) -> (i32, i32, i32) {
    %c0_i32 = arith.constant 0 : i32
    %c0_i32_0 = arith.constant 0 : i32
    %c0_i32_1 = arith.constant 0 : i32
    %c0_i32_2 = arith.constant 0 : i32
    return %c0_i32, %c0_i32_0, %c0_i32_1 : i32, i32, i32
  }
  func.func @transform_8(%arg0: i32) -> (i32, i32) {
    %c0_i32 = arith.constant 0 : i32
    %c0_i32_0 = arith.constant 0 : i32
    %c0_i32_1 = arith.constant 0 : i32
    return %c0_i32, %c0_i32_0 : i32, i32
  }
  func.func @transform_9(%arg0: i32) -> (i32, i32) {
    %c0_i32 = arith.constant 0 : i32
    %c0_i32_0 = arith.constant 0 : i32
    %c0_i32_1 = arith.constant 0 : i32
    return %c0_i32, %c0_i32_0 : i32, i32
  }
  func.func @transform_10(%arg0: i32) -> (i32, i32) {
    %c0_i32 = arith.constant 0 : i32
    %c0_i32_0 = arith.constant 0 : i32
    %c0_i32_1 = arith.constant 0 : i32
    return %c0_i32, %c0_i32_0 : i32, i32
  }
  func.func @transform_11(%arg0: i32) -> (i32, i32) {
    %c0_i32 = arith.constant 0 : i32
    %c0_i32_0 = arith.constant 0 : i32
    return %arg0, %c0_i32 : i32, i32
  }
}

</mosaic_0001>

<llo_original>
// kernel: discriminator_forward.1
$region0: #{discriminator_forward.1}
  #allocation0 [shape = 'u32[]', space=smem, size = 0x4, offset = 0x4, fixed_abs, tag = 'smem constant byte address 0x4 - core index']
  #allocation1 [shape = 'u32[144,128]{1,0:T(1,128)}', space=vmem, size = 0x12000, scoped, tag = 'internal scratch']
  %s0 = inlined_call_operand.vmem [shape: bf16[27,2,16,47], index: 0, kind: input, shape index: {}]
  %s1 = inlined_call_operand.vmem [shape: bf16[3,47,736], index: 1, kind: input, shape index: {}]
  %s2 = inlined_call_operand.vmem [shape: f32[1,736], index: 2, kind: input, shape index: {}]
  %s3 = inlined_call_operand.vmem [shape: bf16[3,736,352], index: 3, kind: input, shape index: {}]
  %s4 = inlined_call_operand.vmem [shape: f32[1,352], index: 4, kind: input, shape index: {}]
  %s5 = inlined_call_operand.vmem [shape: bf16[3,352,160], index: 5, kind: input, shape index: {}]
  %s6 = inlined_call_operand.vmem [shape: f32[1,160], index: 6, kind: input, shape index: {}]
  %s7 = inlined_call_operand.vmem [shape: bf16[5,160,128], index: 7, kind: input, shape index: {}]
  %s8 = inlined_call_operand.vmem [shape: f32[1,128], index: 8, kind: input, shape index: {}]
  %s9 = inlined_call_operand.vmem [shape: bf16[128,128], index: 9, kind: input, shape index: {}]
  %s10 = inlined_call_operand.vmem [shape: f32[1,128], index: 10, kind: input, shape index: {}]
  %s11 = inlined_call_operand.vmem [shape: f32[16,128], index: 11, kind: output, shape index: {}]
  %s12 = sld [smem:[#allocation0]]
  $region54: #{discriminator_forward.1} parent=0
    _
  %s14 = ssub.s32 1, %s12
  %s15 = scalar_select 0, %s14, %s12
  // Predicated region
  $region2: #{discriminator_forward.1} parent=0 // pred_check
    _
  $region3: #{discriminator_forward.1} parent=0 // pred_check_branch
    %17 = sbr.rel (0) target = $region5
  $region4: #{discriminator_forward.1} parent=0 // pred_region
    _
  $region5: #{discriminator_forward.1} parent=0 // pred_fallthru
    _
  // Predicated region
  $region6: #{discriminator_forward.1} parent=0 // pred_check
    _
  $region7: #{discriminator_forward.1} parent=0 // pred_check_branch
    %19 = sbr.rel (0) target = $region9
  $region8: #{discriminator_forward.1} parent=0 // pred_region
    _
  $region9: #{discriminator_forward.1} parent=0 // pred_fallthru
    _
  // Predicated region
  $region10: #{discriminator_forward.1} parent=0 // pred_check
    _
  $region11: #{discriminator_forward.1} parent=0 // pred_check_branch
    %21 = sbr.rel (0) target = $region13
  $region12: #{discriminator_forward.1} parent=0 // pred_region
    _
  $region13: #{discriminator_forward.1} parent=0 // pred_fallthru
    _
  // Predicated region
  $region14: #{discriminator_forward.1} parent=0 // pred_check
    _
  $region15: #{discriminator_forward.1} parent=0 // pred_check_branch
    %23 = sbr.rel (0) target = $region17
  $region16: #{discriminator_forward.1} parent=0 // pred_region
    _
  $region17: #{discriminator_forward.1} parent=0 // pred_fallthru
    _
  // Predicated region
  $region18: #{discriminator_forward.1} parent=0 // pred_check
    _
  $region19: #{discriminator_forward.1} parent=0 // pred_check_branch
    %25 = sbr.rel (0) target = $region21
  $region20: #{discriminator_forward.1} parent=0 // pred_region
    _
  $region21: #{discriminator_forward.1} parent=0 // pred_fallthru
    _
  // Predicated region
  $region22: #{discriminator_forward.1} parent=0 // pred_check
    _
  $region23: #{discriminator_forward.1} parent=0 // pred_check_branch
    %27 = sbr.rel (0) target = $region25
  $region24: #{discriminator_forward.1} parent=0 // pred_region
    _
  $region25: #{discriminator_forward.1} parent=0 // pred_fallthru
    _
  // Predicated region
  $region26: #{discriminator_forward.1} parent=0 // pred_check
    _
  $region27: #{discriminator_forward.1} parent=0 // pred_check_branch
    %29 = sbr.rel (0) target = $region29
  $region28: #{discriminator_forward.1} parent=0 // pred_region
    _
  $region29: #{discriminator_forward.1} parent=0 // pred_fallthru
    _
  // Predicated region
  $region30: #{discriminator_forward.1} parent=0 // pred_check
    _
  $region31: #{discriminator_forward.1} parent=0 // pred_check_branch
    %31 = sbr.rel (0) target = $region33
  $region32: #{discriminator_forward.1} parent=0 // pred_region
    _
  $region33: #{discriminator_forward.1} parent=0 // pred_fallthru
    _
  // Predicated region
  $region34: #{discriminator_forward.1} parent=0 // pred_check
    _
  $region35: #{discriminator_forward.1} parent=0 // pred_check_branch
    %33 = sbr.rel (0) target = $region37
  $region36: #{discriminator_forward.1} parent=0 // pred_region
    _
  $region37: #{discriminator_forward.1} parent=0 // pred_fallthru
    _
  // Predicated region
  $region38: #{discriminator_forward.1} parent=0 // pred_check
    _
  $region39: #{discriminator_forward.1} parent=0 // pred_check_branch
    %35 = sbr.rel (0) target = $region41
  $region40: #{discriminator_forward.1} parent=0 // pred_region
    _
  $region41: #{discriminator_forward.1} parent=0 // pred_fallthru
    _
  // Predicated region
  $region42: #{discriminator_forward.1} parent=0 // pred_check
    _
  $region43: #{discriminator_forward.1} parent=0 // pred_check_branch
    %37 = sbr.rel (0) target = $region45
  $region44: #{discriminator_forward.1} parent=0 // pred_region
    _
  $region45: #{discriminator_forward.1} parent=0 // pred_fallthru
    _
  %v39 = vld [vmem:[%s0] sm:$0xf]
  %v40 = vld [vmem:[%s0 + $0x4] sm:$0xf]
  %v41 = vld [vmem:[%s0 + $0x8] sm:$0xf]
  %v42 = vld [vmem:[%s0 + $0xc] sm:$0xf]
  %v43 = vld [vmem:[%s0 + $0x10] sm:$0xf]
  %v44 = vld [vmem:[%s0 + $0x14] sm:$0xf]
  %v45 = vld [vmem:[%s0 + $0x18] sm:$0xf]
  %v46 = vld [vmem:[%s0 + $0x1c] sm:$0xf]
  %v47 = vld [vmem:[%s0 + $0x20] sm:$0xf]
  %v48 = vld [vmem:[%s0 + $0x24] sm:$0xf]
  %v49 = vld [vmem:[%s0 + $0x28] sm:$0xf]
  %v50 = vld [vmem:[%s0 + $0x2c] sm:$0xf]
  %v51 = vld [vmem:[%s0 + $0x30] sm:$0xf]
  %v52 = vld [vmem:[%s0 + $0x34] sm:$0xf]
  %v53 = vld [vmem:[%s0 + $0x38] sm:$0xf]
  %v54 = vld [vmem:[%s0 + $0x3c] sm:$0xf]
  %v55 = vld [vmem:[%s0 + $0x40] sm:$0xf]
  %v56 = vld [vmem:[%s0 + $0x44] sm:$0xf]
  %v57 = vld [vmem:[%s0 + $0x48] sm:$0xf]
  %v58 = vld [vmem:[%s0 + $0x4c] sm:$0xf]
  %v59 = vld [vmem:[%s0 + $0x50] sm:$0xf]
  %v60 = vld [vmem:[%s0 + $0x54] sm:$0xf]
  %v61 = vld [vmem:[%s0 + $0x58] sm:$0xf]
  %v62 = vld [vmem:[%s0 + $0x5c] sm:$0xf]
  %v63 = vld [vmem:[%s0 + $0x60] sm:$0xf]
  %v64 = vld [vmem:[%s0 + $0x64] sm:$0xf]
  %v65 = vld [vmem:[%s0 + $0x68] sm:$0xf]
  %v66 = vld [vmem:[%s0 + $0x6c] sm:$0xf]
  %v67 = vld [vmem:[%s0 + $0x70] sm:$0xf]
  %v68 = vld [vmem:[%s0 + $0x74] sm:$0xf]
  %v69 = vld [vmem:[%s0 + $0x78] sm:$0xf]
  %v70 = vld [vmem:[%s0 + $0x7c] sm:$0xf]
  %v71 = vld [vmem:[%s0 + $0x80] sm:$0xf]
  %v72 = vld [vmem:[%s0 + $0x84] sm:$0xf]
  %v73 = vld [vmem:[%s0 + $0x88] sm:$0xf]
  %v74 = vld [vmem:[%s0 + $0x8c] sm:$0xf]
  %v75 = vld [vmem:[%s0 + $0x90] sm:$0xf]
  %v76 = vld [vmem:[%s0 + $0x94] sm:$0xf]
  %v77 = vld [vmem:[%s0 + $0x98] sm:$0xf]
  %v78 = vld [vmem:[%s0 + $0x9c] sm:$0xf]
  %v79 = vld [vmem:[%s0 + $0xa0] sm:$0xf]
  %v80 = vld [vmem:[%s0 + $0xa4] sm:$0xf]
  %v81 = vld [vmem:[%s0 + $0xa8] sm:$0xf]
  %v82 = vld [vmem:[%s0 + $0xac] sm:$0xf]
  %v83 = vld [vmem:[%s0 + $0xb0] sm:$0xf]
  %v84 = vld [vmem:[%s0 + $0xb4] sm:$0xf]
  %v85 = vld [vmem:[%s0 + $0xb8] sm:$0xf]
  %v86 = vld [vmem:[%s0 + $0xbc] sm:$0xf]
  %v87 = vld [vmem:[%s0 + $0xc0] sm:$0xf]
  %v88 = vld [vmem:[%s0 + $0xc4] sm:$0xf]
  %v89 = vld [vmem:[%s0 + $0xc8] sm:$0xf]
  %v90 = vld [vmem:[%s0 + $0xcc] sm:$0xf]
  %v91 = vld [vmem:[%s0 + $0xd0] sm:$0xf]
  %v92 = vld [vmem:[%s0 + $0xd4] sm:$0xf]
  %v93 = vld [vmem:[%s0 + $0xd8] sm:$0xf]
  %v94 = vld [vmem:[%s0 + $0xdc] sm:$0xf]
  %v95 = vld [vmem:[%s0 + $0xe0] sm:$0xf]
  %v96 = vld [vmem:[%s0 + $0xe4] sm:$0xf]
  %v97 = vld [vmem:[%s0 + $0xe8] sm:$0xf]
  %v98 = vld [vmem:[%s0 + $0xec] sm:$0xf]
  %v99 = vld [vmem:[%s0 + $0xf0] sm:$0xf]
  %v100 = vld [vmem:[%s0 + $0xf4] sm:$0xf]
  %v101 = vld [vmem:[%s0 + $0xf8] sm:$0xf]
  %v102 = vld [vmem:[%s0 + $0xfc] sm:$0xf]
  %v103 = vld [vmem:[%s0 + $0x100] sm:$0xf]
  %v104 = vld [vmem:[%s0 + $0x104] sm:$0xf]
  %v105 = vld [vmem:[%s0 + $0x108] sm:$0xf]
  %v106 = vld [vmem:[%s0 + $0x10c] sm:$0xf]
  %v107 = vld [vmem:[%s0 + $0x110] sm:$0xf]
  %v108 = vld [vmem:[%s0 + $0x114] sm:$0xf]
  %v109 = vld [vmem:[%s0 + $0x118] sm:$0xf]
  %v110 = vld [vmem:[%s0 + $0x11c] sm:$0xf]
  %v111 = vld [vmem:[%s0 + $0x120] sm:$0xf]
  %v112 = vld [vmem:[%s0 + $0x124] sm:$0xf]
  %v113 = vld [vmem:[%s0 + $0x128] sm:$0xf]
  %v114 = vld [vmem:[%s0 + $0x12c] sm:$0xf]
  %v115 = vld [vmem:[%s0 + $0x130] sm:$0xf]
  %v116 = vld [vmem:[%s0 + $0x134] sm:$0xf]
  %v117 = vld [vmem:[%s0 + $0x138] sm:$0xf]
  %v118 = vld [vmem:[%s0 + $0x13c] sm:$0xf]
  %v119 = vld [vmem:[%s0 + $0x140] sm:$0xf]
  %v120 = vld [vmem:[%s0 + $0x144] sm:$0xf]
  %v121 = vld [vmem:[%s0 + $0x148] sm:$0xf]
  %v122 = vld [vmem:[%s0 + $0x14c] sm:$0xf]
  %v123 = vld [vmem:[%s0 + $0x150] sm:$0xf]
  %v124 = vld [vmem:[%s0 + $0x154] sm:$0xf]
  %v125 = vld [vmem:[%s0 + $0x158] sm:$0xf]
  %v126 = vld [vmem:[%s0 + $0x15c] sm:$0xf]
  %v127 = vld [vmem:[%s0 + $0x160] sm:$0xf]
  %v128 = vld [vmem:[%s0 + $0x164] sm:$0xf]
  %v129 = vld [vmem:[%s0 + $0x168] sm:$0xf]
  %v130 = vld [vmem:[%s0 + $0x16c] sm:$0xf]
  %v131 = vld [vmem:[%s0 + $0x170] sm:$0xf]
  %v132 = vld [vmem:[%s0 + $0x174] sm:$0xf]
  %v133 = vld [vmem:[%s0 + $0x178] sm:$0xf]
  %v134 = vld [vmem:[%s0 + $0x17c] sm:$0xf]
  %v135 = vld [vmem:[%s0 + $0x180] sm:$0xf]
  %v136 = vld [vmem:[%s0 + $0x184] sm:$0xf]
  %v137 = vld [vmem:[%s0 + $0x188] sm:$0xf]
  %v138 = vld [vmem:[%s0 + $0x18c] sm:$0xf]
  %v139 = vld [vmem:[%s0 + $0x190] sm:$0xf]
  %v140 = vld [vmem:[%s0 + $0x194] sm:$0xf]
  %v141 = vld [vmem:[%s0 + $0x198] sm:$0xf]
  %v142 = vld [vmem:[%s0 + $0x19c] sm:$0xf]
  %v143 = vld [vmem:[%s0 + $0x1a0] sm:$0xf]
  %v144 = vld [vmem:[%s0 + $0x1a4] sm:$0xf]
  %v145 = vld [vmem:[%s1] sm:$0xff]
  %v146 = vld [vmem:[%s1 + $0x8] sm:$0xff]
  %v147 = vld [vmem:[%s1 + $0x10] sm:$0xff]
  %v148 = vld [vmem:[%s1 + $0x18] sm:$0xff]
  %v149 = vld [vmem:[%s1 + $0x20] sm:$0xff]
  %v150 = vld [vmem:[%s1 + $0x28] sm:$0xff]
  %v151 = vld [vmem:[%s1 + $0x30] sm:$0xff]
  %v152 = vld [vmem:[%s1 + $0x38] sm:$0xff]
  %v153 = vld [vmem:[%s1 + $0x40] sm:$0xff]
  %v154 = vld [vmem:[%s1 + $0x48] sm:$0xff]
  %v155 = vld [vmem:[%s1 + $0x50] sm:$0xff]
  %v156 = vld [vmem:[%s1 + $0x58] sm:$0xff]
  %v157 = vld [vmem:[%s1 + $0x60] sm:$0xff]
  %v158 = vld [vmem:[%s1 + $0x68] sm:$0xff]
  %v159 = vld [vmem:[%s1 + $0x70] sm:$0xff]
  %v160 = vld [vmem:[%s1 + $0x78] sm:$0xff]
  %v161 = vld [vmem:[%s1 + $0x80] sm:$0xff]
  %v162 = vld [vmem:[%s1 + $0x88] sm:$0xff]
  %s163 = scalar_lea.vmem %s1, 144
  %v164 = vld [vmem:[%s163] sm:$0xff]
  %v165 = vld [vmem:[%s163 + $0x8] sm:$0xff]
  %v166 = vld [vmem:[%s163 + $0x10] sm:$0xff]
  %v167 = vld [vmem:[%s163 + $0x18] sm:$0xff]
  %v168 = vld [vmem:[%s163 + $0x20] sm:$0xff]
  %v169 = vld [vmem:[%s163 + $0x28] sm:$0xff]
  %v170 = vld [vmem:[%s163 + $0x30] sm:$0xff]
  %v171 = vld [vmem:[%s163 + $0x38] sm:$0xff]
  %v172 = vld [vmem:[%s163 + $0x40] sm:$0xff]
  %v173 = vld [vmem:[%s163 + $0x48] sm:$0xff]
  %v174 = vld [vmem:[%s163 + $0x50] sm:$0xff]
  %v175 = vld [vmem:[%s163 + $0x58] sm:$0xff]
  %v176 = vld [vmem:[%s163 + $0x60] sm:$0xff]
  %v177 = vld [vmem:[%s163 + $0x68] sm:$0xff]
  %v178 = vld [vmem:[%s163 + $0x70] sm:$0xff]
  %v179 = vld [vmem:[%s163 + $0x78] sm:$0xff]
  %v180 = vld [vmem:[%s163 + $0x80] sm:$0xff]
  %v181 = vld [vmem:[%s163 + $0x88] sm:$0xff]
  %v234 = vunpack.c.l.b16 %v41
  %v235 = vunpack.c.l.b16 %v42
  %v236 = vunpack.c.l.b16 %v45
  %v237 = vunpack.c.l.b16 %v46
  %v238 = vunpack.c.l.b16 %v49
  %v239 = vunpack.c.l.b16 %v50
  %v240 = vunpack.c.l.b16 %v53
  %v241 = vunpack.c.l.b16 %v54
  %v242 = vunpack.c.l.b16 %v57
  %v243 = vunpack.c.l.b16 %v58
  %v244 = vunpack.c.l.b16 %v61
  %v245 = vunpack.c.l.b16 %v62
  %v246 = vunpack.c.l.b16 %v65
  %v247 = vunpack.c.l.b16 %v66
  %v248 = vunpack.c.l.b16 %v69
  %v249 = vunpack.c.l.b16 %v70
  %v250 = vunpack.c.l.b16 %v73
  %v251 = vunpack.c.l.b16 %v74
  %v252 = vunpack.c.l.b16 %v77
  %v253 = vunpack.c.l.b16 %v78
  %v254 = vunpack.c.l.b16 %v81
  %v255 = vunpack.c.l.b16 %v82
  %v256 = vunpack.c.l.b16 %v85
  %v257 = vunpack.c.l.b16 %v86
  %v258 = vunpack.c.l.b16 %v89
  %v259 = vunpack.c.l.b16 %v90
  %v260 = vunpack.c.l.b16 %v93
  %v261 = vunpack.c.l.b16 %v94
  %v262 = vunpack.c.l.b16 %v97
  %v263 = vunpack.c.l.b16 %v98
  %v264 = vunpack.c.l.b16 %v101
  %v265 = vunpack.c.l.b16 %v102
  %v266 = vunpack.c.l.b16 %v105
  %v267 = vunpack.c.l.b16 %v106
  %v268 = vunpack.c.l.b16 %v109
  %v269 = vunpack.c.l.b16 %v110
  %v270 = vunpack.c.l.b16 %v113
  %v271 = vunpack.c.l.b16 %v114
  %v272 = vunpack.c.l.b16 %v117
  %v273 = vunpack.c.l.b16 %v118
  %v274 = vunpack.c.l.b16 %v121
  %v275 = vunpack.c.l.b16 %v122
  %v276 = vunpack.c.l.b16 %v125
  %v277 = vunpack.c.l.b16 %v126
  %v278 = vunpack.c.l.b16 %v129
  %v279 = vunpack.c.l.b16 %v130
  %v280 = vunpack.c.l.b16 %v133
  %v281 = vunpack.c.l.b16 %v134
  %v282 = vunpack.c.l.b16 %v137
  %v283 = vunpack.c.l.b16 %v138
  %v284 = vunpack.c.l.b16 %v141
  %v285 = vunpack.c.l.b16 %v142
  %v286 = vpack.c.b16 %v235, %v234
  %v287 = vpack.c.b16 %v237, %v236
  %v288 = vpack.c.b16 %v239, %v238
  %v289 = vpack.c.b16 %v241, %v240
  %v290 = vpack.c.b16 %v243, %v242
  %v291 = vpack.c.b16 %v245, %v244
  %v292 = vpack.c.b16 %v247, %v246
  %v293 = vpack.c.b16 %v249, %v248
  %v294 = vpack.c.b16 %v251, %v250
  %v295 = vpack.c.b16 %v253, %v252
  %v296 = vpack.c.b16 %v255, %v254
  %v297 = vpack.c.b16 %v257, %v256
  %v298 = vpack.c.b16 %v259, %v258
  %v299 = vpack.c.b16 %v261, %v260
  %v300 = vpack.c.b16 %v263, %v262
  %v301 = vpack.c.b16 %v265, %v264
  %v302 = vpack.c.b16 %v267, %v266
  %v303 = vpack.c.b16 %v269, %v268
  %v304 = vpack.c.b16 %v271, %v270
  %v305 = vpack.c.b16 %v273, %v272
  %v306 = vpack.c.b16 %v275, %v274
  %v307 = vpack.c.b16 %v277, %v276
  %v308 = vpack.c.b16 %v279, %v278
  %v309 = vpack.c.b16 %v281, %v280
  %v310 = vpack.c.b16 %v283, %v282
  %v311 = vpack.c.b16 %v285, %v284
  %v330 = vunpack.c.l.b16 %v164
  %v331 = vunpack.c.h.b16 %v164
  %v332 = vunpack.c.l.b16 %v165
  %v333 = vunpack.c.h.b16 %v165
  %v334 = vunpack.c.l.b16 %v166
  %v335 = vunpack.c.h.b16 %v166
  %v336 = vunpack.c.l.b16 %v167
  %v337 = vunpack.c.h.b16 %v167
  %v338 = vunpack.c.l.b16 %v168
  %v339 = vunpack.c.h.b16 %v168
  %v340 = vunpack.c.l.b16 %v169
  %v341 = vunpack.c.h.b16 %v169
  %v342 = vunpack.c.l.b16 %v170
  %v343 = vunpack.c.h.b16 %v170
  %v344 = vunpack.c.l.b16 %v171
  %v345 = vunpack.c.h.b16 %v171
  %v346 = vunpack.c.l.b16 %v172
  %v347 = vunpack.c.h.b16 %v172
  %v348 = vunpack.c.l.b16 %v173
  %v349 = vunpack.c.h.b16 %v173
  %v350 = vunpack.c.l.b16 %v174
  %v351 = vunpack.c.h.b16 %v174
  %v352 = vunpack.c.l.b16 %v175
  %v353 = vunpack.c.h.b16 %v175
  %v354 = vunpack.c.l.b16 %v176
  %v355 = vunpack.c.h.b16 %v176
  %v356 = vunpack.c.l.b16 %v177
  %v357 = vunpack.c.h.b16 %v177
  %v358 = vunpack.c.l.b16 %v178
  %v359 = vunpack.c.h.b16 %v178
  %v360 = vunpack.c.l.b16 %v179
  %v361 = vunpack.c.h.b16 %v179
  %v362 = vunpack.c.l.b16 %v180
  %v363 = vunpack.c.h.b16 %v180
  %v364 = vunpack.c.l.b16 %v181
  %v365 = vunpack.c.h.b16 %v181
  %v366 = vpack.c.b16 %v336, %v330
  %v367 = vpack.c.b16 %v337, %v331
  %v368 = vpack.c.b16 %v338, %v332
  %v369 = vpack.c.b16 %v339, %v333
  %v370 = vpack.c.b16 %v340, %v334
  %v371 = vpack.c.b16 %v341, %v335
  %v372 = vpack.c.b16 %v348, %v342
  %v373 = vpack.c.b16 %v349, %v343
  %v374 = vpack.c.b16 %v350, %v344
  %v375 = vpack.c.b16 %v351, %v345
  %v376 = vpack.c.b16 %v352, %v346
  %v377 = vpack.c.b16 %v353, %v347
  %v378 = vpack.c.b16 %v360, %v354
  %v379 = vpack.c.b16 %v361, %v355
  %v380 = vpack.c.b16 %v362, %v356
  %v381 = vpack.c.b16 %v363, %v357
  %v382 = vpack.c.b16 %v364, %v358
  %v383 = vpack.c.b16 %v365, %v359
  %vm396 = vcmask 384000
  %v398 = vsel %vm396, %v286, 0
  %v401 = vsel %vm396, %v287, 0
  %v404 = vsel %vm396, %v288, 0
  %v407 = vsel %vm396, %v289, 0
  %v410 = vsel %vm396, %v290, 0
  %v413 = vsel %vm396, %v291, 0
  %v416 = vsel %vm396, %v292, 0
  %v419 = vsel %vm396, %v293, 0
  %v422 = vsel %vm396, %v294, 0
  %v425 = vsel %vm396, %v295, 0
  %v428 = vsel %vm396, %v296, 0
  %v431 = vsel %vm396, %v297, 0
  %v434 = vsel %vm396, %v298, 0
  %v437 = vsel %vm396, %v299, 0
  %v440 = vsel %vm396, %v300, 0
  %v443 = vsel %vm396, %v301, 0
  %v446 = vsel %vm396, %v302, 0
  %v449 = vsel %vm396, %v303, 0
  %v452 = vsel %vm396, %v304, 0
  %v455 = vsel %vm396, %v305, 0
  %v458 = vsel %vm396, %v306, 0
  %v461 = vsel %vm396, %v307, 0
  %v464 = vsel %vm396, %v308, 0
  %v467 = vsel %vm396, %v309, 0
  %v470 = vsel %vm396, %v310, 0
  %v473 = vsel %vm396, %v311, 0
  %vm475 = vcmask 1046528
  %vm476 = vcmask 1047552
  %v477 = vsel %vm475, 4294967295, 65535
  %v478 = vsel %vm476, %v477, 0
  %v480 = vand.u32 %v378, %v478
  %v483 = vand.u32 %v379, %v478
  %v486 = vand.u32 %v380, %v478
  %v489 = vand.u32 %v381, %v478
  %v492 = vand.u32 %v382, %v478
  %v495 = vand.u32 %v383, %v478
  %497 = vmatprep.subr.bf16.mxu0 0
  %498 = vmatpush1.bf16.msra.mxu0 0
  %499 = vmatprep.subr.bf16.mxu0 0
  %500 = vmatpush1.bf16.msra.mxu0 0
  %501 = vmatprep.subr.bf16.mxu0 0
  %502 = vmatpush1.bf16.msra.mxu0 0
  %503 = vmatprep.subr.bf16.mxu0 0
  %504 = vmatpush1.bf16.msra.mxu0 0
  %505 = vmatprep.subr.bf16.mxu0 0
  %506 = vmatpush1.bf16.msra.mxu0 0
  %507 = vmatprep.subr.bf16.mxu0 %v483
  %508 = vmatpush1.bf16.msra.mxu0 %v480
  %509 = vmatprep.subr.bf16.mxu0 %v373
  %510 = vmatpush1.bf16.msra.mxu0 %v372
  %511 = vmatprep.subr.bf16.mxu0 %v367
  %512 = vmatpush1.bf16.msra.mxu0 %v366
  %513 = vmatprep.subr.bf16.mxu0 0
  %514 = vmatpush2.bf16.msra.mxu0 0
  %515 = vmatprep.subr.bf16.mxu0 0
  %516 = vmatpush2.bf16.msra.mxu0 0
  %517 = vmatprep.subr.bf16.mxu0 0
  %518 = vmatpush2.bf16.msra.mxu0 0
  %519 = vmatprep.subr.bf16.mxu0 0
  %520 = vmatpush2.bf16.msra.mxu0 0
  %521 = vmatprep.subr.bf16.mxu0 0
  %522 = vmatpush2.bf16.msra.mxu0 0
  %523 = vmatprep.subr.bf16.mxu0 0
  %524 = vmatpush2.bf16.msra.mxu0 0
  %525 = vmatprep.subr.bf16.mxu0 0
  %526 = vmatpush2.bf16.msra.mxu0 0
  %527 = vmatprep.subr.bf16.mxu0 0
  %528 = vmatpush2.bf16.msra.mxu0 0
  %529 = vmatprep.mubr.bf16.mxu0 0
  %530 = vmatmul.mubr.bf16.gmra.mxu0 %v398
  %v531 = vpop.f32.mrf.mxu0
  %v532 = vadd.f32 0.0, %v531
  %v533 = vpop.f32.mrf.mxu0
  %v534 = vadd.f32 0.0, %v533
  %v535 = vpop.f32.mrf.mxu0
  %v536 = vadd.f32 0.0, %v535
  %v537 = vpop.f32.mrf.mxu0
  %v538 = vadd.f32 0.0, %v537
  %539 = vmatprep.mubr.bf16.mxu0 0
  %540 = vmatmul.mubr.bf16.gmra.mxu0 %v401
  %v541 = vpop.f32.mrf.mxu0
  %v542 = vadd.f32 0.0, %v541
  %v543 = vpop.f32.mrf.mxu0
  %v544 = vadd.f32 0.0, %v543
  %v545 = vpop.f32.mrf.mxu0
  %v546 = vadd.f32 0.0, %v545
  %v547 = vpop.f32.mrf.mxu0
  %v548 = vadd.f32 0.0, %v547
  %549 = vmatprep.mubr.bf16.mxu0 0
  %550 = vmatmul.mubr.bf16.gmra.mxu0 %v404
  %v551 = vpop.f32.mrf.mxu0
  %v552 = vadd.f32 0.0, %v551
  %v553 = vpop.f32.mrf.mxu0
  %v554 = vadd.f32 0.0, %v553
  %v555 = vpop.f32.mrf.mxu0
  %v556 = vadd.f32 0.0, %v555
  %v557 = vpop.f32.mrf.mxu0
  %v558 = vadd.f32 0.0, %v557
  %559 = vmatprep.mubr.bf16.mxu0 0
  %560 = vmatmul.mubr.bf16.gmra.mxu0 %v407
  %v561 = vpop.f32.mrf.mxu0
  %v562 = vadd.f32 0.0, %v561
  %v563 = vpop.f32.mrf.mxu0
  %v564 = vadd.f32 0.0, %v563
  %v565 = vpop.f32.mrf.mxu0
  %v566 = vadd.f32 0.0, %v565
  %v567 = vpop.f32.mrf.mxu0
  %v568 = vadd.f32 0.0, %v567
  %569 = vmatprep.mubr.bf16.mxu0 0
  %570 = vmatmul.mubr.bf16.gmra.mxu0 %v410
  %v571 = vpop.f32.mrf.mxu0
  %v572 = vadd.f32 0.0, %v571
  %v573 = vpop.f32.mrf.mxu0
  %v574 = vadd.f32 0.0, %v573
  %v575 = vpop.f32.mrf.mxu0
  %v576 = vadd.f32 0.0, %v575
  %v577 = vpop.f32.mrf.mxu0
  %v578 = vadd.f32 0.0, %v577
  %579 = vmatprep.mubr.bf16.mxu0 0
  %580 = vmatmul.mubr.bf16.gmra.mxu0 %v413
  %v581 = vpop.f32.mrf.mxu0
  %v582 = vadd.f32 0.0, %v581
  %v583 = vpop.f32.mrf.mxu0
  %v584 = vadd.f32 0.0, %v583
  %v585 = vpop.f32.mrf.mxu0
  %v586 = vadd.f32 0.0, %v585
  %v587 = vpop.f32.mrf.mxu0
  %v588 = vadd.f32 0.0, %v587
  %589 = vmatprep.mubr.bf16.mxu0 0
  %590 = vmatmul.mubr.bf16.gmra.mxu0 %v416
  %v591 = vpop.f32.mrf.mxu0
  %v592 = vadd.f32 0.0, %v591
  %v593 = vpop.f32.mrf.mxu0
  %v594 = vadd.f32 0.0, %v593
  %v595 = vpop.f32.mrf.mxu0
  %v596 = vadd.f32 0.0, %v595
  %v597 = vpop.f32.mrf.mxu0
  %v598 = vadd.f32 0.0, %v597
  %599 = vmatprep.mubr.bf16.mxu0 0
  %600 = vmatmul.mubr.bf16.gmra.mxu0 %v419
  %v601 = vpop.f32.mrf.mxu0
  %v602 = vadd.f32 0.0, %v601
  %v603 = vpop.f32.mrf.mxu0
  %v604 = vadd.f32 0.0, %v603
  %v605 = vpop.f32.mrf.mxu0
  %v606 = vadd.f32 0.0, %v605
  %v607 = vpop.f32.mrf.mxu0
  %v608 = vadd.f32 0.0, %v607
  %609 = vmatprep.mubr.bf16.mxu0 0
  %610 = vmatmul.mubr.bf16.gmra.mxu0 %v422
  %v611 = vpop.f32.mrf.mxu0
  %v612 = vadd.f32 0.0, %v611
  %v613 = vpop.f32.mrf.mxu0
  %v614 = vadd.f32 0.0, %v613
  %v615 = vpop.f32.mrf.mxu0
  %v616 = vadd.f32 0.0, %v615
  %v617 = vpop.f32.mrf.mxu0
  %v618 = vadd.f32 0.0, %v617
  %619 = vmatprep.mubr.bf16.mxu0 0
  %620 = vmatmul.mubr.bf16.gmra.mxu0 %v425
  %v621 = vpop.f32.mrf.mxu0
  %v622 = vadd.f32 0.0, %v621
  %v623 = vpop.f32.mrf.mxu0
  %v624 = vadd.f32 0.0, %v623
  %v625 = vpop.f32.mrf.mxu0
  %v626 = vadd.f32 0.0, %v625
  %v627 = vpop.f32.mrf.mxu0
  %v628 = vadd.f32 0.0, %v627
  %629 = vmatprep.mubr.bf16.mxu0 0
  %630 = vmatmul.mubr.bf16.gmra.mxu0 %v428
  %v631 = vpop.f32.mrf.mxu0
  %v632 = vadd.f32 0.0, %v631
  %v633 = vpop.f32.mrf.mxu0
  %v634 = vadd.f32 0.0, %v633
  %v635 = vpop.f32.mrf.mxu0
  %v636 = vadd.f32 0.0, %v635
  %v637 = vpop.f32.mrf.mxu0
  %v638 = vadd.f32 0.0, %v637
  %639 = vmatprep.mubr.bf16.mxu0 0
  %640 = vmatmul.mubr.bf16.gmra.mxu0 %v431
  %v641 = vpop.f32.mrf.mxu0
  %v642 = vadd.f32 0.0, %v641
  %v643 = vpop.f32.mrf.mxu0
  %v644 = vadd.f32 0.0, %v643
  %v645 = vpop.f32.mrf.mxu0
  %v646 = vadd.f32 0.0, %v645
  %v647 = vpop.f32.mrf.mxu0
  %v648 = vadd.f32 0.0, %v647
  %649 = vmatprep.mubr.bf16.mxu0 0
  %650 = vmatmul.mubr.bf16.gmra.mxu0 %v434
  %v651 = vpop.f32.mrf.mxu0
  %v652 = vadd.f32 0.0, %v651
  %v653 = vpop.f32.mrf.mxu0
  %v654 = vadd.f32 0.0, %v653
  %v655 = vpop.f32.mrf.mxu0
  %v656 = vadd.f32 0.0, %v655
  %v657 = vpop.f32.mrf.mxu0
  %v658 = vadd.f32 0.0, %v657
  %659 = vmatprep.mubr.bf16.mxu0 0
  %660 = vmatmul.mubr.bf16.gmra.mxu0 %v437
  %v661 = vpop.f32.mrf.mxu0
  %v662 = vadd.f32 0.0, %v661
  %v663 = vpop.f32.mrf.mxu0
  %v664 = vadd.f32 0.0, %v663
  %v665 = vpop.f32.mrf.mxu0
  %v666 = vadd.f32 0.0, %v665
  %v667 = vpop.f32.mrf.mxu0
  %v668 = vadd.f32 0.0, %v667
  %669 = vmatprep.mubr.bf16.mxu0 0
  %670 = vmatmul.mubr.bf16.gmra.mxu0 %v440
  %v671 = vpop.f32.mrf.mxu0
  %v672 = vadd.f32 0.0, %v671
  %v673 = vpop.f32.mrf.mxu0
  %v674 = vadd.f32 0.0, %v673
  %v675 = vpop.f32.mrf.mxu0
  %v676 = vadd.f32 0.0, %v675
  %v677 = vpop.f32.mrf.mxu0
  %v678 = vadd.f32 0.0, %v677
  %679 = vmatprep.mubr.bf16.mxu0 0
  %680 = vmatmul.mubr.bf16.gmra.mxu0 %v443
  %v681 = vpop.f32.mrf.mxu0
  %v682 = vadd.f32 0.0, %v681
  %v683 = vpop.f32.mrf.mxu0
  %v684 = vadd.f32 0.0, %v683
  %v685 = vpop.f32.mrf.mxu0
  %v686 = vadd.f32 0.0, %v685
  %v687 = vpop.f32.mrf.mxu0
  %v688 = vadd.f32 0.0, %v687
  %689 = vmatprep.mubr.bf16.mxu0 0
  %690 = vmatmul.mubr.bf16.gmra.mxu0 %v446
  %v691 = vpop.f32.mrf.mxu0
  %v692 = vadd.f32 0.0, %v691
  %v693 = vpop.f32.mrf.mxu0
  %v694 = vadd.f32 0.0, %v693
  %v695 = vpop.f32.mrf.mxu0
  %v696 = vadd.f32 0.0, %v695
  %v697 = vpop.f32.mrf.mxu0
  %v698 = vadd.f32 0.0, %v697
  %699 = vmatprep.mubr.bf16.mxu0 0
  %700 = vmatmul.mubr.bf16.gmra.mxu0 %v449
  %v701 = vpop.f32.mrf.mxu0
  %v702 = vadd.f32 0.0, %v701
  %v703 = vpop.f32.mrf.mxu0
  %v704 = vadd.f32 0.0, %v703
  %v705 = vpop.f32.mrf.mxu0
  %v706 = vadd.f32 0.0, %v705
  %v707 = vpop.f32.mrf.mxu0
  %v708 = vadd.f32 0.0, %v707
  %709 = vmatprep.mubr.bf16.mxu0 0
  %710 = vmatmul.mubr.bf16.gmra.mxu0 %v452
  %v711 = vpop.f32.mrf.mxu0
  %v712 = vadd.f32 0.0, %v711
  %v713 = vpop.f32.mrf.mxu0
  %v714 = vadd.f32 0.0, %v713
  %v715 = vpop.f32.mrf.mxu0
  %v716 = vadd.f32 0.0, %v715
  %v717 = vpop.f32.mrf.mxu0
  %v718 = vadd.f32 0.0, %v717
  %719 = vmatprep.mubr.bf16.mxu0 0
  %720 = vmatmul.mubr.bf16.gmra.mxu0 %v455
  %v721 = vpop.f32.mrf.mxu0
  %v722 = vadd.f32 0.0, %v721
  %v723 = vpop.f32.mrf.mxu0
  %v724 = vadd.f32 0.0, %v723
  %v725 = vpop.f32.mrf.mxu0
  %v726 = vadd.f32 0.0, %v725
  %v727 = vpop.f32.mrf.mxu0
  %v728 = vadd.f32 0.0, %v727
  %729 = vmatprep.mubr.bf16.mxu0 0
  %730 = vmatmul.mubr.bf16.gmra.mxu0 %v458
  %v731 = vpop.f32.mrf.mxu0
  %v732 = vadd.f32 0.0, %v731
  %v733 = vpop.f32.mrf.mxu0
  %v734 = vadd.f32 0.0, %v733
  %v735 = vpop.f32.mrf.mxu0
  %v736 = vadd.f32 0.0, %v735
  %v737 = vpop.f32.mrf.mxu0
  %v738 = vadd.f32 0.0, %v737
  %739 = vmatprep.mubr.bf16.mxu0 0
  %740 = vmatmul.mubr.bf16.gmra.mxu0 %v461
  %v741 = vpop.f32.mrf.mxu0
  %v742 = vadd.f32 0.0, %v741
  %v743 = vpop.f32.mrf.mxu0
  %v744 = vadd.f32 0.0, %v743
  %v745 = vpop.f32.mrf.mxu0
  %v746 = vadd.f32 0.0, %v745
  %v747 = vpop.f32.mrf.mxu0
  %v748 = vadd.f32 0.0, %v747
  %749 = vmatprep.mubr.bf16.mxu0 0
  %750 = vmatmul.mubr.bf16.gmra.mxu0 %v464
  %v751 = vpop.f32.mrf.mxu0
  %v752 = vadd.f32 0.0, %v751
  %v753 = vpop.f32.mrf.mxu0
  %v754 = vadd.f32 0.0, %v753
  %v755 = vpop.f32.mrf.mxu0
  %v756 = vadd.f32 0.0, %v755
  %v757 = vpop.f32.mrf.mxu0
  %v758 = vadd.f32 0.0, %v757
  %759 = vmatprep.mubr.bf16.mxu0 0
  %760 = vmatmul.mubr.bf16.gmra.mxu0 %v467
  %v761 = vpop.f32.mrf.mxu0
  %v762 = vadd.f32 0.0, %v761
  %v763 = vpop.f32.mrf.mxu0
  %v764 = vadd.f32 0.0, %v763
  %v765 = vpop.f32.mrf.mxu0
  %v766 = vadd.f32 0.0, %v765
  %v767 = vpop.f32.mrf.mxu0
  %v768 = vadd.f32 0.0, %v767
  %769 = vmatprep.mubr.bf16.mxu0 0
  %770 = vmatmul.mubr.bf16.gmra.mxu0 %v470
  %v771 = vpop.f32.mrf.mxu0
  %v772 = vadd.f32 0.0, %v771
  %v773 = vpop.f32.mrf.mxu0
  %v774 = vadd.f32 0.0, %v773
  %v775 = vpop.f32.mrf.mxu0
  %v776 = vadd.f32 0.0, %v775
  %v777 = vpop.f32.mrf.mxu0
  %v778 = vadd.f32 0.0, %v777
  %779 = vmatprep.mubr.bf16.mxu0 0
  %780 = vmatmul.mubr.bf16.gmra.mxu0 %v473
  %v781 = vpop.f32.mrf.mxu0
  %v782 = vpop.f32.mrf.mxu0
  %v783 = vpop.f32.mrf.mxu0
  %v784 = vpop.f32.mrf.mxu0
  %785 = vdwg.mxu0
  %786 = vmatprep.subr.bf16.mxu0 0
  %787 = vmatpush1.bf16.msra.mxu0 0
  %788 = vmatprep.subr.bf16.mxu0 0
  %789 = vmatpush1.bf16.msra.mxu0 0
  %790 = vmatprep.subr.bf16.mxu0 0
  %791 = vmatpush1.bf16.msra.mxu0 0
  %792 = vmatprep.subr.bf16.mxu0 0
  %793 = vmatpush1.bf16.msra.mxu0 0
  %794 = vmatprep.subr.bf16.mxu0 0
  %795 = vmatpush1.bf16.msra.mxu0 0
  %796 = vmatprep.subr.bf16.mxu0 %v489
  %797 = vmatpush1.bf16.msra.mxu0 %v486
  %798 = vmatprep.subr.bf16.mxu0 %v375
  %799 = vmatpush1.bf16.msra.mxu0 %v374
  %800 = vmatprep.subr.bf16.mxu0 %v369
  %801 = vmatpush1.bf16.msra.mxu0 %v368
  %802 = vmatprep.subr.bf16.mxu0 0
  %803 = vmatpush2.bf16.msra.mxu0 0
  %804 = vmatprep.subr.bf16.mxu0 0
  %805 = vmatpush2.bf16.msra.mxu0 0
  %806 = vmatprep.subr.bf16.mxu0 0
  %807 = vmatpush2.bf16.msra.mxu0 0
  %808 = vmatprep.subr.bf16.mxu0 0
  %809 = vmatpush2.bf16.msra.mxu0 0
  %810 = vmatprep.subr.bf16.mxu0 0
  %811 = vmatpush2.bf16.msra.mxu0 0
  %812 = vmatprep.subr.bf16.mxu0 0
  %813 = vmatpush2.bf16.msra.mxu0 0
  %814 = vmatprep.subr.bf16.mxu0 0
  %815 = vmatpush2.bf16.msra.mxu0 0
  %816 = vmatprep.subr.bf16.mxu0 0
  %817 = vmatpush2.bf16.msra.mxu0 0
  %818 = vmatprep.mubr.bf16.mxu0 0
  %819 = vmatmul.mubr.bf16.gmra.mxu0 %v398
  %v820 = vpop.f32.mrf.mxu0
  %v821 = vadd.f32 0.0, %v820
  %v822 = vpop.f32.mrf.mxu0
  %v823 = vadd.f32 0.0, %v822
  %v824 = vpop.f32.mrf.mxu0
  %v825 = vadd.f32 0.0, %v824
  %v826 = vpop.f32.mrf.mxu0
  %v827 = vadd.f32 0.0, %v826
  %828 = vmatprep.mubr.bf16.mxu0 0
  %829 = vmatmul.mubr.bf16.gmra.mxu0 %v401
  %v830 = vpop.f32.mrf.mxu0
  %v831 = vadd.f32 0.0, %v830
  %v832 = vpop.f32.mrf.mxu0
  %v833 = vadd.f32 0.0, %v832
  %v834 = vpop.f32.mrf.mxu0
  %v835 = vadd.f32 0.0, %v834
  %v836 = vpop.f32.mrf.mxu0
  %v837 = vadd.f32 0.0, %v836
  %838 = vmatprep.mubr.bf16.mxu0 0
  %839 = vmatmul.mubr.bf16.gmra.mxu0 %v404
  %v840 = vpop.f32.mrf.mxu0
  %v841 = vadd.f32 0.0, %v840
  %v842 = vpop.f32.mrf.mxu0
  %v843 = vadd.f32 0.0, %v842
  %v844 = vpop.f32.mrf.mxu0
  %v845 = vadd.f32 0.0, %v844
  %v846 = vpop.f32.mrf.mxu0
  %v847 = vadd.f32 0.0, %v846
  %848 = vmatprep.mubr.bf16.mxu0 0
  %849 = vmatmul.mubr.bf16.gmra.mxu0 %v407
  %v850 = vpop.f32.mrf.mxu0
  %v851 = vadd.f32 0.0, %v850
  %v852 = vpop.f32.mrf.mxu0
  %v853 = vadd.f32 0.0, %v852
  %v854 = vpop.f32.mrf.mxu0
  %v855 = vadd.f32 0.0, %v854
  %v856 = vpop.f32.mrf.mxu0
  %v857 = vadd.f32 0.0, %v856
  %858 = vmatprep.mubr.bf16.mxu0 0
  %859 = vmatmul.mubr.bf16.gmra.mxu0 %v410
  %v860 = vpop.f32.mrf.mxu0
  %v861 = vadd.f32 0.0, %v860
  %v862 = vpop.f32.mrf.mxu0
  %v863 = vadd.f32 0.0, %v862
  %v864 = vpop.f32.mrf.mxu0
  %v865 = vadd.f32 0.0, %v864
  %v866 = vpop.f32.mrf.mxu0
  %v867 = vadd.f32 0.0, %v866
  %868 = vmatprep.mubr.bf16.mxu0 0
  %869 = vmatmul.mubr.bf16.gmra.mxu0 %v413
  %v870 = vpop.f32.mrf.mxu0
  %v871 = vadd.f32 0.0, %v870
  %v872 = vpop.f32.mrf.mxu0
  %v873 = vadd.f32 0.0, %v872
  %v874 = vpop.f32.mrf.mxu0
  %v875 = vadd.f32 0.0, %v874
  %v876 = vpop.f32.mrf.mxu0
  %v877 = vadd.f32 0.0, %v876
  %878 = vmatprep.mubr.bf16.mxu0 0
  %879 = vmatmul.mubr.bf16.gmra.mxu0 %v416
  %v880 = vpop.f32.mrf.mxu0
  %v881 = vadd.f32 0.0, %v880
  %v882 = vpop.f32.mrf.mxu0
  %v883 = vadd.f32 0.0, %v882
  %v884 = vpop.f32.mrf.mxu0
  %v885 = vadd.f32 0.0, %v884
  %v886 = vpop.f32.mrf.mxu0
  %v887 = vadd.f32 0.0, %v886
  %888 = vmatprep.mubr.bf16.mxu0 0
  %889 = vmatmul.mubr.bf16.gmra.mxu0 %v419
  %v890 = vpop.f32.mrf.mxu0
  %v891 = vadd.f32 0.0, %v890
  %v892 = vpop.f32.mrf.mxu0
  %v893 = vadd.f32 0.0, %v892
  %v894 = vpop.f32.mrf.mxu0
  %v895 = vadd.f32 0.0, %v894
  %v896 = vpop.f32.mrf.mxu0
  %v897 = vadd.f32 0.0, %v896
  %898 = vmatprep.mubr.bf16.mxu0 0
  %899 = vmatmul.mubr.bf16.gmra.mxu0 %v422
  %v900 = vpop.f32.mrf.mxu0
  %v901 = vadd.f32 0.0, %v900
  %v902 = vpop.f32.mrf.mxu0
  %v903 = vadd.f32 0.0, %v902
  %v904 = vpop.f32.mrf.mxu0
  %v905 = vadd.f32 0.0, %v904
  %v906 = vpop.f32.mrf.mxu0
  %v907 = vadd.f32 0.0, %v906
  %908 = vmatprep.mubr.bf16.mxu0 0
  %909 = vmatmul.mubr.bf16.gmra.mxu0 %v425
  %v910 = vpop.f32.mrf.mxu0
  %v911 = vadd.f32 0.0, %v910
  %v912 = vpop.f32.mrf.mxu0
  %v913 = vadd.f32 0.0, %v912
  %v914 = vpop.f32.mrf.mxu0
  %v915 = vadd.f32 0.0, %v914
  %v916 = vpop.f32.mrf.mxu0
  %v917 = vadd.f32 0.0, %v916
  %918 = vmatprep.mubr.bf16.mxu0 0
  %919 = vmatmul.mubr.bf16.gmra.mxu0 %v428
  %v920 = vpop.f32.mrf.mxu0
  %v921 = vadd.f32 0.0, %v920
  %v922 = vpop.f32.mrf.mxu0
  %v923 = vadd.f32 0.0, %v922
  %v924 = vpop.f32.mrf.mxu0
  %v925 = vadd.f32 0.0, %v924
  %v926 = vpop.f32.mrf.mxu0
  %v927 = vadd.f32 0.0, %v926
  %928 = vmatprep.mubr.bf16.mxu0 0
  %929 = vmatmul.mubr.bf16.gmra.mxu0 %v431
  %v930 = vpop.f32.mrf.mxu0
  %v931 = vadd.f32 0.0, %v930
  %v932 = vpop.f32.mrf.mxu0
  %v933 = vadd.f32 0.0, %v932
  %v934 = vpop.f32.mrf.mxu0
  %v935 = vadd.f32 0.0, %v934
  %v936 = vpop.f32.mrf.mxu0
  %v937 = vadd.f32 0.0, %v936
  %938 = vmatprep.mubr.bf16.mxu0 0
  %939 = vmatmul.mubr.bf16.gmra.mxu0 %v434
  %v940 = vpop.f32.mrf.mxu0
  %v941 = vadd.f32 0.0, %v940
  %v942 = vpop.f32.mrf.mxu0
  %v943 = vadd.f32 0.0, %v942
  %v944 = vpop.f32.mrf.mxu0
  %v945 = vadd.f32 0.0, %v944
  %v946 = vpop.f32.mrf.mxu0
  %v947 = vadd.f32 0.0, %v946
  %948 = vmatprep.mubr.bf16.mxu0 0
  %949 = vmatmul.mubr.bf16.gmra.mxu0 %v437
  %v950 = vpop.f32.mrf.mxu0
  %v951 = vadd.f32 0.0, %v950
  %v952 = vpop.f32.mrf.mxu0
  %v953 = vadd.f32 0.0, %v952
  %v954 = vpop.f32.mrf.mxu0
  %v955 = vadd.f32 0.0, %v954
  %v956 = vpop.f32.mrf.mxu0
  %v957 = vadd.f32 0.0, %v956
  %958 = vmatprep.mubr.bf16.mxu0 0
  %959 = vmatmul.mubr.bf16.gmra.mxu0 %v440
  %v960 = vpop.f32.mrf.mxu0
  %v961 = vadd.f32 0.0, %v960
  %v962 = vpop.f32.mrf.mxu0
  %v963 = vadd.f32 0.0, %v962
  %v964 = vpop.f32.mrf.mxu0
  %v965 = vadd.f32 0.0, %v964
  %v966 = vpop.f32.mrf.mxu0
  %v967 = vadd.f32 0.0, %v966
  %968 = vmatprep.mubr.bf16.mxu0 0
  %969 = vmatmul.mubr.bf16.gmra.mxu0 %v443
  %v970 = vpop.f32.mrf.mxu0
  %v971 = vadd.f32 0.0, %v970
  %v972 = vpop.f32.mrf.mxu0
  %v973 = vadd.f32 0.0, %v972
  %v974 = vpop.f32.mrf.mxu0
  %v975 = vadd.f32 0.0, %v974
  %v976 = vpop.f32.mrf.mxu0
  %v977 = vadd.f32 0.0, %v976
  %978 = vmatprep.mubr.bf16.mxu0 0
  %979 = vmatmul.mubr.bf16.gmra.mxu0 %v446
  %v980 = vpop.f32.mrf.mxu0
  %v981 = vadd.f32 0.0, %v980
  %v982 = vpop.f32.mrf.mxu0
  %v983 = vadd.f32 0.0, %v982
  %v984 = vpop.f32.mrf.mxu0
  %v985 = vadd.f32 0.0, %v984
  %v986 = vpop.f32.mrf.mxu0
  %v987 = vadd.f32 0.0, %v986
  %988 = vmatprep.mubr.bf16.mxu0 0
  %989 = vmatmul.mubr.bf16.gmra.mxu0 %v449
  %v990 = vpop.f32.mrf.mxu0
  %v991 = vadd.f32 0.0, %v990
  %v992 = vpop.f32.mrf.mxu0
  %v993 = vadd.f32 0.0, %v992
  %v994 = vpop.f32.mrf.mxu0
  %v995 = vadd.f32 0.0, %v994
  %v996 = vpop.f32.mrf.mxu0
  %v997 = vadd.f32 0.0, %v996
  %998 = vmatprep.mubr.bf16.mxu0 0
  %999 = vmatmul.mubr.bf16.gmra.mxu0 %v452
  %v1000 = vpop.f32.mrf.mxu0
  %v1001 = vadd.f32 0.0, %v1000
  %v1002 = vpop.f32.mrf.mxu0
  %v1003 = vadd.f32 0.0, %v1002
  %v1004 = vpop.f32.mrf.mxu0
  %v1005 = vadd.f32 0.0, %v1004
  %v1006 = vpop.f32.mrf.mxu0
  %v1007 = vadd.f32 0.0, %v1006
  %1008 = vmatprep.mubr.bf16.mxu0 0
  %1009 = vmatmul.mubr.bf16.gmra.mxu0 %v455
  %v1010 = vpop.f32.mrf.mxu0
  %v1011 = vadd.f32 0.0, %v1010
  %v1012 = vpop.f32.mrf.mxu0
  %v1013 = vadd.f32 0.0, %v1012
  %v1014 = vpop.f32.mrf.mxu0
  %v1015 = vadd.f32 0.0, %v1014
  %v1016 = vpop.f32.mrf.mxu0
  %v1017 = vadd.f32 0.0, %v1016
  %1018 = vmatprep.mubr.bf16.mxu0 0
  %1019 = vmatmul.mubr.bf16.gmra.mxu0 %v458
  %v1020 = vpop.f32.mrf.mxu0
  %v1021 = vadd.f32 0.0, %v1020
  %v1022 = vpop.f32.mrf.mxu0
  %v1023 = vadd.f32 0.0, %v1022
  %v1024 = vpop.f32.mrf.mxu0
  %v1025 = vadd.f32 0.0, %v1024
  %v1026 = vpop.f32.mrf.mxu0
  %v1027 = vadd.f32 0.0, %v1026
  %1028 = vmatprep.mubr.bf16.mxu0 0
  %1029 = vmatmul.mubr.bf16.gmra.mxu0 %v461
  %v1030 = vpop.f32.mrf.mxu0
  %v1031 = vadd.f32 0.0, %v1030
  %v1032 = vpop.f32.mrf.mxu0
  %v1033 = vadd.f32 0.0, %v1032
  %v1034 = vpop.f32.mrf.mxu0
  %v1035 = vadd.f32 0.0, %v1034
  %v1036 = vpop.f32.mrf.mxu0
  %v1037 = vadd.f32 0.0, %v1036
  %1038 = vmatprep.mubr.bf16.mxu0 0
  %1039 = vmatmul.mubr.bf16.gmra.mxu0 %v464
  %v1040 = vpop.f32.mrf.mxu0
  %v1041 = vadd.f32 0.0, %v1040
  %v1042 = vpop.f32.mrf.mxu0
  %v1043 = vadd.f32 0.0, %v1042
  %v1044 = vpop.f32.mrf.mxu0
  %v1045 = vadd.f32 0.0, %v1044
  %v1046 = vpop.f32.mrf.mxu0
  %v1047 = vadd.f32 0.0, %v1046
  %1048 = vmatprep.mubr.bf16.mxu0 0
  %1049 = vmatmul.mubr.bf16.gmra.mxu0 %v467
  %v1050 = vpop.f32.mrf.mxu0
  %v1051 = vadd.f32 0.0, %v1050
  %v1052 = vpop.f32.mrf.mxu0
  %v1053 = vadd.f32 0.0, %v1052
  %v1054 = vpop.f32.mrf.mxu0
  %v1055 = vadd.f32 0.0, %v1054
  %v1056 = vpop.f32.mrf.mxu0
  %v1057 = vadd.f32 0.0, %v1056
  %1058 = vmatprep.mubr.bf16.mxu0 0
  %1059 = vmatmul.mubr.bf16.gmra.mxu0 %v470
  %v1060 = vpop.f32.mrf.mxu0
  %v1061 = vadd.f32 0.0, %v1060
  %v1062 = vpop.f32.mrf.mxu0
  %v1063 = vadd.f32 0.0, %v1062
  %v1064 = vpop.f32.mrf.mxu0
  %v1065 = vadd.f32 0.0, %v1064
  %v1066 = vpop.f32.mrf.mxu0
  %v1067 = vadd.f32 0.0, %v1066
  %1068 = vmatprep.mubr.bf16.mxu0 0
  %1069 = vmatmul.mubr.bf16.gmra.mxu0 %v473
  %v1070 = vpop.f32.mrf.mxu0
  %v1071 = vpop.f32.mrf.mxu0
  %v1072 = vpop.f32.mrf.mxu0
  %v1073 = vpop.f32.mrf.mxu0
  %1074 = vdwg.mxu0
  %1075 = vmatprep.subr.bf16.mxu0 0
  %1076 = vmatpush1.bf16.msra.mxu0 0
  %1077 = vmatprep.subr.bf16.mxu0 0
  %1078 = vmatpush1.bf16.msra.mxu0 0
  %1079 = vmatprep.subr.bf16.mxu0 0
  %1080 = vmatpush1.bf16.msra.mxu0 0
  %1081 = vmatprep.subr.bf16.mxu0 0
  %1082 = vmatpush1.bf16.msra.mxu0 0
  %1083 = vmatprep.subr.bf16.mxu0 0
  %1084 = vmatpush1.bf16.msra.mxu0 0
  %1085 = vmatprep.subr.bf16.mxu0 %v495
  %1086 = vmatpush1.bf16.msra.mxu0 %v492
  %1087 = vmatprep.subr.bf16.mxu0 %v377
  %1088 = vmatpush1.bf16.msra.mxu0 %v376
  %1089 = vmatprep.subr.bf16.mxu0 %v371
  %1090 = vmatpush1.bf16.msra.mxu0 %v370
  %1091 = vmatprep.subr.bf16.mxu0 0
  %1092 = vmatpush2.bf16.msra.mxu0 0
  %1093 = vmatprep.subr.bf16.mxu0 0
  %1094 = vmatpush2.bf16.msra.mxu0 0
  %1095 = vmatprep.subr.bf16.mxu0 0
  %1096 = vmatpush2.bf16.msra.mxu0 0
  %1097 = vmatprep.subr.bf16.mxu0 0
  %1098 = vmatpush2.bf16.msra.mxu0 0
  %1099 = vmatprep.subr.bf16.mxu0 0
  %1100 = vmatpush2.bf16.msra.mxu0 0
  %1101 = vmatprep.subr.bf16.mxu0 0
  %1102 = vmatpush2.bf16.msra.mxu0 0
  %1103 = vmatprep.subr.bf16.mxu0 0
  %1104 = vmatpush2.bf16.msra.mxu0 0
  %1105 = vmatprep.subr.bf16.mxu0 0
  %1106 = vmatpush2.bf16.msra.mxu0 0
  %1107 = vmatprep.mubr.bf16.mxu0 0
  %1108 = vmatmul.mubr.bf16.gmra.mxu0 %v398
  %v1109 = vpop.f32.mrf.mxu0
  %v1110 = vadd.f32 0.0, %v1109
  %v1111 = vpop.f32.mrf.mxu0
  %v1112 = vadd.f32 0.0, %v1111
  %v1113 = vpop.f32.mrf.mxu0
  %v1114 = vadd.f32 0.0, %v1113
  %v1115 = vpop.f32.mrf.mxu0
  %v1116 = vadd.f32 0.0, %v1115
  %1117 = vmatprep.mubr.bf16.mxu0 0
  %1118 = vmatmul.mubr.bf16.gmra.mxu0 %v401
  %v1119 = vpop.f32.mrf.mxu0
  %v1120 = vadd.f32 0.0, %v1119
  %v1121 = vpop.f32.mrf.mxu0
  %v1122 = vadd.f32 0.0, %v1121
  %v1123 = vpop.f32.mrf.mxu0
  %v1124 = vadd.f32 0.0, %v1123
  %v1125 = vpop.f32.mrf.mxu0
  %v1126 = vadd.f32 0.0, %v1125
  %1127 = vmatprep.mubr.bf16.mxu0 0
  %1128 = vmatmul.mubr.bf16.gmra.mxu0 %v404
  %v1129 = vpop.f32.mrf.mxu0
  %v1130 = vadd.f32 0.0, %v1129
  %v1131 = vpop.f32.mrf.mxu0
  %v1132 = vadd.f32 0.0, %v1131
  %v1133 = vpop.f32.mrf.mxu0
  %v1134 = vadd.f32 0.0, %v1133
  %v1135 = vpop.f32.mrf.mxu0
  %v1136 = vadd.f32 0.0, %v1135
  %1137 = vmatprep.mubr.bf16.mxu0 0
  %1138 = vmatmul.mubr.bf16.gmra.mxu0 %v407
  %v1139 = vpop.f32.mrf.mxu0
  %v1140 = vadd.f32 0.0, %v1139
  %v1141 = vpop.f32.mrf.mxu0
  %v1142 = vadd.f32 0.0, %v1141
  %v1143 = vpop.f32.mrf.mxu0
  %v1144 = vadd.f32 0.0, %v1143
  %v1145 = vpop.f32.mrf.mxu0
  %v1146 = vadd.f32 0.0, %v1145
  %1147 = vmatprep.mubr.bf16.mxu0 0
  %1148 = vmatmul.mubr.bf16.gmra.mxu0 %v410
  %v1149 = vpop.f32.mrf.mxu0
  %v1150 = vadd.f32 0.0, %v1149
  %v1151 = vpop.f32.mrf.mxu0
  %v1152 = vadd.f32 0.0, %v1151
  %v1153 = vpop.f32.mrf.mxu0
  %v1154 = vadd.f32 0.0, %v1153
  %v1155 = vpop.f32.mrf.mxu0
  %v1156 = vadd.f32 0.0, %v1155
  %1157 = vmatprep.mubr.bf16.mxu0 0
  %1158 = vmatmul.mubr.bf16.gmra.mxu0 %v413
  %v1159 = vpop.f32.mrf.mxu0
  %v1160 = vadd.f32 0.0, %v1159
  %v1161 = vpop.f32.mrf.mxu0
  %v1162 = vadd.f32 0.0, %v1161
  %v1163 = vpop.f32.mrf.mxu0
  %v1164 = vadd.f32 0.0, %v1163
  %v1165 = vpop.f32.mrf.mxu0
  %v1166 = vadd.f32 0.0, %v1165
  %1167 = vmatprep.mubr.bf16.mxu0 0
  %1168 = vmatmul.mubr.bf16.gmra.mxu0 %v416
  %v1169 = vpop.f32.mrf.mxu0
  %v1170 = vadd.f32 0.0, %v1169
  %v1171 = vpop.f32.mrf.mxu0
  %v1172 = vadd.f32 0.0, %v1171
  %v1173 = vpop.f32.mrf.mxu0
  %v1174 = vadd.f32 0.0, %v1173
  %v1175 = vpop.f32.mrf.mxu0
  %v1176 = vadd.f32 0.0, %v1175
  %1177 = vmatprep.mubr.bf16.mxu0 0
  %1178 = vmatmul.mubr.bf16.gmra.mxu0 %v419
  %v1179 = vpop.f32.mrf.mxu0
  %v1180 = vadd.f32 0.0, %v1179
  %v1181 = vpop.f32.mrf.mxu0
  %v1182 = vadd.f32 0.0, %v1181
  %v1183 = vpop.f32.mrf.mxu0
  %v1184 = vadd.f32 0.0, %v1183
  %v1185 = vpop.f32.mrf.mxu0
  %v1186 = vadd.f32 0.0, %v1185
  %1187 = vmatprep.mubr.bf16.mxu0 0
  %1188 = vmatmul.mubr.bf16.gmra.mxu0 %v422
  %v1189 = vpop.f32.mrf.mxu0
  %v1190 = vadd.f32 0.0, %v1189
  %v1191 = vpop.f32.mrf.mxu0
  %v1192 = vadd.f32 0.0, %v1191
  %v1193 = vpop.f32.mrf.mxu0
  %v1194 = vadd.f32 0.0, %v1193
  %v1195 = vpop.f32.mrf.mxu0
  %v1196 = vadd.f32 0.0, %v1195
  %1197 = vmatprep.mubr.bf16.mxu0 0
  %1198 = vmatmul.mubr.bf16.gmra.mxu0 %v425
  %v1199 = vpop.f32.mrf.mxu0
  %v1200 = vadd.f32 0.0, %v1199
  %v1201 = vpop.f32.mrf.mxu0
  %v1202 = vadd.f32 0.0, %v1201
  %v1203 = vpop.f32.mrf.mxu0
  %v1204 = vadd.f32 0.0, %v1203
  %v1205 = vpop.f32.mrf.mxu0
  %v1206 = vadd.f32 0.0, %v1205
  %1207 = vmatprep.mubr.bf16.mxu0 0
  %1208 = vmatmul.mubr.bf16.gmra.mxu0 %v428
  %v1209 = vpop.f32.mrf.mxu0
  %v1210 = vadd.f32 0.0, %v1209
  %v1211 = vpop.f32.mrf.mxu0
  %v1212 = vadd.f32 0.0, %v1211
  %v1213 = vpop.f32.mrf.mxu0
  %v1214 = vadd.f32 0.0, %v1213
  %v1215 = vpop.f32.mrf.mxu0
  %v1216 = vadd.f32 0.0, %v1215
  %1217 = vmatprep.mubr.bf16.mxu0 0
  %1218 = vmatmul.mubr.bf16.gmra.mxu0 %v431
  %v1219 = vpop.f32.mrf.mxu0
  %v1220 = vadd.f32 0.0, %v1219
  %v1221 = vpop.f32.mrf.mxu0
  %v1222 = vadd.f32 0.0, %v1221
  %v1223 = vpop.f32.mrf.mxu0
  %v1224 = vadd.f32 0.0, %v1223
  %v1225 = vpop.f32.mrf.mxu0
  %v1226 = vadd.f32 0.0, %v1225
  %1227 = vmatprep.mubr.bf16.mxu0 0
  %1228 = vmatmul.mubr.bf16.gmra.mxu0 %v434
  %v1229 = vpop.f32.mrf.mxu0
  %v1230 = vadd.f32 0.0, %v1229
  %v1231 = vpop.f32.mrf.mxu0
  %v1232 = vadd.f32 0.0, %v1231
  %v1233 = vpop.f32.mrf.mxu0
  %v1234 = vadd.f32 0.0, %v1233
  %v1235 = vpop.f32.mrf.mxu0
  %v1236 = vadd.f32 0.0, %v1235
  %1237 = vmatprep.mubr.bf16.mxu0 0
  %1238 = vmatmul.mubr.bf16.gmra.mxu0 %v437
  %v1239 = vpop.f32.mrf.mxu0
  %v1240 = vadd.f32 0.0, %v1239
  %v1241 = vpop.f32.mrf.mxu0
  %v1242 = vadd.f32 0.0, %v1241
  %v1243 = vpop.f32.mrf.mxu0
  %v1244 = vadd.f32 0.0, %v1243
  %v1245 = vpop.f32.mrf.mxu0
  %v1246 = vadd.f32 0.0, %v1245
  %1247 = vmatprep.mubr.bf16.mxu0 0
  %1248 = vmatmul.mubr.bf16.gmra.mxu0 %v440
  %v1249 = vpop.f32.mrf.mxu0
  %v1250 = vadd.f32 0.0, %v1249
  %v1251 = vpop.f32.mrf.mxu0
  %v1252 = vadd.f32 0.0, %v1251
  %v1253 = vpop.f32.mrf.mxu0
  %v1254 = vadd.f32 0.0, %v1253
  %v1255 = vpop.f32.mrf.mxu0
  %v1256 = vadd.f32 0.0, %v1255
  %1257 = vmatprep.mubr.bf16.mxu0 0
  %1258 = vmatmul.mubr.bf16.gmra.mxu0 %v443
  %v1259 = vpop.f32.mrf.mxu0
  %v1260 = vadd.f32 0.0, %v1259
  %v1261 = vpop.f32.mrf.mxu0
  %v1262 = vadd.f32 0.0, %v1261
  %v1263 = vpop.f32.mrf.mxu0
  %v1264 = vadd.f32 0.0, %v1263
  %v1265 = vpop.f32.mrf.mxu0
  %v1266 = vadd.f32 0.0, %v1265
  %1267 = vmatprep.mubr.bf16.mxu0 0
  %1268 = vmatmul.mubr.bf16.gmra.mxu0 %v446
  %v1269 = vpop.f32.mrf.mxu0
  %v1270 = vadd.f32 0.0, %v1269
  %v1271 = vpop.f32.mrf.mxu0
  %v1272 = vadd.f32 0.0, %v1271
  %v1273 = vpop.f32.mrf.mxu0
  %v1274 = vadd.f32 0.0, %v1273
  %v1275 = vpop.f32.mrf.mxu0
  %v1276 = vadd.f32 0.0, %v1275
  %1277 = vmatprep.mubr.bf16.mxu0 0
  %1278 = vmatmul.mubr.bf16.gmra.mxu0 %v449
  %v1279 = vpop.f32.mrf.mxu0
  %v1280 = vadd.f32 0.0, %v1279
  %v1281 = vpop.f32.mrf.mxu0
  %v1282 = vadd.f32 0.0, %v1281
  %v1283 = vpop.f32.mrf.mxu0
  %v1284 = vadd.f32 0.0, %v1283
  %v1285 = vpop.f32.mrf.mxu0
  %v1286 = vadd.f32 0.0, %v1285
  %1287 = vmatprep.mubr.bf16.mxu0 0
  %1288 = vmatmul.mubr.bf16.gmra.mxu0 %v452
  %v1289 = vpop.f32.mrf.mxu0
  %v1290 = vadd.f32 0.0, %v1289
  %v1291 = vpop.f32.mrf.mxu0
  %v1292 = vadd.f32 0.0, %v1291
  %v1293 = vpop.f32.mrf.mxu0
  %v1294 = vadd.f32 0.0, %v1293
  %v1295 = vpop.f32.mrf.mxu0
  %v1296 = vadd.f32 0.0, %v1295
  %1297 = vmatprep.mubr.bf16.mxu0 0
  %1298 = vmatmul.mubr.bf16.gmra.mxu0 %v455
  %v1299 = vpop.f32.mrf.mxu0
  %v1300 = vadd.f32 0.0, %v1299
  %v1301 = vpop.f32.mrf.mxu0
  %v1302 = vadd.f32 0.0, %v1301
  %v1303 = vpop.f32.mrf.mxu0
  %v1304 = vadd.f32 0.0, %v1303
  %v1305 = vpop.f32.mrf.mxu0
  %v1306 = vadd.f32 0.0, %v1305
  %1307 = vmatprep.mubr.bf16.mxu0 0
  %1308 = vmatmul.mubr.bf16.gmra.mxu0 %v458
  %v1309 = vpop.f32.mrf.mxu0
  %v1310 = vadd.f32 0.0, %v1309
  %v1311 = vpop.f32.mrf.mxu0
  %v1312 = vadd.f32 0.0, %v1311
  %v1313 = vpop.f32.mrf.mxu0
  %v1314 = vadd.f32 0.0, %v1313
  %v1315 = vpop.f32.mrf.mxu0
  %v1316 = vadd.f32 0.0, %v1315
  %1317 = vmatprep.mubr.bf16.mxu0 0
  %1318 = vmatmul.mubr.bf16.gmra.mxu0 %v461
  %v1319 = vpop.f32.mrf.mxu0
  %v1320 = vadd.f32 0.0, %v1319
  %v1321 = vpop.f32.mrf.mxu0
  %v1322 = vadd.f32 0.0, %v1321
  %v1323 = vpop.f32.mrf.mxu0
  %v1324 = vadd.f32 0.0, %v1323
  %v1325 = vpop.f32.mrf.mxu0
  %v1326 = vadd.f32 0.0, %v1325
  %1327 = vmatprep.mubr.bf16.mxu0 0
  %1328 = vmatmul.mubr.bf16.gmra.mxu0 %v464
  %v1329 = vpop.f32.mrf.mxu0
  %v1330 = vadd.f32 0.0, %v1329
  %v1331 = vpop.f32.mrf.mxu0
  %v1332 = vadd.f32 0.0, %v1331
  %v1333 = vpop.f32.mrf.mxu0
  %v1334 = vadd.f32 0.0, %v1333
  %v1335 = vpop.f32.mrf.mxu0
  %v1336 = vadd.f32 0.0, %v1335
  %1337 = vmatprep.mubr.bf16.mxu0 0
  %1338 = vmatmul.mubr.bf16.gmra.mxu0 %v467
  %v1339 = vpop.f32.mrf.mxu0
  %v1340 = vadd.f32 0.0, %v1339
  %v1341 = vpop.f32.mrf.mxu0
  %v1342 = vadd.f32 0.0, %v1341
  %v1343 = vpop.f32.mrf.mxu0
  %v1344 = vadd.f32 0.0, %v1343
  %v1345 = vpop.f32.mrf.mxu0
  %v1346 = vadd.f32 0.0, %v1345
  %1347 = vmatprep.mubr.bf16.mxu0 0
  %1348 = vmatmul.mubr.bf16.gmra.mxu0 %v470
  %v1349 = vpop.f32.mrf.mxu0
  %v1350 = vadd.f32 0.0, %v1349
  %v1351 = vpop.f32.mrf.mxu0
  %v1352 = vadd.f32 0.0, %v1351
  %v1353 = vpop.f32.mrf.mxu0
  %v1354 = vadd.f32 0.0, %v1353
  %v1355 = vpop.f32.mrf.mxu0
  %v1356 = vadd.f32 0.0, %v1355
  %1357 = vmatprep.mubr.bf16.mxu0 0
  %1358 = vmatmul.mubr.bf16.gmra.mxu0 %v473
  %v1359 = vpop.f32.mrf.mxu0
  %v1360 = vpop.f32.mrf.mxu0
  %v1361 = vpop.f32.mrf.mxu0
  %v1362 = vpop.f32.mrf.mxu0
  %1363 = vdwg.mxu0
  %v1416 = vunpack.c.l.b16 %v39
  %v1417 = vunpack.c.l.b16 %v40
  %v1418 = vunpack.c.l.b16 %v43
  %v1419 = vunpack.c.l.b16 %v44
  %v1420 = vunpack.c.l.b16 %v47
  %v1421 = vunpack.c.l.b16 %v48
  %v1422 = vunpack.c.l.b16 %v51
  %v1423 = vunpack.c.l.b16 %v52
  %v1424 = vunpack.c.l.b16 %v55
  %v1425 = vunpack.c.l.b16 %v56
  %v1426 = vunpack.c.l.b16 %v59
  %v1427 = vunpack.c.l.b16 %v60
  %v1428 = vunpack.c.l.b16 %v63
  %v1429 = vunpack.c.l.b16 %v64
  %v1430 = vunpack.c.l.b16 %v67
  %v1431 = vunpack.c.l.b16 %v68
  %v1432 = vunpack.c.l.b16 %v71
  %v1433 = vunpack.c.l.b16 %v72
  %v1434 = vunpack.c.l.b16 %v75
  %v1435 = vunpack.c.l.b16 %v76
  %v1436 = vunpack.c.l.b16 %v79
  %v1437 = vunpack.c.l.b16 %v80
  %v1438 = vunpack.c.l.b16 %v83
  %v1439 = vunpack.c.l.b16 %v84
  %v1440 = vunpack.c.l.b16 %v87
  %v1441 = vunpack.c.l.b16 %v88
  %v1442 = vunpack.c.l.b16 %v91
  %v1443 = vunpack.c.l.b16 %v92
  %v1444 = vunpack.c.l.b16 %v95
  %v1445 = vunpack.c.l.b16 %v96
  %v1446 = vunpack.c.l.b16 %v99
  %v1447 = vunpack.c.l.b16 %v100
  %v1448 = vunpack.c.l.b16 %v103
  %v1449 = vunpack.c.l.b16 %v104
  %v1450 = vunpack.c.l.b16 %v107
  %v1451 = vunpack.c.l.b16 %v108
  %v1452 = vunpack.c.l.b16 %v111
  %v1453 = vunpack.c.l.b16 %v112
  %v1454 = vunpack.c.l.b16 %v115
  %v1455 = vunpack.c.l.b16 %v116
  %v1456 = vunpack.c.l.b16 %v119
  %v1457 = vunpack.c.l.b16 %v120
  %v1458 = vunpack.c.l.b16 %v123
  %v1459 = vunpack.c.l.b16 %v124
  %v1460 = vunpack.c.l.b16 %v127
  %v1461 = vunpack.c.l.b16 %v128
  %v1462 = vunpack.c.l.b16 %v131
  %v1463 = vunpack.c.l.b16 %v132
  %v1464 = vunpack.c.l.b16 %v135
  %v1465 = vunpack.c.l.b16 %v136
  %v1466 = vunpack.c.l.b16 %v139
  %v1467 = vunpack.c.l.b16 %v140
  %v1468 = vpack.c.b16 %v1417, %v1416
  %v1469 = vpack.c.b16 %v1419, %v1418
  %v1470 = vpack.c.b16 %v1421, %v1420
  %v1471 = vpack.c.b16 %v1423, %v1422
  %v1472 = vpack.c.b16 %v1425, %v1424
  %v1473 = vpack.c.b16 %v1427, %v1426
  %v1474 = vpack.c.b16 %v1429, %v1428
  %v1475 = vpack.c.b16 %v1431, %v1430
  %v1476 = vpack.c.b16 %v1433, %v1432
  %v1477 = vpack.c.b16 %v1435, %v1434
  %v1478 = vpack.c.b16 %v1437, %v1436
  %v1479 = vpack.c.b16 %v1439, %v1438
  %v1480 = vpack.c.b16 %v1441, %v1440
  %v1481 = vpack.c.b16 %v1443, %v1442
  %v1482 = vpack.c.b16 %v1445, %v1444
  %v1483 = vpack.c.b16 %v1447, %v1446
  %v1484 = vpack.c.b16 %v1449, %v1448
  %v1485 = vpack.c.b16 %v1451, %v1450
  %v1486 = vpack.c.b16 %v1453, %v1452
  %v1487 = vpack.c.b16 %v1455, %v1454
  %v1488 = vpack.c.b16 %v1457, %v1456
  %v1489 = vpack.c.b16 %v1459, %v1458
  %v1490 = vpack.c.b16 %v1461, %v1460
  %v1491 = vpack.c.b16 %v1463, %v1462
  %v1492 = vpack.c.b16 %v1465, %v1464
  %v1493 = vpack.c.b16 %v1467, %v1466
  %v1512 = vunpack.c.l.b16 %v145
  %v1513 = vunpack.c.h.b16 %v145
  %v1514 = vunpack.c.l.b16 %v146
  %v1515 = vunpack.c.h.b16 %v146
  %v1516 = vunpack.c.l.b16 %v147
  %v1517 = vunpack.c.h.b16 %v147
  %v1518 = vunpack.c.l.b16 %v148
  %v1519 = vunpack.c.h.b16 %v148
  %v1520 = vunpack.c.l.b16 %v149
  %v1521 = vunpack.c.h.b16 %v149
  %v1522 = vunpack.c.l.b16 %v150
  %v1523 = vunpack.c.h.b16 %v150
  %v1524 = vunpack.c.l.b16 %v151
  %v1525 = vunpack.c.h.b16 %v151
  %v1526 = vunpack.c.l.b16 %v152
  %v1527 = vunpack.c.h.b16 %v152
  %v1528 = vunpack.c.l.b16 %v153
  %v1529 = vunpack.c.h.b16 %v153
  %v1530 = vunpack.c.l.b16 %v154
  %v1531 = vunpack.c.h.b16 %v154
  %v1532 = vunpack.c.l.b16 %v155
  %v1533 = vunpack.c.h.b16 %v155
  %v1534 = vunpack.c.l.b16 %v156
  %v1535 = vunpack.c.h.b16 %v156
  %v1536 = vunpack.c.l.b16 %v157
  %v1537 = vunpack.c.h.b16 %v157
  %v1538 = vunpack.c.l.b16 %v158
  %v1539 = vunpack.c.h.b16 %v158
  %v1540 = vunpack.c.l.b16 %v159
  %v1541 = vunpack.c.h.b16 %v159
  %v1542 = vunpack.c.l.b16 %v160
  %v1543 = vunpack.c.h.b16 %v160
  %v1544 = vunpack.c.l.b16 %v161
  %v1545 = vunpack.c.h.b16 %v161
  %v1546 = vunpack.c.l.b16 %v162
  %v1547 = vunpack.c.h.b16 %v162
  %v1548 = vpack.c.b16 %v1518, %v1512
  %v1549 = vpack.c.b16 %v1519, %v1513
  %v1550 = vpack.c.b16 %v1520, %v1514
  %v1551 = vpack.c.b16 %v1521, %v1515
  %v1552 = vpack.c.b16 %v1522, %v1516
  %v1553 = vpack.c.b16 %v1523, %v1517
  %v1554 = vpack.c.b16 %v1530, %v1524
  %v1555 = vpack.c.b16 %v1531, %v1525
  %v1556 = vpack.c.b16 %v1532, %v1526
  %v1557 = vpack.c.b16 %v1533, %v1527
  %v1558 = vpack.c.b16 %v1534, %v1528
  %v1559 = vpack.c.b16 %v1535, %v1529
  %v1560 = vpack.c.b16 %v1542, %v1536
  %v1561 = vpack.c.b16 %v1543, %v1537
  %v1562 = vpack.c.b16 %v1544, %v1538
  %v1563 = vpack.c.b16 %v1545, %v1539
  %v1564 = vpack.c.b16 %v1546, %v1540
  %v1565 = vpack.c.b16 %v1547, %v1541
  %v1579 = vsel %vm396, %v1468, 0
  %v1582 = vsel %vm396, %v1469, 0
  %v1585 = vsel %vm396, %v1470, 0
  %v1588 = vsel %vm396, %v1471, 0
  %v1591 = vsel %vm396, %v1472, 0
  %v1594 = vsel %vm396, %v1473, 0
  %v1597 = vsel %vm396, %v1474, 0
  %v1600 = vsel %vm396, %v1475, 0
  %v1603 = vsel %vm396, %v1476, 0
  %v1606 = vsel %vm396, %v1477, 0
  %v1609 = vsel %vm396, %v1478, 0
  %v1612 = vsel %vm396, %v1479, 0
  %v1615 = vsel %vm396, %v1480, 0
  %v1618 = vsel %vm396, %v1481, 0
  %v1621 = vsel %vm396, %v1482, 0
  %v1624 = vsel %vm396, %v1483, 0
  %v1627 = vsel %vm396, %v1484, 0
  %v1630 = vsel %vm396, %v1485, 0
  %v1633 = vsel %vm396, %v1486, 0
  %v1636 = vsel %vm396, %v1487, 0
  %v1639 = vsel %vm396, %v1488, 0
  %v1642 = vsel %vm396, %v1489, 0
  %v1645 = vsel %vm396, %v1490, 0
  %v1648 = vsel %vm396, %v1491, 0
  %v1651 = vsel %vm396, %v1492, 0
  %v1654 = vsel %vm396, %v1493, 0
  %v1657 = vand.u32 %v1560, %v478
  %v1660 = vand.u32 %v1561, %v478
  %v1663 = vand.u32 %v1562, %v478
  %v1666 = vand.u32 %v1563, %v478
  %v1669 = vand.u32 %v1564, %v478
  %v1672 = vand.u32 %v1565, %v478
  %1674 = vmatprep.subr.bf16.mxu0 0
  %1675 = vmatpush1.bf16.msra.mxu0 0
  %1676 = vmatprep.subr.bf16.mxu0 0
  %1677 = vmatpush1.bf16.msra.mxu0 0
  %1678 = vmatprep.subr.bf16.mxu0 0
  %1679 = vmatpush1.bf16.msra.mxu0 0
  %1680 = vmatprep.subr.bf16.mxu0 0
  %1681 = vmatpush1.bf16.msra.mxu0 0
  %1682 = vmatprep.subr.bf16.mxu0 0
  %1683 = vmatpush1.bf16.msra.mxu0 0
  %1684 = vmatprep.subr.bf16.mxu0 %v1660
  %1685 = vmatpush1.bf16.msra.mxu0 %v1657
  %1686 = vmatprep.subr.bf16.mxu0 %v1555
  %1687 = vmatpush1.bf16.msra.mxu0 %v1554
  %1688 = vmatprep.subr.bf16.mxu0 %v1549
  %1689 = vmatpush1.bf16.msra.mxu0 %v1548
  %1690 = vmatprep.subr.bf16.mxu0 0
  %1691 = vmatpush2.bf16.msra.mxu0 0
  %1692 = vmatprep.subr.bf16.mxu0 0
  %1693 = vmatpush2.bf16.msra.mxu0 0
  %1694 = vmatprep.subr.bf16.mxu0 0
  %1695 = vmatpush2.bf16.msra.mxu0 0
  %1696 = vmatprep.subr.bf16.mxu0 0
  %1697 = vmatpush2.bf16.msra.mxu0 0
  %1698 = vmatprep.subr.bf16.mxu0 0
  %1699 = vmatpush2.bf16.msra.mxu0 0
  %1700 = vmatprep.subr.bf16.mxu0 0
  %1701 = vmatpush2.bf16.msra.mxu0 0
  %1702 = vmatprep.subr.bf16.mxu0 0
  %1703 = vmatpush2.bf16.msra.mxu0 0
  %1704 = vmatprep.subr.bf16.mxu0 0
  %1705 = vmatpush2.bf16.msra.mxu0 0
  %1706 = vmatprep.mubr.bf16.mxu0 0
  %1707 = vmatmul.mubr.bf16.gmra.mxu0 %v1579
  %v1708 = vpop.f32.mrf.mxu0
  %v1709 = vadd.f32 %v532, %v1708
  %v1710 = vpop.f32.mrf.mxu0
  %v1711 = vadd.f32 %v534, %v1710
  %v1712 = vpop.f32.mrf.mxu0
  %v1713 = vadd.f32 %v536, %v1712
  %v1714 = vpop.f32.mrf.mxu0
  %v1715 = vadd.f32 %v538, %v1714
  %1716 = vmatprep.mubr.bf16.mxu0 0
  %1717 = vmatmul.mubr.bf16.gmra.mxu0 %v1582
  %v1718 = vpop.f32.mrf.mxu0
  %v1719 = vadd.f32 %v542, %v1718
  %v1720 = vpop.f32.mrf.mxu0
  %v1721 = vadd.f32 %v544, %v1720
  %v1722 = vpop.f32.mrf.mxu0
  %v1723 = vadd.f32 %v546, %v1722
  %v1724 = vpop.f32.mrf.mxu0
  %v1725 = vadd.f32 %v548, %v1724
  %1726 = vmatprep.mubr.bf16.mxu0 0
  %1727 = vmatmul.mubr.bf16.gmra.mxu0 %v1585
  %v1728 = vpop.f32.mrf.mxu0
  %v1729 = vadd.f32 %v552, %v1728
  %v1730 = vpop.f32.mrf.mxu0
  %v1731 = vadd.f32 %v554, %v1730
  %v1732 = vpop.f32.mrf.mxu0
  %v1733 = vadd.f32 %v556, %v1732
  %v1734 = vpop.f32.mrf.mxu0
  %v1735 = vadd.f32 %v558, %v1734
  %1736 = vmatprep.mubr.bf16.mxu0 0
  %1737 = vmatmul.mubr.bf16.gmra.mxu0 %v1588
  %v1738 = vpop.f32.mrf.mxu0
  %v1739 = vadd.f32 %v562, %v1738
  %v1740 = vpop.f32.mrf.mxu0
  %v1741 = vadd.f32 %v564, %v1740
  %v1742 = vpop.f32.mrf.mxu0
  %v1743 = vadd.f32 %v566, %v1742
  %v1744 = vpop.f32.mrf.mxu0
  %v1745 = vadd.f32 %v568, %v1744
  %1746 = vmatprep.mubr.bf16.mxu0 0
  %1747 = vmatmul.mubr.bf16.gmra.mxu0 %v1591
  %v1748 = vpop.f32.mrf.mxu0
  %v1749 = vadd.f32 %v572, %v1748
  %v1750 = vpop.f32.mrf.mxu0
  %v1751 = vadd.f32 %v574, %v1750
  %v1752 = vpop.f32.mrf.mxu0
  %v1753 = vadd.f32 %v576, %v1752
  %v1754 = vpop.f32.mrf.mxu0
  %v1755 = vadd.f32 %v578, %v1754
  %1756 = vmatprep.mubr.bf16.mxu0 0
  %1757 = vmatmul.mubr.bf16.gmra.mxu0 %v1594
  %v1758 = vpop.f32.mrf.mxu0
  %v1759 = vadd.f32 %v582, %v1758
  %v1760 = vpop.f32.mrf.mxu0
  %v1761 = vadd.f32 %v584, %v1760
  %v1762 = vpop.f32.mrf.mxu0
  %v1763 = vadd.f32 %v586, %v1762
  %v1764 = vpop.f32.mrf.mxu0
  %v1765 = vadd.f32 %v588, %v1764
  %1766 = vmatprep.mubr.bf16.mxu0 0
  %1767 = vmatmul.mubr.bf16.gmra.mxu0 %v1597
  %v1768 = vpop.f32.mrf.mxu0
  %v1769 = vadd.f32 %v592, %v1768
  %v1770 = vpop.f32.mrf.mxu0
  %v1771 = vadd.f32 %v594, %v1770
  %v1772 = vpop.f32.mrf.mxu0
  %v1773 = vadd.f32 %v596, %v1772
  %v1774 = vpop.f32.mrf.mxu0
  %v1775 = vadd.f32 %v598, %v1774
  %1776 = vmatprep.mubr.bf16.mxu0 0
  %1777 = vmatmul.mubr.bf16.gmra.mxu0 %v1600
  %v1778 = vpop.f32.mrf.mxu0
  %v1779 = vadd.f32 %v602, %v1778
  %v1780 = vpop.f32.mrf.mxu0
  %v1781 = vadd.f32 %v604, %v1780
  %v1782 = vpop.f32.mrf.mxu0
  %v1783 = vadd.f32 %v606, %v1782
  %v1784 = vpop.f32.mrf.mxu0
  %v1785 = vadd.f32 %v608, %v1784
  %1786 = vmatprep.mubr.bf16.mxu0 0
  %1787 = vmatmul.mubr.bf16.gmra.mxu0 %v1603
  %v1788 = vpop.f32.mrf.mxu0
  %v1789 = vadd.f32 %v612, %v1788
  %v1790 = vpop.f32.mrf.mxu0
  %v1791 = vadd.f32 %v614, %v1790
  %v1792 = vpop.f32.mrf.mxu0
  %v1793 = vadd.f32 %v616, %v1792
  %v1794 = vpop.f32.mrf.mxu0
  %v1795 = vadd.f32 %v618, %v1794
  %1796 = vmatprep.mubr.bf16.mxu0 0
  %1797 = vmatmul.mubr.bf16.gmra.mxu0 %v1606
  %v1798 = vpop.f32.mrf.mxu0
  %v1799 = vadd.f32 %v622, %v1798
  %v1800 = vpop.f32.mrf.mxu0
  %v1801 = vadd.f32 %v624, %v1800
  %v1802 = vpop.f32.mrf.mxu0
  %v1803 = vadd.f32 %v626, %v1802
  %v1804 = vpop.f32.mrf.mxu0
  %v1805 = vadd.f32 %v628, %v1804
  %1806 = vmatprep.mubr.bf16.mxu0 0
  %1807 = vmatmul.mubr.bf16.gmra.mxu0 %v1609
  %v1808 = vpop.f32.mrf.mxu0
  %v1809 = vadd.f32 %v632, %v1808
  %v1810 = vpop.f32.mrf.mxu0
  %v1811 = vadd.f32 %v634, %v1810
  %v1812 = vpop.f32.mrf.mxu0
  %v1813 = vadd.f32 %v636, %v1812
  %v1814 = vpop.f32.mrf.mxu0
  %v1815 = vadd.f32 %v638, %v1814
  %1816 = vmatprep.mubr.bf16.mxu0 0
  %1817 = vmatmul.mubr.bf16.gmra.mxu0 %v1612
  %v1818 = vpop.f32.mrf.mxu0
  %v1819 = vadd.f32 %v642, %v1818
  %v1820 = vpop.f32.mrf.mxu0
  %v1821 = vadd.f32 %v644, %v1820
  %v1822 = vpop.f32.mrf.mxu0
  %v1823 = vadd.f32 %v646, %v1822
  %v1824 = vpop.f32.mrf.mxu0
  %v1825 = vadd.f32 %v648, %v1824
  %1826 = vmatprep.mubr.bf16.mxu0 0
  %1827 = vmatmul.mubr.bf16.gmra.mxu0 %v1615
  %v1828 = vpop.f32.mrf.mxu0
  %v1829 = vadd.f32 %v652, %v1828
  %v1830 = vpop.f32.mrf.mxu0
  %v1831 = vadd.f32 %v654, %v1830
  %v1832 = vpop.f32.mrf.mxu0
  %v1833 = vadd.f32 %v656, %v1832
  %v1834 = vpop.f32.mrf.mxu0
  %v1835 = vadd.f32 %v658, %v1834
  %1836 = vmatprep.mubr.bf16.mxu0 0
  %1837 = vmatmul.mubr.bf16.gmra.mxu0 %v1618
  %v1838 = vpop.f32.mrf.mxu0
  %v1839 = vadd.f32 %v662, %v1838
  %v1840 = vpop.f32.mrf.mxu0
  %v1841 = vadd.f32 %v664, %v1840
  %v1842 = vpop.f32.mrf.mxu0
  %v1843 = vadd.f32 %v666, %v1842
  %v1844 = vpop.f32.mrf.mxu0
  %v1845 = vadd.f32 %v668, %v1844
  %1846 = vmatprep.mubr.bf16.mxu0 0
  %1847 = vmatmul.mubr.bf16.gmra.mxu0 %v1621
  %v1848 = vpop.f32.mrf.mxu0
  %v1849 = vadd.f32 %v672, %v1848
  %v1850 = vpop.f32.mrf.mxu0
  %v1851 = vadd.f32 %v674, %v1850
  %v1852 = vpop.f32.mrf.mxu0
  %v1853 = vadd.f32 %v676, %v1852
  %v1854 = vpop.f32.mrf.mxu0
  %v1855 = vadd.f32 %v678, %v1854
  %1856 = vmatprep.mubr.bf16.mxu0 0
  %1857 = vmatmul.mubr.bf16.gmra.mxu0 %v1624
  %v1858 = vpop.f32.mrf.mxu0
  %v1859 = vadd.f32 %v682, %v1858
  %v1860 = vpop.f32.mrf.mxu0
  %v1861 = vadd.f32 %v684, %v1860
  %v1862 = vpop.f32.mrf.mxu0
  %v1863 = vadd.f32 %v686, %v1862
  %v1864 = vpop.f32.mrf.mxu0
  %v1865 = vadd.f32 %v688, %v1864
  %1866 = vmatprep.mubr.bf16.mxu0 0
  %1867 = vmatmul.mubr.bf16.gmra.mxu0 %v1627
  %v1868 = vpop.f32.mrf.mxu0
  %v1869 = vadd.f32 %v692, %v1868
  %v1870 = vpop.f32.mrf.mxu0
  %v1871 = vadd.f32 %v694, %v1870
  %v1872 = vpop.f32.mrf.mxu0
  %v1873 = vadd.f32 %v696, %v1872
  %v1874 = vpop.f32.mrf.mxu0
  %v1875 = vadd.f32 %v698, %v1874
  %1876 = vmatprep.mubr.bf16.mxu0 0
  %1877 = vmatmul.mubr.bf16.gmra.mxu0 %v1630
  %v1878 = vpop.f32.mrf.mxu0
  %v1879 = vadd.f32 %v702, %v1878
  %v1880 = vpop.f32.mrf.mxu0
  %v1881 = vadd.f32 %v704, %v1880
  %v1882 = vpop.f32.mrf.mxu0
  %v1883 = vadd.f32 %v706, %v1882
  %v1884 = vpop.f32.mrf.mxu0
  %v1885 = vadd.f32 %v708, %v1884
  %1886 = vmatprep.mubr.bf16.mxu0 0
  %1887 = vmatmul.mubr.bf16.gmra.mxu0 %v1633
  %v1888 = vpop.f32.mrf.mxu0
  %v1889 = vadd.f32 %v712, %v1888
  %v1890 = vpop.f32.mrf.mxu0
  %v1891 = vadd.f32 %v714, %v1890
  %v1892 = vpop.f32.mrf.mxu0
  %v1893 = vadd.f32 %v716, %v1892
  %v1894 = vpop.f32.mrf.mxu0
  %v1895 = vadd.f32 %v718, %v1894
  %1896 = vmatprep.mubr.bf16.mxu0 0
  %1897 = vmatmul.mubr.bf16.gmra.mxu0 %v1636
  %v1898 = vpop.f32.mrf.mxu0
  %v1899 = vadd.f32 %v722, %v1898
  %v1900 = vpop.f32.mrf.mxu0
  %v1901 = vadd.f32 %v724, %v1900
  %v1902 = vpop.f32.mrf.mxu0
  %v1903 = vadd.f32 %v726, %v1902
  %v1904 = vpop.f32.mrf.mxu0
  %v1905 = vadd.f32 %v728, %v1904
  %1906 = vmatprep.mubr.bf16.mxu0 0
  %1907 = vmatmul.mubr.bf16.gmra.mxu0 %v1639
  %v1908 = vpop.f32.mrf.mxu0
  %v1909 = vadd.f32 %v732, %v1908
  %v1910 = vpop.f32.mrf.mxu0
  %v1911 = vadd.f32 %v734, %v1910
  %v1912 = vpop.f32.mrf.mxu0
  %v1913 = vadd.f32 %v736, %v1912
  %v1914 = vpop.f32.mrf.mxu0
  %v1915 = vadd.f32 %v738, %v1914
  %1916 = vmatprep.mubr.bf16.mxu0 0
  %1917 = vmatmul.mubr.bf16.gmra.mxu0 %v1642
  %v1918 = vpop.f32.mrf.mxu0
  %v1919 = vadd.f32 %v742, %v1918
  %v1920 = vpop.f32.mrf.mxu0
  %v1921 = vadd.f32 %v744, %v1920
  %v1922 = vpop.f32.mrf.mxu0
  %v1923 = vadd.f32 %v746, %v1922
  %v1924 = vpop.f32.mrf.mxu0
  %v1925 = vadd.f32 %v748, %v1924
  %1926 = vmatprep.mubr.bf16.mxu0 0
  %1927 = vmatmul.mubr.bf16.gmra.mxu0 %v1645
  %v1928 = vpop.f32.mrf.mxu0
  %v1929 = vadd.f32 %v752, %v1928
  %v1930 = vpop.f32.mrf.mxu0
  %v1931 = vadd.f32 %v754, %v1930
  %v1932 = vpop.f32.mrf.mxu0
  %v1933 = vadd.f32 %v756, %v1932
  %v1934 = vpop.f32.mrf.mxu0
  %v1935 = vadd.f32 %v758, %v1934
  %1936 = vmatprep.mubr.bf16.mxu0 0
  %1937 = vmatmul.mubr.bf16.gmra.mxu0 %v1648
  %v1938 = vpop.f32.mrf.mxu0
  %v1939 = vadd.f32 %v762, %v1938
  %v1940 = vpop.f32.mrf.mxu0
  %v1941 = vadd.f32 %v764, %v1940
  %v1942 = vpop.f32.mrf.mxu0
  %v1943 = vadd.f32 %v766, %v1942
  %v1944 = vpop.f32.mrf.mxu0
  %v1945 = vadd.f32 %v768, %v1944
  %1946 = vmatprep.mubr.bf16.mxu0 0
  %1947 = vmatmul.mubr.bf16.gmra.mxu0 %v1651
  %v1948 = vpop.f32.mrf.mxu0
  %v1949 = vadd.f32 %v772, %v1948
  %v1950 = vpop.f32.mrf.mxu0
  %v1951 = vadd.f32 %v774, %v1950
  %v1952 = vpop.f32.mrf.mxu0
  %v1953 = vadd.f32 %v776, %v1952
  %v1954 = vpop.f32.mrf.mxu0
  %v1955 = vadd.f32 %v778, %v1954
  %1956 = vmatprep.mubr.bf16.mxu0 0
  %1957 = vmatmul.mubr.bf16.gmra.mxu0 %v1654
  %v1958 = vpop.f32.mrf.mxu0
  %v1959 = vpop.f32.mrf.mxu0
  %v1960 = vpop.f32.mrf.mxu0
  %v1961 = vpop.f32.mrf.mxu0
  %1962 = vdwg.mxu0
  %1963 = vmatprep.subr.bf16.mxu0 0
  %1964 = vmatpush1.bf16.msra.mxu0 0
  %1965 = vmatprep.subr.bf16.mxu0 0
  %1966 = vmatpush1.bf16.msra.mxu0 0
  %1967 = vmatprep.subr.bf16.mxu0 0
  %1968 = vmatpush1.bf16.msra.mxu0 0
  %1969 = vmatprep.subr.bf16.mxu0 0
  %1970 = vmatpush1.bf16.msra.mxu0 0
  %1971 = vmatprep.subr.bf16.mxu0 0
  %1972 = vmatpush1.bf16.msra.mxu0 0
  %1973 = vmatprep.subr.bf16.mxu0 %v1666
  %1974 = vmatpush1.bf16.msra.mxu0 %v1663
  %1975 = vmatprep.subr.bf16.mxu0 %v1557
  %1976 = vmatpush1.bf16.msra.mxu0 %v1556
  %1977 = vmatprep.subr.bf16.mxu0 %v1551
  %1978 = vmatpush1.bf16.msra.mxu0 %v1550
  %1979 = vmatprep.subr.bf16.mxu0 0
  %1980 = vmatpush2.bf16.msra.mxu0 0
  %1981 = vmatprep.subr.bf16.mxu0 0
  %1982 = vmatpush2.bf16.msra.mxu0 0
  %1983 = vmatprep.subr.bf16.mxu0 0
  %1984 = vmatpush2.bf16.msra.mxu0 0
  %1985 = vmatprep.subr.bf16.mxu0 0
  %1986 = vmatpush2.bf16.msra.mxu0 0
  %1987 = vmatprep.subr.bf16.mxu0 0
  %1988 = vmatpush2.bf16.msra.mxu0 0
  %1989 = vmatprep.subr.bf16.mxu0 0
  %1990 = vmatpush2.bf16.msra.mxu0 0
  %1991 = vmatprep.subr.bf16.mxu0 0
  %1992 = vmatpush2.bf16.msra.mxu0 0
  %1993 = vmatprep.subr.bf16.mxu0 0
  %1994 = vmatpush2.bf16.msra.mxu0 0
  %1995 = vmatprep.mubr.bf16.mxu0 0
  %1996 = vmatmul.mubr.bf16.gmra.mxu0 %v1579
  %v1997 = vpop.f32.mrf.mxu0
  %v1998 = vadd.f32 %v821, %v1997
  %v1999 = vpop.f32.mrf.mxu0
  %v2000 = vadd.f32 %v823, %v1999
  %v2001 = vpop.f32.mrf.mxu0
  %v2002 = vadd.f32 %v825, %v2001
  %v2003 = vpop.f32.mrf.mxu0
  %v2004 = vadd.f32 %v827, %v2003
  %2005 = vmatprep.mubr.bf16.mxu0 0
  %2006 = vmatmul.mubr.bf16.gmra.mxu0 %v1582
  %v2007 = vpop.f32.mrf.mxu0
  %v2008 = vadd.f32 %v831, %v2007
  %v2009 = vpop.f32.mrf.mxu0
  %v2010 = vadd.f32 %v833, %v2009
  %v2011 = vpop.f32.mrf.mxu0
  %v2012 = vadd.f32 %v835, %v2011
  %v2013 = vpop.f32.mrf.mxu0
  %v2014 = vadd.f32 %v837, %v2013
  %2015 = vmatprep.mubr.bf16.mxu0 0
  %2016 = vmatmul.mubr.bf16.gmra.mxu0 %v1585
  %v2017 = vpop.f32.mrf.mxu0
  %v2018 = vadd.f32 %v841, %v2017
  %v2019 = vpop.f32.mrf.mxu0
  %v2020 = vadd.f32 %v843, %v2019
  %v2021 = vpop.f32.mrf.mxu0
  %v2022 = vadd.f32 %v845, %v2021
  %v2023 = vpop.f32.mrf.mxu0
  %v2024 = vadd.f32 %v847, %v2023
  %2025 = vmatprep.mubr.bf16.mxu0 0
  %2026 = vmatmul.mubr.bf16.gmra.mxu0 %v1588
  %v2027 = vpop.f32.mrf.mxu0
  %v2028 = vadd.f32 %v851, %v2027
  %v2029 = vpop.f32.mrf.mxu0
  %v2030 = vadd.f32 %v853, %v2029
  %v2031 = vpop.f32.mrf.mxu0
  %v2032 = vadd.f32 %v855, %v2031
  %v2033 = vpop.f32.mrf.mxu0
  %v2034 = vadd.f32 %v857, %v2033
  %2035 = vmatprep.mubr.bf16.mxu0 0
  %2036 = vmatmul.mubr.bf16.gmra.mxu0 %v1591
  %v2037 = vpop.f32.mrf.mxu0
  %v2038 = vadd.f32 %v861, %v2037
  %v2039 = vpop.f32.mrf.mxu0
  %v2040 = vadd.f32 %v863, %v2039
  %v2041 = vpop.f32.mrf.mxu0
  %v2042 = vadd.f32 %v865, %v2041
  %v2043 = vpop.f32.mrf.mxu0
  %v2044 = vadd.f32 %v867, %v2043
  %2045 = vmatprep.mubr.bf16.mxu0 0
  %2046 = vmatmul.mubr.bf16.gmra.mxu0 %v1594
  %v2047 = vpop.f32.mrf.mxu0
  %v2048 = vadd.f32 %v871, %v2047
  %v2049 = vpop.f32.mrf.mxu0
  %v2050 = vadd.f32 %v873, %v2049
  %v2051 = vpop.f32.mrf.mxu0
  %v2052 = vadd.f32 %v875, %v2051
  %v2053 = vpop.f32.mrf.mxu0
  %v2054 = vadd.f32 %v877, %v2053
  %2055 = vmatprep.mubr.bf16.mxu0 0
  %2056 = vmatmul.mubr.bf16.gmra.mxu0 %v1597
  %v2057 = vpop.f32.mrf.mxu0
  %v2058 = vadd.f32 %v881, %v2057
  %v2059 = vpop.f32.mrf.mxu0
  %v2060 = vadd.f32 %v883, %v2059
  %v2061 = vpop.f32.mrf.mxu0
  %v2062 = vadd.f32 %v885, %v2061
  %v2063 = vpop.f32.mrf.mxu0
  %v2064 = vadd.f32 %v887, %v2063
  %2065 = vmatprep.mubr.bf16.mxu0 0
  %2066 = vmatmul.mubr.bf16.gmra.mxu0 %v1600
  %v2067 = vpop.f32.mrf.mxu0
  %v2068 = vadd.f32 %v891, %v2067
  %v2069 = vpop.f32.mrf.mxu0
  %v2070 = vadd.f32 %v893, %v2069
  %v2071 = vpop.f32.mrf.mxu0
  %v2072 = vadd.f32 %v895, %v2071
  %v2073 = vpop.f32.mrf.mxu0
  %v2074 = vadd.f32 %v897, %v2073
  %2075 = vmatprep.mubr.bf16.mxu0 0
  %2076 = vmatmul.mubr.bf16.gmra.mxu0 %v1603
  %v2077 = vpop.f32.mrf.mxu0
  %v2078 = vadd.f32 %v901, %v2077
  %v2079 = vpop.f32.mrf.mxu0
  %v2080 = vadd.f32 %v903, %v2079
  %v2081 = vpop.f32.mrf.mxu0
  %v2082 = vadd.f32 %v905, %v2081
  %v2083 = vpop.f32.mrf.mxu0
  %v2084 = vadd.f32 %v907, %v2083
  %2085 = vmatprep.mubr.bf16.mxu0 0
  %2086 = vmatmul.mubr.bf16.gmra.mxu0 %v1606
  %v2087 = vpop.f32.mrf.mxu0
  %v2088 = vadd.f32 %v911, %v2087
  %v2089 = vpop.f32.mrf.mxu0
  %v2090 = vadd.f32 %v913, %v2089
  %v2091 = vpop.f32.mrf.mxu0
  %v2092 = vadd.f32 %v915, %v2091
  %v2093 = vpop.f32.mrf.mxu0
  %v2094 = vadd.f32 %v917, %v2093
  %2095 = vmatprep.mubr.bf16.mxu0 0
  %2096 = vmatmul.mubr.bf16.gmra.mxu0 %v1609
  %v2097 = vpop.f32.mrf.mxu0
  %v2098 = vadd.f32 %v921, %v2097
  %v2099 = vpop.f32.mrf.mxu0
  %v2100 = vadd.f32 %v923, %v2099
  %v2101 = vpop.f32.mrf.mxu0
  %v2102 = vadd.f32 %v925, %v2101
  %v2103 = vpop.f32.mrf.mxu0
  %v2104 = vadd.f32 %v927, %v2103
  %2105 = vmatprep.mubr.bf16.mxu0 0
  %2106 = vmatmul.mubr.bf16.gmra.mxu0 %v1612
  %v2107 = vpop.f32.mrf.mxu0
  %v2108 = vadd.f32 %v931, %v2107
  %v2109 = vpop.f32.mrf.mxu0
  %v2110 = vadd.f32 %v933, %v2109
  %v2111 = vpop.f32.mrf.mxu0
  %v2112 = vadd.f32 %v935, %v2111
  %v2113 = vpop.f32.mrf.mxu0
  %v2114 = vadd.f32 %v937, %v2113
  %2115 = vmatprep.mubr.bf16.mxu0 0
  %2116 = vmatmul.mubr.bf16.gmra.mxu0 %v1615
  %v2117 = vpop.f32.mrf.mxu0
  %v2118 = vadd.f32 %v941, %v2117
  %v2119 = vpop.f32.mrf.mxu0
  %v2120 = vadd.f32 %v943, %v2119
  %v2121 = vpop.f32.mrf.mxu0
  %v2122 = vadd.f32 %v945, %v2121
  %v2123 = vpop.f32.mrf.mxu0
  %v2124 = vadd.f32 %v947, %v2123
  %2125 = vmatprep.mubr.bf16.mxu0 0
  %2126 = vmatmul.mubr.bf16.gmra.mxu0 %v1618
  %v2127 = vpop.f32.mrf.mxu0
  %v2128 = vadd.f32 %v951, %v2127
  %v2129 = vpop.f32.mrf.mxu0
  %v2130 = vadd.f32 %v953, %v2129
  %v2131 = vpop.f32.mrf.mxu0
  %v2132 = vadd.f32 %v955, %v2131
  %v2133 = vpop.f32.mrf.mxu0
  %v2134 = vadd.f32 %v957, %v2133
  %2135 = vmatprep.mubr.bf16.mxu0 0
  %2136 = vmatmul.mubr.bf16.gmra.mxu0 %v1621
  %v2137 = vpop.f32.mrf.mxu0
  %v2138 = vadd.f32 %v961, %v2137
  %v2139 = vpop.f32.mrf.mxu0
  %v2140 = vadd.f32 %v963, %v2139
  %v2141 = vpop.f32.mrf.mxu0
  %v2142 = vadd.f32 %v965, %v2141
  %v2143 = vpop.f32.mrf.mxu0
  %v2144 = vadd.f32 %v967, %v2143
  %2145 = vmatprep.mubr.bf16.mxu0 0
  %2146 = vmatmul.mubr.bf16.gmra.mxu0 %v1624
  %v2147 = vpop.f32.mrf.mxu0
  %v2148 = vadd.f32 %v971, %v2147
  %v2149 = vpop.f32.mrf.mxu0
  %v2150 = vadd.f32 %v973, %v2149
  %v2151 = vpop.f32.mrf.mxu0
  %v2152 = vadd.f32 %v975, %v2151
  %v2153 = vpop.f32.mrf.mxu0
  %v2154 = vadd.f32 %v977, %v2153
  %2155 = vmatprep.mubr.bf16.mxu0 0
  %2156 = vmatmul.mubr.bf16.gmra.mxu0 %v1627
  %v2157 = vpop.f32.mrf.mxu0
  %v2158 = vadd.f32 %v981, %v2157
  %v2159 = vpop.f32.mrf.mxu0
  %v2160 = vadd.f32 %v983, %v2159
  %v2161 = vpop.f32.mrf.mxu0
  %v2162 = vadd.f32 %v985, %v2161
  %v2163 = vpop.f32.mrf.mxu0
  %v2164 = vadd.f32 %v987, %v2163
  %2165 = vmatprep.mubr.bf16.mxu0 0
  %2166 = vmatmul.mubr.bf16.gmra.mxu0 %v1630
  %v2167 = vpop.f32.mrf.mxu0
  %v2168 = vadd.f32 %v991, %v2167
  %v2169 = vpop.f32.mrf.mxu0
  %v2170 = vadd.f32 %v993, %v2169
  %v2171 = vpop.f32.mrf.mxu0
  %v2172 = vadd.f32 %v995, %v2171
  %v2173 = vpop.f32.mrf.mxu0
  %v2174 = vadd.f32 %v997, %v2173
  %2175 = vmatprep.mubr.bf16.mxu0 0
  %2176 = vmatmul.mubr.bf16.gmra.mxu0 %v1633
  %v2177 = vpop.f32.mrf.mxu0
  %v2178 = vadd.f32 %v1001, %v2177
  %v2179 = vpop.f32.mrf.mxu0
  %v2180 = vadd.f32 %v1003, %v2179
  %v2181 = vpop.f32.mrf.mxu0
  %v2182 = vadd.f32 %v1005, %v2181
  %v2183 = vpop.f32.mrf.mxu0
  %v2184 = vadd.f32 %v1007, %v2183
  %2185 = vmatprep.mubr.bf16.mxu0 0
  %2186 = vmatmul.mubr.bf16.gmra.mxu0 %v1636
  %v2187 = vpop.f32.mrf.mxu0
  %v2188 = vadd.f32 %v1011, %v2187
  %v2189 = vpop.f32.mrf.mxu0
  %v2190 = vadd.f32 %v1013, %v2189
  %v2191 = vpop.f32.mrf.mxu0
  %v2192 = vadd.f32 %v1015, %v2191
  %v2193 = vpop.f32.mrf.mxu0
  %v2194 = vadd.f32 %v1017, %v2193
  %2195 = vmatprep.mubr.bf16.mxu0 0
  %2196 = vmatmul.mubr.bf16.gmra.mxu0 %v1639
  %v2197 = vpop.f32.mrf.mxu0
  %v2198 = vadd.f32 %v1021, %v2197
  %v2199 = vpop.f32.mrf.mxu0
  %v2200 = vadd.f32 %v1023, %v2199
  %v2201 = vpop.f32.mrf.mxu0
  %v2202 = vadd.f32 %v1025, %v2201
  %v2203 = vpop.f32.mrf.mxu0
  %v2204 = vadd.f32 %v1027, %v2203
  %2205 = vmatprep.mubr.bf16.mxu0 0
  %2206 = vmatmul.mubr.bf16.gmra.mxu0 %v1642
  %v2207 = vpop.f32.mrf.mxu0
  %v2208 = vadd.f32 %v1031, %v2207
  %v2209 = vpop.f32.mrf.mxu0
  %v2210 = vadd.f32 %v1033, %v2209
  %v2211 = vpop.f32.mrf.mxu0
  %v2212 = vadd.f32 %v1035, %v2211
  %v2213 = vpop.f32.mrf.mxu0
  %v2214 = vadd.f32 %v1037, %v2213
  %2215 = vmatprep.mubr.bf16.mxu0 0
  %2216 = vmatmul.mubr.bf16.gmra.mxu0 %v1645
  %v2217 = vpop.f32.mrf.mxu0
  %v2218 = vadd.f32 %v1041, %v2217
  %v2219 = vpop.f32.mrf.mxu0
  %v2220 = vadd.f32 %v1043, %v2219
  %v2221 = vpop.f32.mrf.mxu0
  %v2222 = vadd.f32 %v1045, %v2221
  %v2223 = vpop.f32.mrf.mxu0
  %v2224 = vadd.f32 %v1047, %v2223
  %2225 = vmatprep.mubr.bf16.mxu0 0
  %2226 = vmatmul.mubr.bf16.gmra.mxu0 %v1648
  %v2227 = vpop.f32.mrf.mxu0
  %v2228 = vadd.f32 %v1051, %v2227
  %v2229 = vpop.f32.mrf.mxu0
  %v2230 = vadd.f32 %v1053, %v2229
  %v2231 = vpop.f32.mrf.mxu0
  %v2232 = vadd.f32 %v1055, %v2231
  %v2233 = vpop.f32.mrf.mxu0
  %v2234 = vadd.f32 %v1057, %v2233
  %2235 = vmatprep.mubr.bf16.mxu0 0
  %2236 = vmatmul.mubr.bf16.gmra.mxu0 %v1651
  %v2237 = vpop.f32.mrf.mxu0
  %v2238 = vadd.f32 %v1061, %v2237
  %v2239 = vpop.f32.mrf.mxu0
  %v2240 = vadd.f32 %v1063, %v2239
  %v2241 = vpop.f32.mrf.mxu0
  %v2242 = vadd.f32 %v1065, %v2241
  %v2243 = vpop.f32.mrf.mxu0
  %v2244 = vadd.f32 %v1067, %v2243
  %2245 = vmatprep.mubr.bf16.mxu0 0
  %2246 = vmatmul.mubr.bf16.gmra.mxu0 %v1654
  %v2247 = vpop.f32.mrf.mxu0
  %v2248 = vpop.f32.mrf.mxu0
  %v2249 = vpop.f32.mrf.mxu0
  %v2250 = vpop.f32.mrf.mxu0
  %2251 = vdwg.mxu0
  %2252 = vmatprep.subr.bf16.mxu0 0
  %2253 = vmatpush1.bf16.msra.mxu0 0
  %2254 = vmatprep.subr.bf16.mxu0 0
  %2255 = vmatpush1.bf16.msra.mxu0 0
  %2256 = vmatprep.subr.bf16.mxu0 0
  %2257 = vmatpush1.bf16.msra.mxu0 0
  %2258 = vmatprep.subr.bf16.mxu0 0
  %2259 = vmatpush1.bf16.msra.mxu0 0
  %2260 = vmatprep.subr.bf16.mxu0 0
  %2261 = vmatpush1.bf16.msra.mxu0 0
  %2262 = vmatprep.subr.bf16.mxu0 %v1672
  %2263 = vmatpush1.bf16.msra.mxu0 %v1669
  %2264 = vmatprep.subr.bf16.mxu0 %v1559
  %2265 = vmatpush1.bf16.msra.mxu0 %v1558
  %2266 = vmatprep.subr.bf16.mxu0 %v1553
  %2267 = vmatpush1.bf16.msra.mxu0 %v1552
  %2268 = vmatprep.subr.bf16.mxu0 0
  %2269 = vmatpush2.bf16.msra.mxu0 0
  %2270 = vmatprep.subr.bf16.mxu0 0
  %2271 = vmatpush2.bf16.msra.mxu0 0
  %2272 = vmatprep.subr.bf16.mxu0 0
  %2273 = vmatpush2.bf16.msra.mxu0 0
  %2274 = vmatprep.subr.bf16.mxu0 0
  %2275 = vmatpush2.bf16.msra.mxu0 0
  %2276 = vmatprep.subr.bf16.mxu0 0
  %2277 = vmatpush2.bf16.msra.mxu0 0
  %2278 = vmatprep.subr.bf16.mxu0 0
  %2279 = vmatpush2.bf16.msra.mxu0 0
  %2280 = vmatprep.subr.bf16.mxu0 0
  %2281 = vmatpush2.bf16.msra.mxu0 0
  %2282 = vmatprep.subr.bf16.mxu0 0
  %2283 = vmatpush2.bf16.msra.mxu0 0
  %2284 = vmatprep.mubr.bf16.mxu0 0
  %2285 = vmatmul.mubr.bf16.gmra.mxu0 %v1579
  %v2286 = vpop.f32.mrf.mxu0
  %v2287 = vadd.f32 %v1110, %v2286
  %v2288 = vpop.f32.mrf.mxu0
  %v2289 = vadd.f32 %v1112, %v2288
  %v2290 = vpop.f32.mrf.mxu0
  %v2291 = vadd.f32 %v1114, %v2290
  %v2292 = vpop.f32.mrf.mxu0
  %v2293 = vadd.f32 %v1116, %v2292
  %2294 = vmatprep.mubr.bf16.mxu0 0
  %2295 = vmatmul.mubr.bf16.gmra.mxu0 %v1582
  %v2296 = vpop.f32.mrf.mxu0
  %v2297 = vadd.f32 %v1120, %v2296
  %v2298 = vpop.f32.mrf.mxu0
  %v2299 = vadd.f32 %v1122, %v2298
  %v2300 = vpop.f32.mrf.mxu0
  %v2301 = vadd.f32 %v1124, %v2300
  %v2302 = vpop.f32.mrf.mxu0
  %v2303 = vadd.f32 %v1126, %v2302
  %2304 = vmatprep.mubr.bf16.mxu0 0
  %2305 = vmatmul.mubr.bf16.gmra.mxu0 %v1585
  %v2306 = vpop.f32.mrf.mxu0
  %v2307 = vadd.f32 %v1130, %v2306
  %v2308 = vpop.f32.mrf.mxu0
  %v2309 = vadd.f32 %v1132, %v2308
  %v2310 = vpop.f32.mrf.mxu0
  %v2311 = vadd.f32 %v1134, %v2310
  %v2312 = vpop.f32.mrf.mxu0
  %v2313 = vadd.f32 %v1136, %v2312
  %2314 = vmatprep.mubr.bf16.mxu0 0
  %2315 = vmatmul.mubr.bf16.gmra.mxu0 %v1588
  %v2316 = vpop.f32.mrf.mxu0
  %v2317 = vadd.f32 %v1140, %v2316
  %v2318 = vpop.f32.mrf.mxu0
  %v2319 = vadd.f32 %v1142, %v2318
  %v2320 = vpop.f32.mrf.mxu0
  %v2321 = vadd.f32 %v1144, %v2320
  %v2322 = vpop.f32.mrf.mxu0
  %v2323 = vadd.f32 %v1146, %v2322
  %2324 = vmatprep.mubr.bf16.mxu0 0
  %2325 = vmatmul.mubr.bf16.gmra.mxu0 %v1591
  %v2326 = vpop.f32.mrf.mxu0
  %v2327 = vadd.f32 %v1150, %v2326
  %v2328 = vpop.f32.mrf.mxu0
  %v2329 = vadd.f32 %v1152, %v2328
  %v2330 = vpop.f32.mrf.mxu0
  %v2331 = vadd.f32 %v1154, %v2330
  %v2332 = vpop.f32.mrf.mxu0
  %v2333 = vadd.f32 %v1156, %v2332
  %2334 = vmatprep.mubr.bf16.mxu0 0
  %2335 = vmatmul.mubr.bf16.gmra.mxu0 %v1594
  %v2336 = vpop.f32.mrf.mxu0
  %v2337 = vadd.f32 %v1160, %v2336
  %v2338 = vpop.f32.mrf.mxu0
  %v2339 = vadd.f32 %v1162, %v2338
  %v2340 = vpop.f32.mrf.mxu0
  %v2341 = vadd.f32 %v1164, %v2340
  %v2342 = vpop.f32.mrf.mxu0
  %v2343 = vadd.f32 %v1166, %v2342
  %2344 = vmatprep.mubr.bf16.mxu0 0
  %2345 = vmatmul.mubr.bf16.gmra.mxu0 %v1597
  %v2346 = vpop.f32.mrf.mxu0
  %v2347 = vadd.f32 %v1170, %v2346
  %v2348 = vpop.f32.mrf.mxu0
  %v2349 = vadd.f32 %v1172, %v2348
  %v2350 = vpop.f32.mrf.mxu0
  %v2351 = vadd.f32 %v1174, %v2350
  %v2352 = vpop.f32.mrf.mxu0
  %v2353 = vadd.f32 %v1176, %v2352
  %2354 = vmatprep.mubr.bf16.mxu0 0
  %2355 = vmatmul.mubr.bf16.gmra.mxu0 %v1600
  %v2356 = vpop.f32.mrf.mxu0
  %v2357 = vadd.f32 %v1180, %v2356
  %v2358 = vpop.f32.mrf.mxu0
  %v2359 = vadd.f32 %v1182, %v2358
  %v2360 = vpop.f32.mrf.mxu0
  %v2361 = vadd.f32 %v1184, %v2360
  %v2362 = vpop.f32.mrf.mxu0
  %v2363 = vadd.f32 %v1186, %v2362
  %2364 = vmatprep.mubr.bf16.mxu0 0
  %2365 = vmatmul.mubr.bf16.gmra.mxu0 %v1603
  %v2366 = vpop.f32.mrf.mxu0
  %v2367 = vadd.f32 %v1190, %v2366
  %v2368 = vpop.f32.mrf.mxu0
  %v2369 = vadd.f32 %v1192, %v2368
  %v2370 = vpop.f32.mrf.mxu0
  %v2371 = vadd.f32 %v1194, %v2370
  %v2372 = vpop.f32.mrf.mxu0
  %v2373 = vadd.f32 %v1196, %v2372
  %2374 = vmatprep.mubr.bf16.mxu0 0
  %2375 = vmatmul.mubr.bf16.gmra.mxu0 %v1606
  %v2376 = vpop.f32.mrf.mxu0
  %v2377 = vadd.f32 %v1200, %v2376
  %v2378 = vpop.f32.mrf.mxu0
  %v2379 = vadd.f32 %v1202, %v2378
  %v2380 = vpop.f32.mrf.mxu0
  %v2381 = vadd.f32 %v1204, %v2380
  %v2382 = vpop.f32.mrf.mxu0
  %v2383 = vadd.f32 %v1206, %v2382
  %2384 = vmatprep.mubr.bf16.mxu0 0
  %2385 = vmatmul.mubr.bf16.gmra.mxu0 %v1609
  %v2386 = vpop.f32.mrf.mxu0
  %v2387 = vadd.f32 %v1210, %v2386
  %v2388 = vpop.f32.mrf.mxu0
  %v2389 = vadd.f32 %v1212, %v2388
  %v2390 = vpop.f32.mrf.mxu0
  %v2391 = vadd.f32 %v1214, %v2390
  %v2392 = vpop.f32.mrf.mxu0
  %v2393 = vadd.f32 %v1216, %v2392
  %2394 = vmatprep.mubr.bf16.mxu0 0
  %2395 = vmatmul.mubr.bf16.gmra.mxu0 %v1612
  %v2396 = vpop.f32.mrf.mxu0
  %v2397 = vadd.f32 %v1220, %v2396
  %v2398 = vpop.f32.mrf.mxu0
  %v2399 = vadd.f32 %v1222, %v2398
  %v2400 = vpop.f32.mrf.mxu0
  %v2401 = vadd.f32 %v1224, %v2400
  %v2402 = vpop.f32.mrf.mxu0
  %v2403 = vadd.f32 %v1226, %v2402
  %2404 = vmatprep.mubr.bf16.mxu0 0
  %2405 = vmatmul.mubr.bf16.gmra.mxu0 %v1615
  %v2406 = vpop.f32.mrf.mxu0
  %v2407 = vadd.f32 %v1230, %v2406
  %v2408 = vpop.f32.mrf.mxu0
  %v2409 = vadd.f32 %v1232, %v2408
  %v2410 = vpop.f32.mrf.mxu0
  %v2411 = vadd.f32 %v1234, %v2410
  %v2412 = vpop.f32.mrf.mxu0
  %v2413 = vadd.f32 %v1236, %v2412
  %2414 = vmatprep.mubr.bf16.mxu0 0
  %2415 = vmatmul.mubr.bf16.gmra.mxu0 %v1618
  %v2416 = vpop.f32.mrf.mxu0
  %v2417 = vadd.f32 %v1240, %v2416
  %v2418 = vpop.f32.mrf.mxu0
  %v2419 = vadd.f32 %v1242, %v2418
  %v2420 = vpop.f32.mrf.mxu0
  %v2421 = vadd.f32 %v1244, %v2420
  %v2422 = vpop.f32.mrf.mxu0
  %v2423 = vadd.f32 %v1246, %v2422
  %2424 = vmatprep.mubr.bf16.mxu0 0
  %2425 = vmatmul.mubr.bf16.gmra.mxu0 %v1621
  %v2426 = vpop.f32.mrf.mxu0
  %v2427 = vadd.f32 %v1250, %v2426
  %v2428 = vpop.f32.mrf.mxu0
  %v2429 = vadd.f32 %v1252, %v2428
  %v2430 = vpop.f32.mrf.mxu0
  %v2431 = vadd.f32 %v1254, %v2430
  %v2432 = vpop.f32.mrf.mxu0
  %v2433 = vadd.f32 %v1256, %v2432
  %2434 = vmatprep.mubr.bf16.mxu0 0
  %2435 = vmatmul.mubr.bf16.gmra.mxu0 %v1624
  %v2436 = vpop.f32.mrf.mxu0
  %v2437 = vadd.f32 %v1260, %v2436
  %v2438 = vpop.f32.mrf.mxu0
  %v2439 = vadd.f32 %v1262, %v2438
  %v2440 = vpop.f32.mrf.mxu0
  %v2441 = vadd.f32 %v1264, %v2440
  %v2442 = vpop.f32.mrf.mxu0
  %v2443 = vadd.f32 %v1266, %v2442
  %2444 = vmatprep.mubr.bf16.mxu0 0
  %2445 = vmatmul.mubr.bf16.gmra.mxu0 %v1627
  %v2446 = vpop.f32.mrf.mxu0
  %v2447 = vadd.f32 %v1270, %v2446
  %v2448 = vpop.f32.mrf.mxu0
  %v2449 = vadd.f32 %v1272, %v2448
  %v2450 = vpop.f32.mrf.mxu0
  %v2451 = vadd.f32 %v1274, %v2450
  %v2452 = vpop.f32.mrf.mxu0
  %v2453 = vadd.f32 %v1276, %v2452
  %2454 = vmatprep.mubr.bf16.mxu0 0
  %2455 = vmatmul.mubr.bf16.gmra.mxu0 %v1630
  %v2456 = vpop.f32.mrf.mxu0
  %v2457 = vadd.f32 %v1280, %v2456
  %v2458 = vpop.f32.mrf.mxu0
  %v2459 = vadd.f32 %v1282, %v2458
  %v2460 = vpop.f32.mrf.mxu0
  %v2461 = vadd.f32 %v1284, %v2460
  %v2462 = vpop.f32.mrf.mxu0
  %v2463 = vadd.f32 %v1286, %v2462
  %2464 = vmatprep.mubr.bf16.mxu0 0
  %2465 = vmatmul.mubr.bf16.gmra.mxu0 %v1633
  %v2466 = vpop.f32.mrf.mxu0
  %v2467 = vadd.f32 %v1290, %v2466
  %v2468 = vpop.f32.mrf.mxu0
  %v2469 = vadd.f32 %v1292, %v2468
  %v2470 = vpop.f32.mrf.mxu0
  %v2471 = vadd.f32 %v1294, %v2470
  %v2472 = vpop.f32.mrf.mxu0
  %v2473 = vadd.f32 %v1296, %v2472
  %2474 = vmatprep.mubr.bf16.mxu0 0
  %2475 = vmatmul.mubr.bf16.gmra.mxu0 %v1636
  %v2476 = vpop.f32.mrf.mxu0
  %v2477 = vadd.f32 %v1300, %v2476
  %v2478 = vpop.f32.mrf.mxu0
  %v2479 = vadd.f32 %v1302, %v2478
  %v2480 = vpop.f32.mrf.mxu0
  %v2481 = vadd.f32 %v1304, %v2480
  %v2482 = vpop.f32.mrf.mxu0
  %v2483 = vadd.f32 %v1306, %v2482
  %2484 = vmatprep.mubr.bf16.mxu0 0
  %2485 = vmatmul.mubr.bf16.gmra.mxu0 %v1639
  %v2486 = vpop.f32.mrf.mxu0
  %v2487 = vadd.f32 %v1310, %v2486
  %v2488 = vpop.f32.mrf.mxu0
  %v2489 = vadd.f32 %v1312, %v2488
  %v2490 = vpop.f32.mrf.mxu0
  %v2491 = vadd.f32 %v1314, %v2490
  %v2492 = vpop.f32.mrf.mxu0
  %v2493 = vadd.f32 %v1316, %v2492
  %2494 = vmatprep.mubr.bf16.mxu0 0
  %2495 = vmatmul.mubr.bf16.gmra.mxu0 %v1642
  %v2496 = vpop.f32.mrf.mxu0
  %v2497 = vadd.f32 %v1320, %v2496
  %v2498 = vpop.f32.mrf.mxu0
  %v2499 = vadd.f32 %v1322, %v2498
  %v2500 = vpop.f32.mrf.mxu0
  %v2501 = vadd.f32 %v1324, %v2500
  %v2502 = vpop.f32.mrf.mxu0
  %v2503 = vadd.f32 %v1326, %v2502
  %2504 = vmatprep.mubr.bf16.mxu0 0
  %2505 = vmatmul.mubr.bf16.gmra.mxu0 %v1645
  %v2506 = vpop.f32.mrf.mxu0
  %v2507 = vadd.f32 %v1330, %v2506
  %v2508 = vpop.f32.mrf.mxu0
  %v2509 = vadd.f32 %v1332, %v2508
  %v2510 = vpop.f32.mrf.mxu0
  %v2511 = vadd.f32 %v1334, %v2510
  %v2512 = vpop.f32.mrf.mxu0
  %v2513 = vadd.f32 %v1336, %v2512
  %2514 = vmatprep.mubr.bf16.mxu0 0
  %2515 = vmatmul.mubr.bf16.gmra.mxu0 %v1648
  %v2516 = vpop.f32.mrf.mxu0
  %v2517 = vadd.f32 %v1340, %v2516
  %v2518 = vpop.f32.mrf.mxu0
  %v2519 = vadd.f32 %v1342, %v2518
  %v2520 = vpop.f32.mrf.mxu0
  %v2521 = vadd.f32 %v1344, %v2520
  %v2522 = vpop.f32.mrf.mxu0
  %v2523 = vadd.f32 %v1346, %v2522
  %2524 = vmatprep.mubr.bf16.mxu0 0
  %2525 = vmatmul.mubr.bf16.gmra.mxu0 %v1651
  %v2526 = vpop.f32.mrf.mxu0
  %v2527 = vadd.f32 %v1350, %v2526
  %v2528 = vpop.f32.mrf.mxu0
  %v2529 = vadd.f32 %v1352, %v2528
  %v2530 = vpop.f32.mrf.mxu0
  %v2531 = vadd.f32 %v1354, %v2530
  %v2532 = vpop.f32.mrf.mxu0
  %v2533 = vadd.f32 %v1356, %v2532
  %2534 = vmatprep.mubr.bf16.mxu0 0
  %2535 = vmatmul.mubr.bf16.gmra.mxu0 %v1654
  %v2536 = vpop.f32.mrf.mxu0
  %v2537 = vpop.f32.mrf.mxu0
  %v2538 = vpop.f32.mrf.mxu0
  %v2539 = vpop.f32.mrf.mxu0
  %2540 = vdwg.mxu0
  %s2541 = scalar_lea.vmem %s1, 288
  %v2542 = vld [vmem:[%s2541] sm:$0xff]
  %v2543 = vld [vmem:[%s2541 + $0x8] sm:$0xff]
  %v2544 = vld [vmem:[%s2541 + $0x10] sm:$0xff]
  %v2545 = vld [vmem:[%s2541 + $0x18] sm:$0xff]
  %v2546 = vld [vmem:[%s2541 + $0x20] sm:$0xff]
  %v2547 = vld [vmem:[%s2541 + $0x28] sm:$0xff]
  %v2548 = vld [vmem:[%s2541 + $0x30] sm:$0xff]
  %v2549 = vld [vmem:[%s2541 + $0x38] sm:$0xff]
  %v2550 = vld [vmem:[%s2541 + $0x40] sm:$0xff]
  %v2551 = vld [vmem:[%s2541 + $0x48] sm:$0xff]
  %v2552 = vld [vmem:[%s2541 + $0x50] sm:$0xff]
  %v2553 = vld [vmem:[%s2541 + $0x58] sm:$0xff]
  %v2554 = vld [vmem:[%s2541 + $0x60] sm:$0xff]
  %v2555 = vld [vmem:[%s2541 + $0x68] sm:$0xff]
  %v2556 = vld [vmem:[%s2541 + $0x70] sm:$0xff]
  %v2557 = vld [vmem:[%s2541 + $0x78] sm:$0xff]
  %v2558 = vld [vmem:[%s2541 + $0x80] sm:$0xff]
  %v2559 = vld [vmem:[%s2541 + $0x88] sm:$0xff]
  %v2562 = vunpack.c.l.b16 %v143
  %v2563 = vunpack.c.l.b16 %v144
  %v2564 = vpack.c.b16 %v2563, %v2562
  %v2583 = vunpack.c.l.b16 %v2542
  %v2584 = vunpack.c.h.b16 %v2542
  %v2585 = vunpack.c.l.b16 %v2543
  %v2586 = vunpack.c.h.b16 %v2543
  %v2587 = vunpack.c.l.b16 %v2544
  %v2588 = vunpack.c.h.b16 %v2544
  %v2589 = vunpack.c.l.b16 %v2545
  %v2590 = vunpack.c.h.b16 %v2545
  %v2591 = vunpack.c.l.b16 %v2546
  %v2592 = vunpack.c.h.b16 %v2546
  %v2593 = vunpack.c.l.b16 %v2547
  %v2594 = vunpack.c.h.b16 %v2547
  %v2595 = vunpack.c.l.b16 %v2548
  %v2596 = vunpack.c.h.b16 %v2548
  %v2597 = vunpack.c.l.b16 %v2549
  %v2598 = vunpack.c.h.b16 %v2549
  %v2599 = vunpack.c.l.b16 %v2550
  %v2600 = vunpack.c.h.b16 %v2550
  %v2601 = vunpack.c.l.b16 %v2551
  %v2602 = vunpack.c.h.b16 %v2551
  %v2603 = vunpack.c.l.b16 %v2552
  %v2604 = vunpack.c.h.b16 %v2552
  %v2605 = vunpack.c.l.b16 %v2553
  %v2606 = vunpack.c.h.b16 %v2553
  %v2607 = vunpack.c.l.b16 %v2554
  %v2608 = vunpack.c.h.b16 %v2554
  %v2609 = vunpack.c.l.b16 %v2555
  %v2610 = vunpack.c.h.b16 %v2555
  %v2611 = vunpack.c.l.b16 %v2556
  %v2612 = vunpack.c.h.b16 %v2556
  %v2613 = vunpack.c.l.b16 %v2557
  %v2614 = vunpack.c.h.b16 %v2557
  %v2615 = vunpack.c.l.b16 %v2558
  %v2616 = vunpack.c.h.b16 %v2558
  %v2617 = vunpack.c.l.b16 %v2559
  %v2618 = vunpack.c.h.b16 %v2559
  %v2619 = vpack.c.b16 %v2589, %v2583
  %v2620 = vpack.c.b16 %v2590, %v2584
  %v2621 = vpack.c.b16 %v2591, %v2585
  %v2622 = vpack.c.b16 %v2592, %v2586
  %v2623 = vpack.c.b16 %v2593, %v2587
  %v2624 = vpack.c.b16 %v2594, %v2588
  %v2625 = vpack.c.b16 %v2601, %v2595
  %v2626 = vpack.c.b16 %v2602, %v2596
  %v2627 = vpack.c.b16 %v2603, %v2597
  %v2628 = vpack.c.b16 %v2604, %v2598
  %v2629 = vpack.c.b16 %v2605, %v2599
  %v2630 = vpack.c.b16 %v2606, %v2600
  %v2631 = vpack.c.b16 %v2613, %v2607
  %v2632 = vpack.c.b16 %v2614, %v2608
  %v2633 = vpack.c.b16 %v2615, %v2609
  %v2634 = vpack.c.b16 %v2616, %v2610
  %v2635 = vpack.c.b16 %v2617, %v2611
  %v2636 = vpack.c.b16 %v2618, %v2612
  %v2650 = vsel %vm396, %v2564, 0
  %v2653 = vand.u32 %v2631, %v478
  %v2656 = vand.u32 %v2632, %v478
  %v2659 = vand.u32 %v2633, %v478
  %v2662 = vand.u32 %v2634, %v478
  %v2665 = vand.u32 %v2635, %v478
  %v2668 = vand.u32 %v2636, %v478
  %2670 = vmatprep.subr.bf16.mxu0 0
  %2671 = vmatpush1.bf16.msra.mxu0 0
  %2672 = vmatprep.subr.bf16.mxu0 0
  %2673 = vmatpush1.bf16.msra.mxu0 0
  %2674 = vmatprep.subr.bf16.mxu0 0
  %2675 = vmatpush1.bf16.msra.mxu0 0
  %2676 = vmatprep.subr.bf16.mxu0 0
  %2677 = vmatpush1.bf16.msra.mxu0 0
  %2678 = vmatprep.subr.bf16.mxu0 0
  %2679 = vmatpush1.bf16.msra.mxu0 0
  %2680 = vmatprep.subr.bf16.mxu0 %v2656
  %2681 = vmatpush1.bf16.msra.mxu0 %v2653
  %2682 = vmatprep.subr.bf16.mxu0 %v2626
  %2683 = vmatpush1.bf16.msra.mxu0 %v2625
  %2684 = vmatprep.subr.bf16.mxu0 %v2620
  %2685 = vmatpush1.bf16.msra.mxu0 %v2619
  %2686 = vmatprep.subr.bf16.mxu0 0
  %2687 = vmatpush2.bf16.msra.mxu0 0
  %2688 = vmatprep.subr.bf16.mxu0 0
  %2689 = vmatpush2.bf16.msra.mxu0 0
  %2690 = vmatprep.subr.bf16.mxu0 0
  %2691 = vmatpush2.bf16.msra.mxu0 0
  %2692 = vmatprep.subr.bf16.mxu0 0
  %2693 = vmatpush2.bf16.msra.mxu0 0
  %2694 = vmatprep.subr.bf16.mxu0 0
  %2695 = vmatpush2.bf16.msra.mxu0 0
  %2696 = vmatprep.subr.bf16.mxu0 0
  %2697 = vmatpush2.bf16.msra.mxu0 0
  %2698 = vmatprep.subr.bf16.mxu0 0
  %2699 = vmatpush2.bf16.msra.mxu0 0
  %2700 = vmatprep.subr.bf16.mxu0 0
  %2701 = vmatpush2.bf16.msra.mxu0 0
  %2702 = vmatprep.mubr.bf16.mxu0 0
  %2703 = vmatmul.mubr.bf16.gmra.mxu0 %v1582
  %v2704 = vpop.f32.mrf.mxu0
  %v2705 = vadd.f32 0.0, %v2704
  %v2706 = vpop.f32.mrf.mxu0
  %v2707 = vadd.f32 0.0, %v2706
  %v2708 = vpop.f32.mrf.mxu0
  %v2709 = vadd.f32 0.0, %v2708
  %v2710 = vpop.f32.mrf.mxu0
  %v2711 = vadd.f32 0.0, %v2710
  %2712 = vmatprep.mubr.bf16.mxu0 0
  %2713 = vmatmul.mubr.bf16.gmra.mxu0 %v1585
  %v2714 = vpop.f32.mrf.mxu0
  %v2715 = vadd.f32 0.0, %v2714
  %v2716 = vpop.f32.mrf.mxu0
  %v2717 = vadd.f32 0.0, %v2716
  %v2718 = vpop.f32.mrf.mxu0
  %v2719 = vadd.f32 0.0, %v2718
  %v2720 = vpop.f32.mrf.mxu0
  %v2721 = vadd.f32 0.0, %v2720
  %2722 = vmatprep.mubr.bf16.mxu0 0
  %2723 = vmatmul.mubr.bf16.gmra.mxu0 %v1588
  %v2724 = vpop.f32.mrf.mxu0
  %v2725 = vadd.f32 0.0, %v2724
  %v2726 = vpop.f32.mrf.mxu0
  %v2727 = vadd.f32 0.0, %v2726
  %v2728 = vpop.f32.mrf.mxu0
  %v2729 = vadd.f32 0.0, %v2728
  %v2730 = vpop.f32.mrf.mxu0
  %v2731 = vadd.f32 0.0, %v2730
  %2732 = vmatprep.mubr.bf16.mxu0 0
  %2733 = vmatmul.mubr.bf16.gmra.mxu0 %v1591
  %v2734 = vpop.f32.mrf.mxu0
  %v2735 = vadd.f32 0.0, %v2734
  %v2736 = vpop.f32.mrf.mxu0
  %v2737 = vadd.f32 0.0, %v2736
  %v2738 = vpop.f32.mrf.mxu0
  %v2739 = vadd.f32 0.0, %v2738
  %v2740 = vpop.f32.mrf.mxu0
  %v2741 = vadd.f32 0.0, %v2740
  %2742 = vmatprep.mubr.bf16.mxu0 0
  %2743 = vmatmul.mubr.bf16.gmra.mxu0 %v1594
  %v2744 = vpop.f32.mrf.mxu0
  %v2745 = vadd.f32 0.0, %v2744
  %v2746 = vpop.f32.mrf.mxu0
  %v2747 = vadd.f32 0.0, %v2746
  %v2748 = vpop.f32.mrf.mxu0
  %v2749 = vadd.f32 0.0, %v2748
  %v2750 = vpop.f32.mrf.mxu0
  %v2751 = vadd.f32 0.0, %v2750
  %2752 = vmatprep.mubr.bf16.mxu0 0
  %2753 = vmatmul.mubr.bf16.gmra.mxu0 %v1597
  %v2754 = vpop.f32.mrf.mxu0
  %v2755 = vadd.f32 0.0, %v2754
  %v2756 = vpop.f32.mrf.mxu0
  %v2757 = vadd.f32 0.0, %v2756
  %v2758 = vpop.f32.mrf.mxu0
  %v2759 = vadd.f32 0.0, %v2758
  %v2760 = vpop.f32.mrf.mxu0
  %v2761 = vadd.f32 0.0, %v2760
  %2762 = vmatprep.mubr.bf16.mxu0 0
  %2763 = vmatmul.mubr.bf16.gmra.mxu0 %v1600
  %v2764 = vpop.f32.mrf.mxu0
  %v2765 = vadd.f32 0.0, %v2764
  %v2766 = vpop.f32.mrf.mxu0
  %v2767 = vadd.f32 0.0, %v2766
  %v2768 = vpop.f32.mrf.mxu0
  %v2769 = vadd.f32 0.0, %v2768
  %v2770 = vpop.f32.mrf.mxu0
  %v2771 = vadd.f32 0.0, %v2770
  %2772 = vmatprep.mubr.bf16.mxu0 0
  %2773 = vmatmul.mubr.bf16.gmra.mxu0 %v1603
  %v2774 = vpop.f32.mrf.mxu0
  %v2775 = vadd.f32 0.0, %v2774
  %v2776 = vpop.f32.mrf.mxu0
  %v2777 = vadd.f32 0.0, %v2776
  %v2778 = vpop.f32.mrf.mxu0
  %v2779 = vadd.f32 0.0, %v2778
  %v2780 = vpop.f32.mrf.mxu0
  %v2781 = vadd.f32 0.0, %v2780
  %2782 = vmatprep.mubr.bf16.mxu0 0
  %2783 = vmatmul.mubr.bf16.gmra.mxu0 %v1606
  %v2784 = vpop.f32.mrf.mxu0
  %v2785 = vadd.f32 0.0, %v2784
  %v2786 = vpop.f32.mrf.mxu0
  %v2787 = vadd.f32 0.0, %v2786
  %v2788 = vpop.f32.mrf.mxu0
  %v2789 = vadd.f32 0.0, %v2788
  %v2790 = vpop.f32.mrf.mxu0
  %v2791 = vadd.f32 0.0, %v2790
  %2792 = vmatprep.mubr.bf16.mxu0 0
  %2793 = vmatmul.mubr.bf16.gmra.mxu0 %v1609
  %v2794 = vpop.f32.mrf.mxu0
  %v2795 = vadd.f32 0.0, %v2794
  %v2796 = vpop.f32.mrf.mxu0
  %v2797 = vadd.f32 0.0, %v2796
  %v2798 = vpop.f32.mrf.mxu0
  %v2799 = vadd.f32 0.0, %v2798
  %v2800 = vpop.f32.mrf.mxu0
  %v2801 = vadd.f32 0.0, %v2800
  %2802 = vmatprep.mubr.bf16.mxu0 0
  %2803 = vmatmul.mubr.bf16.gmra.mxu0 %v1612
  %v2804 = vpop.f32.mrf.mxu0
  %v2805 = vadd.f32 0.0, %v2804
  %v2806 = vpop.f32.mrf.mxu0
  %v2807 = vadd.f32 0.0, %v2806
  %v2808 = vpop.f32.mrf.mxu0
  %v2809 = vadd.f32 0.0, %v2808
  %v2810 = vpop.f32.mrf.mxu0
  %v2811 = vadd.f32 0.0, %v2810
  %2812 = vmatprep.mubr.bf16.mxu0 0
  %2813 = vmatmul.mubr.bf16.gmra.mxu0 %v1615
  %v2814 = vpop.f32.mrf.mxu0
  %v2815 = vadd.f32 0.0, %v2814
  %v2816 = vpop.f32.mrf.mxu0
  %v2817 = vadd.f32 0.0, %v2816
  %v2818 = vpop.f32.mrf.mxu0
  %v2819 = vadd.f32 0.0, %v2818
  %v2820 = vpop.f32.mrf.mxu0
  %v2821 = vadd.f32 0.0, %v2820
  %2822 = vmatprep.mubr.bf16.mxu0 0
  %2823 = vmatmul.mubr.bf16.gmra.mxu0 %v1618
  %v2824 = vpop.f32.mrf.mxu0
  %v2825 = vadd.f32 0.0, %v2824
  %v2826 = vpop.f32.mrf.mxu0
  %v2827 = vadd.f32 0.0, %v2826
  %v2828 = vpop.f32.mrf.mxu0
  %v2829 = vadd.f32 0.0, %v2828
  %v2830 = vpop.f32.mrf.mxu0
  %v2831 = vadd.f32 0.0, %v2830
  %2832 = vmatprep.mubr.bf16.mxu0 0
  %2833 = vmatmul.mubr.bf16.gmra.mxu0 %v1621
  %v2834 = vpop.f32.mrf.mxu0
  %v2835 = vadd.f32 0.0, %v2834
  %v2836 = vpop.f32.mrf.mxu0
  %v2837 = vadd.f32 0.0, %v2836
  %v2838 = vpop.f32.mrf.mxu0
  %v2839 = vadd.f32 0.0, %v2838
  %v2840 = vpop.f32.mrf.mxu0
  %v2841 = vadd.f32 0.0, %v2840
  %2842 = vmatprep.mubr.bf16.mxu0 0
  %2843 = vmatmul.mubr.bf16.gmra.mxu0 %v1624
  %v2844 = vpop.f32.mrf.mxu0
  %v2845 = vadd.f32 0.0, %v2844
  %v2846 = vpop.f32.mrf.mxu0
  %v2847 = vadd.f32 0.0, %v2846
  %v2848 = vpop.f32.mrf.mxu0
  %v2849 = vadd.f32 0.0, %v2848
  %v2850 = vpop.f32.mrf.mxu0
  %v2851 = vadd.f32 0.0, %v2850
  %2852 = vmatprep.mubr.bf16.mxu0 0
  %2853 = vmatmul.mubr.bf16.gmra.mxu0 %v1627
  %v2854 = vpop.f32.mrf.mxu0
  %v2855 = vadd.f32 0.0, %v2854
  %v2856 = vpop.f32.mrf.mxu0
  %v2857 = vadd.f32 0.0, %v2856
  %v2858 = vpop.f32.mrf.mxu0
  %v2859 = vadd.f32 0.0, %v2858
  %v2860 = vpop.f32.mrf.mxu0
  %v2861 = vadd.f32 0.0, %v2860
  %2862 = vmatprep.mubr.bf16.mxu0 0
  %2863 = vmatmul.mubr.bf16.gmra.mxu0 %v1630
  %v2864 = vpop.f32.mrf.mxu0
  %v2865 = vadd.f32 0.0, %v2864
  %v2866 = vpop.f32.mrf.mxu0
  %v2867 = vadd.f32 0.0, %v2866
  %v2868 = vpop.f32.mrf.mxu0
  %v2869 = vadd.f32 0.0, %v2868
  %v2870 = vpop.f32.mrf.mxu0
  %v2871 = vadd.f32 0.0, %v2870
  %2872 = vmatprep.mubr.bf16.mxu0 0
  %2873 = vmatmul.mubr.bf16.gmra.mxu0 %v1633
  %v2874 = vpop.f32.mrf.mxu0
  %v2875 = vadd.f32 0.0, %v2874
  %v2876 = vpop.f32.mrf.mxu0
  %v2877 = vadd.f32 0.0, %v2876
  %v2878 = vpop.f32.mrf.mxu0
  %v2879 = vadd.f32 0.0, %v2878
  %v2880 = vpop.f32.mrf.mxu0
  %v2881 = vadd.f32 0.0, %v2880
  %2882 = vmatprep.mubr.bf16.mxu0 0
  %2883 = vmatmul.mubr.bf16.gmra.mxu0 %v1636
  %v2884 = vpop.f32.mrf.mxu0
  %v2885 = vadd.f32 0.0, %v2884
  %v2886 = vpop.f32.mrf.mxu0
  %v2887 = vadd.f32 0.0, %v2886
  %v2888 = vpop.f32.mrf.mxu0
  %v2889 = vadd.f32 0.0, %v2888
  %v2890 = vpop.f32.mrf.mxu0
  %v2891 = vadd.f32 0.0, %v2890
  %2892 = vmatprep.mubr.bf16.mxu0 0
  %2893 = vmatmul.mubr.bf16.gmra.mxu0 %v1639
  %v2894 = vpop.f32.mrf.mxu0
  %v2895 = vadd.f32 0.0, %v2894
  %v2896 = vpop.f32.mrf.mxu0
  %v2897 = vadd.f32 0.0, %v2896
  %v2898 = vpop.f32.mrf.mxu0
  %v2899 = vadd.f32 0.0, %v2898
  %v2900 = vpop.f32.mrf.mxu0
  %v2901 = vadd.f32 0.0, %v2900
  %2902 = vmatprep.mubr.bf16.mxu0 0
  %2903 = vmatmul.mubr.bf16.gmra.mxu0 %v1642
  %v2904 = vpop.f32.mrf.mxu0
  %v2905 = vadd.f32 0.0, %v2904
  %v2906 = vpop.f32.mrf.mxu0
  %v2907 = vadd.f32 0.0, %v2906
  %v2908 = vpop.f32.mrf.mxu0
  %v2909 = vadd.f32 0.0, %v2908
  %v2910 = vpop.f32.mrf.mxu0
  %v2911 = vadd.f32 0.0, %v2910
  %2912 = vmatprep.mubr.bf16.mxu0 0
  %2913 = vmatmul.mubr.bf16.gmra.mxu0 %v1645
  %v2914 = vpop.f32.mrf.mxu0
  %v2915 = vadd.f32 0.0, %v2914
  %v2916 = vpop.f32.mrf.mxu0
  %v2917 = vadd.f32 0.0, %v2916
  %v2918 = vpop.f32.mrf.mxu0
  %v2919 = vadd.f32 0.0, %v2918
  %v2920 = vpop.f32.mrf.mxu0
  %v2921 = vadd.f32 0.0, %v2920
  %2922 = vmatprep.mubr.bf16.mxu0 0
  %2923 = vmatmul.mubr.bf16.gmra.mxu0 %v1648
  %v2924 = vpop.f32.mrf.mxu0
  %v2925 = vadd.f32 0.0, %v2924
  %v2926 = vpop.f32.mrf.mxu0
  %v2927 = vadd.f32 0.0, %v2926
  %v2928 = vpop.f32.mrf.mxu0
  %v2929 = vadd.f32 0.0, %v2928
  %v2930 = vpop.f32.mrf.mxu0
  %v2931 = vadd.f32 0.0, %v2930
  %2932 = vmatprep.mubr.bf16.mxu0 0
  %2933 = vmatmul.mubr.bf16.gmra.mxu0 %v1651
  %v2934 = vpop.f32.mrf.mxu0
  %v2935 = vadd.f32 0.0, %v2934
  %v2936 = vpop.f32.mrf.mxu0
  %v2937 = vadd.f32 0.0, %v2936
  %v2938 = vpop.f32.mrf.mxu0
  %v2939 = vadd.f32 0.0, %v2938
  %v2940 = vpop.f32.mrf.mxu0
  %v2941 = vadd.f32 0.0, %v2940
  %2942 = vmatprep.mubr.bf16.mxu0 0
  %2943 = vmatmul.mubr.bf16.gmra.mxu0 %v1654
  %v2944 = vpop.f32.mrf.mxu0
  %v2945 = vadd.f32 0.0, %v2944
  %v2946 = vpop.f32.mrf.mxu0
  %v2947 = vadd.f32 0.0, %v2946
  %v2948 = vpop.f32.mrf.mxu0
  %v2949 = vadd.f32 0.0, %v2948
  %v2950 = vpop.f32.mrf.mxu0
  %v2951 = vadd.f32 0.0, %v2950
  %2952 = vmatprep.mubr.bf16.mxu0 0
  %2953 = vmatmul.mubr.bf16.gmra.mxu0 %v2650
  %v2954 = vpop.f32.mrf.mxu0
  %v2955 = vpop.f32.mrf.mxu0
  %v2956 = vpop.f32.mrf.mxu0
  %v2957 = vpop.f32.mrf.mxu0
  %2958 = vdwg.mxu0
  %2959 = vmatprep.subr.bf16.mxu0 0
  %2960 = vmatpush1.bf16.msra.mxu0 0
  %2961 = vmatprep.subr.bf16.mxu0 0
  %2962 = vmatpush1.bf16.msra.mxu0 0
  %2963 = vmatprep.subr.bf16.mxu0 0
  %2964 = vmatpush1.bf16.msra.mxu0 0
  %2965 = vmatprep.subr.bf16.mxu0 0
  %2966 = vmatpush1.bf16.msra.mxu0 0
  %2967 = vmatprep.subr.bf16.mxu0 0
  %2968 = vmatpush1.bf16.msra.mxu0 0
  %2969 = vmatprep.subr.bf16.mxu0 %v2662
  %2970 = vmatpush1.bf16.msra.mxu0 %v2659
  %2971 = vmatprep.subr.bf16.mxu0 %v2628
  %2972 = vmatpush1.bf16.msra.mxu0 %v2627
  %2973 = vmatprep.subr.bf16.mxu0 %v2622
  %2974 = vmatpush1.bf16.msra.mxu0 %v2621
  %2975 = vmatprep.subr.bf16.mxu0 0
  %2976 = vmatpush2.bf16.msra.mxu0 0
  %2977 = vmatprep.subr.bf16.mxu0 0
  %2978 = vmatpush2.bf16.msra.mxu0 0
  %2979 = vmatprep.subr.bf16.mxu0 0
  %2980 = vmatpush2.bf16.msra.mxu0 0
  %2981 = vmatprep.subr.bf16.mxu0 0
  %2982 = vmatpush2.bf16.msra.mxu0 0
  %2983 = vmatprep.subr.bf16.mxu0 0
  %2984 = vmatpush2.bf16.msra.mxu0 0
  %2985 = vmatprep.subr.bf16.mxu0 0
  %2986 = vmatpush2.bf16.msra.mxu0 0
  %2987 = vmatprep.subr.bf16.mxu0 0
  %2988 = vmatpush2.bf16.msra.mxu0 0
  %2989 = vmatprep.subr.bf16.mxu0 0
  %2990 = vmatpush2.bf16.msra.mxu0 0
  %2991 = vmatprep.mubr.bf16.mxu0 0
  %2992 = vmatmul.mubr.bf16.gmra.mxu0 %v1582
  %v2993 = vpop.f32.mrf.mxu0
  %v2994 = vadd.f32 0.0, %v2993
  %v2995 = vpop.f32.mrf.mxu0
  %v2996 = vadd.f32 0.0, %v2995
  %v2997 = vpop.f32.mrf.mxu0
  %v2998 = vadd.f32 0.0, %v2997
  %v2999 = vpop.f32.mrf.mxu0
  %v3000 = vadd.f32 0.0, %v2999
  %3001 = vmatprep.mubr.bf16.mxu0 0
  %3002 = vmatmul.mubr.bf16.gmra.mxu0 %v1585
  %v3003 = vpop.f32.mrf.mxu0
  %v3004 = vadd.f32 0.0, %v3003
  %v3005 = vpop.f32.mrf.mxu0
  %v3006 = vadd.f32 0.0, %v3005
  %v3007 = vpop.f32.mrf.mxu0
  %v3008 = vadd.f32 0.0, %v3007
  %v3009 = vpop.f32.mrf.mxu0
  %v3010 = vadd.f32 0.0, %v3009
  %3011 = vmatprep.mubr.bf16.mxu0 0
  %3012 = vmatmul.mubr.bf16.gmra.mxu0 %v1588
  %v3013 = vpop.f32.mrf.mxu0
  %v3014 = vadd.f32 0.0, %v3013
  %v3015 = vpop.f32.mrf.mxu0
  %v3016 = vadd.f32 0.0, %v3015
  %v3017 = vpop.f32.mrf.mxu0
  %v3018 = vadd.f32 0.0, %v3017
  %v3019 = vpop.f32.mrf.mxu0
  %v3020 = vadd.f32 0.0, %v3019
  %3021 = vmatprep.mubr.bf16.mxu0 0
  %3022 = vmatmul.mubr.bf16.gmra.mxu0 %v1591
  %v3023 = vpop.f32.mrf.mxu0
  %v3024 = vadd.f32 0.0, %v3023
  %v3025 = vpop.f32.mrf.mxu0
  %v3026 = vadd.f32 0.0, %v3025
  %v3027 = vpop.f32.mrf.mxu0
  %v3028 = vadd.f32 0.0, %v3027
  %v3029 = vpop.f32.mrf.mxu0
  %v3030 = vadd.f32 0.0, %v3029
  %3031 = vmatprep.mubr.bf16.mxu0 0
  %3032 = vmatmul.mubr.bf16.gmra.mxu0 %v1594
  %v3033 = vpop.f32.mrf.mxu0
  %v3034 = vadd.f32 0.0, %v3033
  %v3035 = vpop.f32.mrf.mxu0
  %v3036 = vadd.f32 0.0, %v3035
  %v3037 = vpop.f32.mrf.mxu0
  %v3038 = vadd.f32 0.0, %v3037
  %v3039 = vpop.f32.mrf.mxu0
  %v3040 = vadd.f32 0.0, %v3039
  %3041 = vmatprep.mubr.bf16.mxu0 0
  %3042 = vmatmul.mubr.bf16.gmra.mxu0 %v1597
  %v3043 = vpop.f32.mrf.mxu0
  %v3044 = vadd.f32 0.0, %v3043
  %v3045 = vpop.f32.mrf.mxu0
  %v3046 = vadd.f32 0.0, %v3045
  %v3047 = vpop.f32.mrf.mxu0
  %v3048 = vadd.f32 0.0, %v3047
  %v3049 = vpop.f32.mrf.mxu0
  %v3050 = vadd.f32 0.0, %v3049
  %3051 = vmatprep.mubr.bf16.mxu0 0
  %3052 = vmatmul.mubr.bf16.gmra.mxu0 %v1600
  %v3053 = vpop.f32.mrf.mxu0
  %v3054 = vadd.f32 0.0, %v3053
  %v3055 = vpop.f32.mrf.mxu0
  %v3056 = vadd.f32 0.0, %v3055
  %v3057 = vpop.f32.mrf.mxu0
  %v3058 = vadd.f32 0.0, %v3057
  %v3059 = vpop.f32.mrf.mxu0
  %v3060 = vadd.f32 0.0, %v3059
  %3061 = vmatprep.mubr.bf16.mxu0 0
  %3062 = vmatmul.mubr.bf16.gmra.mxu0 %v1603
  %v3063 = vpop.f32.mrf.mxu0
  %v3064 = vadd.f32 0.0, %v3063
  %v3065 = vpop.f32.mrf.mxu0
  %v3066 = vadd.f32 0.0, %v3065
  %v3067 = vpop.f32.mrf.mxu0
  %v3068 = vadd.f32 0.0, %v3067
  %v3069 = vpop.f32.mrf.mxu0
  %v3070 = vadd.f32 0.0, %v3069
  %3071 = vmatprep.mubr.bf16.mxu0 0
  %3072 = vmatmul.mubr.bf16.gmra.mxu0 %v1606
  %v3073 = vpop.f32.mrf.mxu0
  %v3074 = vadd.f32 0.0, %v3073
  %v3075 = vpop.f32.mrf.mxu0
  %v3076 = vadd.f32 0.0, %v3075
  %v3077 = vpop.f32.mrf.mxu0
  %v3078 = vadd.f32 0.0, %v3077
  %v3079 = vpop.f32.mrf.mxu0
  %v3080 = vadd.f32 0.0, %v3079
  %3081 = vmatprep.mubr.bf16.mxu0 0
  %3082 = vmatmul.mubr.bf16.gmra.mxu0 %v1609
  %v3083 = vpop.f32.mrf.mxu0
  %v3084 = vadd.f32 0.0, %v3083
  %v3085 = vpop.f32.mrf.mxu0
  %v3086 = vadd.f32 0.0, %v3085
  %v3087 = vpop.f32.mrf.mxu0
  %v3088 = vadd.f32 0.0, %v3087
  %v3089 = vpop.f32.mrf.mxu0
  %v3090 = vadd.f32 0.0, %v3089
  %3091 = vmatprep.mubr.bf16.mxu0 0
  %3092 = vmatmul.mubr.bf16.gmra.mxu0 %v1612
  %v3093 = vpop.f32.mrf.mxu0
  %v3094 = vadd.f32 0.0, %v3093
  %v3095 = vpop.f32.mrf.mxu0
  %v3096 = vadd.f32 0.0, %v3095
  %v3097 = vpop.f32.mrf.mxu0
  %v3098 = vadd.f32 0.0, %v3097
  %v3099 = vpop.f32.mrf.mxu0
  %v3100 = vadd.f32 0.0, %v3099
  %3101 = vmatprep.mubr.bf16.mxu0 0
  %3102 = vmatmul.mubr.bf16.gmra.mxu0 %v1615
  %v3103 = vpop.f32.mrf.mxu0
  %v3104 = vadd.f32 0.0, %v3103
  %v3105 = vpop.f32.mrf.mxu0
  %v3106 = vadd.f32 0.0, %v3105
  %v3107 = vpop.f32.mrf.mxu0
  %v3108 = vadd.f32 0.0, %v3107
  %v3109 = vpop.f32.mrf.mxu0
  %v3110 = vadd.f32 0.0, %v3109
  %3111 = vmatprep.mubr.bf16.mxu0 0
  %3112 = vmatmul.mubr.bf16.gmra.mxu0 %v1618
  %v3113 = vpop.f32.mrf.mxu0
  %v3114 = vadd.f32 0.0, %v3113
  %v3115 = vpop.f32.mrf.mxu0
  %v3116 = vadd.f32 0.0, %v3115
  %v3117 = vpop.f32.mrf.mxu0
  %v3118 = vadd.f32 0.0, %v3117
  %v3119 = vpop.f32.mrf.mxu0
  %v3120 = vadd.f32 0.0, %v3119
  %3121 = vmatprep.mubr.bf16.mxu0 0
  %3122 = vmatmul.mubr.bf16.gmra.mxu0 %v1621
  %v3123 = vpop.f32.mrf.mxu0
  %v3124 = vadd.f32 0.0, %v3123
  %v3125 = vpop.f32.mrf.mxu0
  %v3126 = vadd.f32 0.0, %v3125
  %v3127 = vpop.f32.mrf.mxu0
  %v3128 = vadd.f32 0.0, %v3127
  %v3129 = vpop.f32.mrf.mxu0
  %v3130 = vadd.f32 0.0, %v3129
  %3131 = vmatprep.mubr.bf16.mxu0 0
  %3132 = vmatmul.mubr.bf16.gmra.mxu0 %v1624
  %v3133 = vpop.f32.mrf.mxu0
  %v3134 = vadd.f32 0.0, %v3133
  %v3135 = vpop.f32.mrf.mxu0
  %v3136 = vadd.f32 0.0, %v3135
  %v3137 = vpop.f32.mrf.mxu0
  %v3138 = vadd.f32 0.0, %v3137
  %v3139 = vpop.f32.mrf.mxu0
  %v3140 = vadd.f32 0.0, %v3139
  %3141 = vmatprep.mubr.bf16.mxu0 0
  %3142 = vmatmul.mubr.bf16.gmra.mxu0 %v1627
  %v3143 = vpop.f32.mrf.mxu0
  %v3144 = vadd.f32 0.0, %v3143
  %v3145 = vpop.f32.mrf.mxu0
  %v3146 = vadd.f32 0.0, %v3145
  %v3147 = vpop.f32.mrf.mxu0
  %v3148 = vadd.f32 0.0, %v3147
  %v3149 = vpop.f32.mrf.mxu0
  %v3150 = vadd.f32 0.0, %v3149
  %3151 = vmatprep.mubr.bf16.mxu0 0
  %3152 = vmatmul.mubr.bf16.gmra.mxu0 %v1630
  %v3153 = vpop.f32.mrf.mxu0
  %v3154 = vadd.f32 0.0, %v3153
  %v3155 = vpop.f32.mrf.mxu0
  %v3156 = vadd.f32 0.0, %v3155
  %v3157 = vpop.f32.mrf.mxu0
  %v3158 = vadd.f32 0.0, %v3157
  %v3159 = vpop.f32.mrf.mxu0
  %v3160 = vadd.f32 0.0, %v3159
  %3161 = vmatprep.mubr.bf16.mxu0 0
  %3162 = vmatmul.mubr.bf16.gmra.mxu0 %v1633
  %v3163 = vpop.f32.mrf.mxu0
  %v3164 = vadd.f32 0.0, %v3163
  %v3165 = vpop.f32.mrf.mxu0
  %v3166 = vadd.f32 0.0, %v3165
  %v3167 = vpop.f32.mrf.mxu0
  %v3168 = vadd.f32 0.0, %v3167
  %v3169 = vpop.f32.mrf.mxu0
  %v3170 = vadd.f32 0.0, %v3169
  %3171 = vmatprep.mubr.bf16.mxu0 0
  %3172 = vmatmul.mubr.bf16.gmra.mxu0 %v1636
  %v3173 = vpop.f32.mrf.mxu0
  %v3174 = vadd.f32 0.0, %v3173
  %v3175 = vpop.f32.mrf.mxu0
  %v3176 = vadd.f32 0.0, %v3175
  %v3177 = vpop.f32.mrf.mxu0
  %v3178 = vadd.f32 0.0, %v3177
  %v3179 = vpop.f32.mrf.mxu0
  %v3180 = vadd.f32 0.0, %v3179
  %3181 = vmatprep.mubr.bf16.mxu0 0
  %3182 = vmatmul.mubr.bf16.gmra.mxu0 %v1639
  %v3183 = vpop.f32.mrf.mxu0
  %v3184 = vadd.f32 0.0, %v3183
  %v3185 = vpop.f32.mrf.mxu0
  %v3186 = vadd.f32 0.0, %v3185
  %v3187 = vpop.f32.mrf.mxu0
  %v3188 = vadd.f32 0.0, %v3187
  %v3189 = vpop.f32.mrf.mxu0
  %v3190 = vadd.f32 0.0, %v3189
  %3191 = vmatprep.mubr.bf16.mxu0 0
  %3192 = vmatmul.mubr.bf16.gmra.mxu0 %v1642
  %v3193 = vpop.f32.mrf.mxu0
  %v3194 = vadd.f32 0.0, %v3193
  %v3195 = vpop.f32.mrf.mxu0
  %v3196 = vadd.f32 0.0, %v3195
  %v3197 = vpop.f32.mrf.mxu0
  %v3198 = vadd.f32 0.0, %v3197
  %v3199 = vpop.f32.mrf.mxu0
  %v3200 = vadd.f32 0.0, %v3199
  %3201 = vmatprep.mubr.bf16.mxu0 0
  %3202 = vmatmul.mubr.bf16.gmra.mxu0 %v1645
  %v3203 = vpop.f32.mrf.mxu0
  %v3204 = vadd.f32 0.0, %v3203
  %v3205 = vpop.f32.mrf.mxu0
  %v3206 = vadd.f32 0.0, %v3205
  %v3207 = vpop.f32.mrf.mxu0
  %v3208 = vadd.f32 0.0, %v3207
  %v3209 = vpop.f32.mrf.mxu0
  %v3210 = vadd.f32 0.0, %v3209
  %3211 = vmatprep.mubr.bf16.mxu0 0
  %3212 = vmatmul.mubr.bf16.gmra.mxu0 %v1648
  %v3213 = vpop.f32.mrf.mxu0
  %v3214 = vadd.f32 0.0, %v3213
  %v3215 = vpop.f32.mrf.mxu0
  %v3216 = vadd.f32 0.0, %v3215
  %v3217 = vpop.f32.mrf.mxu0
  %v3218 = vadd.f32 0.0, %v3217
  %v3219 = vpop.f32.mrf.mxu0
  %v3220 = vadd.f32 0.0, %v3219
  %3221 = vmatprep.mubr.bf16.mxu0 0
  %3222 = vmatmul.mubr.bf16.gmra.mxu0 %v1651
  %v3223 = vpop.f32.mrf.mxu0
  %v3224 = vadd.f32 0.0, %v3223
  %v3225 = vpop.f32.mrf.mxu0
  %v3226 = vadd.f32 0.0, %v3225
  %v3227 = vpop.f32.mrf.mxu0
  %v3228 = vadd.f32 0.0, %v3227
  %v3229 = vpop.f32.mrf.mxu0
  %v3230 = vadd.f32 0.0, %v3229
  %3231 = vmatprep.mubr.bf16.mxu0 0
  %3232 = vmatmul.mubr.bf16.gmra.mxu0 %v1654
  %v3233 = vpop.f32.mrf.mxu0
  %v3234 = vadd.f32 0.0, %v3233
  %v3235 = vpop.f32.mrf.mxu0
  %v3236 = vadd.f32 0.0, %v3235
  %v3237 = vpop.f32.mrf.mxu0
  %v3238 = vadd.f32 0.0, %v3237
  %v3239 = vpop.f32.mrf.mxu0
  %v3240 = vadd.f32 0.0, %v3239
  %3241 = vmatprep.mubr.bf16.mxu0 0
  %3242 = vmatmul.mubr.bf16.gmra.mxu0 %v2650
  %v3243 = vpop.f32.mrf.mxu0
  %v3244 = vpop.f32.mrf.mxu0
  %v3245 = vpop.f32.mrf.mxu0
  %v3246 = vpop.f32.mrf.mxu0
  %3247 = vdwg.mxu0
  %3248 = vmatprep.subr.bf16.mxu0 0
  %3249 = vmatpush1.bf16.msra.mxu0 0
  %3250 = vmatprep.subr.bf16.mxu0 0
  %3251 = vmatpush1.bf16.msra.mxu0 0
  %3252 = vmatprep.subr.bf16.mxu0 0
  %3253 = vmatpush1.bf16.msra.mxu0 0
  %3254 = vmatprep.subr.bf16.mxu0 0
  %3255 = vmatpush1.bf16.msra.mxu0 0
  %3256 = vmatprep.subr.bf16.mxu0 0
  %3257 = vmatpush1.bf16.msra.mxu0 0
  %3258 = vmatprep.subr.bf16.mxu0 %v2668
  %3259 = vmatpush1.bf16.msra.mxu0 %v2665
  %3260 = vmatprep.subr.bf16.mxu0 %v2630
  %3261 = vmatpush1.bf16.msra.mxu0 %v2629
  %3262 = vmatprep.subr.bf16.mxu0 %v2624
  %3263 = vmatpush1.bf16.msra.mxu0 %v2623
  %3264 = vmatprep.subr.bf16.mxu0 0
  %3265 = vmatpush2.bf16.msra.mxu0 0
  %3266 = vmatprep.subr.bf16.mxu0 0
  %3267 = vmatpush2.bf16.msra.mxu0 0
  %3268 = vmatprep.subr.bf16.mxu0 0
  %3269 = vmatpush2.bf16.msra.mxu0 0
  %3270 = vmatprep.subr.bf16.mxu0 0
  %3271 = vmatpush2.bf16.msra.mxu0 0
  %3272 = vmatprep.subr.bf16.mxu0 0
  %3273 = vmatpush2.bf16.msra.mxu0 0
  %3274 = vmatprep.subr.bf16.mxu0 0
  %3275 = vmatpush2.bf16.msra.mxu0 0
  %3276 = vmatprep.subr.bf16.mxu0 0
  %3277 = vmatpush2.bf16.msra.mxu0 0
  %3278 = vmatprep.subr.bf16.mxu0 0
  %3279 = vmatpush2.bf16.msra.mxu0 0
  %3280 = vmatprep.mubr.bf16.mxu0 0
  %3281 = vmatmul.mubr.bf16.gmra.mxu0 %v1582
  %v3282 = vpop.f32.mrf.mxu0
  %v3283 = vadd.f32 0.0, %v3282
  %v3284 = vpop.f32.mrf.mxu0
  %v3285 = vadd.f32 0.0, %v3284
  %v3286 = vpop.f32.mrf.mxu0
  %v3287 = vadd.f32 0.0, %v3286
  %v3288 = vpop.f32.mrf.mxu0
  %v3289 = vadd.f32 0.0, %v3288
  %3290 = vmatprep.mubr.bf16.mxu0 0
  %3291 = vmatmul.mubr.bf16.gmra.mxu0 %v1585
  %v3292 = vpop.f32.mrf.mxu0
  %v3293 = vadd.f32 0.0, %v3292
  %v3294 = vpop.f32.mrf.mxu0
  %v3295 = vadd.f32 0.0, %v3294
  %v3296 = vpop.f32.mrf.mxu0
  %v3297 = vadd.f32 0.0, %v3296
  %v3298 = vpop.f32.mrf.mxu0
  %v3299 = vadd.f32 0.0, %v3298
  %3300 = vmatprep.mubr.bf16.mxu0 0
  %3301 = vmatmul.mubr.bf16.gmra.mxu0 %v1588
  %v3302 = vpop.f32.mrf.mxu0
  %v3303 = vadd.f32 0.0, %v3302
  %v3304 = vpop.f32.mrf.mxu0
  %v3305 = vadd.f32 0.0, %v3304
  %v3306 = vpop.f32.mrf.mxu0
  %v3307 = vadd.f32 0.0, %v3306
  %v3308 = vpop.f32.mrf.mxu0
  %v3309 = vadd.f32 0.0, %v3308
  %3310 = vmatprep.mubr.bf16.mxu0 0
  %3311 = vmatmul.mubr.bf16.gmra.mxu0 %v1591
  %v3312 = vpop.f32.mrf.mxu0
  %v3313 = vadd.f32 0.0, %v3312
  %v3314 = vpop.f32.mrf.mxu0
  %v3315 = vadd.f32 0.0, %v3314
  %v3316 = vpop.f32.mrf.mxu0
  %v3317 = vadd.f32 0.0, %v3316
  %v3318 = vpop.f32.mrf.mxu0
  %v3319 = vadd.f32 0.0, %v3318
  %3320 = vmatprep.mubr.bf16.mxu0 0
  %3321 = vmatmul.mubr.bf16.gmra.mxu0 %v1594
  %v3322 = vpop.f32.mrf.mxu0
  %v3323 = vadd.f32 0.0, %v3322
  %v3324 = vpop.f32.mrf.mxu0
  %v3325 = vadd.f32 0.0, %v3324
  %v3326 = vpop.f32.mrf.mxu0
  %v3327 = vadd.f32 0.0, %v3326
  %v3328 = vpop.f32.mrf.mxu0
  %v3329 = vadd.f32 0.0, %v3328
  %3330 = vmatprep.mubr.bf16.mxu0 0
  %3331 = vmatmul.mubr.bf16.gmra.mxu0 %v1597
  %v3332 = vpop.f32.mrf.mxu0
  %v3333 = vadd.f32 0.0, %v3332
  %v3334 = vpop.f32.mrf.mxu0
  %v3335 = vadd.f32 0.0, %v3334
  %v3336 = vpop.f32.mrf.mxu0
  %v3337 = vadd.f32 0.0, %v3336
  %v3338 = vpop.f32.mrf.mxu0
  %v3339 = vadd.f32 0.0, %v3338
  %3340 = vmatprep.mubr.bf16.mxu0 0
  %3341 = vmatmul.mubr.bf16.gmra.mxu0 %v1600
  %v3342 = vpop.f32.mrf.mxu0
  %v3343 = vadd.f32 0.0, %v3342
  %v3344 = vpop.f32.mrf.mxu0
  %v3345 = vadd.f32 0.0, %v3344
  %v3346 = vpop.f32.mrf.mxu0
  %v3347 = vadd.f32 0.0, %v3346
  %v3348 = vpop.f32.mrf.mxu0
  %v3349 = vadd.f32 0.0, %v3348
  %3350 = vmatprep.mubr.bf16.mxu0 0
  %3351 = vmatmul.mubr.bf16.gmra.mxu0 %v1603
  %v3352 = vpop.f32.mrf.mxu0
  %v3353 = vadd.f32 0.0, %v3352
  %v3354 = vpop.f32.mrf.mxu0
  %v3355 = vadd.f32 0.0, %v3354
  %v3356 = vpop.f32.mrf.mxu0
  %v3357 = vadd.f32 0.0, %v3356
  %v3358 = vpop.f32.mrf.mxu0
  %v3359 = vadd.f32 0.0, %v3358
  %3360 = vmatprep.mubr.bf16.mxu0 0
  %3361 = vmatmul.mubr.bf16.gmra.mxu0 %v1606
  %v3362 = vpop.f32.mrf.mxu0
  %v3363 = vadd.f32 0.0, %v3362
  %v3364 = vpop.f32.mrf.mxu0
  %v3365 = vadd.f32 0.0, %v3364
  %v3366 = vpop.f32.mrf.mxu0
  %v3367 = vadd.f32 0.0, %v3366
  %v3368 = vpop.f32.mrf.mxu0
  %v3369 = vadd.f32 0.0, %v3368
  %3370 = vmatprep.mubr.bf16.mxu0 0
  %3371 = vmatmul.mubr.bf16.gmra.mxu0 %v1609
  %v3372 = vpop.f32.mrf.mxu0
  %v3373 = vadd.f32 0.0, %v3372
  %v3374 = vpop.f32.mrf.mxu0
  %v3375 = vadd.f32 0.0, %v3374
  %v3376 = vpop.f32.mrf.mxu0
  %v3377 = vadd.f32 0.0, %v3376
  %v3378 = vpop.f32.mrf.mxu0
  %v3379 = vadd.f32 0.0, %v3378
  %3380 = vmatprep.mubr.bf16.mxu0 0
  %3381 = vmatmul.mubr.bf16.gmra.mxu0 %v1612
  %v3382 = vpop.f32.mrf.mxu0
  %v3383 = vadd.f32 0.0, %v3382
  %v3384 = vpop.f32.mrf.mxu0
  %v3385 = vadd.f32 0.0, %v3384
  %v3386 = vpop.f32.mrf.mxu0
  %v3387 = vadd.f32 0.0, %v3386
  %v3388 = vpop.f32.mrf.mxu0
  %v3389 = vadd.f32 0.0, %v3388
  %3390 = vmatprep.mubr.bf16.mxu0 0
  %3391 = vmatmul.mubr.bf16.gmra.mxu0 %v1615
  %v3392 = vpop.f32.mrf.mxu0
  %v3393 = vadd.f32 0.0, %v3392
  %v3394 = vpop.f32.mrf.mxu0
  %v3395 = vadd.f32 0.0, %v3394
  %v3396 = vpop.f32.mrf.mxu0
  %v3397 = vadd.f32 0.0, %v3396
  %v3398 = vpop.f32.mrf.mxu0
  %v3399 = vadd.f32 0.0, %v3398
  %3400 = vmatprep.mubr.bf16.mxu0 0
  %3401 = vmatmul.mubr.bf16.gmra.mxu0 %v1618
  %v3402 = vpop.f32.mrf.mxu0
  %v3403 = vadd.f32 0.0, %v3402
  %v3404 = vpop.f32.mrf.mxu0
  %v3405 = vadd.f32 0.0, %v3404
  %v3406 = vpop.f32.mrf.mxu0
  %v3407 = vadd.f32 0.0, %v3406
  %v3408 = vpop.f32.mrf.mxu0
  %v3409 = vadd.f32 0.0, %v3408
  %3410 = vmatprep.mubr.bf16.mxu0 0
  %3411 = vmatmul.mubr.bf16.gmra.mxu0 %v1621
  %v3412 = vpop.f32.mrf.mxu0
  %v3413 = vadd.f32 0.0, %v3412
  %v3414 = vpop.f32.mrf.mxu0
  %v3415 = vadd.f32 0.0, %v3414
  %v3416 = vpop.f32.mrf.mxu0
  %v3417 = vadd.f32 0.0, %v3416
  %v3418 = vpop.f32.mrf.mxu0
  %v3419 = vadd.f32 0.0, %v3418
  %3420 = vmatprep.mubr.bf16.mxu0 0
  %3421 = vmatmul.mubr.bf16.gmra.mxu0 %v1624
  %v3422 = vpop.f32.mrf.mxu0
  %v3423 = vadd.f32 0.0, %v3422
  %v3424 = vpop.f32.mrf.mxu0
  %v3425 = vadd.f32 0.0, %v3424
  %v3426 = vpop.f32.mrf.mxu0
  %v3427 = vadd.f32 0.0, %v3426
  %v3428 = vpop.f32.mrf.mxu0
  %v3429 = vadd.f32 0.0, %v3428
  %3430 = vmatprep.mubr.bf16.mxu0 0
  %3431 = vmatmul.mubr.bf16.gmra.mxu0 %v1627
  %v3432 = vpop.f32.mrf.mxu0
  %v3433 = vadd.f32 0.0, %v3432
  %v3434 = vpop.f32.mrf.mxu0
  %v3435 = vadd.f32 0.0, %v3434
  %v3436 = vpop.f32.mrf.mxu0
  %v3437 = vadd.f32 0.0, %v3436
  %v3438 = vpop.f32.mrf.mxu0
  %v3439 = vadd.f32 0.0, %v3438
  %3440 = vmatprep.mubr.bf16.mxu0 0
  %3441 = vmatmul.mubr.bf16.gmra.mxu0 %v1630
  %v3442 = vpop.f32.mrf.mxu0
  %v3443 = vadd.f32 0.0, %v3442
  %v3444 = vpop.f32.mrf.mxu0
  %v3445 = vadd.f32 0.0, %v3444
  %v3446 = vpop.f32.mrf.mxu0
  %v3447 = vadd.f32 0.0, %v3446
  %v3448 = vpop.f32.mrf.mxu0
  %v3449 = vadd.f32 0.0, %v3448
  %3450 = vmatprep.mubr.bf16.mxu0 0
  %3451 = vmatmul.mubr.bf16.gmra.mxu0 %v1633
  %v3452 = vpop.f32.mrf.mxu0
  %v3453 = vadd.f32 0.0, %v3452
  %v3454 = vpop.f32.mrf.mxu0
  %v3455 = vadd.f32 0.0, %v3454
  %v3456 = vpop.f32.mrf.mxu0
  %v3457 = vadd.f32 0.0, %v3456
  %v3458 = vpop.f32.mrf.mxu0
  %v3459 = vadd.f32 0.0, %v3458
  %3460 = vmatprep.mubr.bf16.mxu0 0
  %3461 = vmatmul.mubr.bf16.gmra.mxu0 %v1636
  %v3462 = vpop.f32.mrf.mxu0
  %v3463 = vadd.f32 0.0, %v3462
  %v3464 = vpop.f32.mrf.mxu0
  %v3465 = vadd.f32 0.0, %v3464
  %v3466 = vpop.f32.mrf.mxu0
  %v3467 = vadd.f32 0.0, %v3466
  %v3468 = vpop.f32.mrf.mxu0
  %v3469 = vadd.f32 0.0, %v3468
  %3470 = vmatprep.mubr.bf16.mxu0 0
  %3471 = vmatmul.mubr.bf16.gmra.mxu0 %v1639
  %v3472 = vpop.f32.mrf.mxu0
  %v3473 = vadd.f32 0.0, %v3472
  %v3474 = vpop.f32.mrf.mxu0
  %v3475 = vadd.f32 0.0, %v3474
  %v3476 = vpop.f32.mrf.mxu0
  %v3477 = vadd.f32 0.0, %v3476
  %v3478 = vpop.f32.mrf.mxu0
  %v3479 = vadd.f32 0.0, %v3478
  %3480 = vmatprep.mubr.bf16.mxu0 0
  %3481 = vmatmul.mubr.bf16.gmra.mxu0 %v1642
  %v3482 = vpop.f32.mrf.mxu0
  %v3483 = vadd.f32 0.0, %v3482
  %v3484 = vpop.f32.mrf.mxu0
  %v3485 = vadd.f32 0.0, %v3484
  %v3486 = vpop.f32.mrf.mxu0
  %v3487 = vadd.f32 0.0, %v3486
  %v3488 = vpop.f32.mrf.mxu0
  %v3489 = vadd.f32 0.0, %v3488
  %3490 = vmatprep.mubr.bf16.mxu0 0
  %3491 = vmatmul.mubr.bf16.gmra.mxu0 %v1645
  %v3492 = vpop.f32.mrf.mxu0
  %v3493 = vadd.f32 0.0, %v3492
  %v3494 = vpop.f32.mrf.mxu0
  %v3495 = vadd.f32 0.0, %v3494
  %v3496 = vpop.f32.mrf.mxu0
  %v3497 = vadd.f32 0.0, %v3496
  %v3498 = vpop.f32.mrf.mxu0
  %v3499 = vadd.f32 0.0, %v3498
  %3500 = vmatprep.mubr.bf16.mxu0 0
  %3501 = vmatmul.mubr.bf16.gmra.mxu0 %v1648
  %v3502 = vpop.f32.mrf.mxu0
  %v3503 = vadd.f32 0.0, %v3502
  %v3504 = vpop.f32.mrf.mxu0
  %v3505 = vadd.f32 0.0, %v3504
  %v3506 = vpop.f32.mrf.mxu0
  %v3507 = vadd.f32 0.0, %v3506
  %v3508 = vpop.f32.mrf.mxu0
  %v3509 = vadd.f32 0.0, %v3508
  %3510 = vmatprep.mubr.bf16.mxu0 0
  %3511 = vmatmul.mubr.bf16.gmra.mxu0 %v1651
  %v3512 = vpop.f32.mrf.mxu0
  %v3513 = vadd.f32 0.0, %v3512
  %v3514 = vpop.f32.mrf.mxu0
  %v3515 = vadd.f32 0.0, %v3514
  %v3516 = vpop.f32.mrf.mxu0
  %v3517 = vadd.f32 0.0, %v3516
  %v3518 = vpop.f32.mrf.mxu0
  %v3519 = vadd.f32 0.0, %v3518
  %3520 = vmatprep.mubr.bf16.mxu0 0
  %3521 = vmatmul.mubr.bf16.gmra.mxu0 %v1654
  %v3522 = vpop.f32.mrf.mxu0
  %v3523 = vadd.f32 0.0, %v3522
  %v3524 = vpop.f32.mrf.mxu0
  %v3525 = vadd.f32 0.0, %v3524
  %v3526 = vpop.f32.mrf.mxu0
  %v3527 = vadd.f32 0.0, %v3526
  %v3528 = vpop.f32.mrf.mxu0
  %v3529 = vadd.f32 0.0, %v3528
  %3530 = vmatprep.mubr.bf16.mxu0 0
  %3531 = vmatmul.mubr.bf16.gmra.mxu0 %v2650
  %v3532 = vpop.f32.mrf.mxu0
  %v3533 = vpop.f32.mrf.mxu0
  %v3534 = vpop.f32.mrf.mxu0
  %v3535 = vpop.f32.mrf.mxu0
  %3536 = vdwg.mxu0
  %v3537 = vadd.f32 %v1709, %v2705
  %v3538 = vadd.f32 %v1711, %v2707
  %v3539 = vadd.f32 %v1998, %v2994
  %v3540 = vadd.f32 %v2000, %v2996
  %v3541 = vadd.f32 %v2287, %v3283
  %v3542 = vadd.f32 %v2289, %v3285
  %v3543 = vadd.f32 %v1713, %v2709
  %v3544 = vadd.f32 %v1715, %v2711
  %v3545 = vadd.f32 %v2002, %v2998
  %v3546 = vadd.f32 %v2004, %v3000
  %v3547 = vadd.f32 %v2291, %v3287
  %v3548 = vadd.f32 %v2293, %v3289
  %v3549 = vadd.f32 %v1719, %v2715
  %v3550 = vadd.f32 %v1721, %v2717
  %v3551 = vadd.f32 %v2008, %v3004
  %v3552 = vadd.f32 %v2010, %v3006
  %v3553 = vadd.f32 %v2297, %v3293
  %v3554 = vadd.f32 %v2299, %v3295
  %v3555 = vadd.f32 %v1723, %v2719
  %v3556 = vadd.f32 %v1725, %v2721
  %v3557 = vadd.f32 %v2012, %v3008
  %v3558 = vadd.f32 %v2014, %v3010
  %v3559 = vadd.f32 %v2301, %v3297
  %v3560 = vadd.f32 %v2303, %v3299
  %v3561 = vadd.f32 %v1729, %v2725
  %v3562 = vadd.f32 %v1731, %v2727
  %v3563 = vadd.f32 %v2018, %v3014
  %v3564 = vadd.f32 %v2020, %v3016
  %v3565 = vadd.f32 %v2307, %v3303
  %v3566 = vadd.f32 %v2309, %v3305
  %v3567 = vadd.f32 %v1733, %v2729
  %v3568 = vadd.f32 %v1735, %v2731
  %v3569 = vadd.f32 %v2022, %v3018
  %v3570 = vadd.f32 %v2024, %v3020
  %v3571 = vadd.f32 %v2311, %v3307
  %v3572 = vadd.f32 %v2313, %v3309
  %v3573 = vadd.f32 %v1739, %v2735
  %v3574 = vadd.f32 %v1741, %v2737
  %v3575 = vadd.f32 %v2028, %v3024
  %v3576 = vadd.f32 %v2030, %v3026
  %v3577 = vadd.f32 %v2317, %v3313
  %v3578 = vadd.f32 %v2319, %v3315
  %v3579 = vadd.f32 %v1743, %v2739
  %v3580 = vadd.f32 %v1745, %v2741
  %v3581 = vadd.f32 %v2032, %v3028
  %v3582 = vadd.f32 %v2034, %v3030
  %v3583 = vadd.f32 %v2321, %v3317
  %v3584 = vadd.f32 %v2323, %v3319
  %v3585 = vadd.f32 %v1749, %v2745
  %v3586 = vadd.f32 %v1751, %v2747
  %v3587 = vadd.f32 %v2038, %v3034
  %v3588 = vadd.f32 %v2040, %v3036
  %v3589 = vadd.f32 %v2327, %v3323
  %v3590 = vadd.f32 %v2329, %v3325
  %v3591 = vadd.f32 %v1753, %v2749
  %v3592 = vadd.f32 %v1755, %v2751
  %v3593 = vadd.f32 %v2042, %v3038
  %v3594 = vadd.f32 %v2044, %v3040
  %v3595 = vadd.f32 %v2331, %v3327
  %v3596 = vadd.f32 %v2333, %v3329
  %v3597 = vadd.f32 %v1759, %v2755
  %v3598 = vadd.f32 %v1761, %v2757
  %v3599 = vadd.f32 %v2048, %v3044
  %v3600 = vadd.f32 %v2050, %v3046
  %v3601 = vadd.f32 %v2337, %v3333
  %v3602 = vadd.f32 %v2339, %v3335
  %v3603 = vadd.f32 %v1763, %v2759
  %v3604 = vadd.f32 %v1765, %v2761
  %v3605 = vadd.f32 %v2052, %v3048
  %v3606 = vadd.f32 %v2054, %v3050
  %v3607 = vadd.f32 %v2341, %v3337
  %v3608 = vadd.f32 %v2343, %v3339
  %v3609 = vadd.f32 %v1769, %v2765
  %v3610 = vadd.f32 %v1771, %v2767
  %v3611 = vadd.f32 %v2058, %v3054
  %v3612 = vadd.f32 %v2060, %v3056
  %v3613 = vadd.f32 %v2347, %v3343
  %v3614 = vadd.f32 %v2349, %v3345
  %v3615 = vadd.f32 %v1773, %v2769
  %v3616 = vadd.f32 %v1775, %v2771
  %v3617 = vadd.f32 %v2062, %v3058
  %v3618 = vadd.f32 %v2064, %v3060
  %v3619 = vadd.f32 %v2351, %v3347
  %v3620 = vadd.f32 %v2353, %v3349
  %v3621 = vadd.f32 %v1779, %v2775
  %v3622 = vadd.f32 %v1781, %v2777
  %v3623 = vadd.f32 %v2068, %v3064
  %v3624 = vadd.f32 %v2070, %v3066
  %v3625 = vadd.f32 %v2357, %v3353
  %v3626 = vadd.f32 %v2359, %v3355
  %v3627 = vadd.f32 %v1783, %v2779
  %v3628 = vadd.f32 %v1785, %v2781
  %v3629 = vadd.f32 %v2072, %v3068
  %v3630 = vadd.f32 %v2074, %v3070
  %v3631 = vadd.f32 %v2361, %v3357
  %v3632 = vadd.f32 %v2363, %v3359
  %v3633 = vadd.f32 %v1789, %v2785
  %v3634 = vadd.f32 %v1791, %v2787
  %v3635 = vadd.f32 %v2078, %v3074
  %v3636 = vadd.f32 %v2080, %v3076
  %v3637 = vadd.f32 %v2367, %v3363
  %v3638 = vadd.f32 %v2369, %v3365
  %v3639 = vadd.f32 %v1793, %v2789
  %v3640 = vadd.f32 %v1795, %v2791
  %v3641 = vadd.f32 %v2082, %v3078
  %v3642 = vadd.f32 %v2084, %v3080
  %v3643 = vadd.f32 %v2371, %v3367
  %v3644 = vadd.f32 %v2373, %v3369
  %v3645 = vadd.f32 %v1799, %v2795
  %v3646 = vadd.f32 %v1801, %v2797
  %v3647 = vadd.f32 %v2088, %v3084
  %v3648 = vadd.f32 %v2090, %v3086
  %v3649 = vadd.f32 %v2377, %v3373
  %v3650 = vadd.f32 %v2379, %v3375
  %v3651 = vadd.f32 %v1803, %v2799
  %v3652 = vadd.f32 %v1805, %v2801
  %v3653 = vadd.f32 %v2092, %v3088
  %v3654 = vadd.f32 %v2094, %v3090
  %v3655 = vadd.f32 %v2381, %v3377
  %v3656 = vadd.f32 %v2383, %v3379
  %v3657 = vadd.f32 %v1809, %v2805
  %v3658 = vadd.f32 %v1811, %v2807
  %v3659 = vadd.f32 %v2098, %v3094
  %v3660 = vadd.f32 %v2100, %v3096
  %v3661 = vadd.f32 %v2387, %v3383
  %v3662 = vadd.f32 %v2389, %v3385
  %v3663 = vadd.f32 %v1813, %v2809
  %v3664 = vadd.f32 %v1815, %v2811
  %v3665 = vadd.f32 %v2102, %v3098
  %v3666 = vadd.f32 %v2104, %v3100
  %v3667 = vadd.f32 %v2391, %v3387
  %v3668 = vadd.f32 %v2393, %v3389
  %v3669 = vadd.f32 %v1819, %v2815
  %v3670 = vadd.f32 %v1821, %v2817
  %v3671 = vadd.f32 %v2108, %v3104
  %v3672 = vadd.f32 %v2110, %v3106
  %v3673 = vadd.f32 %v2397, %v3393
  %v3674 = vadd.f32 %v2399, %v3395
  %v3675 = vadd.f32 %v1823, %v2819
  %v3676 = vadd.f32 %v1825, %v2821
  %v3677 = vadd.f32 %v2112, %v3108
  %v3678 = vadd.f32 %v2114, %v3110
  %v3679 = vadd.f32 %v2401, %v3397
  %v3680 = vadd.f32 %v2403, %v3399
  %v3681 = vadd.f32 %v1829, %v2825
  %v3682 = vadd.f32 %v1831, %v2827
  %v3683 = vadd.f32 %v2118, %v3114
  %v3684 = vadd.f32 %v2120, %v3116
  %v3685 = vadd.f32 %v2407, %v3403
  %v3686 = vadd.f32 %v2409, %v3405
  %v3687 = vadd.f32 %v1833, %v2829
  %v3688 = vadd.f32 %v1835, %v2831
  %v3689 = vadd.f32 %v2122, %v3118
  %v3690 = vadd.f32 %v2124, %v3120
  %v3691 = vadd.f32 %v2411, %v3407
  %v3692 = vadd.f32 %v2413, %v3409
  %v3693 = vadd.f32 %v1839, %v2835
  %v3694 = vadd.f32 %v1841, %v2837
  %v3695 = vadd.f32 %v2128, %v3124
  %v3696 = vadd.f32 %v2130, %v3126
  %v3697 = vadd.f32 %v2417, %v3413
  %v3698 = vadd.f32 %v2419, %v3415
  %v3699 = vadd.f32 %v1843, %v2839
  %v3700 = vadd.f32 %v1845, %v2841
  %v3701 = vadd.f32 %v2132, %v3128
  %v3702 = vadd.f32 %v2134, %v3130
  %v3703 = vadd.f32 %v2421, %v3417
  %v3704 = vadd.f32 %v2423, %v3419
  %v3705 = vadd.f32 %v1849, %v2845
  %v3706 = vadd.f32 %v1851, %v2847
  %v3707 = vadd.f32 %v2138, %v3134
  %v3708 = vadd.f32 %v2140, %v3136
  %v3709 = vadd.f32 %v2427, %v3423
  %v3710 = vadd.f32 %v2429, %v3425
  %v3711 = vadd.f32 %v1853, %v2849
  %v3712 = vadd.f32 %v1855, %v2851
  %v3713 = vadd.f32 %v2142, %v3138
  %v3714 = vadd.f32 %v2144, %v3140
  %v3715 = vadd.f32 %v2431, %v3427
  %v3716 = vadd.f32 %v2433, %v3429
  %v3717 = vadd.f32 %v1859, %v2855
  %v3718 = vadd.f32 %v1861, %v2857
  %v3719 = vadd.f32 %v2148, %v3144
  %v3720 = vadd.f32 %v2150, %v3146
  %v3721 = vadd.f32 %v2437, %v3433
  %v3722 = vadd.f32 %v2439, %v3435
  %v3723 = vadd.f32 %v1863, %v2859
  %v3724 = vadd.f32 %v1865, %v2861
  %v3725 = vadd.f32 %v2152, %v3148
  %v3726 = vadd.f32 %v2154, %v3150
  %v3727 = vadd.f32 %v2441, %v3437
  %v3728 = vadd.f32 %v2443, %v3439
  %v3729 = vadd.f32 %v1869, %v2865
  %v3730 = vadd.f32 %v1871, %v2867
  %v3731 = vadd.f32 %v2158, %v3154
  %v3732 = vadd.f32 %v2160, %v3156
  %v3733 = vadd.f32 %v2447, %v3443
  %v3734 = vadd.f32 %v2449, %v3445
  %v3735 = vadd.f32 %v1873, %v2869
  %v3736 = vadd.f32 %v1875, %v2871
  %v3737 = vadd.f32 %v2162, %v3158
  %v3738 = vadd.f32 %v2164, %v3160
  %v3739 = vadd.f32 %v2451, %v3447
  %v3740 = vadd.f32 %v2453, %v3449
  %v3741 = vadd.f32 %v1879, %v2875
  %v3742 = vadd.f32 %v1881, %v2877
  %v3743 = vadd.f32 %v2168, %v3164
  %v3744 = vadd.f32 %v2170, %v3166
  %v3745 = vadd.f32 %v2457, %v3453
  %v3746 = vadd.f32 %v2459, %v3455
  %v3747 = vadd.f32 %v1883, %v2879
  %v3748 = vadd.f32 %v1885, %v2881
  %v3749 = vadd.f32 %v2172, %v3168
  %v3750 = vadd.f32 %v2174, %v3170
  %v3751 = vadd.f32 %v2461, %v3457
  %v3752 = vadd.f32 %v2463, %v3459
  %v3753 = vadd.f32 %v1889, %v2885
  %v3754 = vadd.f32 %v1891, %v2887
  %v3755 = vadd.f32 %v2178, %v3174
  %v3756 = vadd.f32 %v2180, %v3176
  %v3757 = vadd.f32 %v2467, %v3463
  %v3758 = vadd.f32 %v2469, %v3465
  %v3759 = vadd.f32 %v1893, %v2889
  %v3760 = vadd.f32 %v1895, %v2891
  %v3761 = vadd.f32 %v2182, %v3178
  %v3762 = vadd.f32 %v2184, %v3180
  %v3763 = vadd.f32 %v2471, %v3467
  %v3764 = vadd.f32 %v2473, %v3469
  %v3765 = vadd.f32 %v1899, %v2895
  %v3766 = vadd.f32 %v1901, %v2897
  %v3767 = vadd.f32 %v2188, %v3184
  %v3768 = vadd.f32 %v2190, %v3186
  %v3769 = vadd.f32 %v2477, %v3473
  %v3770 = vadd.f32 %v2479, %v3475
  %v3771 = vadd.f32 %v1903, %v2899
  %v3772 = vadd.f32 %v1905, %v2901
  %v3773 = vadd.f32 %v2192, %v3188
  %v3774 = vadd.f32 %v2194, %v3190
  %v3775 = vadd.f32 %v2481, %v3477
  %v3776 = vadd.f32 %v2483, %v3479
  %v3777 = vadd.f32 %v1909, %v2905
  %v3778 = vadd.f32 %v1911, %v2907
  %v3779 = vadd.f32 %v2198, %v3194
  %v3780 = vadd.f32 %v2200, %v3196
  %v3781 = vadd.f32 %v2487, %v3483
  %v3782 = vadd.f32 %v2489, %v3485
  %v3783 = vadd.f32 %v1913, %v2909
  %v3784 = vadd.f32 %v1915, %v2911
  %v3785 = vadd.f32 %v2202, %v3198
  %v3786 = vadd.f32 %v2204, %v3200
  %v3787 = vadd.f32 %v2491, %v3487
  %v3788 = vadd.f32 %v2493, %v3489
  %v3789 = vadd.f32 %v1919, %v2915
  %v3790 = vadd.f32 %v1921, %v2917
  %v3791 = vadd.f32 %v2208, %v3204
  %v3792 = vadd.f32 %v2210, %v3206
  %v3793 = vadd.f32 %v2497, %v3493
  %v3794 = vadd.f32 %v2499, %v3495
  %v3795 = vadd.f32 %v1923, %v2919
  %v3796 = vadd.f32 %v1925, %v2921
  %v3797 = vadd.f32 %v2212, %v3208
  %v3798 = vadd.f32 %v2214, %v3210
  %v3799 = vadd.f32 %v2501, %v3497
  %v3800 = vadd.f32 %v2503, %v3499
  %v3801 = vadd.f32 %v1929, %v2925
  %v3802 = vadd.f32 %v1931, %v2927
  %v3803 = vadd.f32 %v2218, %v3214
  %v3804 = vadd.f32 %v2220, %v3216
  %v3805 = vadd.f32 %v2507, %v3503
  %v3806 = vadd.f32 %v2509, %v3505
  %v3807 = vadd.f32 %v1933, %v2929
  %v3808 = vadd.f32 %v1935, %v2931
  %v3809 = vadd.f32 %v2222, %v3218
  %v3810 = vadd.f32 %v2224, %v3220
  %v3811 = vadd.f32 %v2511, %v3507
  %v3812 = vadd.f32 %v2513, %v3509
  %v3813 = vadd.f32 %v1939, %v2935
  %v3814 = vadd.f32 %v1941, %v2937
  %v3815 = vadd.f32 %v2228, %v3224
  %v3816 = vadd.f32 %v2230, %v3226
  %v3817 = vadd.f32 %v2517, %v3513
  %v3818 = vadd.f32 %v2519, %v3515
  %v3819 = vadd.f32 %v1943, %v2939
  %v3820 = vadd.f32 %v1945, %v2941
  %v3821 = vadd.f32 %v2232, %v3228
  %v3822 = vadd.f32 %v2234, %v3230
  %v3823 = vadd.f32 %v2521, %v3517
  %v3824 = vadd.f32 %v2523, %v3519
  %v3825 = vadd.f32 %v1949, %v2945
  %v3826 = vadd.f32 %v1951, %v2947
  %v3827 = vadd.f32 %v2238, %v3234
  %v3828 = vadd.f32 %v2240, %v3236
  %v3829 = vadd.f32 %v2527, %v3523
  %v3830 = vadd.f32 %v2529, %v3525
  %v3831 = vadd.f32 %v1953, %v2949
  %v3832 = vadd.f32 %v1955, %v2951
  %v3833 = vadd.f32 %v2242, %v3238
  %v3834 = vadd.f32 %v2244, %v3240
  %v3835 = vadd.f32 %v2531, %v3527
  %v3836 = vadd.f32 %v2533, %v3529
  %v3837 = vld [vmem:[%s2] sm:$0x3f]
  %v3839 = vlaneseq
  %v3840 = vshrl.u32 %v3839, 7
  %v3841 = vsub.s32 0, %v3840
  %v3842 = vrot.slane %v3837, %v3841
  %v3843 = vlaneseq
  %v3844 = vshrl.u32 %v3843, 7
  %v3845 = vsub.s32 1, %v3844
  %v3846 = vrot.slane %v3837, %v3845
  %v3847 = vlaneseq
  %v3848 = vshrl.u32 %v3847, 7
  %v3849 = vsub.s32 2, %v3848
  %v3850 = vrot.slane %v3837, %v3849
  %v3851 = vlaneseq
  %v3852 = vshrl.u32 %v3851, 7
  %v3853 = vsub.s32 3, %v3852
  %v3854 = vrot.slane %v3837, %v3853
  %v3855 = vlaneseq
  %v3856 = vshrl.u32 %v3855, 7
  %v3857 = vsub.s32 4, %v3856
  %v3858 = vrot.slane %v3837, %v3857
  %v3859 = vlaneseq
  %v3860 = vshrl.u32 %v3859, 7
  %v3861 = vsub.s32 5, %v3860
  %v3862 = vrot.slane %v3837, %v3861
  %v3869 = vadd.f32 %v3537, %v3842
  %v3870 = vadd.f32 %v3538, %v3846
  %v3871 = vadd.f32 %v3539, %v3850
  %v3872 = vadd.f32 %v3540, %v3854
  %v3873 = vadd.f32 %v3541, %v3858
  %v3874 = vadd.f32 %v3542, %v3862
  %v3875 = vadd.f32 %v3543, %v3842
  %v3876 = vadd.f32 %v3544, %v3846
  %v3877 = vadd.f32 %v3545, %v3850
  %v3878 = vadd.f32 %v3546, %v3854
  %v3879 = vadd.f32 %v3547, %v3858
  %v3880 = vadd.f32 %v3548, %v3862
  %v3881 = vadd.f32 %v3549, %v3842
  %v3882 = vadd.f32 %v3550, %v3846
  %v3883 = vadd.f32 %v3551, %v3850
  %v3884 = vadd.f32 %v3552, %v3854
  %v3885 = vadd.f32 %v3553, %v3858
  %v3886 = vadd.f32 %v3554, %v3862
  %v3887 = vadd.f32 %v3555, %v3842
  %v3888 = vadd.f32 %v3556, %v3846
  %v3889 = vadd.f32 %v3557, %v3850
  %v3890 = vadd.f32 %v3558, %v3854
  %v3891 = vadd.f32 %v3559, %v3858
  %v3892 = vadd.f32 %v3560, %v3862
  %v3893 = vadd.f32 %v3561, %v3842
  %v3894 = vadd.f32 %v3562, %v3846
  %v3895 = vadd.f32 %v3563, %v3850
  %v3896 = vadd.f32 %v3564, %v3854
  %v3897 = vadd.f32 %v3565, %v3858
  %v3898 = vadd.f32 %v3566, %v3862
  %v3899 = vadd.f32 %v3567, %v3842
  %v3900 = vadd.f32 %v3568, %v3846
  %v3901 = vadd.f32 %v3569, %v3850
  %v3902 = vadd.f32 %v3570, %v3854
  %v3903 = vadd.f32 %v3571, %v3858
  %v3904 = vadd.f32 %v3572, %v3862
  %v3905 = vadd.f32 %v3573, %v3842
  %v3906 = vadd.f32 %v3574, %v3846
  %v3907 = vadd.f32 %v3575, %v3850
  %v3908 = vadd.f32 %v3576, %v3854
  %v3909 = vadd.f32 %v3577, %v3858
  %v3910 = vadd.f32 %v3578, %v3862
  %v3911 = vadd.f32 %v3579, %v3842
  %v3912 = vadd.f32 %v3580, %v3846
  %v3913 = vadd.f32 %v3581, %v3850
  %v3914 = vadd.f32 %v3582, %v3854
  %v3915 = vadd.f32 %v3583, %v3858
  %v3916 = vadd.f32 %v3584, %v3862
  %v3917 = vadd.f32 %v3585, %v3842
  %v3918 = vadd.f32 %v3586, %v3846
  %v3919 = vadd.f32 %v3587, %v3850
  %v3920 = vadd.f32 %v3588, %v3854
  %v3921 = vadd.f32 %v3589, %v3858
  %v3922 = vadd.f32 %v3590, %v3862
  %v3923 = vadd.f32 %v3591, %v3842
  %v3924 = vadd.f32 %v3592, %v3846
  %v3925 = vadd.f32 %v3593, %v3850
  %v3926 = vadd.f32 %v3594, %v3854
  %v3927 = vadd.f32 %v3595, %v3858
  %v3928 = vadd.f32 %v3596, %v3862
  %v3929 = vadd.f32 %v3597, %v3842
  %v3930 = vadd.f32 %v3598, %v3846
  %v3931 = vadd.f32 %v3599, %v3850
  %v3932 = vadd.f32 %v3600, %v3854
  %v3933 = vadd.f32 %v3601, %v3858
  %v3934 = vadd.f32 %v3602, %v3862
  %v3935 = vadd.f32 %v3603, %v3842
  %v3936 = vadd.f32 %v3604, %v3846
  %v3937 = vadd.f32 %v3605, %v3850
  %v3938 = vadd.f32 %v3606, %v3854
  %v3939 = vadd.f32 %v3607, %v3858
  %v3940 = vadd.f32 %v3608, %v3862
  %v3941 = vadd.f32 %v3609, %v3842
  %v3942 = vadd.f32 %v3610, %v3846
  %v3943 = vadd.f32 %v3611, %v3850
  %v3944 = vadd.f32 %v3612, %v3854
  %v3945 = vadd.f32 %v3613, %v3858
  %v3946 = vadd.f32 %v3614, %v3862
  %v3947 = vadd.f32 %v3615, %v3842
  %v3948 = vadd.f32 %v3616, %v3846
  %v3949 = vadd.f32 %v3617, %v3850
  %v3950 = vadd.f32 %v3618, %v3854
  %v3951 = vadd.f32 %v3619, %v3858
  %v3952 = vadd.f32 %v3620, %v3862
  %v3953 = vadd.f32 %v3621, %v3842
  %v3954 = vadd.f32 %v3622, %v3846
  %v3955 = vadd.f32 %v3623, %v3850
  %v3956 = vadd.f32 %v3624, %v3854
  %v3957 = vadd.f32 %v3625, %v3858
  %v3958 = vadd.f32 %v3626, %v3862
  %v3959 = vadd.f32 %v3627, %v3842
  %v3960 = vadd.f32 %v3628, %v3846
  %v3961 = vadd.f32 %v3629, %v3850
  %v3962 = vadd.f32 %v3630, %v3854
  %v3963 = vadd.f32 %v3631, %v3858
  %v3964 = vadd.f32 %v3632, %v3862
  %v3965 = vadd.f32 %v3633, %v3842
  %v3966 = vadd.f32 %v3634, %v3846
  %v3967 = vadd.f32 %v3635, %v3850
  %v3968 = vadd.f32 %v3636, %v3854
  %v3969 = vadd.f32 %v3637, %v3858
  %v3970 = vadd.f32 %v3638, %v3862
  %v3971 = vadd.f32 %v3639, %v3842
  %v3972 = vadd.f32 %v3640, %v3846
  %v3973 = vadd.f32 %v3641, %v3850
  %v3974 = vadd.f32 %v3642, %v3854
  %v3975 = vadd.f32 %v3643, %v3858
  %v3976 = vadd.f32 %v3644, %v3862
  %v3977 = vadd.f32 %v3645, %v3842
  %v3978 = vadd.f32 %v3646, %v3846
  %v3979 = vadd.f32 %v3647, %v3850
  %v3980 = vadd.f32 %v3648, %v3854
  %v3981 = vadd.f32 %v3649, %v3858
  %v3982 = vadd.f32 %v3650, %v3862
  %v3983 = vadd.f32 %v3651, %v3842
  %v3984 = vadd.f32 %v3652, %v3846
  %v3985 = vadd.f32 %v3653, %v3850
  %v3986 = vadd.f32 %v3654, %v3854
  %v3987 = vadd.f32 %v3655, %v3858
  %v3988 = vadd.f32 %v3656, %v3862
  %v3989 = vadd.f32 %v3657, %v3842
  %v3990 = vadd.f32 %v3658, %v3846
  %v3991 = vadd.f32 %v3659, %v3850
  %v3992 = vadd.f32 %v3660, %v3854
  %v3993 = vadd.f32 %v3661, %v3858
  %v3994 = vadd.f32 %v3662, %v3862
  %v3995 = vadd.f32 %v3663, %v3842
  %v3996 = vadd.f32 %v3664, %v3846
  %v3997 = vadd.f32 %v3665, %v3850
  %v3998 = vadd.f32 %v3666, %v3854
  %v3999 = vadd.f32 %v3667, %v3858
  %v4000 = vadd.f32 %v3668, %v3862
  %v4001 = vadd.f32 %v3669, %v3842
  %v4002 = vadd.f32 %v3670, %v3846
  %v4003 = vadd.f32 %v3671, %v3850
  %v4004 = vadd.f32 %v3672, %v3854
  %v4005 = vadd.f32 %v3673, %v3858
  %v4006 = vadd.f32 %v3674, %v3862
  %v4007 = vadd.f32 %v3675, %v3842
  %v4008 = vadd.f32 %v3676, %v3846
  %v4009 = vadd.f32 %v3677, %v3850
  %v4010 = vadd.f32 %v3678, %v3854
  %v4011 = vadd.f32 %v3679, %v3858
  %v4012 = vadd.f32 %v3680, %v3862
  %v4013 = vadd.f32 %v3681, %v3842
  %v4014 = vadd.f32 %v3682, %v3846
  %v4015 = vadd.f32 %v3683, %v3850
  %v4016 = vadd.f32 %v3684, %v3854
  %v4017 = vadd.f32 %v3685, %v3858
  %v4018 = vadd.f32 %v3686, %v3862
  %v4019 = vadd.f32 %v3687, %v3842
  %v4020 = vadd.f32 %v3688, %v3846
  %v4021 = vadd.f32 %v3689, %v3850
  %v4022 = vadd.f32 %v3690, %v3854
  %v4023 = vadd.f32 %v3691, %v3858
  %v4024 = vadd.f32 %v3692, %v3862
  %v4025 = vadd.f32 %v3693, %v3842
  %v4026 = vadd.f32 %v3694, %v3846
  %v4027 = vadd.f32 %v3695, %v3850
  %v4028 = vadd.f32 %v3696, %v3854
  %v4029 = vadd.f32 %v3697, %v3858
  %v4030 = vadd.f32 %v3698, %v3862
  %v4031 = vadd.f32 %v3699, %v3842
  %v4032 = vadd.f32 %v3700, %v3846
  %v4033 = vadd.f32 %v3701, %v3850
  %v4034 = vadd.f32 %v3702, %v3854
  %v4035 = vadd.f32 %v3703, %v3858
  %v4036 = vadd.f32 %v3704, %v3862
  %v4037 = vadd.f32 %v3705, %v3842
  %v4038 = vadd.f32 %v3706, %v3846
  %v4039 = vadd.f32 %v3707, %v3850
  %v4040 = vadd.f32 %v3708, %v3854
  %v4041 = vadd.f32 %v3709, %v3858
  %v4042 = vadd.f32 %v3710, %v3862
  %v4043 = vadd.f32 %v3711, %v3842
  %v4044 = vadd.f32 %v3712, %v3846
  %v4045 = vadd.f32 %v3713, %v3850
  %v4046 = vadd.f32 %v3714, %v3854
  %v4047 = vadd.f32 %v3715, %v3858
  %v4048 = vadd.f32 %v3716, %v3862
  %v4049 = vadd.f32 %v3717, %v3842
  %v4050 = vadd.f32 %v3718, %v3846
  %v4051 = vadd.f32 %v3719, %v3850
  %v4052 = vadd.f32 %v3720, %v3854
  %v4053 = vadd.f32 %v3721, %v3858
  %v4054 = vadd.f32 %v3722, %v3862
  %v4055 = vadd.f32 %v3723, %v3842
  %v4056 = vadd.f32 %v3724, %v3846
  %v4057 = vadd.f32 %v3725, %v3850
  %v4058 = vadd.f32 %v3726, %v3854
  %v4059 = vadd.f32 %v3727, %v3858
  %v4060 = vadd.f32 %v3728, %v3862
  %v4061 = vadd.f32 %v3729, %v3842
  %v4062 = vadd.f32 %v3730, %v3846
  %v4063 = vadd.f32 %v3731, %v3850
  %v4064 = vadd.f32 %v3732, %v3854
  %v4065 = vadd.f32 %v3733, %v3858
  %v4066 = vadd.f32 %v3734, %v3862
  %v4067 = vadd.f32 %v3735, %v3842
  %v4068 = vadd.f32 %v3736, %v3846
  %v4069 = vadd.f32 %v3737, %v3850
  %v4070 = vadd.f32 %v3738, %v3854
  %v4071 = vadd.f32 %v3739, %v3858
  %v4072 = vadd.f32 %v3740, %v3862
  %v4073 = vadd.f32 %v3741, %v3842
  %v4074 = vadd.f32 %v3742, %v3846
  %v4075 = vadd.f32 %v3743, %v3850
  %v4076 = vadd.f32 %v3744, %v3854
  %v4077 = vadd.f32 %v3745, %v3858
  %v4078 = vadd.f32 %v3746, %v3862
  %v4079 = vadd.f32 %v3747, %v3842
  %v4080 = vadd.f32 %v3748, %v3846
  %v4081 = vadd.f32 %v3749, %v3850
  %v4082 = vadd.f32 %v3750, %v3854
  %v4083 = vadd.f32 %v3751, %v3858
  %v4084 = vadd.f32 %v3752, %v3862
  %v4085 = vadd.f32 %v3753, %v3842
  %v4086 = vadd.f32 %v3754, %v3846
  %v4087 = vadd.f32 %v3755, %v3850
  %v4088 = vadd.f32 %v3756, %v3854
  %v4089 = vadd.f32 %v3757, %v3858
  %v4090 = vadd.f32 %v3758, %v3862
  %v4091 = vadd.f32 %v3759, %v3842
  %v4092 = vadd.f32 %v3760, %v3846
  %v4093 = vadd.f32 %v3761, %v3850
  %v4094 = vadd.f32 %v3762, %v3854
  %v4095 = vadd.f32 %v3763, %v3858
  %v4096 = vadd.f32 %v3764, %v3862
  %v4097 = vadd.f32 %v3765, %v3842
  %v4098 = vadd.f32 %v3766, %v3846
  %v4099 = vadd.f32 %v3767, %v3850
  %v4100 = vadd.f32 %v3768, %v3854
  %v4101 = vadd.f32 %v3769, %v3858
  %v4102 = vadd.f32 %v3770, %v3862
  %v4103 = vadd.f32 %v3771, %v3842
  %v4104 = vadd.f32 %v3772, %v3846
  %v4105 = vadd.f32 %v3773, %v3850
  %v4106 = vadd.f32 %v3774, %v3854
  %v4107 = vadd.f32 %v3775, %v3858
  %v4108 = vadd.f32 %v3776, %v3862
  %v4109 = vadd.f32 %v3777, %v3842
  %v4110 = vadd.f32 %v3778, %v3846
  %v4111 = vadd.f32 %v3779, %v3850
  %v4112 = vadd.f32 %v3780, %v3854
  %v4113 = vadd.f32 %v3781, %v3858
  %v4114 = vadd.f32 %v3782, %v3862
  %v4115 = vadd.f32 %v3783, %v3842
  %v4116 = vadd.f32 %v3784, %v3846
  %v4117 = vadd.f32 %v3785, %v3850
  %v4118 = vadd.f32 %v3786, %v3854
  %v4119 = vadd.f32 %v3787, %v3858
  %v4120 = vadd.f32 %v3788, %v3862
  %v4121 = vadd.f32 %v3789, %v3842
  %v4122 = vadd.f32 %v3790, %v3846
  %v4123 = vadd.f32 %v3791, %v3850
  %v4124 = vadd.f32 %v3792, %v3854
  %v4125 = vadd.f32 %v3793, %v3858
  %v4126 = vadd.f32 %v3794, %v3862
  %v4127 = vadd.f32 %v3795, %v3842
  %v4128 = vadd.f32 %v3796, %v3846
  %v4129 = vadd.f32 %v3797, %v3850
  %v4130 = vadd.f32 %v3798, %v3854
  %v4131 = vadd.f32 %v3799, %v3858
  %v4132 = vadd.f32 %v3800, %v3862
  %v4133 = vadd.f32 %v3801, %v3842
  %v4134 = vadd.f32 %v3802, %v3846
  %v4135 = vadd.f32 %v3803, %v3850
  %v4136 = vadd.f32 %v3804, %v3854
  %v4137 = vadd.f32 %v3805, %v3858
  %v4138 = vadd.f32 %v3806, %v3862
  %v4139 = vadd.f32 %v3807, %v3842
  %v4140 = vadd.f32 %v3808, %v3846
  %v4141 = vadd.f32 %v3809, %v3850
  %v4142 = vadd.f32 %v3810, %v3854
  %v4143 = vadd.f32 %v3811, %v3858
  %v4144 = vadd.f32 %v3812, %v3862
  %v4145 = vadd.f32 %v3813, %v3842
  %v4146 = vadd.f32 %v3814, %v3846
  %v4147 = vadd.f32 %v3815, %v3850
  %v4148 = vadd.f32 %v3816, %v3854
  %v4149 = vadd.f32 %v3817, %v3858
  %v4150 = vadd.f32 %v3818, %v3862
  %v4151 = vadd.f32 %v3819, %v3842
  %v4152 = vadd.f32 %v3820, %v3846
  %v4153 = vadd.f32 %v3821, %v3850
  %v4154 = vadd.f32 %v3822, %v3854
  %v4155 = vadd.f32 %v3823, %v3858
  %v4156 = vadd.f32 %v3824, %v3862
  %v4157 = vadd.f32 %v3825, %v3842
  %v4158 = vadd.f32 %v3826, %v3846
  %v4159 = vadd.f32 %v3827, %v3850
  %v4160 = vadd.f32 %v3828, %v3854
  %v4161 = vadd.f32 %v3829, %v3858
  %v4162 = vadd.f32 %v3830, %v3862
  %v4163 = vadd.f32 %v3831, %v3842
  %v4164 = vadd.f32 %v3832, %v3846
  %v4165 = vadd.f32 %v3833, %v3850
  %v4166 = vadd.f32 %v3834, %v3854
  %v4167 = vadd.f32 %v3835, %v3858
  %v4168 = vadd.f32 %v3836, %v3862
  %v4169 = vmul.f32 %v3869, 0.2
  %v4170 = vmul.f32 %v3870, 0.2
  %v4171 = vmul.f32 %v3871, 0.2
  %v4172 = vmul.f32 %v3872, 0.2
  %v4173 = vmul.f32 %v3873, 0.2
  %v4174 = vmul.f32 %v3874, 0.2
  %v4175 = vmul.f32 %v3875, 0.2
  %v4176 = vmul.f32 %v3876, 0.2
  %v4177 = vmul.f32 %v3877, 0.2
  %v4178 = vmul.f32 %v3878, 0.2
  %v4179 = vmul.f32 %v3879, 0.2
  %v4180 = vmul.f32 %v3880, 0.2
  %v4181 = vmul.f32 %v3881, 0.2
  %v4182 = vmul.f32 %v3882, 0.2
  %v4183 = vmul.f32 %v3883, 0.2
  %v4184 = vmul.f32 %v3884, 0.2
  %v4185 = vmul.f32 %v3885, 0.2
  %v4186 = vmul.f32 %v3886, 0.2
  %v4187 = vmul.f32 %v3887, 0.2
  %v4188 = vmul.f32 %v3888, 0.2
  %v4189 = vmul.f32 %v3889, 0.2
  %v4190 = vmul.f32 %v3890, 0.2
  %v4191 = vmul.f32 %v3891, 0.2
  %v4192 = vmul.f32 %v3892, 0.2
  %v4193 = vmul.f32 %v3893, 0.2
  %v4194 = vmul.f32 %v3894, 0.2
  %v4195 = vmul.f32 %v3895, 0.2
  %v4196 = vmul.f32 %v3896, 0.2
  %v4197 = vmul.f32 %v3897, 0.2
  %v4198 = vmul.f32 %v3898, 0.2
  %v4199 = vmul.f32 %v3899, 0.2
  %v4200 = vmul.f32 %v3900, 0.2
  %v4201 = vmul.f32 %v3901, 0.2
  %v4202 = vmul.f32 %v3902, 0.2
  %v4203 = vmul.f32 %v3903, 0.2
  %v4204 = vmul.f32 %v3904, 0.2
  %v4205 = vmul.f32 %v3905, 0.2
  %v4206 = vmul.f32 %v3906, 0.2
  %v4207 = vmul.f32 %v3907, 0.2
  %v4208 = vmul.f32 %v3908, 0.2
  %v4209 = vmul.f32 %v3909, 0.2
  %v4210 = vmul.f32 %v3910, 0.2
  %v4211 = vmul.f32 %v3911, 0.2
  %v4212 = vmul.f32 %v3912, 0.2
  %v4213 = vmul.f32 %v3913, 0.2
  %v4214 = vmul.f32 %v3914, 0.2
  %v4215 = vmul.f32 %v3915, 0.2
  %v4216 = vmul.f32 %v3916, 0.2
  %v4217 = vmul.f32 %v3917, 0.2
  %v4218 = vmul.f32 %v3918, 0.2
  %v4219 = vmul.f32 %v3919, 0.2
  %v4220 = vmul.f32 %v3920, 0.2
  %v4221 = vmul.f32 %v3921, 0.2
  %v4222 = vmul.f32 %v3922, 0.2
  %v4223 = vmul.f32 %v3923, 0.2
  %v4224 = vmul.f32 %v3924, 0.2
  %v4225 = vmul.f32 %v3925, 0.2
  %v4226 = vmul.f32 %v3926, 0.2
  %v4227 = vmul.f32 %v3927, 0.2
  %v4228 = vmul.f32 %v3928, 0.2
  %v4229 = vmul.f32 %v3929, 0.2
  %v4230 = vmul.f32 %v3930, 0.2
  %v4231 = vmul.f32 %v3931, 0.2
  %v4232 = vmul.f32 %v3932, 0.2
  %v4233 = vmul.f32 %v3933, 0.2
  %v4234 = vmul.f32 %v3934, 0.2
  %v4235 = vmul.f32 %v3935, 0.2
  %v4236 = vmul.f32 %v3936, 0.2
  %v4237 = vmul.f32 %v3937, 0.2
  %v4238 = vmul.f32 %v3938, 0.2
  %v4239 = vmul.f32 %v3939, 0.2
  %v4240 = vmul.f32 %v3940, 0.2
  %v4241 = vmul.f32 %v3941, 0.2
  %v4242 = vmul.f32 %v3942, 0.2
  %v4243 = vmul.f32 %v3943, 0.2
  %v4244 = vmul.f32 %v3944, 0.2
  %v4245 = vmul.f32 %v3945, 0.2
  %v4246 = vmul.f32 %v3946, 0.2
  %v4247 = vmul.f32 %v3947, 0.2
  %v4248 = vmul.f32 %v3948, 0.2
  %v4249 = vmul.f32 %v3949, 0.2
  %v4250 = vmul.f32 %v3950, 0.2
  %v4251 = vmul.f32 %v3951, 0.2
  %v4252 = vmul.f32 %v3952, 0.2
  %v4253 = vmul.f32 %v3953, 0.2
  %v4254 = vmul.f32 %v3954, 0.2
  %v4255 = vmul.f32 %v3955, 0.2
  %v4256 = vmul.f32 %v3956, 0.2
  %v4257 = vmul.f32 %v3957, 0.2
  %v4258 = vmul.f32 %v3958, 0.2
  %v4259 = vmul.f32 %v3959, 0.2
  %v4260 = vmul.f32 %v3960, 0.2
  %v4261 = vmul.f32 %v3961, 0.2
  %v4262 = vmul.f32 %v3962, 0.2
  %v4263 = vmul.f32 %v3963, 0.2
  %v4264 = vmul.f32 %v3964, 0.2
  %v4265 = vmul.f32 %v3965, 0.2
  %v4266 = vmul.f32 %v3966, 0.2
  %v4267 = vmul.f32 %v3967, 0.2
  %v4268 = vmul.f32 %v3968, 0.2
  %v4269 = vmul.f32 %v3969, 0.2
  %v4270 = vmul.f32 %v3970, 0.2
  %v4271 = vmul.f32 %v3971, 0.2
  %v4272 = vmul.f32 %v3972, 0.2
  %v4273 = vmul.f32 %v3973, 0.2
  %v4274 = vmul.f32 %v3974, 0.2
  %v4275 = vmul.f32 %v3975, 0.2
  %v4276 = vmul.f32 %v3976, 0.2
  %v4277 = vmul.f32 %v3977, 0.2
  %v4278 = vmul.f32 %v3978, 0.2
  %v4279 = vmul.f32 %v3979, 0.2
  %v4280 = vmul.f32 %v3980, 0.2
  %v4281 = vmul.f32 %v3981, 0.2
  %v4282 = vmul.f32 %v3982, 0.2
  %v4283 = vmul.f32 %v3983, 0.2
  %v4284 = vmul.f32 %v3984, 0.2
  %v4285 = vmul.f32 %v3985, 0.2
  %v4286 = vmul.f32 %v3986, 0.2
  %v4287 = vmul.f32 %v3987, 0.2
  %v4288 = vmul.f32 %v3988, 0.2
  %v4289 = vmul.f32 %v3989, 0.2
  %v4290 = vmul.f32 %v3990, 0.2
  %v4291 = vmul.f32 %v3991, 0.2
  %v4292 = vmul.f32 %v3992, 0.2
  %v4293 = vmul.f32 %v3993, 0.2
  %v4294 = vmul.f32 %v3994, 0.2
  %v4295 = vmul.f32 %v3995, 0.2
  %v4296 = vmul.f32 %v3996, 0.2
  %v4297 = vmul.f32 %v3997, 0.2
  %v4298 = vmul.f32 %v3998, 0.2
  %v4299 = vmul.f32 %v3999, 0.2
  %v4300 = vmul.f32 %v4000, 0.2
  %v4301 = vmul.f32 %v4001, 0.2
  %v4302 = vmul.f32 %v4002, 0.2
  %v4303 = vmul.f32 %v4003, 0.2
  %v4304 = vmul.f32 %v4004, 0.2
  %v4305 = vmul.f32 %v4005, 0.2
  %v4306 = vmul.f32 %v4006, 0.2
  %v4307 = vmul.f32 %v4007, 0.2
  %v4308 = vmul.f32 %v4008, 0.2
  %v4309 = vmul.f32 %v4009, 0.2
  %v4310 = vmul.f32 %v4010, 0.2
  %v4311 = vmul.f32 %v4011, 0.2
  %v4312 = vmul.f32 %v4012, 0.2
  %v4313 = vmul.f32 %v4013, 0.2
  %v4314 = vmul.f32 %v4014, 0.2
  %v4315 = vmul.f32 %v4015, 0.2
  %v4316 = vmul.f32 %v4016, 0.2
  %v4317 = vmul.f32 %v4017, 0.2
  %v4318 = vmul.f32 %v4018, 0.2
  %v4319 = vmul.f32 %v4019, 0.2
  %v4320 = vmul.f32 %v4020, 0.2
  %v4321 = vmul.f32 %v4021, 0.2
  %v4322 = vmul.f32 %v4022, 0.2
  %v4323 = vmul.f32 %v4023, 0.2
  %v4324 = vmul.f32 %v4024, 0.2
  %v4325 = vmul.f32 %v4025, 0.2
  %v4326 = vmul.f32 %v4026, 0.2
  %v4327 = vmul.f32 %v4027, 0.2
  %v4328 = vmul.f32 %v4028, 0.2
  %v4329 = vmul.f32 %v4029, 0.2
  %v4330 = vmul.f32 %v4030, 0.2
  %v4331 = vmul.f32 %v4031, 0.2
  %v4332 = vmul.f32 %v4032, 0.2
  %v4333 = vmul.f32 %v4033, 0.2
  %v4334 = vmul.f32 %v4034, 0.2
  %v4335 = vmul.f32 %v4035, 0.2
  %v4336 = vmul.f32 %v4036, 0.2
  %v4337 = vmul.f32 %v4037, 0.2
  %v4338 = vmul.f32 %v4038, 0.2
  %v4339 = vmul.f32 %v4039, 0.2
  %v4340 = vmul.f32 %v4040, 0.2
  %v4341 = vmul.f32 %v4041, 0.2
  %v4342 = vmul.f32 %v4042, 0.2
  %v4343 = vmul.f32 %v4043, 0.2
  %v4344 = vmul.f32 %v4044, 0.2
  %v4345 = vmul.f32 %v4045, 0.2
  %v4346 = vmul.f32 %v4046, 0.2
  %v4347 = vmul.f32 %v4047, 0.2
  %v4348 = vmul.f32 %v4048, 0.2
  %v4349 = vmul.f32 %v4049, 0.2
  %v4350 = vmul.f32 %v4050, 0.2
  %v4351 = vmul.f32 %v4051, 0.2
  %v4352 = vmul.f32 %v4052, 0.2
  %v4353 = vmul.f32 %v4053, 0.2
  %v4354 = vmul.f32 %v4054, 0.2
  %v4355 = vmul.f32 %v4055, 0.2
  %v4356 = vmul.f32 %v4056, 0.2
  %v4357 = vmul.f32 %v4057, 0.2
  %v4358 = vmul.f32 %v4058, 0.2
  %v4359 = vmul.f32 %v4059, 0.2
  %v4360 = vmul.f32 %v4060, 0.2
  %v4361 = vmul.f32 %v4061, 0.2
  %v4362 = vmul.f32 %v4062, 0.2
  %v4363 = vmul.f32 %v4063, 0.2
  %v4364 = vmul.f32 %v4064, 0.2
  %v4365 = vmul.f32 %v4065, 0.2
  %v4366 = vmul.f32 %v4066, 0.2
  %v4367 = vmul.f32 %v4067, 0.2
  %v4368 = vmul.f32 %v4068, 0.2
  %v4369 = vmul.f32 %v4069, 0.2
  %v4370 = vmul.f32 %v4070, 0.2
  %v4371 = vmul.f32 %v4071, 0.2
  %v4372 = vmul.f32 %v4072, 0.2
  %v4373 = vmul.f32 %v4073, 0.2
  %v4374 = vmul.f32 %v4074, 0.2
  %v4375 = vmul.f32 %v4075, 0.2
  %v4376 = vmul.f32 %v4076, 0.2
  %v4377 = vmul.f32 %v4077, 0.2
  %v4378 = vmul.f32 %v4078, 0.2
  %v4379 = vmul.f32 %v4079, 0.2
  %v4380 = vmul.f32 %v4080, 0.2
  %v4381 = vmul.f32 %v4081, 0.2
  %v4382 = vmul.f32 %v4082, 0.2
  %v4383 = vmul.f32 %v4083, 0.2
  %v4384 = vmul.f32 %v4084, 0.2
  %v4385 = vmul.f32 %v4085, 0.2
  %v4386 = vmul.f32 %v4086, 0.2
  %v4387 = vmul.f32 %v4087, 0.2
  %v4388 = vmul.f32 %v4088, 0.2
  %v4389 = vmul.f32 %v4089, 0.2
  %v4390 = vmul.f32 %v4090, 0.2
  %v4391 = vmul.f32 %v4091, 0.2
  %v4392 = vmul.f32 %v4092, 0.2
  %v4393 = vmul.f32 %v4093, 0.2
  %v4394 = vmul.f32 %v4094, 0.2
  %v4395 = vmul.f32 %v4095, 0.2
  %v4396 = vmul.f32 %v4096, 0.2
  %v4397 = vmul.f32 %v4097, 0.2
  %v4398 = vmul.f32 %v4098, 0.2
  %v4399 = vmul.f32 %v4099, 0.2
  %v4400 = vmul.f32 %v4100, 0.2
  %v4401 = vmul.f32 %v4101, 0.2
  %v4402 = vmul.f32 %v4102, 0.2
  %v4403 = vmul.f32 %v4103, 0.2
  %v4404 = vmul.f32 %v4104, 0.2
  %v4405 = vmul.f32 %v4105, 0.2
  %v4406 = vmul.f32 %v4106, 0.2
  %v4407 = vmul.f32 %v4107, 0.2
  %v4408 = vmul.f32 %v4108, 0.2
  %v4409 = vmul.f32 %v4109, 0.2
  %v4410 = vmul.f32 %v4110, 0.2
  %v4411 = vmul.f32 %v4111, 0.2
  %v4412 = vmul.f32 %v4112, 0.2
  %v4413 = vmul.f32 %v4113, 0.2
  %v4414 = vmul.f32 %v4114, 0.2
  %v4415 = vmul.f32 %v4115, 0.2
  %v4416 = vmul.f32 %v4116, 0.2
  %v4417 = vmul.f32 %v4117, 0.2
  %v4418 = vmul.f32 %v4118, 0.2
  %v4419 = vmul.f32 %v4119, 0.2
  %v4420 = vmul.f32 %v4120, 0.2
  %v4421 = vmul.f32 %v4121, 0.2
  %v4422 = vmul.f32 %v4122, 0.2
  %v4423 = vmul.f32 %v4123, 0.2
  %v4424 = vmul.f32 %v4124, 0.2
  %v4425 = vmul.f32 %v4125, 0.2
  %v4426 = vmul.f32 %v4126, 0.2
  %v4427 = vmul.f32 %v4127, 0.2
  %v4428 = vmul.f32 %v4128, 0.2
  %v4429 = vmul.f32 %v4129, 0.2
  %v4430 = vmul.f32 %v4130, 0.2
  %v4431 = vmul.f32 %v4131, 0.2
  %v4432 = vmul.f32 %v4132, 0.2
  %v4433 = vmul.f32 %v4133, 0.2
  %v4434 = vmul.f32 %v4134, 0.2
  %v4435 = vmul.f32 %v4135, 0.2
  %v4436 = vmul.f32 %v4136, 0.2
  %v4437 = vmul.f32 %v4137, 0.2
  %v4438 = vmul.f32 %v4138, 0.2
  %v4439 = vmul.f32 %v4139, 0.2
  %v4440 = vmul.f32 %v4140, 0.2
  %v4441 = vmul.f32 %v4141, 0.2
  %v4442 = vmul.f32 %v4142, 0.2
  %v4443 = vmul.f32 %v4143, 0.2
  %v4444 = vmul.f32 %v4144, 0.2
  %v4445 = vmul.f32 %v4145, 0.2
  %v4446 = vmul.f32 %v4146, 0.2
  %v4447 = vmul.f32 %v4147, 0.2
  %v4448 = vmul.f32 %v4148, 0.2
  %v4449 = vmul.f32 %v4149, 0.2
  %v4450 = vmul.f32 %v4150, 0.2
  %v4451 = vmul.f32 %v4151, 0.2
  %v4452 = vmul.f32 %v4152, 0.2
  %v4453 = vmul.f32 %v4153, 0.2
  %v4454 = vmul.f32 %v4154, 0.2
  %v4455 = vmul.f32 %v4155, 0.2
  %v4456 = vmul.f32 %v4156, 0.2
  %v4457 = vmul.f32 %v4157, 0.2
  %v4458 = vmul.f32 %v4158, 0.2
  %v4459 = vmul.f32 %v4159, 0.2
  %v4460 = vmul.f32 %v4160, 0.2
  %v4461 = vmul.f32 %v4161, 0.2
  %v4462 = vmul.f32 %v4162, 0.2
  %v4463 = vmul.f32 %v4163, 0.2
  %v4464 = vmul.f32 %v4164, 0.2
  %v4465 = vmul.f32 %v4165, 0.2
  %v4466 = vmul.f32 %v4166, 0.2
  %v4467 = vmul.f32 %v4167, 0.2
  %v4468 = vmul.f32 %v4168, 0.2
  %v4469 = vmax.f32 %v3869, %v4169
  %v4470 = vmax.f32 %v3870, %v4170
  %v4471 = vmax.f32 %v3871, %v4171
  %v4472 = vmax.f32 %v3872, %v4172
  %v4473 = vmax.f32 %v3873, %v4173
  %v4474 = vmax.f32 %v3874, %v4174
  %v4475 = vmax.f32 %v3875, %v4175
  %v4476 = vmax.f32 %v3876, %v4176
  %v4477 = vmax.f32 %v3877, %v4177
  %v4478 = vmax.f32 %v3878, %v4178
  %v4479 = vmax.f32 %v3879, %v4179
  %v4480 = vmax.f32 %v3880, %v4180
  %v4481 = vmax.f32 %v3881, %v4181
  %v4482 = vmax.f32 %v3882, %v4182
  %v4483 = vmax.f32 %v3883, %v4183
  %v4484 = vmax.f32 %v3884, %v4184
  %v4485 = vmax.f32 %v3885, %v4185
  %v4486 = vmax.f32 %v3886, %v4186
  %v4487 = vmax.f32 %v3887, %v4187
  %v4488 = vmax.f32 %v3888, %v4188
  %v4489 = vmax.f32 %v3889, %v4189
  %v4490 = vmax.f32 %v3890, %v4190
  %v4491 = vmax.f32 %v3891, %v4191
  %v4492 = vmax.f32 %v3892, %v4192
  %v4493 = vmax.f32 %v3893, %v4193
  %v4494 = vmax.f32 %v3894, %v4194
  %v4495 = vmax.f32 %v3895, %v4195
  %v4496 = vmax.f32 %v3896, %v4196
  %v4497 = vmax.f32 %v3897, %v4197
  %v4498 = vmax.f32 %v3898, %v4198
  %v4499 = vmax.f32 %v3899, %v4199
  %v4500 = vmax.f32 %v3900, %v4200
  %v4501 = vmax.f32 %v3901, %v4201
  %v4502 = vmax.f32 %v3902, %v4202
  %v4503 = vmax.f32 %v3903, %v4203
  %v4504 = vmax.f32 %v3904, %v4204
  %v4505 = vmax.f32 %v3905, %v4205
  %v4506 = vmax.f32 %v3906, %v4206
  %v4507 = vmax.f32 %v3907, %v4207
  %v4508 = vmax.f32 %v3908, %v4208
  %v4509 = vmax.f32 %v3909, %v4209
  %v4510 = vmax.f32 %v3910, %v4210
  %v4511 = vmax.f32 %v3911, %v4211
  %v4512 = vmax.f32 %v3912, %v4212
  %v4513 = vmax.f32 %v3913, %v4213
  %v4514 = vmax.f32 %v3914, %v4214
  %v4515 = vmax.f32 %v3915, %v4215
  %v4516 = vmax.f32 %v3916, %v4216
  %v4517 = vmax.f32 %v3917, %v4217
  %v4518 = vmax.f32 %v3918, %v4218
  %v4519 = vmax.f32 %v3919, %v4219
  %v4520 = vmax.f32 %v3920, %v4220
  %v4521 = vmax.f32 %v3921, %v4221
  %v4522 = vmax.f32 %v3922, %v4222
  %v4523 = vmax.f32 %v3923, %v4223
  %v4524 = vmax.f32 %v3924, %v4224
  %v4525 = vmax.f32 %v3925, %v4225
  %v4526 = vmax.f32 %v3926, %v4226
  %v4527 = vmax.f32 %v3927, %v4227
  %v4528 = vmax.f32 %v3928, %v4228
  %v4529 = vmax.f32 %v3929, %v4229
  %v4530 = vmax.f32 %v3930, %v4230
  %v4531 = vmax.f32 %v3931, %v4231
  %v4532 = vmax.f32 %v3932, %v4232
  %v4533 = vmax.f32 %v3933, %v4233
  %v4534 = vmax.f32 %v3934, %v4234
  %v4535 = vmax.f32 %v3935, %v4235
  %v4536 = vmax.f32 %v3936, %v4236
  %v4537 = vmax.f32 %v3937, %v4237
  %v4538 = vmax.f32 %v3938, %v4238
  %v4539 = vmax.f32 %v3939, %v4239
  %v4540 = vmax.f32 %v3940, %v4240
  %v4541 = vmax.f32 %v3941, %v4241
  %v4542 = vmax.f32 %v3942, %v4242
  %v4543 = vmax.f32 %v3943, %v4243
  %v4544 = vmax.f32 %v3944, %v4244
  %v4545 = vmax.f32 %v3945, %v4245
  %v4546 = vmax.f32 %v3946, %v4246
  %v4547 = vmax.f32 %v3947, %v4247
  %v4548 = vmax.f32 %v3948, %v4248
  %v4549 = vmax.f32 %v3949, %v4249
  %v4550 = vmax.f32 %v3950, %v4250
  %v4551 = vmax.f32 %v3951, %v4251
  %v4552 = vmax.f32 %v3952, %v4252
  %v4553 = vmax.f32 %v3953, %v4253
  %v4554 = vmax.f32 %v3954, %v4254
  %v4555 = vmax.f32 %v3955, %v4255
  %v4556 = vmax.f32 %v3956, %v4256
  %v4557 = vmax.f32 %v3957, %v4257
  %v4558 = vmax.f32 %v3958, %v4258
  %v4559 = vmax.f32 %v3959, %v4259
  %v4560 = vmax.f32 %v3960, %v4260
  %v4561 = vmax.f32 %v3961, %v4261
  %v4562 = vmax.f32 %v3962, %v4262
  %v4563 = vmax.f32 %v3963, %v4263
  %v4564 = vmax.f32 %v3964, %v4264
  %v4565 = vmax.f32 %v3965, %v4265
  %v4566 = vmax.f32 %v3966, %v4266
  %v4567 = vmax.f32 %v3967, %v4267
  %v4568 = vmax.f32 %v3968, %v4268
  %v4569 = vmax.f32 %v3969, %v4269
  %v4570 = vmax.f32 %v3970, %v4270
  %v4571 = vmax.f32 %v3971, %v4271
  %v4572 = vmax.f32 %v3972, %v4272
  %v4573 = vmax.f32 %v3973, %v4273
  %v4574 = vmax.f32 %v3974, %v4274
  %v4575 = vmax.f32 %v3975, %v4275
  %v4576 = vmax.f32 %v3976, %v4276
  %v4577 = vmax.f32 %v3977, %v4277
  %v4578 = vmax.f32 %v3978, %v4278
  %v4579 = vmax.f32 %v3979, %v4279
  %v4580 = vmax.f32 %v3980, %v4280
  %v4581 = vmax.f32 %v3981, %v4281
  %v4582 = vmax.f32 %v3982, %v4282
  %v4583 = vmax.f32 %v3983, %v4283
  %v4584 = vmax.f32 %v3984, %v4284
  %v4585 = vmax.f32 %v3985, %v4285
  %v4586 = vmax.f32 %v3986, %v4286
  %v4587 = vmax.f32 %v3987, %v4287
  %v4588 = vmax.f32 %v3988, %v4288
  %v4589 = vmax.f32 %v3989, %v4289
  %v4590 = vmax.f32 %v3990, %v4290
  %v4591 = vmax.f32 %v3991, %v4291
  %v4592 = vmax.f32 %v3992, %v4292
  %v4593 = vmax.f32 %v3993, %v4293
  %v4594 = vmax.f32 %v3994, %v4294
  %v4595 = vmax.f32 %v3995, %v4295
  %v4596 = vmax.f32 %v3996, %v4296
  %v4597 = vmax.f32 %v3997, %v4297
  %v4598 = vmax.f32 %v3998, %v4298
  %v4599 = vmax.f32 %v3999, %v4299
  %v4600 = vmax.f32 %v4000, %v4300
  %v4601 = vmax.f32 %v4001, %v4301
  %v4602 = vmax.f32 %v4002, %v4302
  %v4603 = vmax.f32 %v4003, %v4303
  %v4604 = vmax.f32 %v4004, %v4304
  %v4605 = vmax.f32 %v4005, %v4305
  %v4606 = vmax.f32 %v4006, %v4306
  %v4607 = vmax.f32 %v4007, %v4307
  %v4608 = vmax.f32 %v4008, %v4308
  %v4609 = vmax.f32 %v4009, %v4309
  %v4610 = vmax.f32 %v4010, %v4310
  %v4611 = vmax.f32 %v4011, %v4311
  %v4612 = vmax.f32 %v4012, %v4312
  %v4613 = vmax.f32 %v4013, %v4313
  %v4614 = vmax.f32 %v4014, %v4314
  %v4615 = vmax.f32 %v4015, %v4315
  %v4616 = vmax.f32 %v4016, %v4316
  %v4617 = vmax.f32 %v4017, %v4317
  %v4618 = vmax.f32 %v4018, %v4318
  %v4619 = vmax.f32 %v4019, %v4319
  %v4620 = vmax.f32 %v4020, %v4320
  %v4621 = vmax.f32 %v4021, %v4321
  %v4622 = vmax.f32 %v4022, %v4322
  %v4623 = vmax.f32 %v4023, %v4323
  %v4624 = vmax.f32 %v4024, %v4324
  %v4625 = vmax.f32 %v4025, %v4325
  %v4626 = vmax.f32 %v4026, %v4326
  %v4627 = vmax.f32 %v4027, %v4327
  %v4628 = vmax.f32 %v4028, %v4328
  %v4629 = vmax.f32 %v4029, %v4329
  %v4630 = vmax.f32 %v4030, %v4330
  %v4631 = vmax.f32 %v4031, %v4331
  %v4632 = vmax.f32 %v4032, %v4332
  %v4633 = vmax.f32 %v4033, %v4333
  %v4634 = vmax.f32 %v4034, %v4334
  %v4635 = vmax.f32 %v4035, %v4335
  %v4636 = vmax.f32 %v4036, %v4336
  %v4637 = vmax.f32 %v4037, %v4337
  %v4638 = vmax.f32 %v4038, %v4338
  %v4639 = vmax.f32 %v4039, %v4339
  %v4640 = vmax.f32 %v4040, %v4340
  %v4641 = vmax.f32 %v4041, %v4341
  %v4642 = vmax.f32 %v4042, %v4342
  %v4643 = vmax.f32 %v4043, %v4343
  %v4644 = vmax.f32 %v4044, %v4344
  %v4645 = vmax.f32 %v4045, %v4345
  %v4646 = vmax.f32 %v4046, %v4346
  %v4647 = vmax.f32 %v4047, %v4347
  %v4648 = vmax.f32 %v4048, %v4348
  %v4649 = vmax.f32 %v4049, %v4349
  %v4650 = vmax.f32 %v4050, %v4350
  %v4651 = vmax.f32 %v4051, %v4351
  %v4652 = vmax.f32 %v4052, %v4352
  %v4653 = vmax.f32 %v4053, %v4353
  %v4654 = vmax.f32 %v4054, %v4354
  %v4655 = vmax.f32 %v4055, %v4355
  %v4656 = vmax.f32 %v4056, %v4356
  %v4657 = vmax.f32 %v4057, %v4357
  %v4658 = vmax.f32 %v4058, %v4358
  %v4659 = vmax.f32 %v4059, %v4359
  %v4660 = vmax.f32 %v4060, %v4360
  %v4661 = vmax.f32 %v4061, %v4361
  %v4662 = vmax.f32 %v4062, %v4362
  %v4663 = vmax.f32 %v4063, %v4363
  %v4664 = vmax.f32 %v4064, %v4364
  %v4665 = vmax.f32 %v4065, %v4365
  %v4666 = vmax.f32 %v4066, %v4366
  %v4667 = vmax.f32 %v4067, %v4367
  %v4668 = vmax.f32 %v4068, %v4368
  %v4669 = vmax.f32 %v4069, %v4369
  %v4670 = vmax.f32 %v4070, %v4370
  %v4671 = vmax.f32 %v4071, %v4371
  %v4672 = vmax.f32 %v4072, %v4372
  %v4673 = vmax.f32 %v4073, %v4373
  %v4674 = vmax.f32 %v4074, %v4374
  %v4675 = vmax.f32 %v4075, %v4375
  %v4676 = vmax.f32 %v4076, %v4376
  %v4677 = vmax.f32 %v4077, %v4377
  %v4678 = vmax.f32 %v4078, %v4378
  %v4679 = vmax.f32 %v4079, %v4379
  %v4680 = vmax.f32 %v4080, %v4380
  %v4681 = vmax.f32 %v4081, %v4381
  %v4682 = vmax.f32 %v4082, %v4382
  %v4683 = vmax.f32 %v4083, %v4383
  %v4684 = vmax.f32 %v4084, %v4384
  %v4685 = vmax.f32 %v4085, %v4385
  %v4686 = vmax.f32 %v4086, %v4386
  %v4687 = vmax.f32 %v4087, %v4387
  %v4688 = vmax.f32 %v4088, %v4388
  %v4689 = vmax.f32 %v4089, %v4389
  %v4690 = vmax.f32 %v4090, %v4390
  %v4691 = vmax.f32 %v4091, %v4391
  %v4692 = vmax.f32 %v4092, %v4392
  %v4693 = vmax.f32 %v4093, %v4393
  %v4694 = vmax.f32 %v4094, %v4394
  %v4695 = vmax.f32 %v4095, %v4395
  %v4696 = vmax.f32 %v4096, %v4396
  %v4697 = vmax.f32 %v4097, %v4397
  %v4698 = vmax.f32 %v4098, %v4398
  %v4699 = vmax.f32 %v4099, %v4399
  %v4700 = vmax.f32 %v4100, %v4400
  %v4701 = vmax.f32 %v4101, %v4401
  %v4702 = vmax.f32 %v4102, %v4402
  %v4703 = vmax.f32 %v4103, %v4403
  %v4704 = vmax.f32 %v4104, %v4404
  %v4705 = vmax.f32 %v4105, %v4405
  %v4706 = vmax.f32 %v4106, %v4406
  %v4707 = vmax.f32 %v4107, %v4407
  %v4708 = vmax.f32 %v4108, %v4408
  %v4709 = vmax.f32 %v4109, %v4409
  %v4710 = vmax.f32 %v4110, %v4410
  %v4711 = vmax.f32 %v4111, %v4411
  %v4712 = vmax.f32 %v4112, %v4412
  %v4713 = vmax.f32 %v4113, %v4413
  %v4714 = vmax.f32 %v4114, %v4414
  %v4715 = vmax.f32 %v4115, %v4415
  %v4716 = vmax.f32 %v4116, %v4416
  %v4717 = vmax.f32 %v4117, %v4417
  %v4718 = vmax.f32 %v4118, %v4418
  %v4719 = vmax.f32 %v4119, %v4419
  %v4720 = vmax.f32 %v4120, %v4420
  %v4721 = vmax.f32 %v4121, %v4421
  %v4722 = vmax.f32 %v4122, %v4422
  %v4723 = vmax.f32 %v4123, %v4423
  %v4724 = vmax.f32 %v4124, %v4424
  %v4725 = vmax.f32 %v4125, %v4425
  %v4726 = vmax.f32 %v4126, %v4426
  %v4727 = vmax.f32 %v4127, %v4427
  %v4728 = vmax.f32 %v4128, %v4428
  %v4729 = vmax.f32 %v4129, %v4429
  %v4730 = vmax.f32 %v4130, %v4430
  %v4731 = vmax.f32 %v4131, %v4431
  %v4732 = vmax.f32 %v4132, %v4432
  %v4733 = vmax.f32 %v4133, %v4433
  %v4734 = vmax.f32 %v4134, %v4434
  %v4735 = vmax.f32 %v4135, %v4435
  %v4736 = vmax.f32 %v4136, %v4436
  %v4737 = vmax.f32 %v4137, %v4437
  %v4738 = vmax.f32 %v4138, %v4438
  %v4739 = vmax.f32 %v4139, %v4439
  %v4740 = vmax.f32 %v4140, %v4440
  %v4741 = vmax.f32 %v4141, %v4441
  %v4742 = vmax.f32 %v4142, %v4442
  %v4743 = vmax.f32 %v4143, %v4443
  %v4744 = vmax.f32 %v4144, %v4444
  %v4745 = vmax.f32 %v4145, %v4445
  %v4746 = vmax.f32 %v4146, %v4446
  %v4747 = vmax.f32 %v4147, %v4447
  %v4748 = vmax.f32 %v4148, %v4448
  %v4749 = vmax.f32 %v4149, %v4449
  %v4750 = vmax.f32 %v4150, %v4450
  %v4751 = vmax.f32 %v4151, %v4451
  %v4752 = vmax.f32 %v4152, %v4452
  %v4753 = vmax.f32 %v4153, %v4453
  %v4754 = vmax.f32 %v4154, %v4454
  %v4755 = vmax.f32 %v4155, %v4455
  %v4756 = vmax.f32 %v4156, %v4456
  %v4757 = vmax.f32 %v4157, %v4457
  %v4758 = vmax.f32 %v4158, %v4458
  %v4759 = vmax.f32 %v4159, %v4459
  %v4760 = vmax.f32 %v4160, %v4460
  %v4761 = vmax.f32 %v4161, %v4461
  %v4762 = vmax.f32 %v4162, %v4462
  %v4763 = vmax.f32 %v4163, %v4463
  %v4764 = vmax.f32 %v4164, %v4464
  %v4765 = vmax.f32 %v4165, %v4465
  %v4766 = vmax.f32 %v4166, %v4466
  %v4767 = vmax.f32 %v4167, %v4467
  %v4768 = vmax.f32 %v4168, %v4468
  %v4769 = vpack.c.bf16 %v4475, %v4469
  %v4770 = vpack.c.bf16 %v4476, %v4470
  %v4771 = vpack.c.bf16 %v4477, %v4471
  %v4772 = vpack.c.bf16 %v4478, %v4472
  %v4773 = vpack.c.bf16 %v4479, %v4473
  %v4774 = vpack.c.bf16 %v4480, %v4474
  %v4775 = vpack.c.bf16 %v4487, %v4481
  %v4776 = vpack.c.bf16 %v4488, %v4482
  %v4777 = vpack.c.bf16 %v4489, %v4483
  %v4778 = vpack.c.bf16 %v4490, %v4484
  %v4779 = vpack.c.bf16 %v4491, %v4485
  %v4780 = vpack.c.bf16 %v4492, %v4486
  %v4781 = vpack.c.bf16 %v4499, %v4493
  %v4782 = vpack.c.bf16 %v4500, %v4494
  %v4783 = vpack.c.bf16 %v4501, %v4495
  %v4784 = vpack.c.bf16 %v4502, %v4496
  %v4785 = vpack.c.bf16 %v4503, %v4497
  %v4786 = vpack.c.bf16 %v4504, %v4498
  %v4787 = vpack.c.bf16 %v4511, %v4505
  %v4788 = vpack.c.bf16 %v4512, %v4506
  %v4789 = vpack.c.bf16 %v4513, %v4507
  %v4790 = vpack.c.bf16 %v4514, %v4508
  %v4791 = vpack.c.bf16 %v4515, %v4509
  %v4792 = vpack.c.bf16 %v4516, %v4510
  %v4793 = vpack.c.bf16 %v4523, %v4517
  %v4794 = vpack.c.bf16 %v4524, %v4518
  %v4795 = vpack.c.bf16 %v4525, %v4519
  %v4796 = vpack.c.bf16 %v4526, %v4520
  %v4797 = vpack.c.bf16 %v4527, %v4521
  %v4798 = vpack.c.bf16 %v4528, %v4522
  %v4799 = vpack.c.bf16 %v4535, %v4529
  %v4800 = vpack.c.bf16 %v4536, %v4530
  %v4801 = vpack.c.bf16 %v4537, %v4531
  %v4802 = vpack.c.bf16 %v4538, %v4532
  %v4803 = vpack.c.bf16 %v4539, %v4533
  %v4804 = vpack.c.bf16 %v4540, %v4534
  %v4805 = vpack.c.bf16 %v4547, %v4541
  %v4806 = vpack.c.bf16 %v4548, %v4542
  %v4807 = vpack.c.bf16 %v4549, %v4543
  %v4808 = vpack.c.bf16 %v4550, %v4544
  %v4809 = vpack.c.bf16 %v4551, %v4545
  %v4810 = vpack.c.bf16 %v4552, %v4546
  %v4811 = vpack.c.bf16 %v4559, %v4553
  %v4812 = vpack.c.bf16 %v4560, %v4554
  %v4813 = vpack.c.bf16 %v4561, %v4555
  %v4814 = vpack.c.bf16 %v4562, %v4556
  %v4815 = vpack.c.bf16 %v4563, %v4557
  %v4816 = vpack.c.bf16 %v4564, %v4558
  %v4817 = vpack.c.bf16 %v4571, %v4565
  %v4818 = vpack.c.bf16 %v4572, %v4566
  %v4819 = vpack.c.bf16 %v4573, %v4567
  %v4820 = vpack.c.bf16 %v4574, %v4568
  %v4821 = vpack.c.bf16 %v4575, %v4569
  %v4822 = vpack.c.bf16 %v4576, %v4570
  %v4823 = vpack.c.bf16 %v4583, %v4577
  %v4824 = vpack.c.bf16 %v4584, %v4578
  %v4825 = vpack.c.bf16 %v4585, %v4579
  %v4826 = vpack.c.bf16 %v4586, %v4580
  %v4827 = vpack.c.bf16 %v4587, %v4581
  %v4828 = vpack.c.bf16 %v4588, %v4582
  %v4829 = vpack.c.bf16 %v4595, %v4589
  %v4830 = vpack.c.bf16 %v4596, %v4590
  %v4831 = vpack.c.bf16 %v4597, %v4591
  %v4832 = vpack.c.bf16 %v4598, %v4592
  %v4833 = vpack.c.bf16 %v4599, %v4593
  %v4834 = vpack.c.bf16 %v4600, %v4594
  %v4835 = vpack.c.bf16 %v4607, %v4601
  %v4836 = vpack.c.bf16 %v4608, %v4602
  %v4837 = vpack.c.bf16 %v4609, %v4603
  %v4838 = vpack.c.bf16 %v4610, %v4604
  %v4839 = vpack.c.bf16 %v4611, %v4605
  %v4840 = vpack.c.bf16 %v4612, %v4606
  %v4841 = vpack.c.bf16 %v4619, %v4613
  %v4842 = vpack.c.bf16 %v4620, %v4614
  %v4843 = vpack.c.bf16 %v4621, %v4615
  %v4844 = vpack.c.bf16 %v4622, %v4616
  %v4845 = vpack.c.bf16 %v4623, %v4617
  %v4846 = vpack.c.bf16 %v4624, %v4618
  %v4847 = vpack.c.bf16 %v4631, %v4625
  %v4848 = vpack.c.bf16 %v4632, %v4626
  %v4849 = vpack.c.bf16 %v4633, %v4627
  %v4850 = vpack.c.bf16 %v4634, %v4628
  %v4851 = vpack.c.bf16 %v4635, %v4629
  %v4852 = vpack.c.bf16 %v4636, %v4630
  %v4853 = vpack.c.bf16 %v4643, %v4637
  %v4854 = vpack.c.bf16 %v4644, %v4638
  %v4855 = vpack.c.bf16 %v4645, %v4639
  %v4856 = vpack.c.bf16 %v4646, %v4640
  %v4857 = vpack.c.bf16 %v4647, %v4641
  %v4858 = vpack.c.bf16 %v4648, %v4642
  %v4859 = vpack.c.bf16 %v4655, %v4649
  %v4860 = vpack.c.bf16 %v4656, %v4650
  %v4861 = vpack.c.bf16 %v4657, %v4651
  %v4862 = vpack.c.bf16 %v4658, %v4652
  %v4863 = vpack.c.bf16 %v4659, %v4653
  %v4864 = vpack.c.bf16 %v4660, %v4654
  %v4865 = vpack.c.bf16 %v4667, %v4661
  %v4866 = vpack.c.bf16 %v4668, %v4662
  %v4867 = vpack.c.bf16 %v4669, %v4663
  %v4868 = vpack.c.bf16 %v4670, %v4664
  %v4869 = vpack.c.bf16 %v4671, %v4665
  %v4870 = vpack.c.bf16 %v4672, %v4666
  %v4871 = vpack.c.bf16 %v4679, %v4673
  %v4872 = vpack.c.bf16 %v4680, %v4674
  %v4873 = vpack.c.bf16 %v4681, %v4675
  %v4874 = vpack.c.bf16 %v4682, %v4676
  %v4875 = vpack.c.bf16 %v4683, %v4677
  %v4876 = vpack.c.bf16 %v4684, %v4678
  %v4877 = vpack.c.bf16 %v4691, %v4685
  %v4878 = vpack.c.bf16 %v4692, %v4686
  %v4879 = vpack.c.bf16 %v4693, %v4687
  %v4880 = vpack.c.bf16 %v4694, %v4688
  %v4881 = vpack.c.bf16 %v4695, %v4689
  %v4882 = vpack.c.bf16 %v4696, %v4690
  %v4883 = vpack.c.bf16 %v4703, %v4697
  %v4884 = vpack.c.bf16 %v4704, %v4698
  %v4885 = vpack.c.bf16 %v4705, %v4699
  %v4886 = vpack.c.bf16 %v4706, %v4700
  %v4887 = vpack.c.bf16 %v4707, %v4701
  %v4888 = vpack.c.bf16 %v4708, %v4702
  %v4889 = vpack.c.bf16 %v4715, %v4709
  %v4890 = vpack.c.bf16 %v4716, %v4710
  %v4891 = vpack.c.bf16 %v4717, %v4711
  %v4892 = vpack.c.bf16 %v4718, %v4712
  %v4893 = vpack.c.bf16 %v4719, %v4713
  %v4894 = vpack.c.bf16 %v4720, %v4714
  %v4895 = vpack.c.bf16 %v4727, %v4721
  %v4896 = vpack.c.bf16 %v4728, %v4722
  %v4897 = vpack.c.bf16 %v4729, %v4723
  %v4898 = vpack.c.bf16 %v4730, %v4724
  %v4899 = vpack.c.bf16 %v4731, %v4725
  %v4900 = vpack.c.bf16 %v4732, %v4726
  %v4901 = vpack.c.bf16 %v4739, %v4733
  %v4902 = vpack.c.bf16 %v4740, %v4734
  %v4903 = vpack.c.bf16 %v4741, %v4735
  %v4904 = vpack.c.bf16 %v4742, %v4736
  %v4905 = vpack.c.bf16 %v4743, %v4737
  %v4906 = vpack.c.bf16 %v4744, %v4738
  %v4907 = vpack.c.bf16 %v4751, %v4745
  %v4908 = vpack.c.bf16 %v4752, %v4746
  %v4909 = vpack.c.bf16 %v4753, %v4747
  %v4910 = vpack.c.bf16 %v4754, %v4748
  %v4911 = vpack.c.bf16 %v4755, %v4749
  %v4912 = vpack.c.bf16 %v4756, %v4750
  %v4913 = vpack.c.bf16 %v4763, %v4757
  %v4914 = vpack.c.bf16 %v4764, %v4758
  %v4915 = vpack.c.bf16 %v4765, %v4759
  %v4916 = vpack.c.bf16 %v4766, %v4760
  %v4917 = vpack.c.bf16 %v4767, %v4761
  %v4918 = vpack.c.bf16 %v4768, %v4762
  %v4919 = vld [vmem:[%s3] sm:$0xff]
  %v4920 = vld [vmem:[%s3 + $0x8] sm:$0xf]
  %v4921 = vld [vmem:[%s3 + $0xc] sm:$0xff]
  %v4922 = vld [vmem:[%s3 + $0x14] sm:$0xf]
  %v4923 = vld [vmem:[%s3 + $0x18] sm:$0xff]
  %v4924 = vld [vmem:[%s3 + $0x20] sm:$0xf]
  %v4925 = vld [vmem:[%s3 + $0x24] sm:$0xff]
  %v4926 = vld [vmem:[%s3 + $0x2c] sm:$0xf]
  %v4927 = vld [vmem:[%s3 + $0x30] sm:$0xff]
  %v4928 = vld [vmem:[%s3 + $0x38] sm:$0xf]
  %v4929 = vld [vmem:[%s3 + $0x3c] sm:$0xff]
  %v4930 = vld [vmem:[%s3 + $0x44] sm:$0xf]
  %v4931 = vld [vmem:[%s3 + $0x48] sm:$0xff]
  %v4932 = vld [vmem:[%s3 + $0x50] sm:$0xf]
  %v4933 = vld [vmem:[%s3 + $0x54] sm:$0xff]
  %v4934 = vld [vmem:[%s3 + $0x5c] sm:$0xf]
  %v4935 = vld [vmem:[%s3 + $0x60] sm:$0xff]
  %v4936 = vld [vmem:[%s3 + $0x68] sm:$0xf]
  %v4937 = vld [vmem:[%s3 + $0x6c] sm:$0xff]
  %v4938 = vld [vmem:[%s3 + $0x74] sm:$0xf]
  %v4939 = vld [vmem:[%s3 + $0x78] sm:$0xff]
  %v4940 = vld [vmem:[%s3 + $0x80] sm:$0xf]
  %v4941 = vld [vmem:[%s3 + $0x84] sm:$0xff]
  %v4942 = vld [vmem:[%s3 + $0x8c] sm:$0xf]
  %v4943 = vld [vmem:[%s3 + $0x90] sm:$0xff]
  %v4944 = vld [vmem:[%s3 + $0x98] sm:$0xf]
  %v4945 = vld [vmem:[%s3 + $0x9c] sm:$0xff]
  %v4946 = vld [vmem:[%s3 + $0xa4] sm:$0xf]
  %v4947 = vld [vmem:[%s3 + $0xa8] sm:$0xff]
  %v4948 = vld [vmem:[%s3 + $0xb0] sm:$0xf]
  %v4949 = vld [vmem:[%s3 + $0xb4] sm:$0xff]
  %v4950 = vld [vmem:[%s3 + $0xbc] sm:$0xf]
  %v4951 = vld [vmem:[%s3 + $0xc0] sm:$0xff]
  %v4952 = vld [vmem:[%s3 + $0xc8] sm:$0xf]
  %v4953 = vld [vmem:[%s3 + $0xcc] sm:$0xff]
  %v4954 = vld [vmem:[%s3 + $0xd4] sm:$0xf]
  %v4955 = vld [vmem:[%s3 + $0xd8] sm:$0xff]
  %v4956 = vld [vmem:[%s3 + $0xe0] sm:$0xf]
  %v4957 = vld [vmem:[%s3 + $0xe4] sm:$0xff]
  %v4958 = vld [vmem:[%s3 + $0xec] sm:$0xf]
  %v4959 = vld [vmem:[%s3 + $0xf0] sm:$0xff]
  %v4960 = vld [vmem:[%s3 + $0xf8] sm:$0xf]
  %v4961 = vld [vmem:[%s3 + $0xfc] sm:$0xff]
  %v4962 = vld [vmem:[%s3 + $0x104] sm:$0xf]
  %v4963 = vld [vmem:[%s3 + $0x108] sm:$0xff]
  %v4964 = vld [vmem:[%s3 + $0x110] sm:$0xf]
  %v4965 = vld [vmem:[%s3 + $0x114] sm:$0xff]
  %v4966 = vld [vmem:[%s3 + $0x11c] sm:$0xf]
  %v4967 = vld [vmem:[%s3 + $0x120] sm:$0xff]
  %v4968 = vld [vmem:[%s3 + $0x128] sm:$0xf]
  %v4969 = vld [vmem:[%s3 + $0x12c] sm:$0xff]
  %v4970 = vld [vmem:[%s3 + $0x134] sm:$0xf]
  %v4971 = vld [vmem:[%s3 + $0x138] sm:$0xff]
  %v4972 = vld [vmem:[%s3 + $0x140] sm:$0xf]
  %v4973 = vld [vmem:[%s3 + $0x144] sm:$0xff]
  %v4974 = vld [vmem:[%s3 + $0x14c] sm:$0xf]
  %v4975 = vld [vmem:[%s3 + $0x150] sm:$0xff]
  %v4976 = vld [vmem:[%s3 + $0x158] sm:$0xf]
  %v4977 = vld [vmem:[%s3 + $0x15c] sm:$0xff]
  %v4978 = vld [vmem:[%s3 + $0x164] sm:$0xf]
  %v4979 = vld [vmem:[%s3 + $0x168] sm:$0xff]
  %v4980 = vld [vmem:[%s3 + $0x170] sm:$0xf]
  %v4981 = vld [vmem:[%s3 + $0x174] sm:$0xff]
  %v4982 = vld [vmem:[%s3 + $0x17c] sm:$0xf]
  %v4983 = vld [vmem:[%s3 + $0x180] sm:$0xff]
  %v4984 = vld [vmem:[%s3 + $0x188] sm:$0xf]
  %v4985 = vld [vmem:[%s3 + $0x18c] sm:$0xff]
  %v4986 = vld [vmem:[%s3 + $0x194] sm:$0xf]
  %v4987 = vld [vmem:[%s3 + $0x198] sm:$0xff]
  %v4988 = vld [vmem:[%s3 + $0x1a0] sm:$0xf]
  %v4989 = vld [vmem:[%s3 + $0x1a4] sm:$0xff]
  %v4990 = vld [vmem:[%s3 + $0x1ac] sm:$0xf]
  %v4991 = vld [vmem:[%s3 + $0x1b0] sm:$0xff]
  %v4992 = vld [vmem:[%s3 + $0x1b8] sm:$0xf]
  %v4993 = vld [vmem:[%s3 + $0x1bc] sm:$0xff]
  %v4994 = vld [vmem:[%s3 + $0x1c4] sm:$0xf]
  %v4995 = vld [vmem:[%s3 + $0x1c8] sm:$0xff]
  %v4996 = vld [vmem:[%s3 + $0x1d0] sm:$0xf]
  %v4997 = vld [vmem:[%s3 + $0x1d4] sm:$0xff]
  %v4998 = vld [vmem:[%s3 + $0x1dc] sm:$0xf]
  %v4999 = vld [vmem:[%s3 + $0x1e0] sm:$0xff]
  %v5000 = vld [vmem:[%s3 + $0x1e8] sm:$0xf]
  %v5001 = vld [vmem:[%s3 + $0x1ec] sm:$0xff]
  %v5002 = vld [vmem:[%s3 + $0x1f4] sm:$0xf]
  %v5003 = vld [vmem:[%s3 + $0x1f8] sm:$0xff]
  %v5004 = vld [vmem:[%s3 + $0x200] sm:$0xf]
  %v5005 = vld [vmem:[%s3 + $0x204] sm:$0xff]
  %v5006 = vld [vmem:[%s3 + $0x20c] sm:$0xf]
  %v5007 = vld [vmem:[%s3 + $0x210] sm:$0xff]
  %v5008 = vld [vmem:[%s3 + $0x218] sm:$0xf]
  %v5009 = vld [vmem:[%s3 + $0x21c] sm:$0xff]
  %v5010 = vld [vmem:[%s3 + $0x224] sm:$0xf]
  %v5011 = vld [vmem:[%s3 + $0x228] sm:$0xff]
  %v5012 = vld [vmem:[%s3 + $0x230] sm:$0xf]
  %v5013 = vld [vmem:[%s3 + $0x234] sm:$0xff]
  %v5014 = vld [vmem:[%s3 + $0x23c] sm:$0xf]
  %v5015 = vld [vmem:[%s3 + $0x240] sm:$0xff]
  %v5016 = vld [vmem:[%s3 + $0x248] sm:$0xf]
  %v5017 = vld [vmem:[%s3 + $0x24c] sm:$0xff]
  %v5018 = vld [vmem:[%s3 + $0x254] sm:$0xf]
  %v5019 = vld [vmem:[%s3 + $0x258] sm:$0xff]
  %v5020 = vld [vmem:[%s3 + $0x260] sm:$0xf]
  %v5021 = vld [vmem:[%s3 + $0x264] sm:$0xff]
  %v5022 = vld [vmem:[%s3 + $0x26c] sm:$0xf]
  %v5023 = vld [vmem:[%s3 + $0x270] sm:$0xff]
  %v5024 = vld [vmem:[%s3 + $0x278] sm:$0xf]
  %v5025 = vld [vmem:[%s3 + $0x27c] sm:$0xff]
  %v5026 = vld [vmem:[%s3 + $0x284] sm:$0xf]
  %v5027 = vld [vmem:[%s3 + $0x288] sm:$0xff]
  %v5028 = vld [vmem:[%s3 + $0x290] sm:$0xf]
  %v5029 = vld [vmem:[%s3 + $0x294] sm:$0xff]
  %v5030 = vld [vmem:[%s3 + $0x29c] sm:$0xf]
  %v5031 = vld [vmem:[%s3 + $0x2a0] sm:$0xff]
  %v5032 = vld [vmem:[%s3 + $0x2a8] sm:$0xf]
  %v5033 = vld [vmem:[%s3 + $0x2ac] sm:$0xff]
  %v5034 = vld [vmem:[%s3 + $0x2b4] sm:$0xf]
  %v5035 = vld [vmem:[%s3 + $0x2b8] sm:$0xff]
  %v5036 = vld [vmem:[%s3 + $0x2c0] sm:$0xf]
  %v5037 = vld [vmem:[%s3 + $0x2c4] sm:$0xff]
  %v5038 = vld [vmem:[%s3 + $0x2cc] sm:$0xf]
  %v5039 = vld [vmem:[%s3 + $0x2d0] sm:$0xff]
  %v5040 = vld [vmem:[%s3 + $0x2d8] sm:$0xf]
  %v5041 = vld [vmem:[%s3 + $0x2dc] sm:$0xff]
  %v5042 = vld [vmem:[%s3 + $0x2e4] sm:$0xf]
  %v5043 = vld [vmem:[%s3 + $0x2e8] sm:$0xff]
  %v5044 = vld [vmem:[%s3 + $0x2f0] sm:$0xf]
  %v5045 = vld [vmem:[%s3 + $0x2f4] sm:$0xff]
  %v5046 = vld [vmem:[%s3 + $0x2fc] sm:$0xf]
  %v5047 = vld [vmem:[%s3 + $0x300] sm:$0xff]
  %v5048 = vld [vmem:[%s3 + $0x308] sm:$0xf]
  %v5049 = vld [vmem:[%s3 + $0x30c] sm:$0xff]
  %v5050 = vld [vmem:[%s3 + $0x314] sm:$0xf]
  %v5051 = vld [vmem:[%s3 + $0x318] sm:$0xff]
  %v5052 = vld [vmem:[%s3 + $0x320] sm:$0xf]
  %v5053 = vld [vmem:[%s3 + $0x324] sm:$0xff]
  %v5054 = vld [vmem:[%s3 + $0x32c] sm:$0xf]
  %v5055 = vld [vmem:[%s3 + $0x330] sm:$0xff]
  %v5056 = vld [vmem:[%s3 + $0x338] sm:$0xf]
  %v5057 = vld [vmem:[%s3 + $0x33c] sm:$0xff]
  %v5058 = vld [vmem:[%s3 + $0x344] sm:$0xf]
  %v5059 = vld [vmem:[%s3 + $0x348] sm:$0xff]
  %v5060 = vld [vmem:[%s3 + $0x350] sm:$0xf]
  %v5061 = vld [vmem:[%s3 + $0x354] sm:$0xff]
  %v5062 = vld [vmem:[%s3 + $0x35c] sm:$0xf]
  %v5063 = vld [vmem:[%s3 + $0x360] sm:$0xff]
  %v5064 = vld [vmem:[%s3 + $0x368] sm:$0xf]
  %v5065 = vld [vmem:[%s3 + $0x36c] sm:$0xff]
  %v5066 = vld [vmem:[%s3 + $0x374] sm:$0xf]
  %v5067 = vld [vmem:[%s3 + $0x378] sm:$0xff]
  %v5068 = vld [vmem:[%s3 + $0x380] sm:$0xf]
  %v5069 = vld [vmem:[%s3 + $0x384] sm:$0xff]
  %v5070 = vld [vmem:[%s3 + $0x38c] sm:$0xf]
  %v5071 = vld [vmem:[%s3 + $0x390] sm:$0xff]
  %v5072 = vld [vmem:[%s3 + $0x398] sm:$0xf]
  %v5073 = vld [vmem:[%s3 + $0x39c] sm:$0xff]
  %v5074 = vld [vmem:[%s3 + $0x3a4] sm:$0xf]
  %v5075 = vld [vmem:[%s3 + $0x3a8] sm:$0xff]
  %v5076 = vld [vmem:[%s3 + $0x3b0] sm:$0xf]
  %v5077 = vld [vmem:[%s3 + $0x3b4] sm:$0xff]
  %v5078 = vld [vmem:[%s3 + $0x3bc] sm:$0xf]
  %v5079 = vld [vmem:[%s3 + $0x3c0] sm:$0xff]
  %v5080 = vld [vmem:[%s3 + $0x3c8] sm:$0xf]
  %v5081 = vld [vmem:[%s3 + $0x3cc] sm:$0xff]
  %v5082 = vld [vmem:[%s3 + $0x3d4] sm:$0xf]
  %v5083 = vld [vmem:[%s3 + $0x3d8] sm:$0xff]
  %v5084 = vld [vmem:[%s3 + $0x3e0] sm:$0xf]
  %v5085 = vld [vmem:[%s3 + $0x3e4] sm:$0xff]
  %v5086 = vld [vmem:[%s3 + $0x3ec] sm:$0xf]
  %v5087 = vld [vmem:[%s3 + $0x3f0] sm:$0xff]
  %v5088 = vld [vmem:[%s3 + $0x3f8] sm:$0xf]
  %v5089 = vld [vmem:[%s3 + $0x3fc] sm:$0xff]
  %v5090 = vld [vmem:[%s3 + $0x404] sm:$0xf]
  %v5091 = vld [vmem:[%s3 + $0x408] sm:$0xff]
  %v5092 = vld [vmem:[%s3 + $0x410] sm:$0xf]
  %v5093 = vld [vmem:[%s3 + $0x414] sm:$0xff]
  %v5094 = vld [vmem:[%s3 + $0x41c] sm:$0xf]
  %v5095 = vld [vmem:[%s3 + $0x420] sm:$0xff]
  %v5096 = vld [vmem:[%s3 + $0x428] sm:$0xf]
  %v5097 = vld [vmem:[%s3 + $0x42c] sm:$0xff]
  %v5098 = vld [vmem:[%s3 + $0x434] sm:$0xf]
  %v5099 = vld [vmem:[%s3 + $0x438] sm:$0xff]
  %v5100 = vld [vmem:[%s3 + $0x440] sm:$0xf]
  %v5101 = vld [vmem:[%s3 + $0x444] sm:$0xff]
  %v5102 = vld [vmem:[%s3 + $0x44c] sm:$0xf]
  %s5103 = scalar_lea.vmem %s3, 1104
  %v5104 = vld [vmem:[%s5103] sm:$0xff]
  %v5105 = vld [vmem:[%s5103 + $0x8] sm:$0xf]
  %v5106 = vld [vmem:[%s5103 + $0xc] sm:$0xff]
  %v5107 = vld [vmem:[%s5103 + $0x14] sm:$0xf]
  %v5108 = vld [vmem:[%s5103 + $0x18] sm:$0xff]
  %v5109 = vld [vmem:[%s5103 + $0x20] sm:$0xf]
  %v5110 = vld [vmem:[%s5103 + $0x24] sm:$0xff]
  %v5111 = vld [vmem:[%s5103 + $0x2c] sm:$0xf]
  %v5112 = vld [vmem:[%s5103 + $0x30] sm:$0xff]
  %v5113 = vld [vmem:[%s5103 + $0x38] sm:$0xf]
  %v5114 = vld [vmem:[%s5103 + $0x3c] sm:$0xff]
  %v5115 = vld [vmem:[%s5103 + $0x44] sm:$0xf]
  %v5116 = vld [vmem:[%s5103 + $0x48] sm:$0xff]
  %v5117 = vld [vmem:[%s5103 + $0x50] sm:$0xf]
  %v5118 = vld [vmem:[%s5103 + $0x54] sm:$0xff]
  %v5119 = vld [vmem:[%s5103 + $0x5c] sm:$0xf]
  %v5120 = vld [vmem:[%s5103 + $0x60] sm:$0xff]
  %v5121 = vld [vmem:[%s5103 + $0x68] sm:$0xf]
  %v5122 = vld [vmem:[%s5103 + $0x6c] sm:$0xff]
  %v5123 = vld [vmem:[%s5103 + $0x74] sm:$0xf]
  %v5124 = vld [vmem:[%s5103 + $0x78] sm:$0xff]
  %v5125 = vld [vmem:[%s5103 + $0x80] sm:$0xf]
  %v5126 = vld [vmem:[%s5103 + $0x84] sm:$0xff]
  %v5127 = vld [vmem:[%s5103 + $0x8c] sm:$0xf]
  %v5128 = vld [vmem:[%s5103 + $0x90] sm:$0xff]
  %v5129 = vld [vmem:[%s5103 + $0x98] sm:$0xf]
  %v5130 = vld [vmem:[%s5103 + $0x9c] sm:$0xff]
  %v5131 = vld [vmem:[%s5103 + $0xa4] sm:$0xf]
  %v5132 = vld [vmem:[%s5103 + $0xa8] sm:$0xff]
  %v5133 = vld [vmem:[%s5103 + $0xb0] sm:$0xf]
  %v5134 = vld [vmem:[%s5103 + $0xb4] sm:$0xff]
  %v5135 = vld [vmem:[%s5103 + $0xbc] sm:$0xf]
  %v5136 = vld [vmem:[%s5103 + $0xc0] sm:$0xff]
  %v5137 = vld [vmem:[%s5103 + $0xc8] sm:$0xf]
  %v5138 = vld [vmem:[%s5103 + $0xcc] sm:$0xff]
  %v5139 = vld [vmem:[%s5103 + $0xd4] sm:$0xf]
  %v5140 = vld [vmem:[%s5103 + $0xd8] sm:$0xff]
  %v5141 = vld [vmem:[%s5103 + $0xe0] sm:$0xf]
  %v5142 = vld [vmem:[%s5103 + $0xe4] sm:$0xff]
  %v5143 = vld [vmem:[%s5103 + $0xec] sm:$0xf]
  %v5144 = vld [vmem:[%s5103 + $0xf0] sm:$0xff]
  %v5145 = vld [vmem:[%s5103 + $0xf8] sm:$0xf]
  %v5146 = vld [vmem:[%s5103 + $0xfc] sm:$0xff]
  %v5147 = vld [vmem:[%s5103 + $0x104] sm:$0xf]
  %v5148 = vld [vmem:[%s5103 + $0x108] sm:$0xff]
  %v5149 = vld [vmem:[%s5103 + $0x110] sm:$0xf]
  %v5150 = vld [vmem:[%s5103 + $0x114] sm:$0xff]
  %v5151 = vld [vmem:[%s5103 + $0x11c] sm:$0xf]
  %v5152 = vld [vmem:[%s5103 + $0x120] sm:$0xff]
  %v5153 = vld [vmem:[%s5103 + $0x128] sm:$0xf]
  %v5154 = vld [vmem:[%s5103 + $0x12c] sm:$0xff]
  %v5155 = vld [vmem:[%s5103 + $0x134] sm:$0xf]
  %v5156 = vld [vmem:[%s5103 + $0x138] sm:$0xff]
  %v5157 = vld [vmem:[%s5103 + $0x140] sm:$0xf]
  %v5158 = vld [vmem:[%s5103 + $0x144] sm:$0xff]
  %v5159 = vld [vmem:[%s5103 + $0x14c] sm:$0xf]
  %v5160 = vld [vmem:[%s5103 + $0x150] sm:$0xff]
  %v5161 = vld [vmem:[%s5103 + $0x158] sm:$0xf]
  %v5162 = vld [vmem:[%s5103 + $0x15c] sm:$0xff]
  %v5163 = vld [vmem:[%s5103 + $0x164] sm:$0xf]
  %v5164 = vld [vmem:[%s5103 + $0x168] sm:$0xff]
  %v5165 = vld [vmem:[%s5103 + $0x170] sm:$0xf]
  %v5166 = vld [vmem:[%s5103 + $0x174] sm:$0xff]
  %v5167 = vld [vmem:[%s5103 + $0x17c] sm:$0xf]
  %v5168 = vld [vmem:[%s5103 + $0x180] sm:$0xff]
  %v5169 = vld [vmem:[%s5103 + $0x188] sm:$0xf]
  %v5170 = vld [vmem:[%s5103 + $0x18c] sm:$0xff]
  %v5171 = vld [vmem:[%s5103 + $0x194] sm:$0xf]
  %v5172 = vld [vmem:[%s5103 + $0x198] sm:$0xff]
  %v5173 = vld [vmem:[%s5103 + $0x1a0] sm:$0xf]
  %v5174 = vld [vmem:[%s5103 + $0x1a4] sm:$0xff]
  %v5175 = vld [vmem:[%s5103 + $0x1ac] sm:$0xf]
  %v5176 = vld [vmem:[%s5103 + $0x1b0] sm:$0xff]
  %v5177 = vld [vmem:[%s5103 + $0x1b8] sm:$0xf]
  %v5178 = vld [vmem:[%s5103 + $0x1bc] sm:$0xff]
  %v5179 = vld [vmem:[%s5103 + $0x1c4] sm:$0xf]
  %v5180 = vld [vmem:[%s5103 + $0x1c8] sm:$0xff]
  %v5181 = vld [vmem:[%s5103 + $0x1d0] sm:$0xf]
  %v5182 = vld [vmem:[%s5103 + $0x1d4] sm:$0xff]
  %v5183 = vld [vmem:[%s5103 + $0x1dc] sm:$0xf]
  %v5184 = vld [vmem:[%s5103 + $0x1e0] sm:$0xff]
  %v5185 = vld [vmem:[%s5103 + $0x1e8] sm:$0xf]
  %v5186 = vld [vmem:[%s5103 + $0x1ec] sm:$0xff]
  %v5187 = vld [vmem:[%s5103 + $0x1f4] sm:$0xf]
  %v5188 = vld [vmem:[%s5103 + $0x1f8] sm:$0xff]
  %v5189 = vld [vmem:[%s5103 + $0x200] sm:$0xf]
  %v5190 = vld [vmem:[%s5103 + $0x204] sm:$0xff]
  %v5191 = vld [vmem:[%s5103 + $0x20c] sm:$0xf]
  %v5192 = vld [vmem:[%s5103 + $0x210] sm:$0xff]
  %v5193 = vld [vmem:[%s5103 + $0x218] sm:$0xf]
  %v5194 = vld [vmem:[%s5103 + $0x21c] sm:$0xff]
  %v5195 = vld [vmem:[%s5103 + $0x224] sm:$0xf]
  %v5196 = vld [vmem:[%s5103 + $0x228] sm:$0xff]
  %v5197 = vld [vmem:[%s5103 + $0x230] sm:$0xf]
  %v5198 = vld [vmem:[%s5103 + $0x234] sm:$0xff]
  %v5199 = vld [vmem:[%s5103 + $0x23c] sm:$0xf]
  %v5200 = vld [vmem:[%s5103 + $0x240] sm:$0xff]
  %v5201 = vld [vmem:[%s5103 + $0x248] sm:$0xf]
  %v5202 = vld [vmem:[%s5103 + $0x24c] sm:$0xff]
  %v5203 = vld [vmem:[%s5103 + $0x254] sm:$0xf]
  %v5204 = vld [vmem:[%s5103 + $0x258] sm:$0xff]
  %v5205 = vld [vmem:[%s5103 + $0x260] sm:$0xf]
  %v5206 = vld [vmem:[%s5103 + $0x264] sm:$0xff]
  %v5207 = vld [vmem:[%s5103 + $0x26c] sm:$0xf]
  %v5208 = vld [vmem:[%s5103 + $0x270] sm:$0xff]
  %v5209 = vld [vmem:[%s5103 + $0x278] sm:$0xf]
  %v5210 = vld [vmem:[%s5103 + $0x27c] sm:$0xff]
  %v5211 = vld [vmem:[%s5103 + $0x284] sm:$0xf]
  %v5212 = vld [vmem:[%s5103 + $0x288] sm:$0xff]
  %v5213 = vld [vmem:[%s5103 + $0x290] sm:$0xf]
  %v5214 = vld [vmem:[%s5103 + $0x294] sm:$0xff]
  %v5215 = vld [vmem:[%s5103 + $0x29c] sm:$0xf]
  %v5216 = vld [vmem:[%s5103 + $0x2a0] sm:$0xff]
  %v5217 = vld [vmem:[%s5103 + $0x2a8] sm:$0xf]
  %v5218 = vld [vmem:[%s5103 + $0x2ac] sm:$0xff]
  %v5219 = vld [vmem:[%s5103 + $0x2b4] sm:$0xf]
  %v5220 = vld [vmem:[%s5103 + $0x2b8] sm:$0xff]
  %v5221 = vld [vmem:[%s5103 + $0x2c0] sm:$0xf]
  %v5222 = vld [vmem:[%s5103 + $0x2c4] sm:$0xff]
  %v5223 = vld [vmem:[%s5103 + $0x2cc] sm:$0xf]
  %v5224 = vld [vmem:[%s5103 + $0x2d0] sm:$0xff]
  %v5225 = vld [vmem:[%s5103 + $0x2d8] sm:$0xf]
  %v5226 = vld [vmem:[%s5103 + $0x2dc] sm:$0xff]
  %v5227 = vld [vmem:[%s5103 + $0x2e4] sm:$0xf]
  %v5228 = vld [vmem:[%s5103 + $0x2e8] sm:$0xff]
  %v5229 = vld [vmem:[%s5103 + $0x2f0] sm:$0xf]
  %v5230 = vld [vmem:[%s5103 + $0x2f4] sm:$0xff]
  %v5231 = vld [vmem:[%s5103 + $0x2fc] sm:$0xf]
  %v5232 = vld [vmem:[%s5103 + $0x300] sm:$0xff]
  %v5233 = vld [vmem:[%s5103 + $0x308] sm:$0xf]
  %v5234 = vld [vmem:[%s5103 + $0x30c] sm:$0xff]
  %v5235 = vld [vmem:[%s5103 + $0x314] sm:$0xf]
  %v5236 = vld [vmem:[%s5103 + $0x318] sm:$0xff]
  %v5237 = vld [vmem:[%s5103 + $0x320] sm:$0xf]
  %v5238 = vld [vmem:[%s5103 + $0x324] sm:$0xff]
  %v5239 = vld [vmem:[%s5103 + $0x32c] sm:$0xf]
  %v5240 = vld [vmem:[%s5103 + $0x330] sm:$0xff]
  %v5241 = vld [vmem:[%s5103 + $0x338] sm:$0xf]
  %v5242 = vld [vmem:[%s5103 + $0x33c] sm:$0xff]
  %v5243 = vld [vmem:[%s5103 + $0x344] sm:$0xf]
  %v5244 = vld [vmem:[%s5103 + $0x348] sm:$0xff]
  %v5245 = vld [vmem:[%s5103 + $0x350] sm:$0xf]
  %v5246 = vld [vmem:[%s5103 + $0x354] sm:$0xff]
  %v5247 = vld [vmem:[%s5103 + $0x35c] sm:$0xf]
  %v5248 = vld [vmem:[%s5103 + $0x360] sm:$0xff]
  %v5249 = vld [vmem:[%s5103 + $0x368] sm:$0xf]
  %v5250 = vld [vmem:[%s5103 + $0x36c] sm:$0xff]
  %v5251 = vld [vmem:[%s5103 + $0x374] sm:$0xf]
  %v5252 = vld [vmem:[%s5103 + $0x378] sm:$0xff]
  %v5253 = vld [vmem:[%s5103 + $0x380] sm:$0xf]
  %v5254 = vld [vmem:[%s5103 + $0x384] sm:$0xff]
  %v5255 = vld [vmem:[%s5103 + $0x38c] sm:$0xf]
  %v5256 = vld [vmem:[%s5103 + $0x390] sm:$0xff]
  %v5257 = vld [vmem:[%s5103 + $0x398] sm:$0xf]
  %v5258 = vld [vmem:[%s5103 + $0x39c] sm:$0xff]
  %v5259 = vld [vmem:[%s5103 + $0x3a4] sm:$0xf]
  %v5260 = vld [vmem:[%s5103 + $0x3a8] sm:$0xff]
  %v5261 = vld [vmem:[%s5103 + $0x3b0] sm:$0xf]
  %v5262 = vld [vmem:[%s5103 + $0x3b4] sm:$0xff]
  %v5263 = vld [vmem:[%s5103 + $0x3bc] sm:$0xf]
  %v5264 = vld [vmem:[%s5103 + $0x3c0] sm:$0xff]
  %v5265 = vld [vmem:[%s5103 + $0x3c8] sm:$0xf]
  %v5266 = vld [vmem:[%s5103 + $0x3cc] sm:$0xff]
  %v5267 = vld [vmem:[%s5103 + $0x3d4] sm:$0xf]
  %v5268 = vld [vmem:[%s5103 + $0x3d8] sm:$0xff]
  %v5269 = vld [vmem:[%s5103 + $0x3e0] sm:$0xf]
  %v5270 = vld [vmem:[%s5103 + $0x3e4] sm:$0xff]
  %v5271 = vld [vmem:[%s5103 + $0x3ec] sm:$0xf]
  %v5272 = vld [vmem:[%s5103 + $0x3f0] sm:$0xff]
  %v5273 = vld [vmem:[%s5103 + $0x3f8] sm:$0xf]
  %v5274 = vld [vmem:[%s5103 + $0x3fc] sm:$0xff]
  %v5275 = vld [vmem:[%s5103 + $0x404] sm:$0xf]
  %v5276 = vld [vmem:[%s5103 + $0x408] sm:$0xff]
  %v5277 = vld [vmem:[%s5103 + $0x410] sm:$0xf]
  %v5278 = vld [vmem:[%s5103 + $0x414] sm:$0xff]
  %v5279 = vld [vmem:[%s5103 + $0x41c] sm:$0xf]
  %v5280 = vld [vmem:[%s5103 + $0x420] sm:$0xff]
  %v5281 = vld [vmem:[%s5103 + $0x428] sm:$0xf]
  %v5282 = vld [vmem:[%s5103 + $0x42c] sm:$0xff]
  %v5283 = vld [vmem:[%s5103 + $0x434] sm:$0xf]
  %v5284 = vld [vmem:[%s5103 + $0x438] sm:$0xff]
  %v5285 = vld [vmem:[%s5103 + $0x440] sm:$0xf]
  %v5286 = vld [vmem:[%s5103 + $0x444] sm:$0xff]
  %v5287 = vld [vmem:[%s5103 + $0x44c] sm:$0xf]
  %v5472 = vunpack.c.l.b16 %v5104
  %v5473 = vunpack.c.h.b16 %v5104
  %v5474 = vunpack.c.l.b16 %v5105
  %v5475 = vunpack.c.l.b16 %v5106
  %v5476 = vunpack.c.h.b16 %v5106
  %v5477 = vunpack.c.l.b16 %v5107
  %v5478 = vunpack.c.l.b16 %v5108
  %v5479 = vunpack.c.h.b16 %v5108
  %v5480 = vunpack.c.l.b16 %v5109
  %v5481 = vunpack.c.l.b16 %v5110
  %v5482 = vunpack.c.h.b16 %v5110
  %v5483 = vunpack.c.l.b16 %v5111
  %v5484 = vunpack.c.l.b16 %v5112
  %v5485 = vunpack.c.h.b16 %v5112
  %v5486 = vunpack.c.l.b16 %v5113
  %v5487 = vunpack.c.l.b16 %v5114
  %v5488 = vunpack.c.h.b16 %v5114
  %v5489 = vunpack.c.l.b16 %v5115
  %v5490 = vunpack.c.l.b16 %v5116
  %v5491 = vunpack.c.h.b16 %v5116
  %v5492 = vunpack.c.l.b16 %v5117
  %v5493 = vunpack.c.l.b16 %v5118
  %v5494 = vunpack.c.h.b16 %v5118
  %v5495 = vunpack.c.l.b16 %v5119
  %v5496 = vunpack.c.l.b16 %v5120
  %v5497 = vunpack.c.h.b16 %v5120
  %v5498 = vunpack.c.l.b16 %v5121
  %v5499 = vunpack.c.l.b16 %v5122
  %v5500 = vunpack.c.h.b16 %v5122
  %v5501 = vunpack.c.l.b16 %v5123
  %v5502 = vunpack.c.l.b16 %v5124
  %v5503 = vunpack.c.h.b16 %v5124
  %v5504 = vunpack.c.l.b16 %v5125
  %v5505 = vunpack.c.l.b16 %v5126
  %v5506 = vunpack.c.h.b16 %v5126
  %v5507 = vunpack.c.l.b16 %v5127
  %v5508 = vunpack.c.l.b16 %v5128
  %v5509 = vunpack.c.h.b16 %v5128
  %v5510 = vunpack.c.l.b16 %v5129
  %v5511 = vunpack.c.l.b16 %v5130
  %v5512 = vunpack.c.h.b16 %v5130
  %v5513 = vunpack.c.l.b16 %v5131
  %v5514 = vunpack.c.l.b16 %v5132
  %v5515 = vunpack.c.h.b16 %v5132
  %v5516 = vunpack.c.l.b16 %v5133
  %v5517 = vunpack.c.l.b16 %v5134
  %v5518 = vunpack.c.h.b16 %v5134
  %v5519 = vunpack.c.l.b16 %v5135
  %v5520 = vunpack.c.l.b16 %v5136
  %v5521 = vunpack.c.h.b16 %v5136
  %v5522 = vunpack.c.l.b16 %v5137
  %v5523 = vunpack.c.l.b16 %v5138
  %v5524 = vunpack.c.h.b16 %v5138
  %v5525 = vunpack.c.l.b16 %v5139
  %v5526 = vunpack.c.l.b16 %v5140
  %v5527 = vunpack.c.h.b16 %v5140
  %v5528 = vunpack.c.l.b16 %v5141
  %v5529 = vunpack.c.l.b16 %v5142
  %v5530 = vunpack.c.h.b16 %v5142
  %v5531 = vunpack.c.l.b16 %v5143
  %v5532 = vunpack.c.l.b16 %v5144
  %v5533 = vunpack.c.h.b16 %v5144
  %v5534 = vunpack.c.l.b16 %v5145
  %v5535 = vunpack.c.l.b16 %v5146
  %v5536 = vunpack.c.h.b16 %v5146
  %v5537 = vunpack.c.l.b16 %v5147
  %v5538 = vunpack.c.l.b16 %v5148
  %v5539 = vunpack.c.h.b16 %v5148
  %v5540 = vunpack.c.l.b16 %v5149
  %v5541 = vunpack.c.l.b16 %v5150
  %v5542 = vunpack.c.h.b16 %v5150
  %v5543 = vunpack.c.l.b16 %v5151
  %v5544 = vunpack.c.l.b16 %v5152
  %v5545 = vunpack.c.h.b16 %v5152
  %v5546 = vunpack.c.l.b16 %v5153
  %v5547 = vunpack.c.l.b16 %v5154
  %v5548 = vunpack.c.h.b16 %v5154
  %v5549 = vunpack.c.l.b16 %v5155
  %v5550 = vunpack.c.l.b16 %v5156
  %v5551 = vunpack.c.h.b16 %v5156
  %v5552 = vunpack.c.l.b16 %v5157
  %v5553 = vunpack.c.l.b16 %v5158
  %v5554 = vunpack.c.h.b16 %v5158
  %v5555 = vunpack.c.l.b16 %v5159
  %v5556 = vunpack.c.l.b16 %v5160
  %v5557 = vunpack.c.h.b16 %v5160
  %v5558 = vunpack.c.l.b16 %v5161
  %v5559 = vunpack.c.l.b16 %v5162
  %v5560 = vunpack.c.h.b16 %v5162
  %v5561 = vunpack.c.l.b16 %v5163
  %v5562 = vunpack.c.l.b16 %v5164
  %v5563 = vunpack.c.h.b16 %v5164
  %v5564 = vunpack.c.l.b16 %v5165
  %v5565 = vunpack.c.l.b16 %v5166
  %v5566 = vunpack.c.h.b16 %v5166
  %v5567 = vunpack.c.l.b16 %v5167
  %v5568 = vunpack.c.l.b16 %v5168
  %v5569 = vunpack.c.h.b16 %v5168
  %v5570 = vunpack.c.l.b16 %v5169
  %v5571 = vunpack.c.l.b16 %v5170
  %v5572 = vunpack.c.h.b16 %v5170
  %v5573 = vunpack.c.l.b16 %v5171
  %v5574 = vunpack.c.l.b16 %v5172
  %v5575 = vunpack.c.h.b16 %v5172
  %v5576 = vunpack.c.l.b16 %v5173
  %v5577 = vunpack.c.l.b16 %v5174
  %v5578 = vunpack.c.h.b16 %v5174
  %v5579 = vunpack.c.l.b16 %v5175
  %v5580 = vunpack.c.l.b16 %v5176
  %v5581 = vunpack.c.h.b16 %v5176
  %v5582 = vunpack.c.l.b16 %v5177
  %v5583 = vunpack.c.l.b16 %v5178
  %v5584 = vunpack.c.h.b16 %v5178
  %v5585 = vunpack.c.l.b16 %v5179
  %v5586 = vunpack.c.l.b16 %v5180
  %v5587 = vunpack.c.h.b16 %v5180
  %v5588 = vunpack.c.l.b16 %v5181
  %v5589 = vunpack.c.l.b16 %v5182
  %v5590 = vunpack.c.h.b16 %v5182
  %v5591 = vunpack.c.l.b16 %v5183
  %v5592 = vunpack.c.l.b16 %v5184
  %v5593 = vunpack.c.h.b16 %v5184
  %v5594 = vunpack.c.l.b16 %v5185
  %v5595 = vunpack.c.l.b16 %v5186
  %v5596 = vunpack.c.h.b16 %v5186
  %v5597 = vunpack.c.l.b16 %v5187
  %v5598 = vunpack.c.l.b16 %v5188
  %v5599 = vunpack.c.h.b16 %v5188
  %v5600 = vunpack.c.l.b16 %v5189
  %v5601 = vunpack.c.l.b16 %v5190
  %v5602 = vunpack.c.h.b16 %v5190
  %v5603 = vunpack.c.l.b16 %v5191
  %v5604 = vunpack.c.l.b16 %v5192
  %v5605 = vunpack.c.h.b16 %v5192
  %v5606 = vunpack.c.l.b16 %v5193
  %v5607 = vunpack.c.l.b16 %v5194
  %v5608 = vunpack.c.h.b16 %v5194
  %v5609 = vunpack.c.l.b16 %v5195
  %v5610 = vunpack.c.l.b16 %v5196
  %v5611 = vunpack.c.h.b16 %v5196
  %v5612 = vunpack.c.l.b16 %v5197
  %v5613 = vunpack.c.l.b16 %v5198
  %v5614 = vunpack.c.h.b16 %v5198
  %v5615 = vunpack.c.l.b16 %v5199
  %v5616 = vunpack.c.l.b16 %v5200
  %v5617 = vunpack.c.h.b16 %v5200
  %v5618 = vunpack.c.l.b16 %v5201
  %v5619 = vunpack.c.l.b16 %v5202
  %v5620 = vunpack.c.h.b16 %v5202
  %v5621 = vunpack.c.l.b16 %v5203
  %v5622 = vunpack.c.l.b16 %v5204
  %v5623 = vunpack.c.h.b16 %v5204
  %v5624 = vunpack.c.l.b16 %v5205
  %v5625 = vunpack.c.l.b16 %v5206
  %v5626 = vunpack.c.h.b16 %v5206
  %v5627 = vunpack.c.l.b16 %v5207
  %v5628 = vunpack.c.l.b16 %v5208
  %v5629 = vunpack.c.h.b16 %v5208
  %v5630 = vunpack.c.l.b16 %v5209
  %v5631 = vunpack.c.l.b16 %v5210
  %v5632 = vunpack.c.h.b16 %v5210
  %v5633 = vunpack.c.l.b16 %v5211
  %v5634 = vunpack.c.l.b16 %v5212
  %v5635 = vunpack.c.h.b16 %v5212
  %v5636 = vunpack.c.l.b16 %v5213
  %v5637 = vunpack.c.l.b16 %v5214
  %v5638 = vunpack.c.h.b16 %v5214
  %v5639 = vunpack.c.l.b16 %v5215
  %v5640 = vunpack.c.l.b16 %v5216
  %v5641 = vunpack.c.h.b16 %v5216
  %v5642 = vunpack.c.l.b16 %v5217
  %v5643 = vunpack.c.l.b16 %v5218
  %v5644 = vunpack.c.h.b16 %v5218
  %v5645 = vunpack.c.l.b16 %v5219
  %v5646 = vunpack.c.l.b16 %v5220
  %v5647 = vunpack.c.h.b16 %v5220
  %v5648 = vunpack.c.l.b16 %v5221
  %v5649 = vunpack.c.l.b16 %v5222
  %v5650 = vunpack.c.h.b16 %v5222
  %v5651 = vunpack.c.l.b16 %v5223
  %v5652 = vunpack.c.l.b16 %v5224
  %v5653 = vunpack.c.h.b16 %v5224
  %v5654 = vunpack.c.l.b16 %v5225
  %v5655 = vunpack.c.l.b16 %v5226
  %v5656 = vunpack.c.h.b16 %v5226
  %v5657 = vunpack.c.l.b16 %v5227
  %v5658 = vunpack.c.l.b16 %v5228
  %v5659 = vunpack.c.h.b16 %v5228
  %v5660 = vunpack.c.l.b16 %v5229
  %v5661 = vunpack.c.l.b16 %v5230
  %v5662 = vunpack.c.h.b16 %v5230
  %v5663 = vunpack.c.l.b16 %v5231
  %v5664 = vunpack.c.l.b16 %v5232
  %v5665 = vunpack.c.h.b16 %v5232
  %v5666 = vunpack.c.l.b16 %v5233
  %v5667 = vunpack.c.l.b16 %v5234
  %v5668 = vunpack.c.h.b16 %v5234
  %v5669 = vunpack.c.l.b16 %v5235
  %v5670 = vunpack.c.l.b16 %v5236
  %v5671 = vunpack.c.h.b16 %v5236
  %v5672 = vunpack.c.l.b16 %v5237
  %v5673 = vunpack.c.l.b16 %v5238
  %v5674 = vunpack.c.h.b16 %v5238
  %v5675 = vunpack.c.l.b16 %v5239
  %v5676 = vunpack.c.l.b16 %v5240
  %v5677 = vunpack.c.h.b16 %v5240
  %v5678 = vunpack.c.l.b16 %v5241
  %v5679 = vunpack.c.l.b16 %v5242
  %v5680 = vunpack.c.h.b16 %v5242
  %v5681 = vunpack.c.l.b16 %v5243
  %v5682 = vunpack.c.l.b16 %v5244
  %v5683 = vunpack.c.h.b16 %v5244
  %v5684 = vunpack.c.l.b16 %v5245
  %v5685 = vunpack.c.l.b16 %v5246
  %v5686 = vunpack.c.h.b16 %v5246
  %v5687 = vunpack.c.l.b16 %v5247
  %v5688 = vunpack.c.l.b16 %v5248
  %v5689 = vunpack.c.h.b16 %v5248
  %v5690 = vunpack.c.l.b16 %v5249
  %v5691 = vunpack.c.l.b16 %v5250
  %v5692 = vunpack.c.h.b16 %v5250
  %v5693 = vunpack.c.l.b16 %v5251
  %v5694 = vunpack.c.l.b16 %v5252
  %v5695 = vunpack.c.h.b16 %v5252
  %v5696 = vunpack.c.l.b16 %v5253
  %v5697 = vunpack.c.l.b16 %v5254
  %v5698 = vunpack.c.h.b16 %v5254
  %v5699 = vunpack.c.l.b16 %v5255
  %v5700 = vunpack.c.l.b16 %v5256
  %v5701 = vunpack.c.h.b16 %v5256
  %v5702 = vunpack.c.l.b16 %v5257
  %v5703 = vunpack.c.l.b16 %v5258
  %v5704 = vunpack.c.h.b16 %v5258
  %v5705 = vunpack.c.l.b16 %v5259
  %v5706 = vunpack.c.l.b16 %v5260
  %v5707 = vunpack.c.h.b16 %v5260
  %v5708 = vunpack.c.l.b16 %v5261
  %v5709 = vunpack.c.l.b16 %v5262
  %v5710 = vunpack.c.h.b16 %v5262
  %v5711 = vunpack.c.l.b16 %v5263
  %v5712 = vunpack.c.l.b16 %v5264
  %v5713 = vunpack.c.h.b16 %v5264
  %v5714 = vunpack.c.l.b16 %v5265
  %v5715 = vunpack.c.l.b16 %v5266
  %v5716 = vunpack.c.h.b16 %v5266
  %v5717 = vunpack.c.l.b16 %v5267
  %v5718 = vunpack.c.l.b16 %v5268
  %v5719 = vunpack.c.h.b16 %v5268
  %v5720 = vunpack.c.l.b16 %v5269
  %v5721 = vunpack.c.l.b16 %v5270
  %v5722 = vunpack.c.h.b16 %v5270
  %v5723 = vunpack.c.l.b16 %v5271
  %v5724 = vunpack.c.l.b16 %v5272
  %v5725 = vunpack.c.h.b16 %v5272
  %v5726 = vunpack.c.l.b16 %v5273
  %v5727 = vunpack.c.l.b16 %v5274
  %v5728 = vunpack.c.h.b16 %v5274
  %v5729 = vunpack.c.l.b16 %v5275
  %v5730 = vunpack.c.l.b16 %v5276
  %v5731 = vunpack.c.h.b16 %v5276
  %v5732 = vunpack.c.l.b16 %v5277
  %v5733 = vunpack.c.l.b16 %v5278
  %v5734 = vunpack.c.h.b16 %v5278
  %v5735 = vunpack.c.l.b16 %v5279
  %v5736 = vunpack.c.l.b16 %v5280
  %v5737 = vunpack.c.h.b16 %v5280
  %v5738 = vunpack.c.l.b16 %v5281
  %v5739 = vunpack.c.l.b16 %v5282
  %v5740 = vunpack.c.h.b16 %v5282
  %v5741 = vunpack.c.l.b16 %v5283
  %v5742 = vunpack.c.l.b16 %v5284
  %v5743 = vunpack.c.h.b16 %v5284
  %v5744 = vunpack.c.l.b16 %v5285
  %v5745 = vunpack.c.l.b16 %v5286
  %v5746 = vunpack.c.h.b16 %v5286
  %v5747 = vunpack.c.l.b16 %v5287
  %v5748 = vpack.c.b16 %v5475, %v5472
  %v5749 = vpack.c.b16 %v5476, %v5473
  %v5750 = vpack.c.b16 %v5477, %v5474
  %v5751 = vpack.c.b16 %v5481, %v5478
  %v5752 = vpack.c.b16 %v5482, %v5479
  %v5753 = vpack.c.b16 %v5483, %v5480
  %v5754 = vpack.c.b16 %v5487, %v5484
  %v5755 = vpack.c.b16 %v5488, %v5485
  %v5756 = vpack.c.b16 %v5489, %v5486
  %v5757 = vpack.c.b16 %v5493, %v5490
  %v5758 = vpack.c.b16 %v5494, %v5491
  %v5759 = vpack.c.b16 %v5495, %v5492
  %v5760 = vpack.c.b16 %v5499, %v5496
  %v5761 = vpack.c.b16 %v5500, %v5497
  %v5762 = vpack.c.b16 %v5501, %v5498
  %v5763 = vpack.c.b16 %v5505, %v5502
  %v5764 = vpack.c.b16 %v5506, %v5503
  %v5765 = vpack.c.b16 %v5507, %v5504
  %v5766 = vpack.c.b16 %v5511, %v5508
  %v5767 = vpack.c.b16 %v5512, %v5509
  %v5768 = vpack.c.b16 %v5513, %v5510
  %v5769 = vpack.c.b16 %v5517, %v5514
  %v5770 = vpack.c.b16 %v5518, %v5515
  %v5771 = vpack.c.b16 %v5519, %v5516
  %v5772 = vpack.c.b16 %v5523, %v5520
  %v5773 = vpack.c.b16 %v5524, %v5521
  %v5774 = vpack.c.b16 %v5525, %v5522
  %v5775 = vpack.c.b16 %v5529, %v5526
  %v5776 = vpack.c.b16 %v5530, %v5527
  %v5777 = vpack.c.b16 %v5531, %v5528
  %v5778 = vpack.c.b16 %v5535, %v5532
  %v5779 = vpack.c.b16 %v5536, %v5533
  %v5780 = vpack.c.b16 %v5537, %v5534
  %v5781 = vpack.c.b16 %v5541, %v5538
  %v5782 = vpack.c.b16 %v5542, %v5539
  %v5783 = vpack.c.b16 %v5543, %v5540
  %v5784 = vpack.c.b16 %v5547, %v5544
  %v5785 = vpack.c.b16 %v5548, %v5545
  %v5786 = vpack.c.b16 %v5549, %v5546
  %v5787 = vpack.c.b16 %v5553, %v5550
  %v5788 = vpack.c.b16 %v5554, %v5551
  %v5789 = vpack.c.b16 %v5555, %v5552
  %v5790 = vpack.c.b16 %v5559, %v5556
  %v5791 = vpack.c.b16 %v5560, %v5557
  %v5792 = vpack.c.b16 %v5561, %v5558
  %v5793 = vpack.c.b16 %v5565, %v5562
  %v5794 = vpack.c.b16 %v5566, %v5563
  %v5795 = vpack.c.b16 %v5567, %v5564
  %v5796 = vpack.c.b16 %v5571, %v5568
  %v5797 = vpack.c.b16 %v5572, %v5569
  %v5798 = vpack.c.b16 %v5573, %v5570
  %v5799 = vpack.c.b16 %v5577, %v5574
  %v5800 = vpack.c.b16 %v5578, %v5575
  %v5801 = vpack.c.b16 %v5579, %v5576
  %v5802 = vpack.c.b16 %v5583, %v5580
  %v5803 = vpack.c.b16 %v5584, %v5581
  %v5804 = vpack.c.b16 %v5585, %v5582
  %v5805 = vpack.c.b16 %v5589, %v5586
  %v5806 = vpack.c.b16 %v5590, %v5587
  %v5807 = vpack.c.b16 %v5591, %v5588
  %v5808 = vpack.c.b16 %v5595, %v5592
  %v5809 = vpack.c.b16 %v5596, %v5593
  %v5810 = vpack.c.b16 %v5597, %v5594
  %v5811 = vpack.c.b16 %v5601, %v5598
  %v5812 = vpack.c.b16 %v5602, %v5599
  %v5813 = vpack.c.b16 %v5603, %v5600
  %v5814 = vpack.c.b16 %v5607, %v5604
  %v5815 = vpack.c.b16 %v5608, %v5605
  %v5816 = vpack.c.b16 %v5609, %v5606
  %v5817 = vpack.c.b16 %v5613, %v5610
  %v5818 = vpack.c.b16 %v5614, %v5611
  %v5819 = vpack.c.b16 %v5615, %v5612
  %v5820 = vpack.c.b16 %v5619, %v5616
  %v5821 = vpack.c.b16 %v5620, %v5617
  %v5822 = vpack.c.b16 %v5621, %v5618
  %v5823 = vpack.c.b16 %v5625, %v5622
  %v5824 = vpack.c.b16 %v5626, %v5623
  %v5825 = vpack.c.b16 %v5627, %v5624
  %v5826 = vpack.c.b16 %v5631, %v5628
  %v5827 = vpack.c.b16 %v5632, %v5629
  %v5828 = vpack.c.b16 %v5633, %v5630
  %v5829 = vpack.c.b16 %v5637, %v5634
  %v5830 = vpack.c.b16 %v5638, %v5635
  %v5831 = vpack.c.b16 %v5639, %v5636
  %v5832 = vpack.c.b16 %v5643, %v5640
  %v5833 = vpack.c.b16 %v5644, %v5641
  %v5834 = vpack.c.b16 %v5645, %v5642
  %v5835 = vpack.c.b16 %v5649, %v5646
  %v5836 = vpack.c.b16 %v5650, %v5647
  %v5837 = vpack.c.b16 %v5651, %v5648
  %v5838 = vpack.c.b16 %v5655, %v5652
  %v5839 = vpack.c.b16 %v5656, %v5653
  %v5840 = vpack.c.b16 %v5657, %v5654
  %v5841 = vpack.c.b16 %v5661, %v5658
  %v5842 = vpack.c.b16 %v5662, %v5659
  %v5843 = vpack.c.b16 %v5663, %v5660
  %v5844 = vpack.c.b16 %v5667, %v5664
  %v5845 = vpack.c.b16 %v5668, %v5665
  %v5846 = vpack.c.b16 %v5669, %v5666
  %v5847 = vpack.c.b16 %v5673, %v5670
  %v5848 = vpack.c.b16 %v5674, %v5671
  %v5849 = vpack.c.b16 %v5675, %v5672
  %v5850 = vpack.c.b16 %v5679, %v5676
  %v5851 = vpack.c.b16 %v5680, %v5677
  %v5852 = vpack.c.b16 %v5681, %v5678
  %v5853 = vpack.c.b16 %v5685, %v5682
  %v5854 = vpack.c.b16 %v5686, %v5683
  %v5855 = vpack.c.b16 %v5687, %v5684
  %v5856 = vpack.c.b16 %v5691, %v5688
  %v5857 = vpack.c.b16 %v5692, %v5689
  %v5858 = vpack.c.b16 %v5693, %v5690
  %v5859 = vpack.c.b16 %v5697, %v5694
  %v5860 = vpack.c.b16 %v5698, %v5695
  %v5861 = vpack.c.b16 %v5699, %v5696
  %v5862 = vpack.c.b16 %v5703, %v5700
  %v5863 = vpack.c.b16 %v5704, %v5701
  %v5864 = vpack.c.b16 %v5705, %v5702
  %v5865 = vpack.c.b16 %v5709, %v5706
  %v5866 = vpack.c.b16 %v5710, %v5707
  %v5867 = vpack.c.b16 %v5711, %v5708
  %v5868 = vpack.c.b16 %v5715, %v5712
  %v5869 = vpack.c.b16 %v5716, %v5713
  %v5870 = vpack.c.b16 %v5717, %v5714
  %v5871 = vpack.c.b16 %v5721, %v5718
  %v5872 = vpack.c.b16 %v5722, %v5719
  %v5873 = vpack.c.b16 %v5723, %v5720
  %v5874 = vpack.c.b16 %v5727, %v5724
  %v5875 = vpack.c.b16 %v5728, %v5725
  %v5876 = vpack.c.b16 %v5729, %v5726
  %v5877 = vpack.c.b16 %v5733, %v5730
  %v5878 = vpack.c.b16 %v5734, %v5731
  %v5879 = vpack.c.b16 %v5735, %v5732
  %v5880 = vpack.c.b16 %v5739, %v5736
  %v5881 = vpack.c.b16 %v5740, %v5737
  %v5882 = vpack.c.b16 %v5741, %v5738
  %v5883 = vpack.c.b16 %v5745, %v5742
  %v5884 = vpack.c.b16 %v5746, %v5743
  %v5885 = vpack.c.b16 %v5747, %v5744
  %vm6024 = vcmask 785408
  %v6026 = vsel %vm6024, %v4780, 0
  %v6029 = vsel %vm6024, %v4792, 0
  %v6032 = vsel %vm6024, %v4804, 0
  %v6035 = vsel %vm6024, %v4816, 0
  %v6038 = vsel %vm6024, %v4828, 0
  %v6041 = vsel %vm6024, %v4840, 0
  %v6044 = vsel %vm6024, %v4852, 0
  %v6047 = vsel %vm6024, %v4864, 0
  %v6050 = vsel %vm6024, %v4876, 0
  %v6053 = vsel %vm6024, %v4888, 0
  %v6056 = vsel %vm6024, %v4900, 0
  %v6059 = vsel %vm6024, %v4912, 0
  %6061 = vmatprep.subr.bf16.mxu0 %v5770
  %6062 = vmatpush1.bf16.msra.mxu0 %v5769
  %6063 = vmatprep.subr.bf16.mxu0 %v5767
  %6064 = vmatpush1.bf16.msra.mxu0 %v5766
  %6065 = vmatprep.subr.bf16.mxu0 %v5764
  %6066 = vmatpush1.bf16.msra.mxu0 %v5763
  %6067 = vmatprep.subr.bf16.mxu0 %v5761
  %6068 = vmatpush1.bf16.msra.mxu0 %v5760
  %6069 = vmatprep.subr.bf16.mxu0 %v5758
  %6070 = vmatpush1.bf16.msra.mxu0 %v5757
  %6071 = vmatprep.subr.bf16.mxu0 %v5755
  %6072 = vmatpush1.bf16.msra.mxu0 %v5754
  %6073 = vmatprep.subr.bf16.mxu0 %v5752
  %6074 = vmatpush1.bf16.msra.mxu0 %v5751
  %6075 = vmatprep.subr.bf16.mxu0 %v5749
  %6076 = vmatpush1.bf16.msra.mxu0 %v5748
  %6077 = vmatprep.subr.bf16.mxu0 %v5794
  %6078 = vmatpush2.bf16.msra.mxu0 %v5793
  %6079 = vmatprep.subr.bf16.mxu0 %v5791
  %6080 = vmatpush2.bf16.msra.mxu0 %v5790
  %6081 = vmatprep.subr.bf16.mxu0 %v5788
  %6082 = vmatpush2.bf16.msra.mxu0 %v5787
  %6083 = vmatprep.subr.bf16.mxu0 %v5785
  %6084 = vmatpush2.bf16.msra.mxu0 %v5784
  %6085 = vmatprep.subr.bf16.mxu0 %v5782
  %6086 = vmatpush2.bf16.msra.mxu0 %v5781
  %6087 = vmatprep.subr.bf16.mxu0 %v5779
  %6088 = vmatpush2.bf16.msra.mxu0 %v5778
  %6089 = vmatprep.subr.bf16.mxu0 %v5776
  %6090 = vmatpush2.bf16.msra.mxu0 %v5775
  %6091 = vmatprep.subr.bf16.mxu0 %v5773
  %6092 = vmatpush2.bf16.msra.mxu0 %v5772
  %6093 = vmatprep.mubr.bf16.mxu0 %v4776
  %6094 = vmatmul.mubr.bf16.gmra.mxu0 %v4775
  %v6095 = vpop.f32.mrf.mxu0
  %v6096 = vadd.f32 0.0, %v6095
  %v6097 = vpop.f32.mrf.mxu0
  %v6098 = vadd.f32 0.0, %v6097
  %v6099 = vpop.f32.mrf.mxu0
  %v6100 = vadd.f32 0.0, %v6099
  %v6101 = vpop.f32.mrf.mxu0
  %v6102 = vadd.f32 0.0, %v6101
  %6103 = vmatprep.mubr.bf16.mxu0 %v4788
  %6104 = vmatmul.mubr.bf16.gmra.mxu0 %v4787
  %v6105 = vpop.f32.mrf.mxu0
  %v6106 = vadd.f32 0.0, %v6105
  %v6107 = vpop.f32.mrf.mxu0
  %v6108 = vadd.f32 0.0, %v6107
  %v6109 = vpop.f32.mrf.mxu0
  %v6110 = vadd.f32 0.0, %v6109
  %v6111 = vpop.f32.mrf.mxu0
  %v6112 = vadd.f32 0.0, %v6111
  %6113 = vmatprep.mubr.bf16.mxu0 %v4800
  %6114 = vmatmul.mubr.bf16.gmra.mxu0 %v4799
  %v6115 = vpop.f32.mrf.mxu0
  %v6116 = vadd.f32 0.0, %v6115
  %v6117 = vpop.f32.mrf.mxu0
  %v6118 = vadd.f32 0.0, %v6117
  %v6119 = vpop.f32.mrf.mxu0
  %v6120 = vadd.f32 0.0, %v6119
  %v6121 = vpop.f32.mrf.mxu0
  %v6122 = vadd.f32 0.0, %v6121
  %6123 = vmatprep.mubr.bf16.mxu0 %v4812
  %6124 = vmatmul.mubr.bf16.gmra.mxu0 %v4811
  %v6125 = vpop.f32.mrf.mxu0
  %v6126 = vadd.f32 0.0, %v6125
  %v6127 = vpop.f32.mrf.mxu0
  %v6128 = vadd.f32 0.0, %v6127
  %v6129 = vpop.f32.mrf.mxu0
  %v6130 = vadd.f32 0.0, %v6129
  %v6131 = vpop.f32.mrf.mxu0
  %v6132 = vadd.f32 0.0, %v6131
  %6133 = vmatprep.mubr.bf16.mxu0 %v4824
  %6134 = vmatmul.mubr.bf16.gmra.mxu0 %v4823
  %v6135 = vpop.f32.mrf.mxu0
  %v6136 = vadd.f32 0.0, %v6135
  %v6137 = vpop.f32.mrf.mxu0
  %v6138 = vadd.f32 0.0, %v6137
  %v6139 = vpop.f32.mrf.mxu0
  %v6140 = vadd.f32 0.0, %v6139
  %v6141 = vpop.f32.mrf.mxu0
  %v6142 = vadd.f32 0.0, %v6141
  %6143 = vmatprep.mubr.bf16.mxu0 %v4836
  %6144 = vmatmul.mubr.bf16.gmra.mxu0 %v4835
  %v6145 = vpop.f32.mrf.mxu0
  %v6146 = vadd.f32 0.0, %v6145
  %v6147 = vpop.f32.mrf.mxu0
  %v6148 = vadd.f32 0.0, %v6147
  %v6149 = vpop.f32.mrf.mxu0
  %v6150 = vadd.f32 0.0, %v6149
  %v6151 = vpop.f32.mrf.mxu0
  %v6152 = vadd.f32 0.0, %v6151
  %6153 = vmatprep.mubr.bf16.mxu0 %v4848
  %6154 = vmatmul.mubr.bf16.gmra.mxu0 %v4847
  %v6155 = vpop.f32.mrf.mxu0
  %v6156 = vadd.f32 0.0, %v6155
  %v6157 = vpop.f32.mrf.mxu0
  %v6158 = vadd.f32 0.0, %v6157
  %v6159 = vpop.f32.mrf.mxu0
  %v6160 = vadd.f32 0.0, %v6159
  %v6161 = vpop.f32.mrf.mxu0
  %v6162 = vadd.f32 0.0, %v6161
  %6163 = vmatprep.mubr.bf16.mxu0 %v4860
  %6164 = vmatmul.mubr.bf16.gmra.mxu0 %v4859
  %v6165 = vpop.f32.mrf.mxu0
  %v6166 = vadd.f32 0.0, %v6165
  %v6167 = vpop.f32.mrf.mxu0
  %v6168 = vadd.f32 0.0, %v6167
  %v6169 = vpop.f32.mrf.mxu0
  %v6170 = vadd.f32 0.0, %v6169
  %v6171 = vpop.f32.mrf.mxu0
  %v6172 = vadd.f32 0.0, %v6171
  %6173 = vmatprep.mubr.bf16.mxu0 %v4872
  %6174 = vmatmul.mubr.bf16.gmra.mxu0 %v4871
  %v6175 = vpop.f32.mrf.mxu0
  %v6176 = vadd.f32 0.0, %v6175
  %v6177 = vpop.f32.mrf.mxu0
  %v6178 = vadd.f32 0.0, %v6177
  %v6179 = vpop.f32.mrf.mxu0
  %v6180 = vadd.f32 0.0, %v6179
  %v6181 = vpop.f32.mrf.mxu0
  %v6182 = vadd.f32 0.0, %v6181
  %6183 = vmatprep.mubr.bf16.mxu0 %v4884
  %6184 = vmatmul.mubr.bf16.gmra.mxu0 %v4883
  %v6185 = vpop.f32.mrf.mxu0
  %v6186 = vadd.f32 0.0, %v6185
  %v6187 = vpop.f32.mrf.mxu0
  %v6188 = vadd.f32 0.0, %v6187
  %v6189 = vpop.f32.mrf.mxu0
  %v6190 = vadd.f32 0.0, %v6189
  %v6191 = vpop.f32.mrf.mxu0
  %v6192 = vadd.f32 0.0, %v6191
  %6193 = vmatprep.mubr.bf16.mxu0 %v4896
  %6194 = vmatmul.mubr.bf16.gmra.mxu0 %v4895
  %v6195 = vpop.f32.mrf.mxu0
  %v6196 = vadd.f32 0.0, %v6195
  %v6197 = vpop.f32.mrf.mxu0
  %v6198 = vadd.f32 0.0, %v6197
  %v6199 = vpop.f32.mrf.mxu0
  %v6200 = vadd.f32 0.0, %v6199
  %v6201 = vpop.f32.mrf.mxu0
  %v6202 = vadd.f32 0.0, %v6201
  %6203 = vmatprep.mubr.bf16.mxu0 %v4908
  %6204 = vmatmul.mubr.bf16.gmra.mxu0 %v4907
  %v6205 = vpop.f32.mrf.mxu0
  %v6206 = vpop.f32.mrf.mxu0
  %v6207 = vpop.f32.mrf.mxu0
  %v6208 = vpop.f32.mrf.mxu0
  %6209 = vdwg.mxu0
  %6210 = vmatprep.subr.bf16.mxu0 %v5818
  %6211 = vmatpush1.bf16.msra.mxu0 %v5817
  %6212 = vmatprep.subr.bf16.mxu0 %v5815
  %6213 = vmatpush1.bf16.msra.mxu0 %v5814
  %6214 = vmatprep.subr.bf16.mxu0 %v5812
  %6215 = vmatpush1.bf16.msra.mxu0 %v5811
  %6216 = vmatprep.subr.bf16.mxu0 %v5809
  %6217 = vmatpush1.bf16.msra.mxu0 %v5808
  %6218 = vmatprep.subr.bf16.mxu0 %v5806
  %6219 = vmatpush1.bf16.msra.mxu0 %v5805
  %6220 = vmatprep.subr.bf16.mxu0 %v5803
  %6221 = vmatpush1.bf16.msra.mxu0 %v5802
  %6222 = vmatprep.subr.bf16.mxu0 %v5800
  %6223 = vmatpush1.bf16.msra.mxu0 %v5799
  %6224 = vmatprep.subr.bf16.mxu0 %v5797
  %6225 = vmatpush1.bf16.msra.mxu0 %v5796
  %6226 = vmatprep.subr.bf16.mxu0 %v5842
  %6227 = vmatpush2.bf16.msra.mxu0 %v5841
  %6228 = vmatprep.subr.bf16.mxu0 %v5839
  %6229 = vmatpush2.bf16.msra.mxu0 %v5838
  %6230 = vmatprep.subr.bf16.mxu0 %v5836
  %6231 = vmatpush2.bf16.msra.mxu0 %v5835
  %6232 = vmatprep.subr.bf16.mxu0 %v5833
  %6233 = vmatpush2.bf16.msra.mxu0 %v5832
  %6234 = vmatprep.subr.bf16.mxu0 %v5830
  %6235 = vmatpush2.bf16.msra.mxu0 %v5829
  %6236 = vmatprep.subr.bf16.mxu0 %v5827
  %6237 = vmatpush2.bf16.msra.mxu0 %v5826
  %6238 = vmatprep.subr.bf16.mxu0 %v5824
  %6239 = vmatpush2.bf16.msra.mxu0 %v5823
  %6240 = vmatprep.subr.bf16.mxu0 %v5821
  %6241 = vmatpush2.bf16.msra.mxu0 %v5820
  %6242 = vmatprep.mubr.bf16.mxu0 %v4778
  %6243 = vmatmul.mubr.bf16.gmra.mxu0 %v4777
  %v6244 = vpop.f32.mrf.mxu0
  %v6245 = vadd.f32 %v6096, %v6244
  %v6246 = vpop.f32.mrf.mxu0
  %v6247 = vadd.f32 %v6098, %v6246
  %v6248 = vpop.f32.mrf.mxu0
  %v6249 = vadd.f32 %v6100, %v6248
  %v6250 = vpop.f32.mrf.mxu0
  %v6251 = vadd.f32 %v6102, %v6250
  %6252 = vmatprep.mubr.bf16.mxu0 %v4790
  %6253 = vmatmul.mubr.bf16.gmra.mxu0 %v4789
  %v6254 = vpop.f32.mrf.mxu0
  %v6255 = vadd.f32 %v6106, %v6254
  %v6256 = vpop.f32.mrf.mxu0
  %v6257 = vadd.f32 %v6108, %v6256
  %v6258 = vpop.f32.mrf.mxu0
  %v6259 = vadd.f32 %v6110, %v6258
  %v6260 = vpop.f32.mrf.mxu0
  %v6261 = vadd.f32 %v6112, %v6260
  %6262 = vmatprep.mubr.bf16.mxu0 %v4802
  %6263 = vmatmul.mubr.bf16.gmra.mxu0 %v4801
  %v6264 = vpop.f32.mrf.mxu0
  %v6265 = vadd.f32 %v6116, %v6264
  %v6266 = vpop.f32.mrf.mxu0
  %v6267 = vadd.f32 %v6118, %v6266
  %v6268 = vpop.f32.mrf.mxu0
  %v6269 = vadd.f32 %v6120, %v6268
  %v6270 = vpop.f32.mrf.mxu0
  %v6271 = vadd.f32 %v6122, %v6270
  %6272 = vmatprep.mubr.bf16.mxu0 %v4814
  %6273 = vmatmul.mubr.bf16.gmra.mxu0 %v4813
  %v6274 = vpop.f32.mrf.mxu0
  %v6275 = vadd.f32 %v6126, %v6274
  %v6276 = vpop.f32.mrf.mxu0
  %v6277 = vadd.f32 %v6128, %v6276
  %v6278 = vpop.f32.mrf.mxu0
  %v6279 = vadd.f32 %v6130, %v6278
  %v6280 = vpop.f32.mrf.mxu0
  %v6281 = vadd.f32 %v6132, %v6280
  %6282 = vmatprep.mubr.bf16.mxu0 %v4826
  %6283 = vmatmul.mubr.bf16.gmra.mxu0 %v4825
  %v6284 = vpop.f32.mrf.mxu0
  %v6285 = vadd.f32 %v6136, %v6284
  %v6286 = vpop.f32.mrf.mxu0
  %v6287 = vadd.f32 %v6138, %v6286
  %v6288 = vpop.f32.mrf.mxu0
  %v6289 = vadd.f32 %v6140, %v6288
  %v6290 = vpop.f32.mrf.mxu0
  %v6291 = vadd.f32 %v6142, %v6290
  %6292 = vmatprep.mubr.bf16.mxu0 %v4838
  %6293 = vmatmul.mubr.bf16.gmra.mxu0 %v4837
  %v6294 = vpop.f32.mrf.mxu0
  %v6295 = vadd.f32 %v6146, %v6294
  %v6296 = vpop.f32.mrf.mxu0
  %v6297 = vadd.f32 %v6148, %v6296
  %v6298 = vpop.f32.mrf.mxu0
  %v6299 = vadd.f32 %v6150, %v6298
  %v6300 = vpop.f32.mrf.mxu0
  %v6301 = vadd.f32 %v6152, %v6300
  %6302 = vmatprep.mubr.bf16.mxu0 %v4850
  %6303 = vmatmul.mubr.bf16.gmra.mxu0 %v4849
  %v6304 = vpop.f32.mrf.mxu0
  %v6305 = vadd.f32 %v6156, %v6304
  %v6306 = vpop.f32.mrf.mxu0
  %v6307 = vadd.f32 %v6158, %v6306
  %v6308 = vpop.f32.mrf.mxu0
  %v6309 = vadd.f32 %v6160, %v6308
  %v6310 = vpop.f32.mrf.mxu0
  %v6311 = vadd.f32 %v6162, %v6310
  %6312 = vmatprep.mubr.bf16.mxu0 %v4862
  %6313 = vmatmul.mubr.bf16.gmra.mxu0 %v4861
  %v6314 = vpop.f32.mrf.mxu0
  %v6315 = vadd.f32 %v6166, %v6314
  %v6316 = vpop.f32.mrf.mxu0
  %v6317 = vadd.f32 %v6168, %v6316
  %v6318 = vpop.f32.mrf.mxu0
  %v6319 = vadd.f32 %v6170, %v6318
  %v6320 = vpop.f32.mrf.mxu0
  %v6321 = vadd.f32 %v6172, %v6320
  %6322 = vmatprep.mubr.bf16.mxu0 %v4874
  %6323 = vmatmul.mubr.bf16.gmra.mxu0 %v4873
  %v6324 = vpop.f32.mrf.mxu0
  %v6325 = vadd.f32 %v6176, %v6324
  %v6326 = vpop.f32.mrf.mxu0
  %v6327 = vadd.f32 %v6178, %v6326
  %v6328 = vpop.f32.mrf.mxu0
  %v6329 = vadd.f32 %v6180, %v6328
  %v6330 = vpop.f32.mrf.mxu0
  %v6331 = vadd.f32 %v6182, %v6330
  %6332 = vmatprep.mubr.bf16.mxu0 %v4886
  %6333 = vmatmul.mubr.bf16.gmra.mxu0 %v4885
  %v6334 = vpop.f32.mrf.mxu0
  %v6335 = vadd.f32 %v6186, %v6334
  %v6336 = vpop.f32.mrf.mxu0
  %v6337 = vadd.f32 %v6188, %v6336
  %v6338 = vpop.f32.mrf.mxu0
  %v6339 = vadd.f32 %v6190, %v6338
  %v6340 = vpop.f32.mrf.mxu0
  %v6341 = vadd.f32 %v6192, %v6340
  %6342 = vmatprep.mubr.bf16.mxu0 %v4898
  %6343 = vmatmul.mubr.bf16.gmra.mxu0 %v4897
  %v6344 = vpop.f32.mrf.mxu0
  %v6345 = vadd.f32 %v6196, %v6344
  %v6346 = vpop.f32.mrf.mxu0
  %v6347 = vadd.f32 %v6198, %v6346
  %v6348 = vpop.f32.mrf.mxu0
  %v6349 = vadd.f32 %v6200, %v6348
  %v6350 = vpop.f32.mrf.mxu0
  %v6351 = vadd.f32 %v6202, %v6350
  %6352 = vmatprep.mubr.bf16.mxu0 %v4910
  %6353 = vmatmul.mubr.bf16.gmra.mxu0 %v4909
  %v6354 = vpop.f32.mrf.mxu0
  %v6355 = vpop.f32.mrf.mxu0
  %v6356 = vpop.f32.mrf.mxu0
  %v6357 = vpop.f32.mrf.mxu0
  %6358 = vdwg.mxu0
  %6359 = vmatprep.subr.bf16.mxu0 %v5866
  %6360 = vmatpush1.bf16.msra.mxu0 %v5865
  %6361 = vmatprep.subr.bf16.mxu0 %v5863
  %6362 = vmatpush1.bf16.msra.mxu0 %v5862
  %6363 = vmatprep.subr.bf16.mxu0 %v5860
  %6364 = vmatpush1.bf16.msra.mxu0 %v5859
  %6365 = vmatprep.subr.bf16.mxu0 %v5857
  %6366 = vmatpush1.bf16.msra.mxu0 %v5856
  %6367 = vmatprep.subr.bf16.mxu0 %v5854
  %6368 = vmatpush1.bf16.msra.mxu0 %v5853
  %6369 = vmatprep.subr.bf16.mxu0 %v5851
  %6370 = vmatpush1.bf16.msra.mxu0 %v5850
  %6371 = vmatprep.subr.bf16.mxu0 %v5848
  %6372 = vmatpush1.bf16.msra.mxu0 %v5847
  %6373 = vmatprep.subr.bf16.mxu0 %v5845
  %6374 = vmatpush1.bf16.msra.mxu0 %v5844
  %6375 = vmatprep.subr.bf16.mxu0 0
  %6376 = vmatpush2.bf16.msra.mxu0 0
  %6377 = vmatprep.subr.bf16.mxu0 0
  %6378 = vmatpush2.bf16.msra.mxu0 0
  %6379 = vmatprep.subr.bf16.mxu0 %v5884
  %6380 = vmatpush2.bf16.msra.mxu0 %v5883
  %6381 = vmatprep.subr.bf16.mxu0 %v5881
  %6382 = vmatpush2.bf16.msra.mxu0 %v5880
  %6383 = vmatprep.subr.bf16.mxu0 %v5878
  %6384 = vmatpush2.bf16.msra.mxu0 %v5877
  %6385 = vmatprep.subr.bf16.mxu0 %v5875
  %6386 = vmatpush2.bf16.msra.mxu0 %v5874
  %6387 = vmatprep.subr.bf16.mxu0 %v5872
  %6388 = vmatpush2.bf16.msra.mxu0 %v5871
  %6389 = vmatprep.subr.bf16.mxu0 %v5869
  %6390 = vmatpush2.bf16.msra.mxu0 %v5868
  %6391 = vmatprep.mubr.bf16.mxu0 %v6026
  %6392 = vmatmul.mubr.bf16.gmra.mxu0 %v4779
  %v6393 = vpop.f32.mrf.mxu0
  %v6394 = vadd.f32 %v6245, %v6393
  %v6395 = vpop.f32.mrf.mxu0
  %v6396 = vadd.f32 %v6247, %v6395
  %v6397 = vpop.f32.mrf.mxu0
  %v6398 = vadd.f32 %v6249, %v6397
  %v6399 = vpop.f32.mrf.mxu0
  %v6400 = vadd.f32 %v6251, %v6399
  %6401 = vmatprep.mubr.bf16.mxu0 %v6029
  %6402 = vmatmul.mubr.bf16.gmra.mxu0 %v4791
  %v6403 = vpop.f32.mrf.mxu0
  %v6404 = vadd.f32 %v6255, %v6403
  %v6405 = vpop.f32.mrf.mxu0
  %v6406 = vadd.f32 %v6257, %v6405
  %v6407 = vpop.f32.mrf.mxu0
  %v6408 = vadd.f32 %v6259, %v6407
  %v6409 = vpop.f32.mrf.mxu0
  %v6410 = vadd.f32 %v6261, %v6409
  %6411 = vmatprep.mubr.bf16.mxu0 %v6032
  %6412 = vmatmul.mubr.bf16.gmra.mxu0 %v4803
  %v6413 = vpop.f32.mrf.mxu0
  %v6414 = vadd.f32 %v6265, %v6413
  %v6415 = vpop.f32.mrf.mxu0
  %v6416 = vadd.f32 %v6267, %v6415
  %v6417 = vpop.f32.mrf.mxu0
  %v6418 = vadd.f32 %v6269, %v6417
  %v6419 = vpop.f32.mrf.mxu0
  %v6420 = vadd.f32 %v6271, %v6419
  %6421 = vmatprep.mubr.bf16.mxu0 %v6035
  %6422 = vmatmul.mubr.bf16.gmra.mxu0 %v4815
  %v6423 = vpop.f32.mrf.mxu0
  %v6424 = vadd.f32 %v6275, %v6423
  %v6425 = vpop.f32.mrf.mxu0
  %v6426 = vadd.f32 %v6277, %v6425
  %v6427 = vpop.f32.mrf.mxu0
  %v6428 = vadd.f32 %v6279, %v6427
  %v6429 = vpop.f32.mrf.mxu0
  %v6430 = vadd.f32 %v6281, %v6429
  %6431 = vmatprep.mubr.bf16.mxu0 %v6038
  %6432 = vmatmul.mubr.bf16.gmra.mxu0 %v4827
  %v6433 = vpop.f32.mrf.mxu0
  %v6434 = vadd.f32 %v6285, %v6433
  %v6435 = vpop.f32.mrf.mxu0
  %v6436 = vadd.f32 %v6287, %v6435
  %v6437 = vpop.f32.mrf.mxu0
  %v6438 = vadd.f32 %v6289, %v6437
  %v6439 = vpop.f32.mrf.mxu0
  %v6440 = vadd.f32 %v6291, %v6439
  %6441 = vmatprep.mubr.bf16.mxu0 %v6041
  %6442 = vmatmul.mubr.bf16.gmra.mxu0 %v4839
  %v6443 = vpop.f32.mrf.mxu0
  %v6444 = vadd.f32 %v6295, %v6443
  %v6445 = vpop.f32.mrf.mxu0
  %v6446 = vadd.f32 %v6297, %v6445
  %v6447 = vpop.f32.mrf.mxu0
  %v6448 = vadd.f32 %v6299, %v6447
  %v6449 = vpop.f32.mrf.mxu0
  %v6450 = vadd.f32 %v6301, %v6449
  %6451 = vmatprep.mubr.bf16.mxu0 %v6044
  %6452 = vmatmul.mubr.bf16.gmra.mxu0 %v4851
  %v6453 = vpop.f32.mrf.mxu0
  %v6454 = vadd.f32 %v6305, %v6453
  %v6455 = vpop.f32.mrf.mxu0
  %v6456 = vadd.f32 %v6307, %v6455
  %v6457 = vpop.f32.mrf.mxu0
  %v6458 = vadd.f32 %v6309, %v6457
  %v6459 = vpop.f32.mrf.mxu0
  %v6460 = vadd.f32 %v6311, %v6459
  %6461 = vmatprep.mubr.bf16.mxu0 %v6047
  %6462 = vmatmul.mubr.bf16.gmra.mxu0 %v4863
  %v6463 = vpop.f32.mrf.mxu0
  %v6464 = vadd.f32 %v6315, %v6463
  %v6465 = vpop.f32.mrf.mxu0
  %v6466 = vadd.f32 %v6317, %v6465
  %v6467 = vpop.f32.mrf.mxu0
  %v6468 = vadd.f32 %v6319, %v6467
  %v6469 = vpop.f32.mrf.mxu0
  %v6470 = vadd.f32 %v6321, %v6469
  %6471 = vmatprep.mubr.bf16.mxu0 %v6050
  %6472 = vmatmul.mubr.bf16.gmra.mxu0 %v4875
  %v6473 = vpop.f32.mrf.mxu0
  %v6474 = vadd.f32 %v6325, %v6473
  %v6475 = vpop.f32.mrf.mxu0
  %v6476 = vadd.f32 %v6327, %v6475
  %v6477 = vpop.f32.mrf.mxu0
  %v6478 = vadd.f32 %v6329, %v6477
  %v6479 = vpop.f32.mrf.mxu0
  %v6480 = vadd.f32 %v6331, %v6479
  %6481 = vmatprep.mubr.bf16.mxu0 %v6053
  %6482 = vmatmul.mubr.bf16.gmra.mxu0 %v4887
  %v6483 = vpop.f32.mrf.mxu0
  %v6484 = vadd.f32 %v6335, %v6483
  %v6485 = vpop.f32.mrf.mxu0
  %v6486 = vadd.f32 %v6337, %v6485
  %v6487 = vpop.f32.mrf.mxu0
  %v6488 = vadd.f32 %v6339, %v6487
  %v6489 = vpop.f32.mrf.mxu0
  %v6490 = vadd.f32 %v6341, %v6489
  %6491 = vmatprep.mubr.bf16.mxu0 %v6056
  %6492 = vmatmul.mubr.bf16.gmra.mxu0 %v4899
  %v6493 = vpop.f32.mrf.mxu0
  %v6494 = vadd.f32 %v6345, %v6493
  %v6495 = vpop.f32.mrf.mxu0
  %v6496 = vadd.f32 %v6347, %v6495
  %v6497 = vpop.f32.mrf.mxu0
  %v6498 = vadd.f32 %v6349, %v6497
  %v6499 = vpop.f32.mrf.mxu0
  %v6500 = vadd.f32 %v6351, %v6499
  %6501 = vmatprep.mubr.bf16.mxu0 %v6059
  %6502 = vmatmul.mubr.bf16.gmra.mxu0 %v4911
  %v6503 = vpop.f32.mrf.mxu0
  %v6504 = vpop.f32.mrf.mxu0
  %v6505 = vpop.f32.mrf.mxu0
  %v6506 = vpop.f32.mrf.mxu0
  %6507 = vdwg.mxu0
  %6508 = vmatprep.subr.bf16.mxu0 0
  %6509 = vmatpush1.bf16.msra.mxu0 %v5771
  %6510 = vmatprep.subr.bf16.mxu0 0
  %6511 = vmatpush1.bf16.msra.mxu0 %v5768
  %6512 = vmatprep.subr.bf16.mxu0 0
  %6513 = vmatpush1.bf16.msra.mxu0 %v5765
  %6514 = vmatprep.subr.bf16.mxu0 0
  %6515 = vmatpush1.bf16.msra.mxu0 %v5762
  %6516 = vmatprep.subr.bf16.mxu0 0
  %6517 = vmatpush1.bf16.msra.mxu0 %v5759
  %6518 = vmatprep.subr.bf16.mxu0 0
  %6519 = vmatpush1.bf16.msra.mxu0 %v5756
  %6520 = vmatprep.subr.bf16.mxu0 0
  %6521 = vmatpush1.bf16.msra.mxu0 %v5753
  %6522 = vmatprep.subr.bf16.mxu0 0
  %6523 = vmatpush1.bf16.msra.mxu0 %v5750
  %6524 = vmatprep.subr.bf16.mxu0 0
  %6525 = vmatpush2.bf16.msra.mxu0 %v5795
  %6526 = vmatprep.subr.bf16.mxu0 0
  %6527 = vmatpush2.bf16.msra.mxu0 %v5792
  %6528 = vmatprep.subr.bf16.mxu0 0
  %6529 = vmatpush2.bf16.msra.mxu0 %v5789
  %6530 = vmatprep.subr.bf16.mxu0 0
  %6531 = vmatpush2.bf16.msra.mxu0 %v5786
  %6532 = vmatprep.subr.bf16.mxu0 0
  %6533 = vmatpush2.bf16.msra.mxu0 %v5783
  %6534 = vmatprep.subr.bf16.mxu0 0
  %6535 = vmatpush2.bf16.msra.mxu0 %v5780
  %6536 = vmatprep.subr.bf16.mxu0 0
  %6537 = vmatpush2.bf16.msra.mxu0 %v5777
  %6538 = vmatprep.subr.bf16.mxu0 0
  %6539 = vmatpush2.bf16.msra.mxu0 %v5774
  %6540 = vmatprep.mubr.bf16.mxu0 %v4776
  %6541 = vmatmul.mubr.bf16.gmra.mxu0 %v4775
  %v6542 = vpop.f32.mrf.mxu0
  %v6543 = vadd.f32 0.0, %v6542
  %v6544 = vpop.f32.mrf.mxu0
  %v6545 = vpop.f32.mrf.mxu0
  %v6546 = vadd.f32 0.0, %v6545
  %v6547 = vpop.f32.mrf.mxu0
  %6548 = vmatprep.mubr.bf16.mxu0 %v4788
  %6549 = vmatmul.mubr.bf16.gmra.mxu0 %v4787
  %v6550 = vpop.f32.mrf.mxu0
  %v6551 = vadd.f32 0.0, %v6550
  %v6552 = vpop.f32.mrf.mxu0
  %v6553 = vpop.f32.mrf.mxu0
  %v6554 = vadd.f32 0.0, %v6553
  %v6555 = vpop.f32.mrf.mxu0
  %6556 = vmatprep.mubr.bf16.mxu0 %v4800
  %6557 = vmatmul.mubr.bf16.gmra.mxu0 %v4799
  %v6558 = vpop.f32.mrf.mxu0
  %v6559 = vadd.f32 0.0, %v6558
  %v6560 = vpop.f32.mrf.mxu0
  %v6561 = vpop.f32.mrf.mxu0
  %v6562 = vadd.f32 0.0, %v6561
  %v6563 = vpop.f32.mrf.mxu0
  %6564 = vmatprep.mubr.bf16.mxu0 %v4812
  %6565 = vmatmul.mubr.bf16.gmra.mxu0 %v4811
  %v6566 = vpop.f32.mrf.mxu0
  %v6567 = vadd.f32 0.0, %v6566
  %v6568 = vpop.f32.mrf.mxu0
  %v6569 = vpop.f32.mrf.mxu0
  %v6570 = vadd.f32 0.0, %v6569
  %v6571 = vpop.f32.mrf.mxu0
  %6572 = vmatprep.mubr.bf16.mxu0 %v4824
  %6573 = vmatmul.mubr.bf16.gmra.mxu0 %v4823
  %v6574 = vpop.f32.mrf.mxu0
  %v6575 = vadd.f32 0.0, %v6574
  %v6576 = vpop.f32.mrf.mxu0
  %v6577 = vpop.f32.mrf.mxu0
  %v6578 = vadd.f32 0.0, %v6577
  %v6579 = vpop.f32.mrf.mxu0
  %6580 = vmatprep.mubr.bf16.mxu0 %v4836
  %6581 = vmatmul.mubr.bf16.gmra.mxu0 %v4835
  %v6582 = vpop.f32.mrf.mxu0
  %v6583 = vadd.f32 0.0, %v6582
  %v6584 = vpop.f32.mrf.mxu0
  %v6585 = vpop.f32.mrf.mxu0
  %v6586 = vadd.f32 0.0, %v6585
  %v6587 = vpop.f32.mrf.mxu0
  %6588 = vmatprep.mubr.bf16.mxu0 %v4848
  %6589 = vmatmul.mubr.bf16.gmra.mxu0 %v4847
  %v6590 = vpop.f32.mrf.mxu0
  %v6591 = vadd.f32 0.0, %v6590
  %v6592 = vpop.f32.mrf.mxu0
  %v6593 = vpop.f32.mrf.mxu0
  %v6594 = vadd.f32 0.0, %v6593
  %v6595 = vpop.f32.mrf.mxu0
  %6596 = vmatprep.mubr.bf16.mxu0 %v4860
  %6597 = vmatmul.mubr.bf16.gmra.mxu0 %v4859
  %v6598 = vpop.f32.mrf.mxu0
  %v6599 = vadd.f32 0.0, %v6598
  %v6600 = vpop.f32.mrf.mxu0
  %v6601 = vpop.f32.mrf.mxu0
  %v6602 = vadd.f32 0.0, %v6601
  %v6603 = vpop.f32.mrf.mxu0
  %6604 = vmatprep.mubr.bf16.mxu0 %v4872
  %6605 = vmatmul.mubr.bf16.gmra.mxu0 %v4871
  %v6606 = vpop.f32.mrf.mxu0
  %v6607 = vadd.f32 0.0, %v6606
  %v6608 = vpop.f32.mrf.mxu0
  %v6609 = vpop.f32.mrf.mxu0
  %v6610 = vadd.f32 0.0, %v6609
  %v6611 = vpop.f32.mrf.mxu0
  %6612 = vmatprep.mubr.bf16.mxu0 %v4884
  %6613 = vmatmul.mubr.bf16.gmra.mxu0 %v4883
  %v6614 = vpop.f32.mrf.mxu0
  %v6615 = vadd.f32 0.0, %v6614
  %v6616 = vpop.f32.mrf.mxu0
  %v6617 = vpop.f32.mrf.mxu0
  %v6618 = vadd.f32 0.0, %v6617
  %v6619 = vpop.f32.mrf.mxu0
  %6620 = vmatprep.mubr.bf16.mxu0 %v4896
  %6621 = vmatmul.mubr.bf16.gmra.mxu0 %v4895
  %v6622 = vpop.f32.mrf.mxu0
  %v6623 = vadd.f32 0.0, %v6622
  %v6624 = vpop.f32.mrf.mxu0
  %v6625 = vpop.f32.mrf.mxu0
  %v6626 = vadd.f32 0.0, %v6625
  %v6627 = vpop.f32.mrf.mxu0
  %6628 = vmatprep.mubr.bf16.mxu0 %v4908
  %6629 = vmatmul.mubr.bf16.gmra.mxu0 %v4907
  %v6630 = vpop.f32.mrf.mxu0
  %v6631 = vpop.f32.mrf.mxu0
  %v6632 = vpop.f32.mrf.mxu0
  %v6633 = vpop.f32.mrf.mxu0
  %6634 = vdwg.mxu0
  %6635 = vmatprep.subr.bf16.mxu0 0
  %6636 = vmatpush1.bf16.msra.mxu0 %v5819
  %6637 = vmatprep.subr.bf16.mxu0 0
  %6638 = vmatpush1.bf16.msra.mxu0 %v5816
  %6639 = vmatprep.subr.bf16.mxu0 0
  %6640 = vmatpush1.bf16.msra.mxu0 %v5813
  %6641 = vmatprep.subr.bf16.mxu0 0
  %6642 = vmatpush1.bf16.msra.mxu0 %v5810
  %6643 = vmatprep.subr.bf16.mxu0 0
  %6644 = vmatpush1.bf16.msra.mxu0 %v5807
  %6645 = vmatprep.subr.bf16.mxu0 0
  %6646 = vmatpush1.bf16.msra.mxu0 %v5804
  %6647 = vmatprep.subr.bf16.mxu0 0
  %6648 = vmatpush1.bf16.msra.mxu0 %v5801
  %6649 = vmatprep.subr.bf16.mxu0 0
  %6650 = vmatpush1.bf16.msra.mxu0 %v5798
  %6651 = vmatprep.subr.bf16.mxu0 0
  %6652 = vmatpush2.bf16.msra.mxu0 %v5843
  %6653 = vmatprep.subr.bf16.mxu0 0
  %6654 = vmatpush2.bf16.msra.mxu0 %v5840
  %6655 = vmatprep.subr.bf16.mxu0 0
  %6656 = vmatpush2.bf16.msra.mxu0 %v5837
  %6657 = vmatprep.subr.bf16.mxu0 0
  %6658 = vmatpush2.bf16.msra.mxu0 %v5834
  %6659 = vmatprep.subr.bf16.mxu0 0
  %6660 = vmatpush2.bf16.msra.mxu0 %v5831
  %6661 = vmatprep.subr.bf16.mxu0 0
  %6662 = vmatpush2.bf16.msra.mxu0 %v5828
  %6663 = vmatprep.subr.bf16.mxu0 0
  %6664 = vmatpush2.bf16.msra.mxu0 %v5825
  %6665 = vmatprep.subr.bf16.mxu0 0
  %6666 = vmatpush2.bf16.msra.mxu0 %v5822
  %6667 = vmatprep.mubr.bf16.mxu0 %v4778
  %6668 = vmatmul.mubr.bf16.gmra.mxu0 %v4777
  %v6669 = vpop.f32.mrf.mxu0
  %v6670 = vadd.f32 %v6543, %v6669
  %v6671 = vpop.f32.mrf.mxu0
  %v6672 = vpop.f32.mrf.mxu0
  %v6673 = vadd.f32 %v6546, %v6672
  %v6674 = vpop.f32.mrf.mxu0
  %6675 = vmatprep.mubr.bf16.mxu0 %v4790
  %6676 = vmatmul.mubr.bf16.gmra.mxu0 %v4789
  %v6677 = vpop.f32.mrf.mxu0
  %v6678 = vadd.f32 %v6551, %v6677
  %v6679 = vpop.f32.mrf.mxu0
  %v6680 = vpop.f32.mrf.mxu0
  %v6681 = vadd.f32 %v6554, %v6680
  %v6682 = vpop.f32.mrf.mxu0
  %6683 = vmatprep.mubr.bf16.mxu0 %v4802
  %6684 = vmatmul.mubr.bf16.gmra.mxu0 %v4801
  %v6685 = vpop.f32.mrf.mxu0
  %v6686 = vadd.f32 %v6559, %v6685
  %v6687 = vpop.f32.mrf.mxu0
  %v6688 = vpop.f32.mrf.mxu0
  %v6689 = vadd.f32 %v6562, %v6688
  %v6690 = vpop.f32.mrf.mxu0
  %6691 = vmatprep.mubr.bf16.mxu0 %v4814
  %6692 = vmatmul.mubr.bf16.gmra.mxu0 %v4813
  %v6693 = vpop.f32.mrf.mxu0
  %v6694 = vadd.f32 %v6567, %v6693
  %v6695 = vpop.f32.mrf.mxu0
  %v6696 = vpop.f32.mrf.mxu0
  %v6697 = vadd.f32 %v6570, %v6696
  %v6698 = vpop.f32.mrf.mxu0
  %6699 = vmatprep.mubr.bf16.mxu0 %v4826
  %6700 = vmatmul.mubr.bf16.gmra.mxu0 %v4825
  %v6701 = vpop.f32.mrf.mxu0
  %v6702 = vadd.f32 %v6575, %v6701
  %v6703 = vpop.f32.mrf.mxu0
  %v6704 = vpop.f32.mrf.mxu0
  %v6705 = vadd.f32 %v6578, %v6704
  %v6706 = vpop.f32.mrf.mxu0
  %6707 = vmatprep.mubr.bf16.mxu0 %v4838
  %6708 = vmatmul.mubr.bf16.gmra.mxu0 %v4837
  %v6709 = vpop.f32.mrf.mxu0
  %v6710 = vadd.f32 %v6583, %v6709
  %v6711 = vpop.f32.mrf.mxu0
  %v6712 = vpop.f32.mrf.mxu0
  %v6713 = vadd.f32 %v6586, %v6712
  %v6714 = vpop.f32.mrf.mxu0
  %6715 = vmatprep.mubr.bf16.mxu0 %v4850
  %6716 = vmatmul.mubr.bf16.gmra.mxu0 %v4849
  %v6717 = vpop.f32.mrf.mxu0
  %v6718 = vadd.f32 %v6591, %v6717
  %v6719 = vpop.f32.mrf.mxu0
  %v6720 = vpop.f32.mrf.mxu0
  %v6721 = vadd.f32 %v6594, %v6720
  %v6722 = vpop.f32.mrf.mxu0
  %6723 = vmatprep.mubr.bf16.mxu0 %v4862
  %6724 = vmatmul.mubr.bf16.gmra.mxu0 %v4861
  %v6725 = vpop.f32.mrf.mxu0
  %v6726 = vadd.f32 %v6599, %v6725
  %v6727 = vpop.f32.mrf.mxu0
  %v6728 = vpop.f32.mrf.mxu0
  %v6729 = vadd.f32 %v6602, %v6728
  %v6730 = vpop.f32.mrf.mxu0
  %6731 = vmatprep.mubr.bf16.mxu0 %v4874
  %6732 = vmatmul.mubr.bf16.gmra.mxu0 %v4873
  %v6733 = vpop.f32.mrf.mxu0
  %v6734 = vadd.f32 %v6607, %v6733
  %v6735 = vpop.f32.mrf.mxu0
  %v6736 = vpop.f32.mrf.mxu0
  %v6737 = vadd.f32 %v6610, %v6736
  %v6738 = vpop.f32.mrf.mxu0
  %6739 = vmatprep.mubr.bf16.mxu0 %v4886
  %6740 = vmatmul.mubr.bf16.gmra.mxu0 %v4885
  %v6741 = vpop.f32.mrf.mxu0
  %v6742 = vadd.f32 %v6615, %v6741
  %v6743 = vpop.f32.mrf.mxu0
  %v6744 = vpop.f32.mrf.mxu0
  %v6745 = vadd.f32 %v6618, %v6744
  %v6746 = vpop.f32.mrf.mxu0
  %6747 = vmatprep.mubr.bf16.mxu0 %v4898
  %6748 = vmatmul.mubr.bf16.gmra.mxu0 %v4897
  %v6749 = vpop.f32.mrf.mxu0
  %v6750 = vadd.f32 %v6623, %v6749
  %v6751 = vpop.f32.mrf.mxu0
  %v6752 = vpop.f32.mrf.mxu0
  %v6753 = vadd.f32 %v6626, %v6752
  %v6754 = vpop.f32.mrf.mxu0
  %6755 = vmatprep.mubr.bf16.mxu0 %v4910
  %6756 = vmatmul.mubr.bf16.gmra.mxu0 %v4909
  %v6757 = vpop.f32.mrf.mxu0
  %v6758 = vpop.f32.mrf.mxu0
  %v6759 = vpop.f32.mrf.mxu0
  %v6760 = vpop.f32.mrf.mxu0
  %6761 = vdwg.mxu0
  %6762 = vmatprep.subr.bf16.mxu0 0
  %6763 = vmatpush1.bf16.msra.mxu0 %v5867
  %6764 = vmatprep.subr.bf16.mxu0 0
  %6765 = vmatpush1.bf16.msra.mxu0 %v5864
  %6766 = vmatprep.subr.bf16.mxu0 0
  %6767 = vmatpush1.bf16.msra.mxu0 %v5861
  %6768 = vmatprep.subr.bf16.mxu0 0
  %6769 = vmatpush1.bf16.msra.mxu0 %v5858
  %6770 = vmatprep.subr.bf16.mxu0 0
  %6771 = vmatpush1.bf16.msra.mxu0 %v5855
  %6772 = vmatprep.subr.bf16.mxu0 0
  %6773 = vmatpush1.bf16.msra.mxu0 %v5852
  %6774 = vmatprep.subr.bf16.mxu0 0
  %6775 = vmatpush1.bf16.msra.mxu0 %v5849
  %6776 = vmatprep.subr.bf16.mxu0 0
  %6777 = vmatpush1.bf16.msra.mxu0 %v5846
  %6778 = vmatprep.subr.bf16.mxu0 0
  %6779 = vmatpush2.bf16.msra.mxu0 0
  %6780 = vmatprep.subr.bf16.mxu0 0
  %6781 = vmatpush2.bf16.msra.mxu0 0
  %6782 = vmatprep.subr.bf16.mxu0 0
  %6783 = vmatpush2.bf16.msra.mxu0 %v5885
  %6784 = vmatprep.subr.bf16.mxu0 0
  %6785 = vmatpush2.bf16.msra.mxu0 %v5882
  %6786 = vmatprep.subr.bf16.mxu0 0
  %6787 = vmatpush2.bf16.msra.mxu0 %v5879
  %6788 = vmatprep.subr.bf16.mxu0 0
  %6789 = vmatpush2.bf16.msra.mxu0 %v5876
  %6790 = vmatprep.subr.bf16.mxu0 0
  %6791 = vmatpush2.bf16.msra.mxu0 %v5873
  %6792 = vmatprep.subr.bf16.mxu0 0
  %6793 = vmatpush2.bf16.msra.mxu0 %v5870
  %6794 = vmatprep.mubr.bf16.mxu0 %v6026
  %6795 = vmatmul.mubr.bf16.gmra.mxu0 %v4779
  %v6796 = vpop.f32.mrf.mxu0
  %v6797 = vadd.f32 %v6670, %v6796
  %v6798 = vpop.f32.mrf.mxu0
  %v6799 = vpop.f32.mrf.mxu0
  %v6800 = vadd.f32 %v6673, %v6799
  %v6801 = vpop.f32.mrf.mxu0
  %6802 = vmatprep.mubr.bf16.mxu0 %v6029
  %6803 = vmatmul.mubr.bf16.gmra.mxu0 %v4791
  %v6804 = vpop.f32.mrf.mxu0
  %v6805 = vadd.f32 %v6678, %v6804
  %v6806 = vpop.f32.mrf.mxu0
  %v6807 = vpop.f32.mrf.mxu0
  %v6808 = vadd.f32 %v6681, %v6807
  %v6809 = vpop.f32.mrf.mxu0
  %6810 = vmatprep.mubr.bf16.mxu0 %v6032
  %6811 = vmatmul.mubr.bf16.gmra.mxu0 %v4803
  %v6812 = vpop.f32.mrf.mxu0
  %v6813 = vadd.f32 %v6686, %v6812
  %v6814 = vpop.f32.mrf.mxu0
  %v6815 = vpop.f32.mrf.mxu0
  %v6816 = vadd.f32 %v6689, %v6815
  %v6817 = vpop.f32.mrf.mxu0
  %6818 = vmatprep.mubr.bf16.mxu0 %v6035
  %6819 = vmatmul.mubr.bf16.gmra.mxu0 %v4815
  %v6820 = vpop.f32.mrf.mxu0
  %v6821 = vadd.f32 %v6694, %v6820
  %v6822 = vpop.f32.mrf.mxu0
  %v6823 = vpop.f32.mrf.mxu0
  %v6824 = vadd.f32 %v6697, %v6823
  %v6825 = vpop.f32.mrf.mxu0
  %6826 = vmatprep.mubr.bf16.mxu0 %v6038
  %6827 = vmatmul.mubr.bf16.gmra.mxu0 %v4827
  %v6828 = vpop.f32.mrf.mxu0
  %v6829 = vadd.f32 %v6702, %v6828
  %v6830 = vpop.f32.mrf.mxu0
  %v6831 = vpop.f32.mrf.mxu0
  %v6832 = vadd.f32 %v6705, %v6831
  %v6833 = vpop.f32.mrf.mxu0
  %6834 = vmatprep.mubr.bf16.mxu0 %v6041
  %6835 = vmatmul.mubr.bf16.gmra.mxu0 %v4839
  %v6836 = vpop.f32.mrf.mxu0
  %v6837 = vadd.f32 %v6710, %v6836
  %v6838 = vpop.f32.mrf.mxu0
  %v6839 = vpop.f32.mrf.mxu0
  %v6840 = vadd.f32 %v6713, %v6839
  %v6841 = vpop.f32.mrf.mxu0
  %6842 = vmatprep.mubr.bf16.mxu0 %v6044
  %6843 = vmatmul.mubr.bf16.gmra.mxu0 %v4851
  %v6844 = vpop.f32.mrf.mxu0
  %v6845 = vadd.f32 %v6718, %v6844
  %v6846 = vpop.f32.mrf.mxu0
  %v6847 = vpop.f32.mrf.mxu0
  %v6848 = vadd.f32 %v6721, %v6847
  %v6849 = vpop.f32.mrf.mxu0
  %6850 = vmatprep.mubr.bf16.mxu0 %v6047
  %6851 = vmatmul.mubr.bf16.gmra.mxu0 %v4863
  %v6852 = vpop.f32.mrf.mxu0
  %v6853 = vadd.f32 %v6726, %v6852
  %v6854 = vpop.f32.mrf.mxu0
  %v6855 = vpop.f32.mrf.mxu0
  %v6856 = vadd.f32 %v6729, %v6855
  %v6857 = vpop.f32.mrf.mxu0
  %6858 = vmatprep.mubr.bf16.mxu0 %v6050
  %6859 = vmatmul.mubr.bf16.gmra.mxu0 %v4875
  %v6860 = vpop.f32.mrf.mxu0
  %v6861 = vadd.f32 %v6734, %v6860
  %v6862 = vpop.f32.mrf.mxu0
  %v6863 = vpop.f32.mrf.mxu0
  %v6864 = vadd.f32 %v6737, %v6863
  %v6865 = vpop.f32.mrf.mxu0
  %6866 = vmatprep.mubr.bf16.mxu0 %v6053
  %6867 = vmatmul.mubr.bf16.gmra.mxu0 %v4887
  %v6868 = vpop.f32.mrf.mxu0
  %v6869 = vadd.f32 %v6742, %v6868
  %v6870 = vpop.f32.mrf.mxu0
  %v6871 = vpop.f32.mrf.mxu0
  %v6872 = vadd.f32 %v6745, %v6871
  %v6873 = vpop.f32.mrf.mxu0
  %6874 = vmatprep.mubr.bf16.mxu0 %v6056
  %6875 = vmatmul.mubr.bf16.gmra.mxu0 %v4899
  %v6876 = vpop.f32.mrf.mxu0
  %v6877 = vadd.f32 %v6750, %v6876
  %v6878 = vpop.f32.mrf.mxu0
  %v6879 = vpop.f32.mrf.mxu0
  %v6880 = vadd.f32 %v6753, %v6879
  %v6881 = vpop.f32.mrf.mxu0
  %6882 = vmatprep.mubr.bf16.mxu0 %v6059
  %6883 = vmatmul.mubr.bf16.gmra.mxu0 %v4911
  %v6884 = vpop.f32.mrf.mxu0
  %v6885 = vpop.f32.mrf.mxu0
  %v6886 = vpop.f32.mrf.mxu0
  %v6887 = vpop.f32.mrf.mxu0
  %6888 = vdwg.mxu0
  %v7073 = vunpack.c.l.b16 %v4919
  %v7074 = vunpack.c.h.b16 %v4919
  %v7075 = vunpack.c.l.b16 %v4920
  %v7076 = vunpack.c.l.b16 %v4921
  %v7077 = vunpack.c.h.b16 %v4921
  %v7078 = vunpack.c.l.b16 %v4922
  %v7079 = vunpack.c.l.b16 %v4923
  %v7080 = vunpack.c.h.b16 %v4923
  %v7081 = vunpack.c.l.b16 %v4924
  %v7082 = vunpack.c.l.b16 %v4925
  %v7083 = vunpack.c.h.b16 %v4925
  %v7084 = vunpack.c.l.b16 %v4926
  %v7085 = vunpack.c.l.b16 %v4927
  %v7086 = vunpack.c.h.b16 %v4927
  %v7087 = vunpack.c.l.b16 %v4928
  %v7088 = vunpack.c.l.b16 %v4929
  %v7089 = vunpack.c.h.b16 %v4929
  %v7090 = vunpack.c.l.b16 %v4930
  %v7091 = vunpack.c.l.b16 %v4931
  %v7092 = vunpack.c.h.b16 %v4931
  %v7093 = vunpack.c.l.b16 %v4932
  %v7094 = vunpack.c.l.b16 %v4933
  %v7095 = vunpack.c.h.b16 %v4933
  %v7096 = vunpack.c.l.b16 %v4934
  %v7097 = vunpack.c.l.b16 %v4935
  %v7098 = vunpack.c.h.b16 %v4935
  %v7099 = vunpack.c.l.b16 %v4936
  %v7100 = vunpack.c.l.b16 %v4937
  %v7101 = vunpack.c.h.b16 %v4937
  %v7102 = vunpack.c.l.b16 %v4938
  %v7103 = vunpack.c.l.b16 %v4939
  %v7104 = vunpack.c.h.b16 %v4939
  %v7105 = vunpack.c.l.b16 %v4940
  %v7106 = vunpack.c.l.b16 %v4941
  %v7107 = vunpack.c.h.b16 %v4941
  %v7108 = vunpack.c.l.b16 %v4942
  %v7109 = vunpack.c.l.b16 %v4943
  %v7110 = vunpack.c.h.b16 %v4943
  %v7111 = vunpack.c.l.b16 %v4944
  %v7112 = vunpack.c.l.b16 %v4945
  %v7113 = vunpack.c.h.b16 %v4945
  %v7114 = vunpack.c.l.b16 %v4946
  %v7115 = vunpack.c.l.b16 %v4947
  %v7116 = vunpack.c.h.b16 %v4947
  %v7117 = vunpack.c.l.b16 %v4948
  %v7118 = vunpack.c.l.b16 %v4949
  %v7119 = vunpack.c.h.b16 %v4949
  %v7120 = vunpack.c.l.b16 %v4950
  %v7121 = vunpack.c.l.b16 %v4951
  %v7122 = vunpack.c.h.b16 %v4951
  %v7123 = vunpack.c.l.b16 %v4952
  %v7124 = vunpack.c.l.b16 %v4953
  %v7125 = vunpack.c.h.b16 %v4953
  %v7126 = vunpack.c.l.b16 %v4954
  %v7127 = vunpack.c.l.b16 %v4955
  %v7128 = vunpack.c.h.b16 %v4955
  %v7129 = vunpack.c.l.b16 %v4956
  %v7130 = vunpack.c.l.b16 %v4957
  %v7131 = vunpack.c.h.b16 %v4957
  %v7132 = vunpack.c.l.b16 %v4958
  %v7133 = vunpack.c.l.b16 %v4959
  %v7134 = vunpack.c.h.b16 %v4959
  %v7135 = vunpack.c.l.b16 %v4960
  %v7136 = vunpack.c.l.b16 %v4961
  %v7137 = vunpack.c.h.b16 %v4961
  %v7138 = vunpack.c.l.b16 %v4962
  %v7139 = vunpack.c.l.b16 %v4963
  %v7140 = vunpack.c.h.b16 %v4963
  %v7141 = vunpack.c.l.b16 %v4964
  %v7142 = vunpack.c.l.b16 %v4965
  %v7143 = vunpack.c.h.b16 %v4965
  %v7144 = vunpack.c.l.b16 %v4966
  %v7145 = vunpack.c.l.b16 %v4967
  %v7146 = vunpack.c.h.b16 %v4967
  %v7147 = vunpack.c.l.b16 %v4968
  %v7148 = vunpack.c.l.b16 %v4969
  %v7149 = vunpack.c.h.b16 %v4969
  %v7150 = vunpack.c.l.b16 %v4970
  %v7151 = vunpack.c.l.b16 %v4971
  %v7152 = vunpack.c.h.b16 %v4971
  %v7153 = vunpack.c.l.b16 %v4972
  %v7154 = vunpack.c.l.b16 %v4973
  %v7155 = vunpack.c.h.b16 %v4973
  %v7156 = vunpack.c.l.b16 %v4974
  %v7157 = vunpack.c.l.b16 %v4975
  %v7158 = vunpack.c.h.b16 %v4975
  %v7159 = vunpack.c.l.b16 %v4976
  %v7160 = vunpack.c.l.b16 %v4977
  %v7161 = vunpack.c.h.b16 %v4977
  %v7162 = vunpack.c.l.b16 %v4978
  %v7163 = vunpack.c.l.b16 %v4979
  %v7164 = vunpack.c.h.b16 %v4979
  %v7165 = vunpack.c.l.b16 %v4980
  %v7166 = vunpack.c.l.b16 %v4981
  %v7167 = vunpack.c.h.b16 %v4981
  %v7168 = vunpack.c.l.b16 %v4982
  %v7169 = vunpack.c.l.b16 %v4983
  %v7170 = vunpack.c.h.b16 %v4983
  %v7171 = vunpack.c.l.b16 %v4984
  %v7172 = vunpack.c.l.b16 %v4985
  %v7173 = vunpack.c.h.b16 %v4985
  %v7174 = vunpack.c.l.b16 %v4986
  %v7175 = vunpack.c.l.b16 %v4987
  %v7176 = vunpack.c.h.b16 %v4987
  %v7177 = vunpack.c.l.b16 %v4988
  %v7178 = vunpack.c.l.b16 %v4989
  %v7179 = vunpack.c.h.b16 %v4989
  %v7180 = vunpack.c.l.b16 %v4990
  %v7181 = vunpack.c.l.b16 %v4991
  %v7182 = vunpack.c.h.b16 %v4991
  %v7183 = vunpack.c.l.b16 %v4992
  %v7184 = vunpack.c.l.b16 %v4993
  %v7185 = vunpack.c.h.b16 %v4993
  %v7186 = vunpack.c.l.b16 %v4994
  %v7187 = vunpack.c.l.b16 %v4995
  %v7188 = vunpack.c.h.b16 %v4995
  %v7189 = vunpack.c.l.b16 %v4996
  %v7190 = vunpack.c.l.b16 %v4997
  %v7191 = vunpack.c.h.b16 %v4997
  %v7192 = vunpack.c.l.b16 %v4998
  %v7193 = vunpack.c.l.b16 %v4999
  %v7194 = vunpack.c.h.b16 %v4999
  %v7195 = vunpack.c.l.b16 %v5000
  %v7196 = vunpack.c.l.b16 %v5001
  %v7197 = vunpack.c.h.b16 %v5001
  %v7198 = vunpack.c.l.b16 %v5002
  %v7199 = vunpack.c.l.b16 %v5003
  %v7200 = vunpack.c.h.b16 %v5003
  %v7201 = vunpack.c.l.b16 %v5004
  %v7202 = vunpack.c.l.b16 %v5005
  %v7203 = vunpack.c.h.b16 %v5005
  %v7204 = vunpack.c.l.b16 %v5006
  %v7205 = vunpack.c.l.b16 %v5007
  %v7206 = vunpack.c.h.b16 %v5007
  %v7207 = vunpack.c.l.b16 %v5008
  %v7208 = vunpack.c.l.b16 %v5009
  %v7209 = vunpack.c.h.b16 %v5009
  %v7210 = vunpack.c.l.b16 %v5010
  %v7211 = vunpack.c.l.b16 %v5011
  %v7212 = vunpack.c.h.b16 %v5011
  %v7213 = vunpack.c.l.b16 %v5012
  %v7214 = vunpack.c.l.b16 %v5013
  %v7215 = vunpack.c.h.b16 %v5013
  %v7216 = vunpack.c.l.b16 %v5014
  %v7217 = vunpack.c.l.b16 %v5015
  %v7218 = vunpack.c.h.b16 %v5015
  %v7219 = vunpack.c.l.b16 %v5016
  %v7220 = vunpack.c.l.b16 %v5017
  %v7221 = vunpack.c.h.b16 %v5017
  %v7222 = vunpack.c.l.b16 %v5018
  %v7223 = vunpack.c.l.b16 %v5019
  %v7224 = vunpack.c.h.b16 %v5019
  %v7225 = vunpack.c.l.b16 %v5020
  %v7226 = vunpack.c.l.b16 %v5021
  %v7227 = vunpack.c.h.b16 %v5021
  %v7228 = vunpack.c.l.b16 %v5022
  %v7229 = vunpack.c.l.b16 %v5023
  %v7230 = vunpack.c.h.b16 %v5023
  %v7231 = vunpack.c.l.b16 %v5024
  %v7232 = vunpack.c.l.b16 %v5025
  %v7233 = vunpack.c.h.b16 %v5025
  %v7234 = vunpack.c.l.b16 %v5026
  %v7235 = vunpack.c.l.b16 %v5027
  %v7236 = vunpack.c.h.b16 %v5027
  %v7237 = vunpack.c.l.b16 %v5028
  %v7238 = vunpack.c.l.b16 %v5029
  %v7239 = vunpack.c.h.b16 %v5029
  %v7240 = vunpack.c.l.b16 %v5030
  %v7241 = vunpack.c.l.b16 %v5031
  %v7242 = vunpack.c.h.b16 %v5031
  %v7243 = vunpack.c.l.b16 %v5032
  %v7244 = vunpack.c.l.b16 %v5033
  %v7245 = vunpack.c.h.b16 %v5033
  %v7246 = vunpack.c.l.b16 %v5034
  %v7247 = vunpack.c.l.b16 %v5035
  %v7248 = vunpack.c.h.b16 %v5035
  %v7249 = vunpack.c.l.b16 %v5036
  %v7250 = vunpack.c.l.b16 %v5037
  %v7251 = vunpack.c.h.b16 %v5037
  %v7252 = vunpack.c.l.b16 %v5038
  %v7253 = vunpack.c.l.b16 %v5039
  %v7254 = vunpack.c.h.b16 %v5039
  %v7255 = vunpack.c.l.b16 %v5040
  %v7256 = vunpack.c.l.b16 %v5041
  %v7257 = vunpack.c.h.b16 %v5041
  %v7258 = vunpack.c.l.b16 %v5042
  %v7259 = vunpack.c.l.b16 %v5043
  %v7260 = vunpack.c.h.b16 %v5043
  %v7261 = vunpack.c.l.b16 %v5044
  %v7262 = vunpack.c.l.b16 %v5045
  %v7263 = vunpack.c.h.b16 %v5045
  %v7264 = vunpack.c.l.b16 %v5046
  %v7265 = vunpack.c.l.b16 %v5047
  %v7266 = vunpack.c.h.b16 %v5047
  %v7267 = vunpack.c.l.b16 %v5048
  %v7268 = vunpack.c.l.b16 %v5049
  %v7269 = vunpack.c.h.b16 %v5049
  %v7270 = vunpack.c.l.b16 %v5050
  %v7271 = vunpack.c.l.b16 %v5051
  %v7272 = vunpack.c.h.b16 %v5051
  %v7273 = vunpack.c.l.b16 %v5052
  %v7274 = vunpack.c.l.b16 %v5053
  %v7275 = vunpack.c.h.b16 %v5053
  %v7276 = vunpack.c.l.b16 %v5054
  %v7277 = vunpack.c.l.b16 %v5055
  %v7278 = vunpack.c.h.b16 %v5055
  %v7279 = vunpack.c.l.b16 %v5056
  %v7280 = vunpack.c.l.b16 %v5057
  %v7281 = vunpack.c.h.b16 %v5057
  %v7282 = vunpack.c.l.b16 %v5058
  %v7283 = vunpack.c.l.b16 %v5059
  %v7284 = vunpack.c.h.b16 %v5059
  %v7285 = vunpack.c.l.b16 %v5060
  %v7286 = vunpack.c.l.b16 %v5061
  %v7287 = vunpack.c.h.b16 %v5061
  %v7288 = vunpack.c.l.b16 %v5062
  %v7289 = vunpack.c.l.b16 %v5063
  %v7290 = vunpack.c.h.b16 %v5063
  %v7291 = vunpack.c.l.b16 %v5064
  %v7292 = vunpack.c.l.b16 %v5065
  %v7293 = vunpack.c.h.b16 %v5065
  %v7294 = vunpack.c.l.b16 %v5066
  %v7295 = vunpack.c.l.b16 %v5067
  %v7296 = vunpack.c.h.b16 %v5067
  %v7297 = vunpack.c.l.b16 %v5068
  %v7298 = vunpack.c.l.b16 %v5069
  %v7299 = vunpack.c.h.b16 %v5069
  %v7300 = vunpack.c.l.b16 %v5070
  %v7301 = vunpack.c.l.b16 %v5071
  %v7302 = vunpack.c.h.b16 %v5071
  %v7303 = vunpack.c.l.b16 %v5072
  %v7304 = vunpack.c.l.b16 %v5073
  %v7305 = vunpack.c.h.b16 %v5073
  %v7306 = vunpack.c.l.b16 %v5074
  %v7307 = vunpack.c.l.b16 %v5075
  %v7308 = vunpack.c.h.b16 %v5075
  %v7309 = vunpack.c.l.b16 %v5076
  %v7310 = vunpack.c.l.b16 %v5077
  %v7311 = vunpack.c.h.b16 %v5077
  %v7312 = vunpack.c.l.b16 %v5078
  %v7313 = vunpack.c.l.b16 %v5079
  %v7314 = vunpack.c.h.b16 %v5079
  %v7315 = vunpack.c.l.b16 %v5080
  %v7316 = vunpack.c.l.b16 %v5081
  %v7317 = vunpack.c.h.b16 %v5081
  %v7318 = vunpack.c.l.b16 %v5082
  %v7319 = vunpack.c.l.b16 %v5083
  %v7320 = vunpack.c.h.b16 %v5083
  %v7321 = vunpack.c.l.b16 %v5084
  %v7322 = vunpack.c.l.b16 %v5085
  %v7323 = vunpack.c.h.b16 %v5085
  %v7324 = vunpack.c.l.b16 %v5086
  %v7325 = vunpack.c.l.b16 %v5087
  %v7326 = vunpack.c.h.b16 %v5087
  %v7327 = vunpack.c.l.b16 %v5088
  %v7328 = vunpack.c.l.b16 %v5089
  %v7329 = vunpack.c.h.b16 %v5089
  %v7330 = vunpack.c.l.b16 %v5090
  %v7331 = vunpack.c.l.b16 %v5091
  %v7332 = vunpack.c.h.b16 %v5091
  %v7333 = vunpack.c.l.b16 %v5092
  %v7334 = vunpack.c.l.b16 %v5093
  %v7335 = vunpack.c.h.b16 %v5093
  %v7336 = vunpack.c.l.b16 %v5094
  %v7337 = vunpack.c.l.b16 %v5095
  %v7338 = vunpack.c.h.b16 %v5095
  %v7339 = vunpack.c.l.b16 %v5096
  %v7340 = vunpack.c.l.b16 %v5097
  %v7341 = vunpack.c.h.b16 %v5097
  %v7342 = vunpack.c.l.b16 %v5098
  %v7343 = vunpack.c.l.b16 %v5099
  %v7344 = vunpack.c.h.b16 %v5099
  %v7345 = vunpack.c.l.b16 %v5100
  %v7346 = vunpack.c.l.b16 %v5101
  %v7347 = vunpack.c.h.b16 %v5101
  %v7348 = vunpack.c.l.b16 %v5102
  %v7349 = vpack.c.b16 %v7076, %v7073
  %v7350 = vpack.c.b16 %v7077, %v7074
  %v7351 = vpack.c.b16 %v7078, %v7075
  %v7352 = vpack.c.b16 %v7082, %v7079
  %v7353 = vpack.c.b16 %v7083, %v7080
  %v7354 = vpack.c.b16 %v7084, %v7081
  %v7355 = vpack.c.b16 %v7088, %v7085
  %v7356 = vpack.c.b16 %v7089, %v7086
  %v7357 = vpack.c.b16 %v7090, %v7087
  %v7358 = vpack.c.b16 %v7094, %v7091
  %v7359 = vpack.c.b16 %v7095, %v7092
  %v7360 = vpack.c.b16 %v7096, %v7093
  %v7361 = vpack.c.b16 %v7100, %v7097
  %v7362 = vpack.c.b16 %v7101, %v7098
  %v7363 = vpack.c.b16 %v7102, %v7099
  %v7364 = vpack.c.b16 %v7106, %v7103
  %v7365 = vpack.c.b16 %v7107, %v7104
  %v7366 = vpack.c.b16 %v7108, %v7105
  %v7367 = vpack.c.b16 %v7112, %v7109
  %v7368 = vpack.c.b16 %v7113, %v7110
  %v7369 = vpack.c.b16 %v7114, %v7111
  %v7370 = vpack.c.b16 %v7118, %v7115
  %v7371 = vpack.c.b16 %v7119, %v7116
  %v7372 = vpack.c.b16 %v7120, %v7117
  %v7373 = vpack.c.b16 %v7124, %v7121
  %v7374 = vpack.c.b16 %v7125, %v7122
  %v7375 = vpack.c.b16 %v7126, %v7123
  %v7376 = vpack.c.b16 %v7130, %v7127
  %v7377 = vpack.c.b16 %v7131, %v7128
  %v7378 = vpack.c.b16 %v7132, %v7129
  %v7379 = vpack.c.b16 %v7136, %v7133
  %v7380 = vpack.c.b16 %v7137, %v7134
  %v7381 = vpack.c.b16 %v7138, %v7135
  %v7382 = vpack.c.b16 %v7142, %v7139
  %v7383 = vpack.c.b16 %v7143, %v7140
  %v7384 = vpack.c.b16 %v7144, %v7141
  %v7385 = vpack.c.b16 %v7148, %v7145
  %v7386 = vpack.c.b16 %v7149, %v7146
  %v7387 = vpack.c.b16 %v7150, %v7147
  %v7388 = vpack.c.b16 %v7154, %v7151
  %v7389 = vpack.c.b16 %v7155, %v7152
  %v7390 = vpack.c.b16 %v7156, %v7153
  %v7391 = vpack.c.b16 %v7160, %v7157
  %v7392 = vpack.c.b16 %v7161, %v7158
  %v7393 = vpack.c.b16 %v7162, %v7159
  %v7394 = vpack.c.b16 %v7166, %v7163
  %v7395 = vpack.c.b16 %v7167, %v7164
  %v7396 = vpack.c.b16 %v7168, %v7165
  %v7397 = vpack.c.b16 %v7172, %v7169
  %v7398 = vpack.c.b16 %v7173, %v7170
  %v7399 = vpack.c.b16 %v7174, %v7171
  %v7400 = vpack.c.b16 %v7178, %v7175
  %v7401 = vpack.c.b16 %v7179, %v7176
  %v7402 = vpack.c.b16 %v7180, %v7177
  %v7403 = vpack.c.b16 %v7184, %v7181
  %v7404 = vpack.c.b16 %v7185, %v7182
  %v7405 = vpack.c.b16 %v7186, %v7183
  %v7406 = vpack.c.b16 %v7190, %v7187
  %v7407 = vpack.c.b16 %v7191, %v7188
  %v7408 = vpack.c.b16 %v7192, %v7189
  %v7409 = vpack.c.b16 %v7196, %v7193
  %v7410 = vpack.c.b16 %v7197, %v7194
  %v7411 = vpack.c.b16 %v7198, %v7195
  %v7412 = vpack.c.b16 %v7202, %v7199
  %v7413 = vpack.c.b16 %v7203, %v7200
  %v7414 = vpack.c.b16 %v7204, %v7201
  %v7415 = vpack.c.b16 %v7208, %v7205
  %v7416 = vpack.c.b16 %v7209, %v7206
  %v7417 = vpack.c.b16 %v7210, %v7207
  %v7418 = vpack.c.b16 %v7214, %v7211
  %v7419 = vpack.c.b16 %v7215, %v7212
  %v7420 = vpack.c.b16 %v7216, %v7213
  %v7421 = vpack.c.b16 %v7220, %v7217
  %v7422 = vpack.c.b16 %v7221, %v7218
  %v7423 = vpack.c.b16 %v7222, %v7219
  %v7424 = vpack.c.b16 %v7226, %v7223
  %v7425 = vpack.c.b16 %v7227, %v7224
  %v7426 = vpack.c.b16 %v7228, %v7225
  %v7427 = vpack.c.b16 %v7232, %v7229
  %v7428 = vpack.c.b16 %v7233, %v7230
  %v7429 = vpack.c.b16 %v7234, %v7231
  %v7430 = vpack.c.b16 %v7238, %v7235
  %v7431 = vpack.c.b16 %v7239, %v7236
  %v7432 = vpack.c.b16 %v7240, %v7237
  %v7433 = vpack.c.b16 %v7244, %v7241
  %v7434 = vpack.c.b16 %v7245, %v7242
  %v7435 = vpack.c.b16 %v7246, %v7243
  %v7436 = vpack.c.b16 %v7250, %v7247
  %v7437 = vpack.c.b16 %v7251, %v7248
  %v7438 = vpack.c.b16 %v7252, %v7249
  %v7439 = vpack.c.b16 %v7256, %v7253
  %v7440 = vpack.c.b16 %v7257, %v7254
  %v7441 = vpack.c.b16 %v7258, %v7255
  %v7442 = vpack.c.b16 %v7262, %v7259
  %v7443 = vpack.c.b16 %v7263, %v7260
  %v7444 = vpack.c.b16 %v7264, %v7261
  %v7445 = vpack.c.b16 %v7268, %v7265
  %v7446 = vpack.c.b16 %v7269, %v7266
  %v7447 = vpack.c.b16 %v7270, %v7267
  %v7448 = vpack.c.b16 %v7274, %v7271
  %v7449 = vpack.c.b16 %v7275, %v7272
  %v7450 = vpack.c.b16 %v7276, %v7273
  %v7451 = vpack.c.b16 %v7280, %v7277
  %v7452 = vpack.c.b16 %v7281, %v7278
  %v7453 = vpack.c.b16 %v7282, %v7279
  %v7454 = vpack.c.b16 %v7286, %v7283
  %v7455 = vpack.c.b16 %v7287, %v7284
  %v7456 = vpack.c.b16 %v7288, %v7285
  %v7457 = vpack.c.b16 %v7292, %v7289
  %v7458 = vpack.c.b16 %v7293, %v7290
  %v7459 = vpack.c.b16 %v7294, %v7291
  %v7460 = vpack.c.b16 %v7298, %v7295
  %v7461 = vpack.c.b16 %v7299, %v7296
  %v7462 = vpack.c.b16 %v7300, %v7297
  %v7463 = vpack.c.b16 %v7304, %v7301
  %v7464 = vpack.c.b16 %v7305, %v7302
  %v7465 = vpack.c.b16 %v7306, %v7303
  %v7466 = vpack.c.b16 %v7310, %v7307
  %v7467 = vpack.c.b16 %v7311, %v7308
  %v7468 = vpack.c.b16 %v7312, %v7309
  %v7469 = vpack.c.b16 %v7316, %v7313
  %v7470 = vpack.c.b16 %v7317, %v7314
  %v7471 = vpack.c.b16 %v7318, %v7315
  %v7472 = vpack.c.b16 %v7322, %v7319
  %v7473 = vpack.c.b16 %v7323, %v7320
  %v7474 = vpack.c.b16 %v7324, %v7321
  %v7475 = vpack.c.b16 %v7328, %v7325
  %v7476 = vpack.c.b16 %v7329, %v7326
  %v7477 = vpack.c.b16 %v7330, %v7327
  %v7478 = vpack.c.b16 %v7334, %v7331
  %v7479 = vpack.c.b16 %v7335, %v7332
  %v7480 = vpack.c.b16 %v7336, %v7333
  %v7481 = vpack.c.b16 %v7340, %v7337
  %v7482 = vpack.c.b16 %v7341, %v7338
  %v7483 = vpack.c.b16 %v7342, %v7339
  %v7484 = vpack.c.b16 %v7346, %v7343
  %v7485 = vpack.c.b16 %v7347, %v7344
  %v7486 = vpack.c.b16 %v7348, %v7345
  %v7626 = vsel %vm6024, %v4774, 0
  %v7629 = vsel %vm6024, %v4786, 0
  %v7632 = vsel %vm6024, %v4798, 0
  %v7635 = vsel %vm6024, %v4810, 0
  %v7638 = vsel %vm6024, %v4822, 0
  %v7641 = vsel %vm6024, %v4834, 0
  %v7644 = vsel %vm6024, %v4846, 0
  %v7647 = vsel %vm6024, %v4858, 0
  %v7650 = vsel %vm6024, %v4870, 0
  %v7653 = vsel %vm6024, %v4882, 0
  %v7656 = vsel %vm6024, %v4894, 0
  %v7659 = vsel %vm6024, %v4906, 0
  %7661 = vmatprep.subr.bf16.mxu0 %v7371
  %7662 = vmatpush1.bf16.msra.mxu0 %v7370
  %7663 = vmatprep.subr.bf16.mxu0 %v7368
  %7664 = vmatpush1.bf16.msra.mxu0 %v7367
  %7665 = vmatprep.subr.bf16.mxu0 %v7365
  %7666 = vmatpush1.bf16.msra.mxu0 %v7364
  %7667 = vmatprep.subr.bf16.mxu0 %v7362
  %7668 = vmatpush1.bf16.msra.mxu0 %v7361
  %7669 = vmatprep.subr.bf16.mxu0 %v7359
  %7670 = vmatpush1.bf16.msra.mxu0 %v7358
  %7671 = vmatprep.subr.bf16.mxu0 %v7356
  %7672 = vmatpush1.bf16.msra.mxu0 %v7355
  %7673 = vmatprep.subr.bf16.mxu0 %v7353
  %7674 = vmatpush1.bf16.msra.mxu0 %v7352
  %7675 = vmatprep.subr.bf16.mxu0 %v7350
  %7676 = vmatpush1.bf16.msra.mxu0 %v7349
  %7677 = vmatprep.subr.bf16.mxu0 %v7395
  %7678 = vmatpush2.bf16.msra.mxu0 %v7394
  %7679 = vmatprep.subr.bf16.mxu0 %v7392
  %7680 = vmatpush2.bf16.msra.mxu0 %v7391
  %7681 = vmatprep.subr.bf16.mxu0 %v7389
  %7682 = vmatpush2.bf16.msra.mxu0 %v7388
  %7683 = vmatprep.subr.bf16.mxu0 %v7386
  %7684 = vmatpush2.bf16.msra.mxu0 %v7385
  %7685 = vmatprep.subr.bf16.mxu0 %v7383
  %7686 = vmatpush2.bf16.msra.mxu0 %v7382
  %7687 = vmatprep.subr.bf16.mxu0 %v7380
  %7688 = vmatpush2.bf16.msra.mxu0 %v7379
  %7689 = vmatprep.subr.bf16.mxu0 %v7377
  %7690 = vmatpush2.bf16.msra.mxu0 %v7376
  %7691 = vmatprep.subr.bf16.mxu0 %v7374
  %7692 = vmatpush2.bf16.msra.mxu0 %v7373
  %7693 = vmatprep.mubr.bf16.mxu0 %v4770
  %7694 = vmatmul.mubr.bf16.gmra.mxu0 %v4769
  %v7695 = vpop.f32.mrf.mxu0
  %v7696 = vadd.f32 %v6394, %v7695
  %v7697 = vpop.f32.mrf.mxu0
  %v7698 = vadd.f32 %v6396, %v7697
  %v7699 = vpop.f32.mrf.mxu0
  %v7700 = vadd.f32 %v6398, %v7699
  %v7701 = vpop.f32.mrf.mxu0
  %v7702 = vadd.f32 %v6400, %v7701
  %7703 = vmatprep.mubr.bf16.mxu0 %v4782
  %7704 = vmatmul.mubr.bf16.gmra.mxu0 %v4781
  %v7705 = vpop.f32.mrf.mxu0
  %v7706 = vadd.f32 %v6404, %v7705
  %v7707 = vpop.f32.mrf.mxu0
  %v7708 = vadd.f32 %v6406, %v7707
  %v7709 = vpop.f32.mrf.mxu0
  %v7710 = vadd.f32 %v6408, %v7709
  %v7711 = vpop.f32.mrf.mxu0
  %v7712 = vadd.f32 %v6410, %v7711
  %7713 = vmatprep.mubr.bf16.mxu0 %v4794
  %7714 = vmatmul.mubr.bf16.gmra.mxu0 %v4793
  %v7715 = vpop.f32.mrf.mxu0
  %v7716 = vadd.f32 %v6414, %v7715
  %v7717 = vpop.f32.mrf.mxu0
  %v7718 = vadd.f32 %v6416, %v7717
  %v7719 = vpop.f32.mrf.mxu0
  %v7720 = vadd.f32 %v6418, %v7719
  %v7721 = vpop.f32.mrf.mxu0
  %v7722 = vadd.f32 %v6420, %v7721
  %7723 = vmatprep.mubr.bf16.mxu0 %v4806
  %7724 = vmatmul.mubr.bf16.gmra.mxu0 %v4805
  %v7725 = vpop.f32.mrf.mxu0
  %v7726 = vadd.f32 %v6424, %v7725
  %v7727 = vpop.f32.mrf.mxu0
  %v7728 = vadd.f32 %v6426, %v7727
  %v7729 = vpop.f32.mrf.mxu0
  %v7730 = vadd.f32 %v6428, %v7729
  %v7731 = vpop.f32.mrf.mxu0
  %v7732 = vadd.f32 %v6430, %v7731
  %7733 = vmatprep.mubr.bf16.mxu0 %v4818
  %7734 = vmatmul.mubr.bf16.gmra.mxu0 %v4817
  %v7735 = vpop.f32.mrf.mxu0
  %v7736 = vadd.f32 %v6434, %v7735
  %v7737 = vpop.f32.mrf.mxu0
  %v7738 = vadd.f32 %v6436, %v7737
  %v7739 = vpop.f32.mrf.mxu0
  %v7740 = vadd.f32 %v6438, %v7739
  %v7741 = vpop.f32.mrf.mxu0
  %v7742 = vadd.f32 %v6440, %v7741
  %7743 = vmatprep.mubr.bf16.mxu0 %v4830
  %7744 = vmatmul.mubr.bf16.gmra.mxu0 %v4829
  %v7745 = vpop.f32.mrf.mxu0
  %v7746 = vadd.f32 %v6444, %v7745
  %v7747 = vpop.f32.mrf.mxu0
  %v7748 = vadd.f32 %v6446, %v7747
  %v7749 = vpop.f32.mrf.mxu0
  %v7750 = vadd.f32 %v6448, %v7749
  %v7751 = vpop.f32.mrf.mxu0
  %v7752 = vadd.f32 %v6450, %v7751
  %7753 = vmatprep.mubr.bf16.mxu0 %v4842
  %7754 = vmatmul.mubr.bf16.gmra.mxu0 %v4841
  %v7755 = vpop.f32.mrf.mxu0
  %v7756 = vadd.f32 %v6454, %v7755
  %v7757 = vpop.f32.mrf.mxu0
  %v7758 = vadd.f32 %v6456, %v7757
  %v7759 = vpop.f32.mrf.mxu0
  %v7760 = vadd.f32 %v6458, %v7759
  %v7761 = vpop.f32.mrf.mxu0
  %v7762 = vadd.f32 %v6460, %v7761
  %7763 = vmatprep.mubr.bf16.mxu0 %v4854
  %7764 = vmatmul.mubr.bf16.gmra.mxu0 %v4853
  %v7765 = vpop.f32.mrf.mxu0
  %v7766 = vadd.f32 %v6464, %v7765
  %v7767 = vpop.f32.mrf.mxu0
  %v7768 = vadd.f32 %v6466, %v7767
  %v7769 = vpop.f32.mrf.mxu0
  %v7770 = vadd.f32 %v6468, %v7769
  %v7771 = vpop.f32.mrf.mxu0
  %v7772 = vadd.f32 %v6470, %v7771
  %7773 = vmatprep.mubr.bf16.mxu0 %v4866
  %7774 = vmatmul.mubr.bf16.gmra.mxu0 %v4865
  %v7775 = vpop.f32.mrf.mxu0
  %v7776 = vadd.f32 %v6474, %v7775
  %v7777 = vpop.f32.mrf.mxu0
  %v7778 = vadd.f32 %v6476, %v7777
  %v7779 = vpop.f32.mrf.mxu0
  %v7780 = vadd.f32 %v6478, %v7779
  %v7781 = vpop.f32.mrf.mxu0
  %v7782 = vadd.f32 %v6480, %v7781
  %7783 = vmatprep.mubr.bf16.mxu0 %v4878
  %7784 = vmatmul.mubr.bf16.gmra.mxu0 %v4877
  %v7785 = vpop.f32.mrf.mxu0
  %v7786 = vadd.f32 %v6484, %v7785
  %v7787 = vpop.f32.mrf.mxu0
  %v7788 = vadd.f32 %v6486, %v7787
  %v7789 = vpop.f32.mrf.mxu0
  %v7790 = vadd.f32 %v6488, %v7789
  %v7791 = vpop.f32.mrf.mxu0
  %v7792 = vadd.f32 %v6490, %v7791
  %7793 = vmatprep.mubr.bf16.mxu0 %v4890
  %7794 = vmatmul.mubr.bf16.gmra.mxu0 %v4889
  %v7795 = vpop.f32.mrf.mxu0
  %v7796 = vadd.f32 %v6494, %v7795
  %v7797 = vpop.f32.mrf.mxu0
  %v7798 = vadd.f32 %v6496, %v7797
  %v7799 = vpop.f32.mrf.mxu0
  %v7800 = vadd.f32 %v6498, %v7799
  %v7801 = vpop.f32.mrf.mxu0
  %v7802 = vadd.f32 %v6500, %v7801
  %7803 = vmatprep.mubr.bf16.mxu0 %v4902
  %7804 = vmatmul.mubr.bf16.gmra.mxu0 %v4901
  %v7805 = vpop.f32.mrf.mxu0
  %v7806 = vpop.f32.mrf.mxu0
  %v7807 = vpop.f32.mrf.mxu0
  %v7808 = vpop.f32.mrf.mxu0
  %7809 = vdwg.mxu0
  %7810 = vmatprep.subr.bf16.mxu0 %v7419
  %7811 = vmatpush1.bf16.msra.mxu0 %v7418
  %7812 = vmatprep.subr.bf16.mxu0 %v7416
  %7813 = vmatpush1.bf16.msra.mxu0 %v7415
  %7814 = vmatprep.subr.bf16.mxu0 %v7413
  %7815 = vmatpush1.bf16.msra.mxu0 %v7412
  %7816 = vmatprep.subr.bf16.mxu0 %v7410
  %7817 = vmatpush1.bf16.msra.mxu0 %v7409
  %7818 = vmatprep.subr.bf16.mxu0 %v7407
  %7819 = vmatpush1.bf16.msra.mxu0 %v7406
  %7820 = vmatprep.subr.bf16.mxu0 %v7404
  %7821 = vmatpush1.bf16.msra.mxu0 %v7403
  %7822 = vmatprep.subr.bf16.mxu0 %v7401
  %7823 = vmatpush1.bf16.msra.mxu0 %v7400
  %7824 = vmatprep.subr.bf16.mxu0 %v7398
  %7825 = vmatpush1.bf16.msra.mxu0 %v7397
  %7826 = vmatprep.subr.bf16.mxu0 %v7443
  %7827 = vmatpush2.bf16.msra.mxu0 %v7442
  %7828 = vmatprep.subr.bf16.mxu0 %v7440
  %7829 = vmatpush2.bf16.msra.mxu0 %v7439
  %7830 = vmatprep.subr.bf16.mxu0 %v7437
  %7831 = vmatpush2.bf16.msra.mxu0 %v7436
  %7832 = vmatprep.subr.bf16.mxu0 %v7434
  %7833 = vmatpush2.bf16.msra.mxu0 %v7433
  %7834 = vmatprep.subr.bf16.mxu0 %v7431
  %7835 = vmatpush2.bf16.msra.mxu0 %v7430
  %7836 = vmatprep.subr.bf16.mxu0 %v7428
  %7837 = vmatpush2.bf16.msra.mxu0 %v7427
  %7838 = vmatprep.subr.bf16.mxu0 %v7425
  %7839 = vmatpush2.bf16.msra.mxu0 %v7424
  %7840 = vmatprep.subr.bf16.mxu0 %v7422
  %7841 = vmatpush2.bf16.msra.mxu0 %v7421
  %7842 = vmatprep.mubr.bf16.mxu0 %v4772
  %7843 = vmatmul.mubr.bf16.gmra.mxu0 %v4771
  %v7844 = vpop.f32.mrf.mxu0
  %v7845 = vadd.f32 %v7696, %v7844
  %v7846 = vpop.f32.mrf.mxu0
  %v7847 = vadd.f32 %v7698, %v7846
  %v7848 = vpop.f32.mrf.mxu0
  %v7849 = vadd.f32 %v7700, %v7848
  %v7850 = vpop.f32.mrf.mxu0
  %v7851 = vadd.f32 %v7702, %v7850
  %7852 = vmatprep.mubr.bf16.mxu0 %v4784
  %7853 = vmatmul.mubr.bf16.gmra.mxu0 %v4783
  %v7854 = vpop.f32.mrf.mxu0
  %v7855 = vadd.f32 %v7706, %v7854
  %v7856 = vpop.f32.mrf.mxu0
  %v7857 = vadd.f32 %v7708, %v7856
  %v7858 = vpop.f32.mrf.mxu0
  %v7859 = vadd.f32 %v7710, %v7858
  %v7860 = vpop.f32.mrf.mxu0
  %v7861 = vadd.f32 %v7712, %v7860
  %7862 = vmatprep.mubr.bf16.mxu0 %v4796
  %7863 = vmatmul.mubr.bf16.gmra.mxu0 %v4795
  %v7864 = vpop.f32.mrf.mxu0
  %v7865 = vadd.f32 %v7716, %v7864
  %v7866 = vpop.f32.mrf.mxu0
  %v7867 = vadd.f32 %v7718, %v7866
  %v7868 = vpop.f32.mrf.mxu0
  %v7869 = vadd.f32 %v7720, %v7868
  %v7870 = vpop.f32.mrf.mxu0
  %v7871 = vadd.f32 %v7722, %v7870
  %7872 = vmatprep.mubr.bf16.mxu0 %v4808
  %7873 = vmatmul.mubr.bf16.gmra.mxu0 %v4807
  %v7874 = vpop.f32.mrf.mxu0
  %v7875 = vadd.f32 %v7726, %v7874
  %v7876 = vpop.f32.mrf.mxu0
  %v7877 = vadd.f32 %v7728, %v7876
  %v7878 = vpop.f32.mrf.mxu0
  %v7879 = vadd.f32 %v7730, %v7878
  %v7880 = vpop.f32.mrf.mxu0
  %v7881 = vadd.f32 %v7732, %v7880
  %7882 = vmatprep.mubr.bf16.mxu0 %v4820
  %7883 = vmatmul.mubr.bf16.gmra.mxu0 %v4819
  %v7884 = vpop.f32.mrf.mxu0
  %v7885 = vadd.f32 %v7736, %v7884
  %v7886 = vpop.f32.mrf.mxu0
  %v7887 = vadd.f32 %v7738, %v7886
  %v7888 = vpop.f32.mrf.mxu0
  %v7889 = vadd.f32 %v7740, %v7888
  %v7890 = vpop.f32.mrf.mxu0
  %v7891 = vadd.f32 %v7742, %v7890
  %7892 = vmatprep.mubr.bf16.mxu0 %v4832
  %7893 = vmatmul.mubr.bf16.gmra.mxu0 %v4831
  %v7894 = vpop.f32.mrf.mxu0
  %v7895 = vadd.f32 %v7746, %v7894
  %v7896 = vpop.f32.mrf.mxu0
  %v7897 = vadd.f32 %v7748, %v7896
  %v7898 = vpop.f32.mrf.mxu0
  %v7899 = vadd.f32 %v7750, %v7898
  %v7900 = vpop.f32.mrf.mxu0
  %v7901 = vadd.f32 %v7752, %v7900
  %7902 = vmatprep.mubr.bf16.mxu0 %v4844
  %7903 = vmatmul.mubr.bf16.gmra.mxu0 %v4843
  %v7904 = vpop.f32.mrf.mxu0
  %v7905 = vadd.f32 %v7756, %v7904
  %v7906 = vpop.f32.mrf.mxu0
  %v7907 = vadd.f32 %v7758, %v7906
  %v7908 = vpop.f32.mrf.mxu0
  %v7909 = vadd.f32 %v7760, %v7908
  %v7910 = vpop.f32.mrf.mxu0
  %v7911 = vadd.f32 %v7762, %v7910
  %7912 = vmatprep.mubr.bf16.mxu0 %v4856
  %7913 = vmatmul.mubr.bf16.gmra.mxu0 %v4855
  %v7914 = vpop.f32.mrf.mxu0
  %v7915 = vadd.f32 %v7766, %v7914
  %v7916 = vpop.f32.mrf.mxu0
  %v7917 = vadd.f32 %v7768, %v7916
  %v7918 = vpop.f32.mrf.mxu0
  %v7919 = vadd.f32 %v7770, %v7918
  %v7920 = vpop.f32.mrf.mxu0
  %v7921 = vadd.f32 %v7772, %v7920
  %7922 = vmatprep.mubr.bf16.mxu0 %v4868
  %7923 = vmatmul.mubr.bf16.gmra.mxu0 %v4867
  %v7924 = vpop.f32.mrf.mxu0
  %v7925 = vadd.f32 %v7776, %v7924
  %v7926 = vpop.f32.mrf.mxu0
  %v7927 = vadd.f32 %v7778, %v7926
  %v7928 = vpop.f32.mrf.mxu0
  %v7929 = vadd.f32 %v7780, %v7928
  %v7930 = vpop.f32.mrf.mxu0
  %v7931 = vadd.f32 %v7782, %v7930
  %7932 = vmatprep.mubr.bf16.mxu0 %v4880
  %7933 = vmatmul.mubr.bf16.gmra.mxu0 %v4879
  %v7934 = vpop.f32.mrf.mxu0
  %v7935 = vadd.f32 %v7786, %v7934
  %v7936 = vpop.f32.mrf.mxu0
  %v7937 = vadd.f32 %v7788, %v7936
  %v7938 = vpop.f32.mrf.mxu0
  %v7939 = vadd.f32 %v7790, %v7938
  %v7940 = vpop.f32.mrf.mxu0
  %v7941 = vadd.f32 %v7792, %v7940
  %7942 = vmatprep.mubr.bf16.mxu0 %v4892
  %7943 = vmatmul.mubr.bf16.gmra.mxu0 %v4891
  %v7944 = vpop.f32.mrf.mxu0
  %v7945 = vadd.f32 %v7796, %v7944
  %v7946 = vpop.f32.mrf.mxu0
  %v7947 = vadd.f32 %v7798, %v7946
  %v7948 = vpop.f32.mrf.mxu0
  %v7949 = vadd.f32 %v7800, %v7948
  %v7950 = vpop.f32.mrf.mxu0
  %v7951 = vadd.f32 %v7802, %v7950
  %7952 = vmatprep.mubr.bf16.mxu0 %v4904
  %7953 = vmatmul.mubr.bf16.gmra.mxu0 %v4903
  %v7954 = vpop.f32.mrf.mxu0
  %v7955 = vpop.f32.mrf.mxu0
  %v7956 = vpop.f32.mrf.mxu0
  %v7957 = vpop.f32.mrf.mxu0
  %7958 = vdwg.mxu0
  %7959 = vmatprep.subr.bf16.mxu0 %v7467
  %7960 = vmatpush1.bf16.msra.mxu0 %v7466
  %7961 = vmatprep.subr.bf16.mxu0 %v7464
  %7962 = vmatpush1.bf16.msra.mxu0 %v7463
  %7963 = vmatprep.subr.bf16.mxu0 %v7461
  %7964 = vmatpush1.bf16.msra.mxu0 %v7460
  %7965 = vmatprep.subr.bf16.mxu0 %v7458
  %7966 = vmatpush1.bf16.msra.mxu0 %v7457
  %7967 = vmatprep.subr.bf16.mxu0 %v7455
  %7968 = vmatpush1.bf16.msra.mxu0 %v7454
  %7969 = vmatprep.subr.bf16.mxu0 %v7452
  %7970 = vmatpush1.bf16.msra.mxu0 %v7451
  %7971 = vmatprep.subr.bf16.mxu0 %v7449
  %7972 = vmatpush1.bf16.msra.mxu0 %v7448
  %7973 = vmatprep.subr.bf16.mxu0 %v7446
  %7974 = vmatpush1.bf16.msra.mxu0 %v7445
  %7975 = vmatprep.subr.bf16.mxu0 0
  %7976 = vmatpush2.bf16.msra.mxu0 0
  %7977 = vmatprep.subr.bf16.mxu0 0
  %7978 = vmatpush2.bf16.msra.mxu0 0
  %7979 = vmatprep.subr.bf16.mxu0 %v7485
  %7980 = vmatpush2.bf16.msra.mxu0 %v7484
  %7981 = vmatprep.subr.bf16.mxu0 %v7482
  %7982 = vmatpush2.bf16.msra.mxu0 %v7481
  %7983 = vmatprep.subr.bf16.mxu0 %v7479
  %7984 = vmatpush2.bf16.msra.mxu0 %v7478
  %7985 = vmatprep.subr.bf16.mxu0 %v7476
  %7986 = vmatpush2.bf16.msra.mxu0 %v7475
  %7987 = vmatprep.subr.bf16.mxu0 %v7473
  %7988 = vmatpush2.bf16.msra.mxu0 %v7472
  %7989 = vmatprep.subr.bf16.mxu0 %v7470
  %7990 = vmatpush2.bf16.msra.mxu0 %v7469
  %7991 = vmatprep.mubr.bf16.mxu0 %v7626
  %7992 = vmatmul.mubr.bf16.gmra.mxu0 %v4773
  %v7993 = vpop.f32.mrf.mxu0
  %v7994 = vadd.f32 %v7845, %v7993
  %v7995 = vpop.f32.mrf.mxu0
  %v7996 = vadd.f32 %v7847, %v7995
  %v7997 = vpop.f32.mrf.mxu0
  %v7998 = vadd.f32 %v7849, %v7997
  %v7999 = vpop.f32.mrf.mxu0
  %v8000 = vadd.f32 %v7851, %v7999
  %8001 = vmatprep.mubr.bf16.mxu0 %v7629
  %8002 = vmatmul.mubr.bf16.gmra.mxu0 %v4785
  %v8003 = vpop.f32.mrf.mxu0
  %v8004 = vadd.f32 %v7855, %v8003
  %v8005 = vpop.f32.mrf.mxu0
  %v8006 = vadd.f32 %v7857, %v8005
  %v8007 = vpop.f32.mrf.mxu0
  %v8008 = vadd.f32 %v7859, %v8007
  %v8009 = vpop.f32.mrf.mxu0
  %v8010 = vadd.f32 %v7861, %v8009
  %8011 = vmatprep.mubr.bf16.mxu0 %v7632
  %8012 = vmatmul.mubr.bf16.gmra.mxu0 %v4797
  %v8013 = vpop.f32.mrf.mxu0
  %v8014 = vadd.f32 %v7865, %v8013
  %v8015 = vpop.f32.mrf.mxu0
  %v8016 = vadd.f32 %v7867, %v8015
  %v8017 = vpop.f32.mrf.mxu0
  %v8018 = vadd.f32 %v7869, %v8017
  %v8019 = vpop.f32.mrf.mxu0
  %v8020 = vadd.f32 %v7871, %v8019
  %8021 = vmatprep.mubr.bf16.mxu0 %v7635
  %8022 = vmatmul.mubr.bf16.gmra.mxu0 %v4809
  %v8023 = vpop.f32.mrf.mxu0
  %v8024 = vadd.f32 %v7875, %v8023
  %v8025 = vpop.f32.mrf.mxu0
  %v8026 = vadd.f32 %v7877, %v8025
  %v8027 = vpop.f32.mrf.mxu0
  %v8028 = vadd.f32 %v7879, %v8027
  %v8029 = vpop.f32.mrf.mxu0
  %v8030 = vadd.f32 %v7881, %v8029
  %8031 = vmatprep.mubr.bf16.mxu0 %v7638
  %8032 = vmatmul.mubr.bf16.gmra.mxu0 %v4821
  %v8033 = vpop.f32.mrf.mxu0
  %v8034 = vadd.f32 %v7885, %v8033
  %v8035 = vpop.f32.mrf.mxu0
  %v8036 = vadd.f32 %v7887, %v8035
  %v8037 = vpop.f32.mrf.mxu0
  %v8038 = vadd.f32 %v7889, %v8037
  %v8039 = vpop.f32.mrf.mxu0
  %v8040 = vadd.f32 %v7891, %v8039
  %8041 = vmatprep.mubr.bf16.mxu0 %v7641
  %8042 = vmatmul.mubr.bf16.gmra.mxu0 %v4833
  %v8043 = vpop.f32.mrf.mxu0
  %v8044 = vadd.f32 %v7895, %v8043
  %v8045 = vpop.f32.mrf.mxu0
  %v8046 = vadd.f32 %v7897, %v8045
  %v8047 = vpop.f32.mrf.mxu0
  %v8048 = vadd.f32 %v7899, %v8047
  %v8049 = vpop.f32.mrf.mxu0
  %v8050 = vadd.f32 %v7901, %v8049
  %8051 = vmatprep.mubr.bf16.mxu0 %v7644
  %8052 = vmatmul.mubr.bf16.gmra.mxu0 %v4845
  %v8053 = vpop.f32.mrf.mxu0
  %v8054 = vadd.f32 %v7905, %v8053
  %v8055 = vpop.f32.mrf.mxu0
  %v8056 = vadd.f32 %v7907, %v8055
  %v8057 = vpop.f32.mrf.mxu0
  %v8058 = vadd.f32 %v7909, %v8057
  %v8059 = vpop.f32.mrf.mxu0
  %v8060 = vadd.f32 %v7911, %v8059
  %8061 = vmatprep.mubr.bf16.mxu0 %v7647
  %8062 = vmatmul.mubr.bf16.gmra.mxu0 %v4857
  %v8063 = vpop.f32.mrf.mxu0
  %v8064 = vadd.f32 %v7915, %v8063
  %v8065 = vpop.f32.mrf.mxu0
  %v8066 = vadd.f32 %v7917, %v8065
  %v8067 = vpop.f32.mrf.mxu0
  %v8068 = vadd.f32 %v7919, %v8067
  %v8069 = vpop.f32.mrf.mxu0
  %v8070 = vadd.f32 %v7921, %v8069
  %8071 = vmatprep.mubr.bf16.mxu0 %v7650
  %8072 = vmatmul.mubr.bf16.gmra.mxu0 %v4869
  %v8073 = vpop.f32.mrf.mxu0
  %v8074 = vadd.f32 %v7925, %v8073
  %v8075 = vpop.f32.mrf.mxu0
  %v8076 = vadd.f32 %v7927, %v8075
  %v8077 = vpop.f32.mrf.mxu0
  %v8078 = vadd.f32 %v7929, %v8077
  %v8079 = vpop.f32.mrf.mxu0
  %v8080 = vadd.f32 %v7931, %v8079
  %8081 = vmatprep.mubr.bf16.mxu0 %v7653
  %8082 = vmatmul.mubr.bf16.gmra.mxu0 %v4881
  %v8083 = vpop.f32.mrf.mxu0
  %v8084 = vadd.f32 %v7935, %v8083
  %v8085 = vpop.f32.mrf.mxu0
  %v8086 = vadd.f32 %v7937, %v8085
  %v8087 = vpop.f32.mrf.mxu0
  %v8088 = vadd.f32 %v7939, %v8087
  %v8089 = vpop.f32.mrf.mxu0
  %v8090 = vadd.f32 %v7941, %v8089
  %8091 = vmatprep.mubr.bf16.mxu0 %v7656
  %8092 = vmatmul.mubr.bf16.gmra.mxu0 %v4893
  %v8093 = vpop.f32.mrf.mxu0
  %v8094 = vadd.f32 %v7945, %v8093
  %v8095 = vpop.f32.mrf.mxu0
  %v8096 = vadd.f32 %v7947, %v8095
  %v8097 = vpop.f32.mrf.mxu0
  %v8098 = vadd.f32 %v7949, %v8097
  %v8099 = vpop.f32.mrf.mxu0
  %v8100 = vadd.f32 %v7951, %v8099
  %8101 = vmatprep.mubr.bf16.mxu0 %v7659
  %8102 = vmatmul.mubr.bf16.gmra.mxu0 %v4905
  %v8103 = vpop.f32.mrf.mxu0
  %v8104 = vpop.f32.mrf.mxu0
  %v8105 = vpop.f32.mrf.mxu0
  %v8106 = vpop.f32.mrf.mxu0
  %8107 = vdwg.mxu0
  %8108 = vmatprep.subr.bf16.mxu0 0
  %8109 = vmatpush1.bf16.msra.mxu0 %v7372
  %8110 = vmatprep.subr.bf16.mxu0 0
  %8111 = vmatpush1.bf16.msra.mxu0 %v7369
  %8112 = vmatprep.subr.bf16.mxu0 0
  %8113 = vmatpush1.bf16.msra.mxu0 %v7366
  %8114 = vmatprep.subr.bf16.mxu0 0
  %8115 = vmatpush1.bf16.msra.mxu0 %v7363
  %8116 = vmatprep.subr.bf16.mxu0 0
  %8117 = vmatpush1.bf16.msra.mxu0 %v7360
  %8118 = vmatprep.subr.bf16.mxu0 0
  %8119 = vmatpush1.bf16.msra.mxu0 %v7357
  %8120 = vmatprep.subr.bf16.mxu0 0
  %8121 = vmatpush1.bf16.msra.mxu0 %v7354
  %8122 = vmatprep.subr.bf16.mxu0 0
  %8123 = vmatpush1.bf16.msra.mxu0 %v7351
  %8124 = vmatprep.subr.bf16.mxu0 0
  %8125 = vmatpush2.bf16.msra.mxu0 %v7396
  %8126 = vmatprep.subr.bf16.mxu0 0
  %8127 = vmatpush2.bf16.msra.mxu0 %v7393
  %8128 = vmatprep.subr.bf16.mxu0 0
  %8129 = vmatpush2.bf16.msra.mxu0 %v7390
  %8130 = vmatprep.subr.bf16.mxu0 0
  %8131 = vmatpush2.bf16.msra.mxu0 %v7387
  %8132 = vmatprep.subr.bf16.mxu0 0
  %8133 = vmatpush2.bf16.msra.mxu0 %v7384
  %8134 = vmatprep.subr.bf16.mxu0 0
  %8135 = vmatpush2.bf16.msra.mxu0 %v7381
  %8136 = vmatprep.subr.bf16.mxu0 0
  %8137 = vmatpush2.bf16.msra.mxu0 %v7378
  %8138 = vmatprep.subr.bf16.mxu0 0
  %8139 = vmatpush2.bf16.msra.mxu0 %v7375
  %8140 = vmatprep.mubr.bf16.mxu0 %v4770
  %8141 = vmatmul.mubr.bf16.gmra.mxu0 %v4769
  %v8142 = vpop.f32.mrf.mxu0
  %v8143 = vadd.f32 %v6797, %v8142
  %v8144 = vpop.f32.mrf.mxu0
  %v8145 = vpop.f32.mrf.mxu0
  %v8146 = vadd.f32 %v6800, %v8145
  %v8147 = vpop.f32.mrf.mxu0
  %8148 = vmatprep.mubr.bf16.mxu0 %v4782
  %8149 = vmatmul.mubr.bf16.gmra.mxu0 %v4781
  %v8150 = vpop.f32.mrf.mxu0
  %v8151 = vadd.f32 %v6805, %v8150
  %v8152 = vpop.f32.mrf.mxu0
  %v8153 = vpop.f32.mrf.mxu0
  %v8154 = vadd.f32 %v6808, %v8153
  %v8155 = vpop.f32.mrf.mxu0
  %8156 = vmatprep.mubr.bf16.mxu0 %v4794
  %8157 = vmatmul.mubr.bf16.gmra.mxu0 %v4793
  %v8158 = vpop.f32.mrf.mxu0
  %v8159 = vadd.f32 %v6813, %v8158
  %v8160 = vpop.f32.mrf.mxu0
  %v8161 = vpop.f32.mrf.mxu0
  %v8162 = vadd.f32 %v6816, %v8161
  %v8163 = vpop.f32.mrf.mxu0
  %8164 = vmatprep.mubr.bf16.mxu0 %v4806
  %8165 = vmatmul.mubr.bf16.gmra.mxu0 %v4805
  %v8166 = vpop.f32.mrf.mxu0
  %v8167 = vadd.f32 %v6821, %v8166
  %v8168 = vpop.f32.mrf.mxu0
  %v8169 = vpop.f32.mrf.mxu0
  %v8170 = vadd.f32 %v6824, %v8169
  %v8171 = vpop.f32.mrf.mxu0
  %8172 = vmatprep.mubr.bf16.mxu0 %v4818
  %8173 = vmatmul.mubr.bf16.gmra.mxu0 %v4817
  %v8174 = vpop.f32.mrf.mxu0
  %v8175 = vadd.f32 %v6829, %v8174
  %v8176 = vpop.f32.mrf.mxu0
  %v8177 = vpop.f32.mrf.mxu0
  %v8178 = vadd.f32 %v6832, %v8177
  %v8179 = vpop.f32.mrf.mxu0
  %8180 = vmatprep.mubr.bf16.mxu0 %v4830
  %8181 = vmatmul.mubr.bf16.gmra.mxu0 %v4829
  %v8182 = vpop.f32.mrf.mxu0
  %v8183 = vadd.f32 %v6837, %v8182
  %v8184 = vpop.f32.mrf.mxu0
  %v8185 = vpop.f32.mrf.mxu0
  %v8186 = vadd.f32 %v6840, %v8185
  %v8187 = vpop.f32.mrf.mxu0
  %8188 = vmatprep.mubr.bf16.mxu0 %v4842
  %8189 = vmatmul.mubr.bf16.gmra.mxu0 %v4841
  %v8190 = vpop.f32.mrf.mxu0
  %v8191 = vadd.f32 %v6845, %v8190
  %v8192 = vpop.f32.mrf.mxu0
  %v8193 = vpop.f32.mrf.mxu0
  %v8194 = vadd.f32 %v6848, %v8193
  %v8195 = vpop.f32.mrf.mxu0
  %8196 = vmatprep.mubr.bf16.mxu0 %v4854
  %8197 = vmatmul.mubr.bf16.gmra.mxu0 %v4853
  %v8198 = vpop.f32.mrf.mxu0
  %v8199 = vadd.f32 %v6853, %v8198
  %v8200 = vpop.f32.mrf.mxu0
  %v8201 = vpop.f32.mrf.mxu0
  %v8202 = vadd.f32 %v6856, %v8201
  %v8203 = vpop.f32.mrf.mxu0
  %8204 = vmatprep.mubr.bf16.mxu0 %v4866
  %8205 = vmatmul.mubr.bf16.gmra.mxu0 %v4865
  %v8206 = vpop.f32.mrf.mxu0
  %v8207 = vadd.f32 %v6861, %v8206
  %v8208 = vpop.f32.mrf.mxu0
  %v8209 = vpop.f32.mrf.mxu0
  %v8210 = vadd.f32 %v6864, %v8209
  %v8211 = vpop.f32.mrf.mxu0
  %8212 = vmatprep.mubr.bf16.mxu0 %v4878
  %8213 = vmatmul.mubr.bf16.gmra.mxu0 %v4877
  %v8214 = vpop.f32.mrf.mxu0
  %v8215 = vadd.f32 %v6869, %v8214
  %v8216 = vpop.f32.mrf.mxu0
  %v8217 = vpop.f32.mrf.mxu0
  %v8218 = vadd.f32 %v6872, %v8217
  %v8219 = vpop.f32.mrf.mxu0
  %8220 = vmatprep.mubr.bf16.mxu0 %v4890
  %8221 = vmatmul.mubr.bf16.gmra.mxu0 %v4889
  %v8222 = vpop.f32.mrf.mxu0
  %v8223 = vadd.f32 %v6877, %v8222
  %v8224 = vpop.f32.mrf.mxu0
  %v8225 = vpop.f32.mrf.mxu0
  %v8226 = vadd.f32 %v6880, %v8225
  %v8227 = vpop.f32.mrf.mxu0
  %8228 = vmatprep.mubr.bf16.mxu0 %v4902
  %8229 = vmatmul.mubr.bf16.gmra.mxu0 %v4901
  %v8230 = vpop.f32.mrf.mxu0
  %v8231 = vpop.f32.mrf.mxu0
  %v8232 = vpop.f32.mrf.mxu0
  %v8233 = vpop.f32.mrf.mxu0
  %8234 = vdwg.mxu0
  %8235 = vmatprep.subr.bf16.mxu0 0
  %8236 = vmatpush1.bf16.msra.mxu0 %v7420
  %8237 = vmatprep.subr.bf16.mxu0 0
  %8238 = vmatpush1.bf16.msra.mxu0 %v7417
  %8239 = vmatprep.subr.bf16.mxu0 0
  %8240 = vmatpush1.bf16.msra.mxu0 %v7414
  %8241 = vmatprep.subr.bf16.mxu0 0
  %8242 = vmatpush1.bf16.msra.mxu0 %v7411
  %8243 = vmatprep.subr.bf16.mxu0 0
  %8244 = vmatpush1.bf16.msra.mxu0 %v7408
  %8245 = vmatprep.subr.bf16.mxu0 0
  %8246 = vmatpush1.bf16.msra.mxu0 %v7405
  %8247 = vmatprep.subr.bf16.mxu0 0
  %8248 = vmatpush1.bf16.msra.mxu0 %v7402
  %8249 = vmatprep.subr.bf16.mxu0 0
  %8250 = vmatpush1.bf16.msra.mxu0 %v7399
  %8251 = vmatprep.subr.bf16.mxu0 0
  %8252 = vmatpush2.bf16.msra.mxu0 %v7444
  %8253 = vmatprep.subr.bf16.mxu0 0
  %8254 = vmatpush2.bf16.msra.mxu0 %v7441
  %8255 = vmatprep.subr.bf16.mxu0 0
  %8256 = vmatpush2.bf16.msra.mxu0 %v7438
  %8257 = vmatprep.subr.bf16.mxu0 0
  %8258 = vmatpush2.bf16.msra.mxu0 %v7435
  %8259 = vmatprep.subr.bf16.mxu0 0
  %8260 = vmatpush2.bf16.msra.mxu0 %v7432
  %8261 = vmatprep.subr.bf16.mxu0 0
  %8262 = vmatpush2.bf16.msra.mxu0 %v7429
  %8263 = vmatprep.subr.bf16.mxu0 0
  %8264 = vmatpush2.bf16.msra.mxu0 %v7426
  %8265 = vmatprep.subr.bf16.mxu0 0
  %8266 = vmatpush2.bf16.msra.mxu0 %v7423
  %8267 = vmatprep.mubr.bf16.mxu0 %v4772
  %8268 = vmatmul.mubr.bf16.gmra.mxu0 %v4771
  %v8269 = vpop.f32.mrf.mxu0
  %v8270 = vadd.f32 %v8143, %v8269
  %v8271 = vpop.f32.mrf.mxu0
  %v8272 = vpop.f32.mrf.mxu0
  %v8273 = vadd.f32 %v8146, %v8272
  %v8274 = vpop.f32.mrf.mxu0
  %8275 = vmatprep.mubr.bf16.mxu0 %v4784
  %8276 = vmatmul.mubr.bf16.gmra.mxu0 %v4783
  %v8277 = vpop.f32.mrf.mxu0
  %v8278 = vadd.f32 %v8151, %v8277
  %v8279 = vpop.f32.mrf.mxu0
  %v8280 = vpop.f32.mrf.mxu0
  %v8281 = vadd.f32 %v8154, %v8280
  %v8282 = vpop.f32.mrf.mxu0
  %8283 = vmatprep.mubr.bf16.mxu0 %v4796
  %8284 = vmatmul.mubr.bf16.gmra.mxu0 %v4795
  %v8285 = vpop.f32.mrf.mxu0
  %v8286 = vadd.f32 %v8159, %v8285
  %v8287 = vpop.f32.mrf.mxu0
  %v8288 = vpop.f32.mrf.mxu0
  %v8289 = vadd.f32 %v8162, %v8288
  %v8290 = vpop.f32.mrf.mxu0
  %8291 = vmatprep.mubr.bf16.mxu0 %v4808
  %8292 = vmatmul.mubr.bf16.gmra.mxu0 %v4807
  %v8293 = vpop.f32.mrf.mxu0
  %v8294 = vadd.f32 %v8167, %v8293
  %v8295 = vpop.f32.mrf.mxu0
  %v8296 = vpop.f32.mrf.mxu0
  %v8297 = vadd.f32 %v8170, %v8296
  %v8298 = vpop.f32.mrf.mxu0
  %8299 = vmatprep.mubr.bf16.mxu0 %v4820
  %8300 = vmatmul.mubr.bf16.gmra.mxu0 %v4819
  %v8301 = vpop.f32.mrf.mxu0
  %v8302 = vadd.f32 %v8175, %v8301
  %v8303 = vpop.f32.mrf.mxu0
  %v8304 = vpop.f32.mrf.mxu0
  %v8305 = vadd.f32 %v8178, %v8304
  %v8306 = vpop.f32.mrf.mxu0
  %8307 = vmatprep.mubr.bf16.mxu0 %v4832
  %8308 = vmatmul.mubr.bf16.gmra.mxu0 %v4831
  %v8309 = vpop.f32.mrf.mxu0
  %v8310 = vadd.f32 %v8183, %v8309
  %v8311 = vpop.f32.mrf.mxu0
  %v8312 = vpop.f32.mrf.mxu0
  %v8313 = vadd.f32 %v8186, %v8312
  %v8314 = vpop.f32.mrf.mxu0
  %8315 = vmatprep.mubr.bf16.mxu0 %v4844
  %8316 = vmatmul.mubr.bf16.gmra.mxu0 %v4843
  %v8317 = vpop.f32.mrf.mxu0
  %v8318 = vadd.f32 %v8191, %v8317
  %v8319 = vpop.f32.mrf.mxu0
  %v8320 = vpop.f32.mrf.mxu0
  %v8321 = vadd.f32 %v8194, %v8320
  %v8322 = vpop.f32.mrf.mxu0
  %8323 = vmatprep.mubr.bf16.mxu0 %v4856
  %8324 = vmatmul.mubr.bf16.gmra.mxu0 %v4855
  %v8325 = vpop.f32.mrf.mxu0
  %v8326 = vadd.f32 %v8199, %v8325
  %v8327 = vpop.f32.mrf.mxu0
  %v8328 = vpop.f32.mrf.mxu0
  %v8329 = vadd.f32 %v8202, %v8328
  %v8330 = vpop.f32.mrf.mxu0
  %8331 = vmatprep.mubr.bf16.mxu0 %v4868
  %8332 = vmatmul.mubr.bf16.gmra.mxu0 %v4867
  %v8333 = vpop.f32.mrf.mxu0
  %v8334 = vadd.f32 %v8207, %v8333
  %v8335 = vpop.f32.mrf.mxu0
  %v8336 = vpop.f32.mrf.mxu0
  %v8337 = vadd.f32 %v8210, %v8336
  %v8338 = vpop.f32.mrf.mxu0
  %8339 = vmatprep.mubr.bf16.mxu0 %v4880
  %8340 = vmatmul.mubr.bf16.gmra.mxu0 %v4879
  %v8341 = vpop.f32.mrf.mxu0
  %v8342 = vadd.f32 %v8215, %v8341
  %v8343 = vpop.f32.mrf.mxu0
  %v8344 = vpop.f32.mrf.mxu0
  %v8345 = vadd.f32 %v8218, %v8344
  %v8346 = vpop.f32.mrf.mxu0
  %8347 = vmatprep.mubr.bf16.mxu0 %v4892
  %8348 = vmatmul.mubr.bf16.gmra.mxu0 %v4891
  %v8349 = vpop.f32.mrf.mxu0
  %v8350 = vadd.f32 %v8223, %v8349
  %v8351 = vpop.f32.mrf.mxu0
  %v8352 = vpop.f32.mrf.mxu0
  %v8353 = vadd.f32 %v8226, %v8352
  %v8354 = vpop.f32.mrf.mxu0
  %8355 = vmatprep.mubr.bf16.mxu0 %v4904
  %8356 = vmatmul.mubr.bf16.gmra.mxu0 %v4903
  %v8357 = vpop.f32.mrf.mxu0
  %v8358 = vpop.f32.mrf.mxu0
  %v8359 = vpop.f32.mrf.mxu0
  %v8360 = vpop.f32.mrf.mxu0
  %8361 = vdwg.mxu0
  %8362 = vmatprep.subr.bf16.mxu0 0
  %8363 = vmatpush1.bf16.msra.mxu0 %v7468
  %8364 = vmatprep.subr.bf16.mxu0 0
  %8365 = vmatpush1.bf16.msra.mxu0 %v7465
  %8366 = vmatprep.subr.bf16.mxu0 0
  %8367 = vmatpush1.bf16.msra.mxu0 %v7462
  %8368 = vmatprep.subr.bf16.mxu0 0
  %8369 = vmatpush1.bf16.msra.mxu0 %v7459
  %8370 = vmatprep.subr.bf16.mxu0 0
  %8371 = vmatpush1.bf16.msra.mxu0 %v7456
  %8372 = vmatprep.subr.bf16.mxu0 0
  %8373 = vmatpush1.bf16.msra.mxu0 %v7453
  %8374 = vmatprep.subr.bf16.mxu0 0
  %8375 = vmatpush1.bf16.msra.mxu0 %v7450
  %8376 = vmatprep.subr.bf16.mxu0 0
  %8377 = vmatpush1.bf16.msra.mxu0 %v7447
  %8378 = vmatprep.subr.bf16.mxu0 0
  %8379 = vmatpush2.bf16.msra.mxu0 0
  %8380 = vmatprep.subr.bf16.mxu0 0
  %8381 = vmatpush2.bf16.msra.mxu0 0
  %8382 = vmatprep.subr.bf16.mxu0 0
  %8383 = vmatpush2.bf16.msra.mxu0 %v7486
  %8384 = vmatprep.subr.bf16.mxu0 0
  %8385 = vmatpush2.bf16.msra.mxu0 %v7483
  %8386 = vmatprep.subr.bf16.mxu0 0
  %8387 = vmatpush2.bf16.msra.mxu0 %v7480
  %8388 = vmatprep.subr.bf16.mxu0 0
  %8389 = vmatpush2.bf16.msra.mxu0 %v7477
  %8390 = vmatprep.subr.bf16.mxu0 0
  %8391 = vmatpush2.bf16.msra.mxu0 %v7474
  %8392 = vmatprep.subr.bf16.mxu0 0
  %8393 = vmatpush2.bf16.msra.mxu0 %v7471
  %8394 = vmatprep.mubr.bf16.mxu0 %v7626
  %8395 = vmatmul.mubr.bf16.gmra.mxu0 %v4773
  %v8396 = vpop.f32.mrf.mxu0
  %v8397 = vadd.f32 %v8270, %v8396
  %v8398 = vpop.f32.mrf.mxu0
  %v8399 = vpop.f32.mrf.mxu0
  %v8400 = vadd.f32 %v8273, %v8399
  %v8401 = vpop.f32.mrf.mxu0
  %8402 = vmatprep.mubr.bf16.mxu0 %v7629
  %8403 = vmatmul.mubr.bf16.gmra.mxu0 %v4785
  %v8404 = vpop.f32.mrf.mxu0
  %v8405 = vadd.f32 %v8278, %v8404
  %v8406 = vpop.f32.mrf.mxu0
  %v8407 = vpop.f32.mrf.mxu0
  %v8408 = vadd.f32 %v8281, %v8407
  %v8409 = vpop.f32.mrf.mxu0
  %8410 = vmatprep.mubr.bf16.mxu0 %v7632
  %8411 = vmatmul.mubr.bf16.gmra.mxu0 %v4797
  %v8412 = vpop.f32.mrf.mxu0
  %v8413 = vadd.f32 %v8286, %v8412
  %v8414 = vpop.f32.mrf.mxu0
  %v8415 = vpop.f32.mrf.mxu0
  %v8416 = vadd.f32 %v8289, %v8415
  %v8417 = vpop.f32.mrf.mxu0
  %8418 = vmatprep.mubr.bf16.mxu0 %v7635
  %8419 = vmatmul.mubr.bf16.gmra.mxu0 %v4809
  %v8420 = vpop.f32.mrf.mxu0
  %v8421 = vadd.f32 %v8294, %v8420
  %v8422 = vpop.f32.mrf.mxu0
  %v8423 = vpop.f32.mrf.mxu0
  %v8424 = vadd.f32 %v8297, %v8423
  %v8425 = vpop.f32.mrf.mxu0
  %8426 = vmatprep.mubr.bf16.mxu0 %v7638
  %8427 = vmatmul.mubr.bf16.gmra.mxu0 %v4821
  %v8428 = vpop.f32.mrf.mxu0
  %v8429 = vadd.f32 %v8302, %v8428
  %v8430 = vpop.f32.mrf.mxu0
  %v8431 = vpop.f32.mrf.mxu0
  %v8432 = vadd.f32 %v8305, %v8431
  %v8433 = vpop.f32.mrf.mxu0
  %8434 = vmatprep.mubr.bf16.mxu0 %v7641
  %8435 = vmatmul.mubr.bf16.gmra.mxu0 %v4833
  %v8436 = vpop.f32.mrf.mxu0
  %v8437 = vadd.f32 %v8310, %v8436
  %v8438 = vpop.f32.mrf.mxu0
  %v8439 = vpop.f32.mrf.mxu0
  %v8440 = vadd.f32 %v8313, %v8439
  %v8441 = vpop.f32.mrf.mxu0
  %8442 = vmatprep.mubr.bf16.mxu0 %v7644
  %8443 = vmatmul.mubr.bf16.gmra.mxu0 %v4845
  %v8444 = vpop.f32.mrf.mxu0
  %v8445 = vadd.f32 %v8318, %v8444
  %v8446 = vpop.f32.mrf.mxu0
  %v8447 = vpop.f32.mrf.mxu0
  %v8448 = vadd.f32 %v8321, %v8447
  %v8449 = vpop.f32.mrf.mxu0
  %8450 = vmatprep.mubr.bf16.mxu0 %v7647
  %8451 = vmatmul.mubr.bf16.gmra.mxu0 %v4857
  %v8452 = vpop.f32.mrf.mxu0
  %v8453 = vadd.f32 %v8326, %v8452
  %v8454 = vpop.f32.mrf.mxu0
  %v8455 = vpop.f32.mrf.mxu0
  %v8456 = vadd.f32 %v8329, %v8455
  %v8457 = vpop.f32.mrf.mxu0
  %8458 = vmatprep.mubr.bf16.mxu0 %v7650
  %8459 = vmatmul.mubr.bf16.gmra.mxu0 %v4869
  %v8460 = vpop.f32.mrf.mxu0
  %v8461 = vadd.f32 %v8334, %v8460
  %v8462 = vpop.f32.mrf.mxu0
  %v8463 = vpop.f32.mrf.mxu0
  %v8464 = vadd.f32 %v8337, %v8463
  %v8465 = vpop.f32.mrf.mxu0
  %8466 = vmatprep.mubr.bf16.mxu0 %v7653
  %8467 = vmatmul.mubr.bf16.gmra.mxu0 %v4881
  %v8468 = vpop.f32.mrf.mxu0
  %v8469 = vadd.f32 %v8342, %v8468
  %v8470 = vpop.f32.mrf.mxu0
  %v8471 = vpop.f32.mrf.mxu0
  %v8472 = vadd.f32 %v8345, %v8471
  %v8473 = vpop.f32.mrf.mxu0
  %8474 = vmatprep.mubr.bf16.mxu0 %v7656
  %8475 = vmatmul.mubr.bf16.gmra.mxu0 %v4893
  %v8476 = vpop.f32.mrf.mxu0
  %v8477 = vadd.f32 %v8350, %v8476
  %v8478 = vpop.f32.mrf.mxu0
  %v8479 = vpop.f32.mrf.mxu0
  %v8480 = vadd.f32 %v8353, %v8479
  %v8481 = vpop.f32.mrf.mxu0
  %8482 = vmatprep.mubr.bf16.mxu0 %v7659
  %8483 = vmatmul.mubr.bf16.gmra.mxu0 %v4905
  %v8484 = vpop.f32.mrf.mxu0
  %v8485 = vpop.f32.mrf.mxu0
  %v8486 = vpop.f32.mrf.mxu0
  %v8487 = vpop.f32.mrf.mxu0
  %8488 = vdwg.mxu0
  %s8489 = scalar_lea.vmem %s3, 2208
  %v8490 = vld [vmem:[%s8489] sm:$0xff]
  %v8491 = vld [vmem:[%s8489 + $0x8] sm:$0xf]
  %v8492 = vld [vmem:[%s8489 + $0xc] sm:$0xff]
  %v8493 = vld [vmem:[%s8489 + $0x14] sm:$0xf]
  %v8494 = vld [vmem:[%s8489 + $0x18] sm:$0xff]
  %v8495 = vld [vmem:[%s8489 + $0x20] sm:$0xf]
  %v8496 = vld [vmem:[%s8489 + $0x24] sm:$0xff]
  %v8497 = vld [vmem:[%s8489 + $0x2c] sm:$0xf]
  %v8498 = vld [vmem:[%s8489 + $0x30] sm:$0xff]
  %v8499 = vld [vmem:[%s8489 + $0x38] sm:$0xf]
  %v8500 = vld [vmem:[%s8489 + $0x3c] sm:$0xff]
  %v8501 = vld [vmem:[%s8489 + $0x44] sm:$0xf]
  %v8502 = vld [vmem:[%s8489 + $0x48] sm:$0xff]
  %v8503 = vld [vmem:[%s8489 + $0x50] sm:$0xf]
  %v8504 = vld [vmem:[%s8489 + $0x54] sm:$0xff]
  %v8505 = vld [vmem:[%s8489 + $0x5c] sm:$0xf]
  %v8506 = vld [vmem:[%s8489 + $0x60] sm:$0xff]
  %v8507 = vld [vmem:[%s8489 + $0x68] sm:$0xf]
  %v8508 = vld [vmem:[%s8489 + $0x6c] sm:$0xff]
  %v8509 = vld [vmem:[%s8489 + $0x74] sm:$0xf]
  %v8510 = vld [vmem:[%s8489 + $0x78] sm:$0xff]
  %v8511 = vld [vmem:[%s8489 + $0x80] sm:$0xf]
  %v8512 = vld [vmem:[%s8489 + $0x84] sm:$0xff]
  %v8513 = vld [vmem:[%s8489 + $0x8c] sm:$0xf]
  %v8514 = vld [vmem:[%s8489 + $0x90] sm:$0xff]
  %v8515 = vld [vmem:[%s8489 + $0x98] sm:$0xf]
  %v8516 = vld [vmem:[%s8489 + $0x9c] sm:$0xff]
  %v8517 = vld [vmem:[%s8489 + $0xa4] sm:$0xf]
  %v8518 = vld [vmem:[%s8489 + $0xa8] sm:$0xff]
  %v8519 = vld [vmem:[%s8489 + $0xb0] sm:$0xf]
  %v8520 = vld [vmem:[%s8489 + $0xb4] sm:$0xff]
  %v8521 = vld [vmem:[%s8489 + $0xbc] sm:$0xf]
  %v8522 = vld [vmem:[%s8489 + $0xc0] sm:$0xff]
  %v8523 = vld [vmem:[%s8489 + $0xc8] sm:$0xf]
  %v8524 = vld [vmem:[%s8489 + $0xcc] sm:$0xff]
  %v8525 = vld [vmem:[%s8489 + $0xd4] sm:$0xf]
  %v8526 = vld [vmem:[%s8489 + $0xd8] sm:$0xff]
  %v8527 = vld [vmem:[%s8489 + $0xe0] sm:$0xf]
  %v8528 = vld [vmem:[%s8489 + $0xe4] sm:$0xff]
  %v8529 = vld [vmem:[%s8489 + $0xec] sm:$0xf]
  %v8530 = vld [vmem:[%s8489 + $0xf0] sm:$0xff]
  %v8531 = vld [vmem:[%s8489 + $0xf8] sm:$0xf]
  %v8532 = vld [vmem:[%s8489 + $0xfc] sm:$0xff]
  %v8533 = vld [vmem:[%s8489 + $0x104] sm:$0xf]
  %v8534 = vld [vmem:[%s8489 + $0x108] sm:$0xff]
  %v8535 = vld [vmem:[%s8489 + $0x110] sm:$0xf]
  %v8536 = vld [vmem:[%s8489 + $0x114] sm:$0xff]
  %v8537 = vld [vmem:[%s8489 + $0x11c] sm:$0xf]
  %v8538 = vld [vmem:[%s8489 + $0x120] sm:$0xff]
  %v8539 = vld [vmem:[%s8489 + $0x128] sm:$0xf]
  %v8540 = vld [vmem:[%s8489 + $0x12c] sm:$0xff]
  %v8541 = vld [vmem:[%s8489 + $0x134] sm:$0xf]
  %v8542 = vld [vmem:[%s8489 + $0x138] sm:$0xff]
  %v8543 = vld [vmem:[%s8489 + $0x140] sm:$0xf]
  %v8544 = vld [vmem:[%s8489 + $0x144] sm:$0xff]
  %v8545 = vld [vmem:[%s8489 + $0x14c] sm:$0xf]
  %v8546 = vld [vmem:[%s8489 + $0x150] sm:$0xff]
  %v8547 = vld [vmem:[%s8489 + $0x158] sm:$0xf]
  %v8548 = vld [vmem:[%s8489 + $0x15c] sm:$0xff]
  %v8549 = vld [vmem:[%s8489 + $0x164] sm:$0xf]
  %v8550 = vld [vmem:[%s8489 + $0x168] sm:$0xff]
  %v8551 = vld [vmem:[%s8489 + $0x170] sm:$0xf]
  %v8552 = vld [vmem:[%s8489 + $0x174] sm:$0xff]
  %v8553 = vld [vmem:[%s8489 + $0x17c] sm:$0xf]
  %v8554 = vld [vmem:[%s8489 + $0x180] sm:$0xff]
  %v8555 = vld [vmem:[%s8489 + $0x188] sm:$0xf]
  %v8556 = vld [vmem:[%s8489 + $0x18c] sm:$0xff]
  %v8557 = vld [vmem:[%s8489 + $0x194] sm:$0xf]
  %v8558 = vld [vmem:[%s8489 + $0x198] sm:$0xff]
  %v8559 = vld [vmem:[%s8489 + $0x1a0] sm:$0xf]
  %v8560 = vld [vmem:[%s8489 + $0x1a4] sm:$0xff]
  %v8561 = vld [vmem:[%s8489 + $0x1ac] sm:$0xf]
  %v8562 = vld [vmem:[%s8489 + $0x1b0] sm:$0xff]
  %v8563 = vld [vmem:[%s8489 + $0x1b8] sm:$0xf]
  %v8564 = vld [vmem:[%s8489 + $0x1bc] sm:$0xff]
  %v8565 = vld [vmem:[%s8489 + $0x1c4] sm:$0xf]
  %v8566 = vld [vmem:[%s8489 + $0x1c8] sm:$0xff]
  %v8567 = vld [vmem:[%s8489 + $0x1d0] sm:$0xf]
  %v8568 = vld [vmem:[%s8489 + $0x1d4] sm:$0xff]
  %v8569 = vld [vmem:[%s8489 + $0x1dc] sm:$0xf]
  %v8570 = vld [vmem:[%s8489 + $0x1e0] sm:$0xff]
  %v8571 = vld [vmem:[%s8489 + $0x1e8] sm:$0xf]
  %v8572 = vld [vmem:[%s8489 + $0x1ec] sm:$0xff]
  %v8573 = vld [vmem:[%s8489 + $0x1f4] sm:$0xf]
  %v8574 = vld [vmem:[%s8489 + $0x1f8] sm:$0xff]
  %v8575 = vld [vmem:[%s8489 + $0x200] sm:$0xf]
  %v8576 = vld [vmem:[%s8489 + $0x204] sm:$0xff]
  %v8577 = vld [vmem:[%s8489 + $0x20c] sm:$0xf]
  %v8578 = vld [vmem:[%s8489 + $0x210] sm:$0xff]
  %v8579 = vld [vmem:[%s8489 + $0x218] sm:$0xf]
  %v8580 = vld [vmem:[%s8489 + $0x21c] sm:$0xff]
  %v8581 = vld [vmem:[%s8489 + $0x224] sm:$0xf]
  %v8582 = vld [vmem:[%s8489 + $0x228] sm:$0xff]
  %v8583 = vld [vmem:[%s8489 + $0x230] sm:$0xf]
  %v8584 = vld [vmem:[%s8489 + $0x234] sm:$0xff]
  %v8585 = vld [vmem:[%s8489 + $0x23c] sm:$0xf]
  %v8586 = vld [vmem:[%s8489 + $0x240] sm:$0xff]
  %v8587 = vld [vmem:[%s8489 + $0x248] sm:$0xf]
  %v8588 = vld [vmem:[%s8489 + $0x24c] sm:$0xff]
  %v8589 = vld [vmem:[%s8489 + $0x254] sm:$0xf]
  %v8590 = vld [vmem:[%s8489 + $0x258] sm:$0xff]
  %v8591 = vld [vmem:[%s8489 + $0x260] sm:$0xf]
  %v8592 = vld [vmem:[%s8489 + $0x264] sm:$0xff]
  %v8593 = vld [vmem:[%s8489 + $0x26c] sm:$0xf]
  %v8594 = vld [vmem:[%s8489 + $0x270] sm:$0xff]
  %v8595 = vld [vmem:[%s8489 + $0x278] sm:$0xf]
  %v8596 = vld [vmem:[%s8489 + $0x27c] sm:$0xff]
  %v8597 = vld [vmem:[%s8489 + $0x284] sm:$0xf]
  %v8598 = vld [vmem:[%s8489 + $0x288] sm:$0xff]
  %v8599 = vld [vmem:[%s8489 + $0x290] sm:$0xf]
  %v8600 = vld [vmem:[%s8489 + $0x294] sm:$0xff]
  %v8601 = vld [vmem:[%s8489 + $0x29c] sm:$0xf]
  %v8602 = vld [vmem:[%s8489 + $0x2a0] sm:$0xff]
  %v8603 = vld [vmem:[%s8489 + $0x2a8] sm:$0xf]
  %v8604 = vld [vmem:[%s8489 + $0x2ac] sm:$0xff]
  %v8605 = vld [vmem:[%s8489 + $0x2b4] sm:$0xf]
  %v8606 = vld [vmem:[%s8489 + $0x2b8] sm:$0xff]
  %v8607 = vld [vmem:[%s8489 + $0x2c0] sm:$0xf]
  %v8608 = vld [vmem:[%s8489 + $0x2c4] sm:$0xff]
  %v8609 = vld [vmem:[%s8489 + $0x2cc] sm:$0xf]
  %v8610 = vld [vmem:[%s8489 + $0x2d0] sm:$0xff]
  %v8611 = vld [vmem:[%s8489 + $0x2d8] sm:$0xf]
  %v8612 = vld [vmem:[%s8489 + $0x2dc] sm:$0xff]
  %v8613 = vld [vmem:[%s8489 + $0x2e4] sm:$0xf]
  %v8614 = vld [vmem:[%s8489 + $0x2e8] sm:$0xff]
  %v8615 = vld [vmem:[%s8489 + $0x2f0] sm:$0xf]
  %v8616 = vld [vmem:[%s8489 + $0x2f4] sm:$0xff]
  %v8617 = vld [vmem:[%s8489 + $0x2fc] sm:$0xf]
  %v8618 = vld [vmem:[%s8489 + $0x300] sm:$0xff]
  %v8619 = vld [vmem:[%s8489 + $0x308] sm:$0xf]
  %v8620 = vld [vmem:[%s8489 + $0x30c] sm:$0xff]
  %v8621 = vld [vmem:[%s8489 + $0x314] sm:$0xf]
  %v8622 = vld [vmem:[%s8489 + $0x318] sm:$0xff]
  %v8623 = vld [vmem:[%s8489 + $0x320] sm:$0xf]
  %v8624 = vld [vmem:[%s8489 + $0x324] sm:$0xff]
  %v8625 = vld [vmem:[%s8489 + $0x32c] sm:$0xf]
  %v8626 = vld [vmem:[%s8489 + $0x330] sm:$0xff]
  %v8627 = vld [vmem:[%s8489 + $0x338] sm:$0xf]
  %v8628 = vld [vmem:[%s8489 + $0x33c] sm:$0xff]
  %v8629 = vld [vmem:[%s8489 + $0x344] sm:$0xf]
  %v8630 = vld [vmem:[%s8489 + $0x348] sm:$0xff]
  %v8631 = vld [vmem:[%s8489 + $0x350] sm:$0xf]
  %v8632 = vld [vmem:[%s8489 + $0x354] sm:$0xff]
  %v8633 = vld [vmem:[%s8489 + $0x35c] sm:$0xf]
  %v8634 = vld [vmem:[%s8489 + $0x360] sm:$0xff]
  %v8635 = vld [vmem:[%s8489 + $0x368] sm:$0xf]
  %v8636 = vld [vmem:[%s8489 + $0x36c] sm:$0xff]
  %v8637 = vld [vmem:[%s8489 + $0x374] sm:$0xf]
  %v8638 = vld [vmem:[%s8489 + $0x378] sm:$0xff]
  %v8639 = vld [vmem:[%s8489 + $0x380] sm:$0xf]
  %v8640 = vld [vmem:[%s8489 + $0x384] sm:$0xff]
  %v8641 = vld [vmem:[%s8489 + $0x38c] sm:$0xf]
  %v8642 = vld [vmem:[%s8489 + $0x390] sm:$0xff]
  %v8643 = vld [vmem:[%s8489 + $0x398] sm:$0xf]
  %v8644 = vld [vmem:[%s8489 + $0x39c] sm:$0xff]
  %v8645 = vld [vmem:[%s8489 + $0x3a4] sm:$0xf]
  %v8646 = vld [vmem:[%s8489 + $0x3a8] sm:$0xff]
  %v8647 = vld [vmem:[%s8489 + $0x3b0] sm:$0xf]
  %v8648 = vld [vmem:[%s8489 + $0x3b4] sm:$0xff]
  %v8649 = vld [vmem:[%s8489 + $0x3bc] sm:$0xf]
  %v8650 = vld [vmem:[%s8489 + $0x3c0] sm:$0xff]
  %v8651 = vld [vmem:[%s8489 + $0x3c8] sm:$0xf]
  %v8652 = vld [vmem:[%s8489 + $0x3cc] sm:$0xff]
  %v8653 = vld [vmem:[%s8489 + $0x3d4] sm:$0xf]
  %v8654 = vld [vmem:[%s8489 + $0x3d8] sm:$0xff]
  %v8655 = vld [vmem:[%s8489 + $0x3e0] sm:$0xf]
  %v8656 = vld [vmem:[%s8489 + $0x3e4] sm:$0xff]
  %v8657 = vld [vmem:[%s8489 + $0x3ec] sm:$0xf]
  %v8658 = vld [vmem:[%s8489 + $0x3f0] sm:$0xff]
  %v8659 = vld [vmem:[%s8489 + $0x3f8] sm:$0xf]
  %v8660 = vld [vmem:[%s8489 + $0x3fc] sm:$0xff]
  %v8661 = vld [vmem:[%s8489 + $0x404] sm:$0xf]
  %v8662 = vld [vmem:[%s8489 + $0x408] sm:$0xff]
  %v8663 = vld [vmem:[%s8489 + $0x410] sm:$0xf]
  %v8664 = vld [vmem:[%s8489 + $0x414] sm:$0xff]
  %v8665 = vld [vmem:[%s8489 + $0x41c] sm:$0xf]
  %v8666 = vld [vmem:[%s8489 + $0x420] sm:$0xff]
  %v8667 = vld [vmem:[%s8489 + $0x428] sm:$0xf]
  %v8668 = vld [vmem:[%s8489 + $0x42c] sm:$0xff]
  %v8669 = vld [vmem:[%s8489 + $0x434] sm:$0xf]
  %v8670 = vld [vmem:[%s8489 + $0x438] sm:$0xff]
  %v8671 = vld [vmem:[%s8489 + $0x440] sm:$0xf]
  %v8672 = vld [vmem:[%s8489 + $0x444] sm:$0xff]
  %v8673 = vld [vmem:[%s8489 + $0x44c] sm:$0xf]
  %v8858 = vunpack.c.l.b16 %v8490
  %v8859 = vunpack.c.h.b16 %v8490
  %v8860 = vunpack.c.l.b16 %v8491
  %v8861 = vunpack.c.l.b16 %v8492
  %v8862 = vunpack.c.h.b16 %v8492
  %v8863 = vunpack.c.l.b16 %v8493
  %v8864 = vunpack.c.l.b16 %v8494
  %v8865 = vunpack.c.h.b16 %v8494
  %v8866 = vunpack.c.l.b16 %v8495
  %v8867 = vunpack.c.l.b16 %v8496
  %v8868 = vunpack.c.h.b16 %v8496
  %v8869 = vunpack.c.l.b16 %v8497
  %v8870 = vunpack.c.l.b16 %v8498
  %v8871 = vunpack.c.h.b16 %v8498
  %v8872 = vunpack.c.l.b16 %v8499
  %v8873 = vunpack.c.l.b16 %v8500
  %v8874 = vunpack.c.h.b16 %v8500
  %v8875 = vunpack.c.l.b16 %v8501
  %v8876 = vunpack.c.l.b16 %v8502
  %v8877 = vunpack.c.h.b16 %v8502
  %v8878 = vunpack.c.l.b16 %v8503
  %v8879 = vunpack.c.l.b16 %v8504
  %v8880 = vunpack.c.h.b16 %v8504
  %v8881 = vunpack.c.l.b16 %v8505
  %v8882 = vunpack.c.l.b16 %v8506
  %v8883 = vunpack.c.h.b16 %v8506
  %v8884 = vunpack.c.l.b16 %v8507
  %v8885 = vunpack.c.l.b16 %v8508
  %v8886 = vunpack.c.h.b16 %v8508
  %v8887 = vunpack.c.l.b16 %v8509
  %v8888 = vunpack.c.l.b16 %v8510
  %v8889 = vunpack.c.h.b16 %v8510
  %v8890 = vunpack.c.l.b16 %v8511
  %v8891 = vunpack.c.l.b16 %v8512
  %v8892 = vunpack.c.h.b16 %v8512
  %v8893 = vunpack.c.l.b16 %v8513
  %v8894 = vunpack.c.l.b16 %v8514
  %v8895 = vunpack.c.h.b16 %v8514
  %v8896 = vunpack.c.l.b16 %v8515
  %v8897 = vunpack.c.l.b16 %v8516
  %v8898 = vunpack.c.h.b16 %v8516
  %v8899 = vunpack.c.l.b16 %v8517
  %v8900 = vunpack.c.l.b16 %v8518
  %v8901 = vunpack.c.h.b16 %v8518
  %v8902 = vunpack.c.l.b16 %v8519
  %v8903 = vunpack.c.l.b16 %v8520
  %v8904 = vunpack.c.h.b16 %v8520
  %v8905 = vunpack.c.l.b16 %v8521
  %v8906 = vunpack.c.l.b16 %v8522
  %v8907 = vunpack.c.h.b16 %v8522
  %v8908 = vunpack.c.l.b16 %v8523
  %v8909 = vunpack.c.l.b16 %v8524
  %v8910 = vunpack.c.h.b16 %v8524
  %v8911 = vunpack.c.l.b16 %v8525
  %v8912 = vunpack.c.l.b16 %v8526
  %v8913 = vunpack.c.h.b16 %v8526
  %v8914 = vunpack.c.l.b16 %v8527
  %v8915 = vunpack.c.l.b16 %v8528
  %v8916 = vunpack.c.h.b16 %v8528
  %v8917 = vunpack.c.l.b16 %v8529
  %v8918 = vunpack.c.l.b16 %v8530
  %v8919 = vunpack.c.h.b16 %v8530
  %v8920 = vunpack.c.l.b16 %v8531
  %v8921 = vunpack.c.l.b16 %v8532
  %v8922 = vunpack.c.h.b16 %v8532
  %v8923 = vunpack.c.l.b16 %v8533
  %v8924 = vunpack.c.l.b16 %v8534
  %v8925 = vunpack.c.h.b16 %v8534
  %v8926 = vunpack.c.l.b16 %v8535
  %v8927 = vunpack.c.l.b16 %v8536
  %v8928 = vunpack.c.h.b16 %v8536
  %v8929 = vunpack.c.l.b16 %v8537
  %v8930 = vunpack.c.l.b16 %v8538
  %v8931 = vunpack.c.h.b16 %v8538
  %v8932 = vunpack.c.l.b16 %v8539
  %v8933 = vunpack.c.l.b16 %v8540
  %v8934 = vunpack.c.h.b16 %v8540
  %v8935 = vunpack.c.l.b16 %v8541
  %v8936 = vunpack.c.l.b16 %v8542
  %v8937 = vunpack.c.h.b16 %v8542
  %v8938 = vunpack.c.l.b16 %v8543
  %v8939 = vunpack.c.l.b16 %v8544
  %v8940 = vunpack.c.h.b16 %v8544
  %v8941 = vunpack.c.l.b16 %v8545
  %v8942 = vunpack.c.l.b16 %v8546
  %v8943 = vunpack.c.h.b16 %v8546
  %v8944 = vunpack.c.l.b16 %v8547
  %v8945 = vunpack.c.l.b16 %v8548
  %v8946 = vunpack.c.h.b16 %v8548
  %v8947 = vunpack.c.l.b16 %v8549
  %v8948 = vunpack.c.l.b16 %v8550
  %v8949 = vunpack.c.h.b16 %v8550
  %v8950 = vunpack.c.l.b16 %v8551
  %v8951 = vunpack.c.l.b16 %v8552
  %v8952 = vunpack.c.h.b16 %v8552
  %v8953 = vunpack.c.l.b16 %v8553
  %v8954 = vunpack.c.l.b16 %v8554
  %v8955 = vunpack.c.h.b16 %v8554
  %v8956 = vunpack.c.l.b16 %v8555
  %v8957 = vunpack.c.l.b16 %v8556
  %v8958 = vunpack.c.h.b16 %v8556
  %v8959 = vunpack.c.l.b16 %v8557
  %v8960 = vunpack.c.l.b16 %v8558
  %v8961 = vunpack.c.h.b16 %v8558
  %v8962 = vunpack.c.l.b16 %v8559
  %v8963 = vunpack.c.l.b16 %v8560
  %v8964 = vunpack.c.h.b16 %v8560
  %v8965 = vunpack.c.l.b16 %v8561
  %v8966 = vunpack.c.l.b16 %v8562
  %v8967 = vunpack.c.h.b16 %v8562
  %v8968 = vunpack.c.l.b16 %v8563
  %v8969 = vunpack.c.l.b16 %v8564
  %v8970 = vunpack.c.h.b16 %v8564
  %v8971 = vunpack.c.l.b16 %v8565
  %v8972 = vunpack.c.l.b16 %v8566
  %v8973 = vunpack.c.h.b16 %v8566
  %v8974 = vunpack.c.l.b16 %v8567
  %v8975 = vunpack.c.l.b16 %v8568
  %v8976 = vunpack.c.h.b16 %v8568
  %v8977 = vunpack.c.l.b16 %v8569
  %v8978 = vunpack.c.l.b16 %v8570
  %v8979 = vunpack.c.h.b16 %v8570
  %v8980 = vunpack.c.l.b16 %v8571
  %v8981 = vunpack.c.l.b16 %v8572
  %v8982 = vunpack.c.h.b16 %v8572
  %v8983 = vunpack.c.l.b16 %v8573
  %v8984 = vunpack.c.l.b16 %v8574
  %v8985 = vunpack.c.h.b16 %v8574
  %v8986 = vunpack.c.l.b16 %v8575
  %v8987 = vunpack.c.l.b16 %v8576
  %v8988 = vunpack.c.h.b16 %v8576
  %v8989 = vunpack.c.l.b16 %v8577
  %v8990 = vunpack.c.l.b16 %v8578
  %v8991 = vunpack.c.h.b16 %v8578
  %v8992 = vunpack.c.l.b16 %v8579
  %v8993 = vunpack.c.l.b16 %v8580
  %v8994 = vunpack.c.h.b16 %v8580
  %v8995 = vunpack.c.l.b16 %v8581
  %v8996 = vunpack.c.l.b16 %v8582
  %v8997 = vunpack.c.h.b16 %v8582
  %v8998 = vunpack.c.l.b16 %v8583
  %v8999 = vunpack.c.l.b16 %v8584
  %v9000 = vunpack.c.h.b16 %v8584
  %v9001 = vunpack.c.l.b16 %v8585
  %v9002 = vunpack.c.l.b16 %v8586
  %v9003 = vunpack.c.h.b16 %v8586
  %v9004 = vunpack.c.l.b16 %v8587
  %v9005 = vunpack.c.l.b16 %v8588
  %v9006 = vunpack.c.h.b16 %v8588
  %v9007 = vunpack.c.l.b16 %v8589
  %v9008 = vunpack.c.l.b16 %v8590
  %v9009 = vunpack.c.h.b16 %v8590
  %v9010 = vunpack.c.l.b16 %v8591
  %v9011 = vunpack.c.l.b16 %v8592
  %v9012 = vunpack.c.h.b16 %v8592
  %v9013 = vunpack.c.l.b16 %v8593
  %v9014 = vunpack.c.l.b16 %v8594
  %v9015 = vunpack.c.h.b16 %v8594
  %v9016 = vunpack.c.l.b16 %v8595
  %v9017 = vunpack.c.l.b16 %v8596
  %v9018 = vunpack.c.h.b16 %v8596
  %v9019 = vunpack.c.l.b16 %v8597
  %v9020 = vunpack.c.l.b16 %v8598
  %v9021 = vunpack.c.h.b16 %v8598
  %v9022 = vunpack.c.l.b16 %v8599
  %v9023 = vunpack.c.l.b16 %v8600
  %v9024 = vunpack.c.h.b16 %v8600
  %v9025 = vunpack.c.l.b16 %v8601
  %v9026 = vunpack.c.l.b16 %v8602
  %v9027 = vunpack.c.h.b16 %v8602
  %v9028 = vunpack.c.l.b16 %v8603
  %v9029 = vunpack.c.l.b16 %v8604
  %v9030 = vunpack.c.h.b16 %v8604
  %v9031 = vunpack.c.l.b16 %v8605
  %v9032 = vunpack.c.l.b16 %v8606
  %v9033 = vunpack.c.h.b16 %v8606
  %v9034 = vunpack.c.l.b16 %v8607
  %v9035 = vunpack.c.l.b16 %v8608
  %v9036 = vunpack.c.h.b16 %v8608
  %v9037 = vunpack.c.l.b16 %v8609
  %v9038 = vunpack.c.l.b16 %v8610
  %v9039 = vunpack.c.h.b16 %v8610
  %v9040 = vunpack.c.l.b16 %v8611
  %v9041 = vunpack.c.l.b16 %v8612
  %v9042 = vunpack.c.h.b16 %v8612
  %v9043 = vunpack.c.l.b16 %v8613
  %v9044 = vunpack.c.l.b16 %v8614
  %v9045 = vunpack.c.h.b16 %v8614
  %v9046 = vunpack.c.l.b16 %v8615
  %v9047 = vunpack.c.l.b16 %v8616
  %v9048 = vunpack.c.h.b16 %v8616
  %v9049 = vunpack.c.l.b16 %v8617
  %v9050 = vunpack.c.l.b16 %v8618
  %v9051 = vunpack.c.h.b16 %v8618
  %v9052 = vunpack.c.l.b16 %v8619
  %v9053 = vunpack.c.l.b16 %v8620
  %v9054 = vunpack.c.h.b16 %v8620
  %v9055 = vunpack.c.l.b16 %v8621
  %v9056 = vunpack.c.l.b16 %v8622
  %v9057 = vunpack.c.h.b16 %v8622
  %v9058 = vunpack.c.l.b16 %v8623
  %v9059 = vunpack.c.l.b16 %v8624
  %v9060 = vunpack.c.h.b16 %v8624
  %v9061 = vunpack.c.l.b16 %v8625
  %v9062 = vunpack.c.l.b16 %v8626
  %v9063 = vunpack.c.h.b16 %v8626
  %v9064 = vunpack.c.l.b16 %v8627
  %v9065 = vunpack.c.l.b16 %v8628
  %v9066 = vunpack.c.h.b16 %v8628
  %v9067 = vunpack.c.l.b16 %v8629
  %v9068 = vunpack.c.l.b16 %v8630
  %v9069 = vunpack.c.h.b16 %v8630
  %v9070 = vunpack.c.l.b16 %v8631
  %v9071 = vunpack.c.l.b16 %v8632
  %v9072 = vunpack.c.h.b16 %v8632
  %v9073 = vunpack.c.l.b16 %v8633
  %v9074 = vunpack.c.l.b16 %v8634
  %v9075 = vunpack.c.h.b16 %v8634
  %v9076 = vunpack.c.l.b16 %v8635
  %v9077 = vunpack.c.l.b16 %v8636
  %v9078 = vunpack.c.h.b16 %v8636
  %v9079 = vunpack.c.l.b16 %v8637
  %v9080 = vunpack.c.l.b16 %v8638
  %v9081 = vunpack.c.h.b16 %v8638
  %v9082 = vunpack.c.l.b16 %v8639
  %v9083 = vunpack.c.l.b16 %v8640
  %v9084 = vunpack.c.h.b16 %v8640
  %v9085 = vunpack.c.l.b16 %v8641
  %v9086 = vunpack.c.l.b16 %v8642
  %v9087 = vunpack.c.h.b16 %v8642
  %v9088 = vunpack.c.l.b16 %v8643
  %v9089 = vunpack.c.l.b16 %v8644
  %v9090 = vunpack.c.h.b16 %v8644
  %v9091 = vunpack.c.l.b16 %v8645
  %v9092 = vunpack.c.l.b16 %v8646
  %v9093 = vunpack.c.h.b16 %v8646
  %v9094 = vunpack.c.l.b16 %v8647
  %v9095 = vunpack.c.l.b16 %v8648
  %v9096 = vunpack.c.h.b16 %v8648
  %v9097 = vunpack.c.l.b16 %v8649
  %v9098 = vunpack.c.l.b16 %v8650
  %v9099 = vunpack.c.h.b16 %v8650
  %v9100 = vunpack.c.l.b16 %v8651
  %v9101 = vunpack.c.l.b16 %v8652
  %v9102 = vunpack.c.h.b16 %v8652
  %v9103 = vunpack.c.l.b16 %v8653
  %v9104 = vunpack.c.l.b16 %v8654
  %v9105 = vunpack.c.h.b16 %v8654
  %v9106 = vunpack.c.l.b16 %v8655
  %v9107 = vunpack.c.l.b16 %v8656
  %v9108 = vunpack.c.h.b16 %v8656
  %v9109 = vunpack.c.l.b16 %v8657
  %v9110 = vunpack.c.l.b16 %v8658
  %v9111 = vunpack.c.h.b16 %v8658
  %v9112 = vunpack.c.l.b16 %v8659
  %v9113 = vunpack.c.l.b16 %v8660
  %v9114 = vunpack.c.h.b16 %v8660
  %v9115 = vunpack.c.l.b16 %v8661
  %v9116 = vunpack.c.l.b16 %v8662
  %v9117 = vunpack.c.h.b16 %v8662
  %v9118 = vunpack.c.l.b16 %v8663
  %v9119 = vunpack.c.l.b16 %v8664
  %v9120 = vunpack.c.h.b16 %v8664
  %v9121 = vunpack.c.l.b16 %v8665
  %v9122 = vunpack.c.l.b16 %v8666
  %v9123 = vunpack.c.h.b16 %v8666
  %v9124 = vunpack.c.l.b16 %v8667
  %v9125 = vunpack.c.l.b16 %v8668
  %v9126 = vunpack.c.h.b16 %v8668
  %v9127 = vunpack.c.l.b16 %v8669
  %v9128 = vunpack.c.l.b16 %v8670
  %v9129 = vunpack.c.h.b16 %v8670
  %v9130 = vunpack.c.l.b16 %v8671
  %v9131 = vunpack.c.l.b16 %v8672
  %v9132 = vunpack.c.h.b16 %v8672
  %v9133 = vunpack.c.l.b16 %v8673
  %v9134 = vpack.c.b16 %v8861, %v8858
  %v9135 = vpack.c.b16 %v8862, %v8859
  %v9136 = vpack.c.b16 %v8863, %v8860
  %v9137 = vpack.c.b16 %v8867, %v8864
  %v9138 = vpack.c.b16 %v8868, %v8865
  %v9139 = vpack.c.b16 %v8869, %v8866
  %v9140 = vpack.c.b16 %v8873, %v8870
  %v9141 = vpack.c.b16 %v8874, %v8871
  %v9142 = vpack.c.b16 %v8875, %v8872
  %v9143 = vpack.c.b16 %v8879, %v8876
  %v9144 = vpack.c.b16 %v8880, %v8877
  %v9145 = vpack.c.b16 %v8881, %v8878
  %v9146 = vpack.c.b16 %v8885, %v8882
  %v9147 = vpack.c.b16 %v8886, %v8883
  %v9148 = vpack.c.b16 %v8887, %v8884
  %v9149 = vpack.c.b16 %v8891, %v8888
  %v9150 = vpack.c.b16 %v8892, %v8889
  %v9151 = vpack.c.b16 %v8893, %v8890
  %v9152 = vpack.c.b16 %v8897, %v8894
  %v9153 = vpack.c.b16 %v8898, %v8895
  %v9154 = vpack.c.b16 %v8899, %v8896
  %v9155 = vpack.c.b16 %v8903, %v8900
  %v9156 = vpack.c.b16 %v8904, %v8901
  %v9157 = vpack.c.b16 %v8905, %v8902
  %v9158 = vpack.c.b16 %v8909, %v8906
  %v9159 = vpack.c.b16 %v8910, %v8907
  %v9160 = vpack.c.b16 %v8911, %v8908
  %v9161 = vpack.c.b16 %v8915, %v8912
  %v9162 = vpack.c.b16 %v8916, %v8913
  %v9163 = vpack.c.b16 %v8917, %v8914
  %v9164 = vpack.c.b16 %v8921, %v8918
  %v9165 = vpack.c.b16 %v8922, %v8919
  %v9166 = vpack.c.b16 %v8923, %v8920
  %v9167 = vpack.c.b16 %v8927, %v8924
  %v9168 = vpack.c.b16 %v8928, %v8925
  %v9169 = vpack.c.b16 %v8929, %v8926
  %v9170 = vpack.c.b16 %v8933, %v8930
  %v9171 = vpack.c.b16 %v8934, %v8931
  %v9172 = vpack.c.b16 %v8935, %v8932
  %v9173 = vpack.c.b16 %v8939, %v8936
  %v9174 = vpack.c.b16 %v8940, %v8937
  %v9175 = vpack.c.b16 %v8941, %v8938
  %v9176 = vpack.c.b16 %v8945, %v8942
  %v9177 = vpack.c.b16 %v8946, %v8943
  %v9178 = vpack.c.b16 %v8947, %v8944
  %v9179 = vpack.c.b16 %v8951, %v8948
  %v9180 = vpack.c.b16 %v8952, %v8949
  %v9181 = vpack.c.b16 %v8953, %v8950
  %v9182 = vpack.c.b16 %v8957, %v8954
  %v9183 = vpack.c.b16 %v8958, %v8955
  %v9184 = vpack.c.b16 %v8959, %v8956
  %v9185 = vpack.c.b16 %v8963, %v8960
  %v9186 = vpack.c.b16 %v8964, %v8961
  %v9187 = vpack.c.b16 %v8965, %v8962
  %v9188 = vpack.c.b16 %v8969, %v8966
  %v9189 = vpack.c.b16 %v8970, %v8967
  %v9190 = vpack.c.b16 %v8971, %v8968
  %v9191 = vpack.c.b16 %v8975, %v8972
  %v9192 = vpack.c.b16 %v8976, %v8973
  %v9193 = vpack.c.b16 %v8977, %v8974
  %v9194 = vpack.c.b16 %v8981, %v8978
  %v9195 = vpack.c.b16 %v8982, %v8979
  %v9196 = vpack.c.b16 %v8983, %v8980
  %v9197 = vpack.c.b16 %v8987, %v8984
  %v9198 = vpack.c.b16 %v8988, %v8985
  %v9199 = vpack.c.b16 %v8989, %v8986
  %v9200 = vpack.c.b16 %v8993, %v8990
  %v9201 = vpack.c.b16 %v8994, %v8991
  %v9202 = vpack.c.b16 %v8995, %v8992
  %v9203 = vpack.c.b16 %v8999, %v8996
  %v9204 = vpack.c.b16 %v9000, %v8997
  %v9205 = vpack.c.b16 %v9001, %v8998
  %v9206 = vpack.c.b16 %v9005, %v9002
  %v9207 = vpack.c.b16 %v9006, %v9003
  %v9208 = vpack.c.b16 %v9007, %v9004
  %v9209 = vpack.c.b16 %v9011, %v9008
  %v9210 = vpack.c.b16 %v9012, %v9009
  %v9211 = vpack.c.b16 %v9013, %v9010
  %v9212 = vpack.c.b16 %v9017, %v9014
  %v9213 = vpack.c.b16 %v9018, %v9015
  %v9214 = vpack.c.b16 %v9019, %v9016
  %v9215 = vpack.c.b16 %v9023, %v9020
  %v9216 = vpack.c.b16 %v9024, %v9021
  %v9217 = vpack.c.b16 %v9025, %v9022
  %v9218 = vpack.c.b16 %v9029, %v9026
  %v9219 = vpack.c.b16 %v9030, %v9027
  %v9220 = vpack.c.b16 %v9031, %v9028
  %v9221 = vpack.c.b16 %v9035, %v9032
  %v9222 = vpack.c.b16 %v9036, %v9033
  %v9223 = vpack.c.b16 %v9037, %v9034
  %v9224 = vpack.c.b16 %v9041, %v9038
  %v9225 = vpack.c.b16 %v9042, %v9039
  %v9226 = vpack.c.b16 %v9043, %v9040
  %v9227 = vpack.c.b16 %v9047, %v9044
  %v9228 = vpack.c.b16 %v9048, %v9045
  %v9229 = vpack.c.b16 %v9049, %v9046
  %v9230 = vpack.c.b16 %v9053, %v9050
  %v9231 = vpack.c.b16 %v9054, %v9051
  %v9232 = vpack.c.b16 %v9055, %v9052
  %v9233 = vpack.c.b16 %v9059, %v9056
  %v9234 = vpack.c.b16 %v9060, %v9057
  %v9235 = vpack.c.b16 %v9061, %v9058
  %v9236 = vpack.c.b16 %v9065, %v9062
  %v9237 = vpack.c.b16 %v9066, %v9063
  %v9238 = vpack.c.b16 %v9067, %v9064
  %v9239 = vpack.c.b16 %v9071, %v9068
  %v9240 = vpack.c.b16 %v9072, %v9069
  %v9241 = vpack.c.b16 %v9073, %v9070
  %v9242 = vpack.c.b16 %v9077, %v9074
  %v9243 = vpack.c.b16 %v9078, %v9075
  %v9244 = vpack.c.b16 %v9079, %v9076
  %v9245 = vpack.c.b16 %v9083, %v9080
  %v9246 = vpack.c.b16 %v9084, %v9081
  %v9247 = vpack.c.b16 %v9085, %v9082
  %v9248 = vpack.c.b16 %v9089, %v9086
  %v9249 = vpack.c.b16 %v9090, %v9087
  %v9250 = vpack.c.b16 %v9091, %v9088
  %v9251 = vpack.c.b16 %v9095, %v9092
  %v9252 = vpack.c.b16 %v9096, %v9093
  %v9253 = vpack.c.b16 %v9097, %v9094
  %v9254 = vpack.c.b16 %v9101, %v9098
  %v9255 = vpack.c.b16 %v9102, %v9099
  %v9256 = vpack.c.b16 %v9103, %v9100
  %v9257 = vpack.c.b16 %v9107, %v9104
  %v9258 = vpack.c.b16 %v9108, %v9105
  %v9259 = vpack.c.b16 %v9109, %v9106
  %v9260 = vpack.c.b16 %v9113, %v9110
  %v9261 = vpack.c.b16 %v9114, %v9111
  %v9262 = vpack.c.b16 %v9115, %v9112
  %v9263 = vpack.c.b16 %v9119, %v9116
  %v9264 = vpack.c.b16 %v9120, %v9117
  %v9265 = vpack.c.b16 %v9121, %v9118
  %v9266 = vpack.c.b16 %v9125, %v9122
  %v9267 = vpack.c.b16 %v9126, %v9123
  %v9268 = vpack.c.b16 %v9127, %v9124
  %v9269 = vpack.c.b16 %v9131, %v9128
  %v9270 = vpack.c.b16 %v9132, %v9129
  %v9271 = vpack.c.b16 %v9133, %v9130
  %v9411 = vsel %vm6024, %v4918, 0
  %9413 = vmatprep.subr.bf16.mxu0 %v9156
  %9414 = vmatpush1.bf16.msra.mxu0 %v9155
  %9415 = vmatprep.subr.bf16.mxu0 %v9153
  %9416 = vmatpush1.bf16.msra.mxu0 %v9152
  %9417 = vmatprep.subr.bf16.mxu0 %v9150
  %9418 = vmatpush1.bf16.msra.mxu0 %v9149
  %9419 = vmatprep.subr.bf16.mxu0 %v9147
  %9420 = vmatpush1.bf16.msra.mxu0 %v9146
  %9421 = vmatprep.subr.bf16.mxu0 %v9144
  %9422 = vmatpush1.bf16.msra.mxu0 %v9143
  %9423 = vmatprep.subr.bf16.mxu0 %v9141
  %9424 = vmatpush1.bf16.msra.mxu0 %v9140
  %9425 = vmatprep.subr.bf16.mxu0 %v9138
  %9426 = vmatpush1.bf16.msra.mxu0 %v9137
  %9427 = vmatprep.subr.bf16.mxu0 %v9135
  %9428 = vmatpush1.bf16.msra.mxu0 %v9134
  %9429 = vmatprep.subr.bf16.mxu0 %v9180
  %9430 = vmatpush2.bf16.msra.mxu0 %v9179
  %9431 = vmatprep.subr.bf16.mxu0 %v9177
  %9432 = vmatpush2.bf16.msra.mxu0 %v9176
  %9433 = vmatprep.subr.bf16.mxu0 %v9174
  %9434 = vmatpush2.bf16.msra.mxu0 %v9173
  %9435 = vmatprep.subr.bf16.mxu0 %v9171
  %9436 = vmatpush2.bf16.msra.mxu0 %v9170
  %9437 = vmatprep.subr.bf16.mxu0 %v9168
  %9438 = vmatpush2.bf16.msra.mxu0 %v9167
  %9439 = vmatprep.subr.bf16.mxu0 %v9165
  %9440 = vmatpush2.bf16.msra.mxu0 %v9164
  %9441 = vmatprep.subr.bf16.mxu0 %v9162
  %9442 = vmatpush2.bf16.msra.mxu0 %v9161
  %9443 = vmatprep.subr.bf16.mxu0 %v9159
  %9444 = vmatpush2.bf16.msra.mxu0 %v9158
  %9445 = vmatprep.mubr.bf16.mxu0 %v4782
  %9446 = vmatmul.mubr.bf16.gmra.mxu0 %v4781
  %v9447 = vpop.f32.mrf.mxu0
  %v9448 = vadd.f32 0.0, %v9447
  %v9449 = vpop.f32.mrf.mxu0
  %v9450 = vadd.f32 0.0, %v9449
  %v9451 = vpop.f32.mrf.mxu0
  %v9452 = vadd.f32 0.0, %v9451
  %v9453 = vpop.f32.mrf.mxu0
  %v9454 = vadd.f32 0.0, %v9453
  %9455 = vmatprep.mubr.bf16.mxu0 %v4794
  %9456 = vmatmul.mubr.bf16.gmra.mxu0 %v4793
  %v9457 = vpop.f32.mrf.mxu0
  %v9458 = vadd.f32 0.0, %v9457
  %v9459 = vpop.f32.mrf.mxu0
  %v9460 = vadd.f32 0.0, %v9459
  %v9461 = vpop.f32.mrf.mxu0
  %v9462 = vadd.f32 0.0, %v9461
  %v9463 = vpop.f32.mrf.mxu0
  %v9464 = vadd.f32 0.0, %v9463
  %9465 = vmatprep.mubr.bf16.mxu0 %v4806
  %9466 = vmatmul.mubr.bf16.gmra.mxu0 %v4805
  %v9467 = vpop.f32.mrf.mxu0
  %v9468 = vadd.f32 0.0, %v9467
  %v9469 = vpop.f32.mrf.mxu0
  %v9470 = vadd.f32 0.0, %v9469
  %v9471 = vpop.f32.mrf.mxu0
  %v9472 = vadd.f32 0.0, %v9471
  %v9473 = vpop.f32.mrf.mxu0
  %v9474 = vadd.f32 0.0, %v9473
  %9475 = vmatprep.mubr.bf16.mxu0 %v4818
  %9476 = vmatmul.mubr.bf16.gmra.mxu0 %v4817
  %v9477 = vpop.f32.mrf.mxu0
  %v9478 = vadd.f32 0.0, %v9477
  %v9479 = vpop.f32.mrf.mxu0
  %v9480 = vadd.f32 0.0, %v9479
  %v9481 = vpop.f32.mrf.mxu0
  %v9482 = vadd.f32 0.0, %v9481
  %v9483 = vpop.f32.mrf.mxu0
  %v9484 = vadd.f32 0.0, %v9483
  %9485 = vmatprep.mubr.bf16.mxu0 %v4830
  %9486 = vmatmul.mubr.bf16.gmra.mxu0 %v4829
  %v9487 = vpop.f32.mrf.mxu0
  %v9488 = vadd.f32 0.0, %v9487
  %v9489 = vpop.f32.mrf.mxu0
  %v9490 = vadd.f32 0.0, %v9489
  %v9491 = vpop.f32.mrf.mxu0
  %v9492 = vadd.f32 0.0, %v9491
  %v9493 = vpop.f32.mrf.mxu0
  %v9494 = vadd.f32 0.0, %v9493
  %9495 = vmatprep.mubr.bf16.mxu0 %v4842
  %9496 = vmatmul.mubr.bf16.gmra.mxu0 %v4841
  %v9497 = vpop.f32.mrf.mxu0
  %v9498 = vadd.f32 0.0, %v9497
  %v9499 = vpop.f32.mrf.mxu0
  %v9500 = vadd.f32 0.0, %v9499
  %v9501 = vpop.f32.mrf.mxu0
  %v9502 = vadd.f32 0.0, %v9501
  %v9503 = vpop.f32.mrf.mxu0
  %v9504 = vadd.f32 0.0, %v9503
  %9505 = vmatprep.mubr.bf16.mxu0 %v4854
  %9506 = vmatmul.mubr.bf16.gmra.mxu0 %v4853
  %v9507 = vpop.f32.mrf.mxu0
  %v9508 = vadd.f32 0.0, %v9507
  %v9509 = vpop.f32.mrf.mxu0
  %v9510 = vadd.f32 0.0, %v9509
  %v9511 = vpop.f32.mrf.mxu0
  %v9512 = vadd.f32 0.0, %v9511
  %v9513 = vpop.f32.mrf.mxu0
  %v9514 = vadd.f32 0.0, %v9513
  %9515 = vmatprep.mubr.bf16.mxu0 %v4866
  %9516 = vmatmul.mubr.bf16.gmra.mxu0 %v4865
  %v9517 = vpop.f32.mrf.mxu0
  %v9518 = vadd.f32 0.0, %v9517
  %v9519 = vpop.f32.mrf.mxu0
  %v9520 = vadd.f32 0.0, %v9519
  %v9521 = vpop.f32.mrf.mxu0
  %v9522 = vadd.f32 0.0, %v9521
  %v9523 = vpop.f32.mrf.mxu0
  %v9524 = vadd.f32 0.0, %v9523
  %9525 = vmatprep.mubr.bf16.mxu0 %v4878
  %9526 = vmatmul.mubr.bf16.gmra.mxu0 %v4877
  %v9527 = vpop.f32.mrf.mxu0
  %v9528 = vadd.f32 0.0, %v9527
  %v9529 = vpop.f32.mrf.mxu0
  %v9530 = vadd.f32 0.0, %v9529
  %v9531 = vpop.f32.mrf.mxu0
  %v9532 = vadd.f32 0.0, %v9531
  %v9533 = vpop.f32.mrf.mxu0
  %v9534 = vadd.f32 0.0, %v9533
  %9535 = vmatprep.mubr.bf16.mxu0 %v4890
  %9536 = vmatmul.mubr.bf16.gmra.mxu0 %v4889
  %v9537 = vpop.f32.mrf.mxu0
  %v9538 = vadd.f32 0.0, %v9537
  %v9539 = vpop.f32.mrf.mxu0
  %v9540 = vadd.f32 0.0, %v9539
  %v9541 = vpop.f32.mrf.mxu0
  %v9542 = vadd.f32 0.0, %v9541
  %v9543 = vpop.f32.mrf.mxu0
  %v9544 = vadd.f32 0.0, %v9543
  %9545 = vmatprep.mubr.bf16.mxu0 %v4902
  %9546 = vmatmul.mubr.bf16.gmra.mxu0 %v4901
  %v9547 = vpop.f32.mrf.mxu0
  %v9548 = vadd.f32 0.0, %v9547
  %v9549 = vpop.f32.mrf.mxu0
  %v9550 = vadd.f32 0.0, %v9549
  %v9551 = vpop.f32.mrf.mxu0
  %v9552 = vadd.f32 0.0, %v9551
  %v9553 = vpop.f32.mrf.mxu0
  %v9554 = vadd.f32 0.0, %v9553
  %9555 = vmatprep.mubr.bf16.mxu0 %v4914
  %9556 = vmatmul.mubr.bf16.gmra.mxu0 %v4913
  %v9557 = vpop.f32.mrf.mxu0
  %v9558 = vpop.f32.mrf.mxu0
  %v9559 = vpop.f32.mrf.mxu0
  %v9560 = vpop.f32.mrf.mxu0
  %9561 = vdwg.mxu0
  %9562 = vmatprep.subr.bf16.mxu0 %v9204
  %9563 = vmatpush1.bf16.msra.mxu0 %v9203
  %9564 = vmatprep.subr.bf16.mxu0 %v9201
  %9565 = vmatpush1.bf16.msra.mxu0 %v9200
  %9566 = vmatprep.subr.bf16.mxu0 %v9198
  %9567 = vmatpush1.bf16.msra.mxu0 %v9197
  %9568 = vmatprep.subr.bf16.mxu0 %v9195
  %9569 = vmatpush1.bf16.msra.mxu0 %v9194
  %9570 = vmatprep.subr.bf16.mxu0 %v9192
  %9571 = vmatpush1.bf16.msra.mxu0 %v9191
  %9572 = vmatprep.subr.bf16.mxu0 %v9189
  %9573 = vmatpush1.bf16.msra.mxu0 %v9188
  %9574 = vmatprep.subr.bf16.mxu0 %v9186
  %9575 = vmatpush1.bf16.msra.mxu0 %v9185
  %9576 = vmatprep.subr.bf16.mxu0 %v9183
  %9577 = vmatpush1.bf16.msra.mxu0 %v9182
  %9578 = vmatprep.subr.bf16.mxu0 %v9228
  %9579 = vmatpush2.bf16.msra.mxu0 %v9227
  %9580 = vmatprep.subr.bf16.mxu0 %v9225
  %9581 = vmatpush2.bf16.msra.mxu0 %v9224
  %9582 = vmatprep.subr.bf16.mxu0 %v9222
  %9583 = vmatpush2.bf16.msra.mxu0 %v9221
  %9584 = vmatprep.subr.bf16.mxu0 %v9219
  %9585 = vmatpush2.bf16.msra.mxu0 %v9218
  %9586 = vmatprep.subr.bf16.mxu0 %v9216
  %9587 = vmatpush2.bf16.msra.mxu0 %v9215
  %9588 = vmatprep.subr.bf16.mxu0 %v9213
  %9589 = vmatpush2.bf16.msra.mxu0 %v9212
  %9590 = vmatprep.subr.bf16.mxu0 %v9210
  %9591 = vmatpush2.bf16.msra.mxu0 %v9209
  %9592 = vmatprep.subr.bf16.mxu0 %v9207
  %9593 = vmatpush2.bf16.msra.mxu0 %v9206
  %9594 = vmatprep.mubr.bf16.mxu0 %v4784
  %9595 = vmatmul.mubr.bf16.gmra.mxu0 %v4783
  %v9596 = vpop.f32.mrf.mxu0
  %v9597 = vadd.f32 %v9448, %v9596
  %v9598 = vpop.f32.mrf.mxu0
  %v9599 = vadd.f32 %v9450, %v9598
  %v9600 = vpop.f32.mrf.mxu0
  %v9601 = vadd.f32 %v9452, %v9600
  %v9602 = vpop.f32.mrf.mxu0
  %v9603 = vadd.f32 %v9454, %v9602
  %9604 = vmatprep.mubr.bf16.mxu0 %v4796
  %9605 = vmatmul.mubr.bf16.gmra.mxu0 %v4795
  %v9606 = vpop.f32.mrf.mxu0
  %v9607 = vadd.f32 %v9458, %v9606
  %v9608 = vpop.f32.mrf.mxu0
  %v9609 = vadd.f32 %v9460, %v9608
  %v9610 = vpop.f32.mrf.mxu0
  %v9611 = vadd.f32 %v9462, %v9610
  %v9612 = vpop.f32.mrf.mxu0
  %v9613 = vadd.f32 %v9464, %v9612
  %9614 = vmatprep.mubr.bf16.mxu0 %v4808
  %9615 = vmatmul.mubr.bf16.gmra.mxu0 %v4807
  %v9616 = vpop.f32.mrf.mxu0
  %v9617 = vadd.f32 %v9468, %v9616
  %v9618 = vpop.f32.mrf.mxu0
  %v9619 = vadd.f32 %v9470, %v9618
  %v9620 = vpop.f32.mrf.mxu0
  %v9621 = vadd.f32 %v9472, %v9620
  %v9622 = vpop.f32.mrf.mxu0
  %v9623 = vadd.f32 %v9474, %v9622
  %9624 = vmatprep.mubr.bf16.mxu0 %v4820
  %9625 = vmatmul.mubr.bf16.gmra.mxu0 %v4819
  %v9626 = vpop.f32.mrf.mxu0
  %v9627 = vadd.f32 %v9478, %v9626
  %v9628 = vpop.f32.mrf.mxu0
  %v9629 = vadd.f32 %v9480, %v9628
  %v9630 = vpop.f32.mrf.mxu0
  %v9631 = vadd.f32 %v9482, %v9630
  %v9632 = vpop.f32.mrf.mxu0
  %v9633 = vadd.f32 %v9484, %v9632
  %9634 = vmatprep.mubr.bf16.mxu0 %v4832
  %9635 = vmatmul.mubr.bf16.gmra.mxu0 %v4831
  %v9636 = vpop.f32.mrf.mxu0
  %v9637 = vadd.f32 %v9488, %v9636
  %v9638 = vpop.f32.mrf.mxu0
  %v9639 = vadd.f32 %v9490, %v9638
  %v9640 = vpop.f32.mrf.mxu0
  %v9641 = vadd.f32 %v9492, %v9640
  %v9642 = vpop.f32.mrf.mxu0
  %v9643 = vadd.f32 %v9494, %v9642
  %9644 = vmatprep.mubr.bf16.mxu0 %v4844
  %9645 = vmatmul.mubr.bf16.gmra.mxu0 %v4843
  %v9646 = vpop.f32.mrf.mxu0
  %v9647 = vadd.f32 %v9498, %v9646
  %v9648 = vpop.f32.mrf.mxu0
  %v9649 = vadd.f32 %v9500, %v9648
  %v9650 = vpop.f32.mrf.mxu0
  %v9651 = vadd.f32 %v9502, %v9650
  %v9652 = vpop.f32.mrf.mxu0
  %v9653 = vadd.f32 %v9504, %v9652
  %9654 = vmatprep.mubr.bf16.mxu0 %v4856
  %9655 = vmatmul.mubr.bf16.gmra.mxu0 %v4855
  %v9656 = vpop.f32.mrf.mxu0
  %v9657 = vadd.f32 %v9508, %v9656
  %v9658 = vpop.f32.mrf.mxu0
  %v9659 = vadd.f32 %v9510, %v9658
  %v9660 = vpop.f32.mrf.mxu0
  %v9661 = vadd.f32 %v9512, %v9660
  %v9662 = vpop.f32.mrf.mxu0
  %v9663 = vadd.f32 %v9514, %v9662
  %9664 = vmatprep.mubr.bf16.mxu0 %v4868
  %9665 = vmatmul.mubr.bf16.gmra.mxu0 %v4867
  %v9666 = vpop.f32.mrf.mxu0
  %v9667 = vadd.f32 %v9518, %v9666
  %v9668 = vpop.f32.mrf.mxu0
  %v9669 = vadd.f32 %v9520, %v9668
  %v9670 = vpop.f32.mrf.mxu0
  %v9671 = vadd.f32 %v9522, %v9670
  %v9672 = vpop.f32.mrf.mxu0
  %v9673 = vadd.f32 %v9524, %v9672
  %9674 = vmatprep.mubr.bf16.mxu0 %v4880
  %9675 = vmatmul.mubr.bf16.gmra.mxu0 %v4879
  %v9676 = vpop.f32.mrf.mxu0
  %v9677 = vadd.f32 %v9528, %v9676
  %v9678 = vpop.f32.mrf.mxu0
  %v9679 = vadd.f32 %v9530, %v9678
  %v9680 = vpop.f32.mrf.mxu0
  %v9681 = vadd.f32 %v9532, %v9680
  %v9682 = vpop.f32.mrf.mxu0
  %v9683 = vadd.f32 %v9534, %v9682
  %9684 = vmatprep.mubr.bf16.mxu0 %v4892
  %9685 = vmatmul.mubr.bf16.gmra.mxu0 %v4891
  %v9686 = vpop.f32.mrf.mxu0
  %v9687 = vadd.f32 %v9538, %v9686
  %v9688 = vpop.f32.mrf.mxu0
  %v9689 = vadd.f32 %v9540, %v9688
  %v9690 = vpop.f32.mrf.mxu0
  %v9691 = vadd.f32 %v9542, %v9690
  %v9692 = vpop.f32.mrf.mxu0
  %v9693 = vadd.f32 %v9544, %v9692
  %9694 = vmatprep.mubr.bf16.mxu0 %v4904
  %9695 = vmatmul.mubr.bf16.gmra.mxu0 %v4903
  %v9696 = vpop.f32.mrf.mxu0
  %v9697 = vadd.f32 %v9548, %v9696
  %v9698 = vpop.f32.mrf.mxu0
  %v9699 = vadd.f32 %v9550, %v9698
  %v9700 = vpop.f32.mrf.mxu0
  %v9701 = vadd.f32 %v9552, %v9700
  %v9702 = vpop.f32.mrf.mxu0
  %v9703 = vadd.f32 %v9554, %v9702
  %9704 = vmatprep.mubr.bf16.mxu0 %v4916
  %9705 = vmatmul.mubr.bf16.gmra.mxu0 %v4915
  %v9706 = vpop.f32.mrf.mxu0
  %v9707 = vpop.f32.mrf.mxu0
  %v9708 = vpop.f32.mrf.mxu0
  %v9709 = vpop.f32.mrf.mxu0
  %9710 = vdwg.mxu0
  %9711 = vmatprep.subr.bf16.mxu0 %v9252
  %9712 = vmatpush1.bf16.msra.mxu0 %v9251
  %9713 = vmatprep.subr.bf16.mxu0 %v9249
  %9714 = vmatpush1.bf16.msra.mxu0 %v9248
  %9715 = vmatprep.subr.bf16.mxu0 %v9246
  %9716 = vmatpush1.bf16.msra.mxu0 %v9245
  %9717 = vmatprep.subr.bf16.mxu0 %v9243
  %9718 = vmatpush1.bf16.msra.mxu0 %v9242
  %9719 = vmatprep.subr.bf16.mxu0 %v9240
  %9720 = vmatpush1.bf16.msra.mxu0 %v9239
  %9721 = vmatprep.subr.bf16.mxu0 %v9237
  %9722 = vmatpush1.bf16.msra.mxu0 %v9236
  %9723 = vmatprep.subr.bf16.mxu0 %v9234
  %9724 = vmatpush1.bf16.msra.mxu0 %v9233
  %9725 = vmatprep.subr.bf16.mxu0 %v9231
  %9726 = vmatpush1.bf16.msra.mxu0 %v9230
  %9727 = vmatprep.subr.bf16.mxu0 0
  %9728 = vmatpush2.bf16.msra.mxu0 0
  %9729 = vmatprep.subr.bf16.mxu0 0
  %9730 = vmatpush2.bf16.msra.mxu0 0
  %9731 = vmatprep.subr.bf16.mxu0 %v9270
  %9732 = vmatpush2.bf16.msra.mxu0 %v9269
  %9733 = vmatprep.subr.bf16.mxu0 %v9267
  %9734 = vmatpush2.bf16.msra.mxu0 %v9266
  %9735 = vmatprep.subr.bf16.mxu0 %v9264
  %9736 = vmatpush2.bf16.msra.mxu0 %v9263
  %9737 = vmatprep.subr.bf16.mxu0 %v9261
  %9738 = vmatpush2.bf16.msra.mxu0 %v9260
  %9739 = vmatprep.subr.bf16.mxu0 %v9258
  %9740 = vmatpush2.bf16.msra.mxu0 %v9257
  %9741 = vmatprep.subr.bf16.mxu0 %v9255
  %9742 = vmatpush2.bf16.msra.mxu0 %v9254
  %9743 = vmatprep.mubr.bf16.mxu0 %v7629
  %9744 = vmatmul.mubr.bf16.gmra.mxu0 %v4785
  %v9745 = vpop.f32.mrf.mxu0
  %v9746 = vadd.f32 %v9597, %v9745
  %v9747 = vpop.f32.mrf.mxu0
  %v9748 = vadd.f32 %v9599, %v9747
  %v9749 = vpop.f32.mrf.mxu0
  %v9750 = vadd.f32 %v9601, %v9749
  %v9751 = vpop.f32.mrf.mxu0
  %v9752 = vadd.f32 %v9603, %v9751
  %9753 = vmatprep.mubr.bf16.mxu0 %v7632
  %9754 = vmatmul.mubr.bf16.gmra.mxu0 %v4797
  %v9755 = vpop.f32.mrf.mxu0
  %v9756 = vadd.f32 %v9607, %v9755
  %v9757 = vpop.f32.mrf.mxu0
  %v9758 = vadd.f32 %v9609, %v9757
  %v9759 = vpop.f32.mrf.mxu0
  %v9760 = vadd.f32 %v9611, %v9759
  %v9761 = vpop.f32.mrf.mxu0
  %v9762 = vadd.f32 %v9613, %v9761
  %9763 = vmatprep.mubr.bf16.mxu0 %v7635
  %9764 = vmatmul.mubr.bf16.gmra.mxu0 %v4809
  %v9765 = vpop.f32.mrf.mxu0
  %v9766 = vadd.f32 %v9617, %v9765
  %v9767 = vpop.f32.mrf.mxu0
  %v9768 = vadd.f32 %v9619, %v9767
  %v9769 = vpop.f32.mrf.mxu0
  %v9770 = vadd.f32 %v9621, %v9769
  %v9771 = vpop.f32.mrf.mxu0
  %v9772 = vadd.f32 %v9623, %v9771
  %9773 = vmatprep.mubr.bf16.mxu0 %v7638
  %9774 = vmatmul.mubr.bf16.gmra.mxu0 %v4821
  %v9775 = vpop.f32.mrf.mxu0
  %v9776 = vadd.f32 %v9627, %v9775
  %v9777 = vpop.f32.mrf.mxu0
  %v9778 = vadd.f32 %v9629, %v9777
  %v9779 = vpop.f32.mrf.mxu0
  %v9780 = vadd.f32 %v9631, %v9779
  %v9781 = vpop.f32.mrf.mxu0
  %v9782 = vadd.f32 %v9633, %v9781
  %9783 = vmatprep.mubr.bf16.mxu0 %v7641
  %9784 = vmatmul.mubr.bf16.gmra.mxu0 %v4833
  %v9785 = vpop.f32.mrf.mxu0
  %v9786 = vadd.f32 %v9637, %v9785
  %v9787 = vpop.f32.mrf.mxu0
  %v9788 = vadd.f32 %v9639, %v9787
  %v9789 = vpop.f32.mrf.mxu0
  %v9790 = vadd.f32 %v9641, %v9789
  %v9791 = vpop.f32.mrf.mxu0
  %v9792 = vadd.f32 %v9643, %v9791
  %9793 = vmatprep.mubr.bf16.mxu0 %v7644
  %9794 = vmatmul.mubr.bf16.gmra.mxu0 %v4845
  %v9795 = vpop.f32.mrf.mxu0
  %v9796 = vadd.f32 %v9647, %v9795
  %v9797 = vpop.f32.mrf.mxu0
  %v9798 = vadd.f32 %v9649, %v9797
  %v9799 = vpop.f32.mrf.mxu0
  %v9800 = vadd.f32 %v9651, %v9799
  %v9801 = vpop.f32.mrf.mxu0
  %v9802 = vadd.f32 %v9653, %v9801
  %9803 = vmatprep.mubr.bf16.mxu0 %v7647
  %9804 = vmatmul.mubr.bf16.gmra.mxu0 %v4857
  %v9805 = vpop.f32.mrf.mxu0
  %v9806 = vadd.f32 %v9657, %v9805
  %v9807 = vpop.f32.mrf.mxu0
  %v9808 = vadd.f32 %v9659, %v9807
  %v9809 = vpop.f32.mrf.mxu0
  %v9810 = vadd.f32 %v9661, %v9809
  %v9811 = vpop.f32.mrf.mxu0
  %v9812 = vadd.f32 %v9663, %v9811
  %9813 = vmatprep.mubr.bf16.mxu0 %v7650
  %9814 = vmatmul.mubr.bf16.gmra.mxu0 %v4869
  %v9815 = vpop.f32.mrf.mxu0
  %v9816 = vadd.f32 %v9667, %v9815
  %v9817 = vpop.f32.mrf.mxu0
  %v9818 = vadd.f32 %v9669, %v9817
  %v9819 = vpop.f32.mrf.mxu0
  %v9820 = vadd.f32 %v9671, %v9819
  %v9821 = vpop.f32.mrf.mxu0
  %v9822 = vadd.f32 %v9673, %v9821
  %9823 = vmatprep.mubr.bf16.mxu0 %v7653
  %9824 = vmatmul.mubr.bf16.gmra.mxu0 %v4881
  %v9825 = vpop.f32.mrf.mxu0
  %v9826 = vadd.f32 %v9677, %v9825
  %v9827 = vpop.f32.mrf.mxu0
  %v9828 = vadd.f32 %v9679, %v9827
  %v9829 = vpop.f32.mrf.mxu0
  %v9830 = vadd.f32 %v9681, %v9829
  %v9831 = vpop.f32.mrf.mxu0
  %v9832 = vadd.f32 %v9683, %v9831
  %9833 = vmatprep.mubr.bf16.mxu0 %v7656
  %9834 = vmatmul.mubr.bf16.gmra.mxu0 %v4893
  %v9835 = vpop.f32.mrf.mxu0
  %v9836 = vadd.f32 %v9687, %v9835
  %v9837 = vpop.f32.mrf.mxu0
  %v9838 = vadd.f32 %v9689, %v9837
  %v9839 = vpop.f32.mrf.mxu0
  %v9840 = vadd.f32 %v9691, %v9839
  %v9841 = vpop.f32.mrf.mxu0
  %v9842 = vadd.f32 %v9693, %v9841
  %9843 = vmatprep.mubr.bf16.mxu0 %v7659
  %9844 = vmatmul.mubr.bf16.gmra.mxu0 %v4905
  %v9845 = vpop.f32.mrf.mxu0
  %v9846 = vadd.f32 %v9697, %v9845
  %v9847 = vpop.f32.mrf.mxu0
  %v9848 = vadd.f32 %v9699, %v9847
  %v9849 = vpop.f32.mrf.mxu0
  %v9850 = vadd.f32 %v9701, %v9849
  %v9851 = vpop.f32.mrf.mxu0
  %v9852 = vadd.f32 %v9703, %v9851
  %9853 = vmatprep.mubr.bf16.mxu0 %v9411
  %9854 = vmatmul.mubr.bf16.gmra.mxu0 %v4917
  %v9855 = vpop.f32.mrf.mxu0
  %v9856 = vpop.f32.mrf.mxu0
  %v9857 = vpop.f32.mrf.mxu0
  %v9858 = vpop.f32.mrf.mxu0
  %9859 = vdwg.mxu0
  %9860 = vmatprep.subr.bf16.mxu0 0
  %9861 = vmatpush1.bf16.msra.mxu0 %v9157
  %9862 = vmatprep.subr.bf16.mxu0 0
  %9863 = vmatpush1.bf16.msra.mxu0 %v9154
  %9864 = vmatprep.subr.bf16.mxu0 0
  %9865 = vmatpush1.bf16.msra.mxu0 %v9151
  %9866 = vmatprep.subr.bf16.mxu0 0
  %9867 = vmatpush1.bf16.msra.mxu0 %v9148
  %9868 = vmatprep.subr.bf16.mxu0 0
  %9869 = vmatpush1.bf16.msra.mxu0 %v9145
  %9870 = vmatprep.subr.bf16.mxu0 0
  %9871 = vmatpush1.bf16.msra.mxu0 %v9142
  %9872 = vmatprep.subr.bf16.mxu0 0
  %9873 = vmatpush1.bf16.msra.mxu0 %v9139
  %9874 = vmatprep.subr.bf16.mxu0 0
  %9875 = vmatpush1.bf16.msra.mxu0 %v9136
  %9876 = vmatprep.subr.bf16.mxu0 0
  %9877 = vmatpush2.bf16.msra.mxu0 %v9181
  %9878 = vmatprep.subr.bf16.mxu0 0
  %9879 = vmatpush2.bf16.msra.mxu0 %v9178
  %9880 = vmatprep.subr.bf16.mxu0 0
  %9881 = vmatpush2.bf16.msra.mxu0 %v9175
  %9882 = vmatprep.subr.bf16.mxu0 0
  %9883 = vmatpush2.bf16.msra.mxu0 %v9172
  %9884 = vmatprep.subr.bf16.mxu0 0
  %9885 = vmatpush2.bf16.msra.mxu0 %v9169
  %9886 = vmatprep.subr.bf16.mxu0 0
  %9887 = vmatpush2.bf16.msra.mxu0 %v9166
  %9888 = vmatprep.subr.bf16.mxu0 0
  %9889 = vmatpush2.bf16.msra.mxu0 %v9163
  %9890 = vmatprep.subr.bf16.mxu0 0
  %9891 = vmatpush2.bf16.msra.mxu0 %v9160
  %9892 = vmatprep.mubr.bf16.mxu0 %v4782
  %9893 = vmatmul.mubr.bf16.gmra.mxu0 %v4781
  %v9894 = vpop.f32.mrf.mxu0
  %v9895 = vadd.f32 0.0, %v9894
  %v9896 = vpop.f32.mrf.mxu0
  %v9897 = vpop.f32.mrf.mxu0
  %v9898 = vadd.f32 0.0, %v9897
  %v9899 = vpop.f32.mrf.mxu0
  %9900 = vmatprep.mubr.bf16.mxu0 %v4794
  %9901 = vmatmul.mubr.bf16.gmra.mxu0 %v4793
  %v9902 = vpop.f32.mrf.mxu0
  %v9903 = vadd.f32 0.0, %v9902
  %v9904 = vpop.f32.mrf.mxu0
  %v9905 = vpop.f32.mrf.mxu0
  %v9906 = vadd.f32 0.0, %v9905
  %v9907 = vpop.f32.mrf.mxu0
  %9908 = vmatprep.mubr.bf16.mxu0 %v4806
  %9909 = vmatmul.mubr.bf16.gmra.mxu0 %v4805
  %v9910 = vpop.f32.mrf.mxu0
  %v9911 = vadd.f32 0.0, %v9910
  %v9912 = vpop.f32.mrf.mxu0
  %v9913 = vpop.f32.mrf.mxu0
  %v9914 = vadd.f32 0.0, %v9913
  %v9915 = vpop.f32.mrf.mxu0
  %9916 = vmatprep.mubr.bf16.mxu0 %v4818
  %9917 = vmatmul.mubr.bf16.gmra.mxu0 %v4817
  %v9918 = vpop.f32.mrf.mxu0
  %v9919 = vadd.f32 0.0, %v9918
  %v9920 = vpop.f32.mrf.mxu0
  %v9921 = vpop.f32.mrf.mxu0
  %v9922 = vadd.f32 0.0, %v9921
  %v9923 = vpop.f32.mrf.mxu0
  %9924 = vmatprep.mubr.bf16.mxu0 %v4830
  %9925 = vmatmul.mubr.bf16.gmra.mxu0 %v4829
  %v9926 = vpop.f32.mrf.mxu0
  %v9927 = vadd.f32 0.0, %v9926
  %v9928 = vpop.f32.mrf.mxu0
  %v9929 = vpop.f32.mrf.mxu0
  %v9930 = vadd.f32 0.0, %v9929
  %v9931 = vpop.f32.mrf.mxu0
  %9932 = vmatprep.mubr.bf16.mxu0 %v4842
  %9933 = vmatmul.mubr.bf16.gmra.mxu0 %v4841
  %v9934 = vpop.f32.mrf.mxu0
  %v9935 = vadd.f32 0.0, %v9934
  %v9936 = vpop.f32.mrf.mxu0
  %v9937 = vpop.f32.mrf.mxu0
  %v9938 = vadd.f32 0.0, %v9937
  %v9939 = vpop.f32.mrf.mxu0
  %9940 = vmatprep.mubr.bf16.mxu0 %v4854
  %9941 = vmatmul.mubr.bf16.gmra.mxu0 %v4853
  %v9942 = vpop.f32.mrf.mxu0
  %v9943 = vadd.f32 0.0, %v9942
  %v9944 = vpop.f32.mrf.mxu0
  %v9945 = vpop.f32.mrf.mxu0
  %v9946 = vadd.f32 0.0, %v9945
  %v9947 = vpop.f32.mrf.mxu0
  %9948 = vmatprep.mubr.bf16.mxu0 %v4866
  %9949 = vmatmul.mubr.bf16.gmra.mxu0 %v4865
  %v9950 = vpop.f32.mrf.mxu0
  %v9951 = vadd.f32 0.0, %v9950
  %v9952 = vpop.f32.mrf.mxu0
  %v9953 = vpop.f32.mrf.mxu0
  %v9954 = vadd.f32 0.0, %v9953
  %v9955 = vpop.f32.mrf.mxu0
  %9956 = vmatprep.mubr.bf16.mxu0 %v4878
  %9957 = vmatmul.mubr.bf16.gmra.mxu0 %v4877
  %v9958 = vpop.f32.mrf.mxu0
  %v9959 = vadd.f32 0.0, %v9958
  %v9960 = vpop.f32.mrf.mxu0
  %v9961 = vpop.f32.mrf.mxu0
  %v9962 = vadd.f32 0.0, %v9961
  %v9963 = vpop.f32.mrf.mxu0
  %9964 = vmatprep.mubr.bf16.mxu0 %v4890
  %9965 = vmatmul.mubr.bf16.gmra.mxu0 %v4889
  %v9966 = vpop.f32.mrf.mxu0
  %v9967 = vadd.f32 0.0, %v9966
  %v9968 = vpop.f32.mrf.mxu0
  %v9969 = vpop.f32.mrf.mxu0
  %v9970 = vadd.f32 0.0, %v9969
  %v9971 = vpop.f32.mrf.mxu0
  %9972 = vmatprep.mubr.bf16.mxu0 %v4902
  %9973 = vmatmul.mubr.bf16.gmra.mxu0 %v4901
  %v9974 = vpop.f32.mrf.mxu0
  %v9975 = vadd.f32 0.0, %v9974
  %v9976 = vpop.f32.mrf.mxu0
  %v9977 = vpop.f32.mrf.mxu0
  %v9978 = vadd.f32 0.0, %v9977
  %v9979 = vpop.f32.mrf.mxu0
  %9980 = vmatprep.mubr.bf16.mxu0 %v4914
  %9981 = vmatmul.mubr.bf16.gmra.mxu0 %v4913
  %v9982 = vpop.f32.mrf.mxu0
  %v9983 = vpop.f32.mrf.mxu0
  %v9984 = vpop.f32.mrf.mxu0
  %v9985 = vpop.f32.mrf.mxu0
  %9986 = vdwg.mxu0
  %9987 = vmatprep.subr.bf16.mxu0 0
  %9988 = vmatpush1.bf16.msra.mxu0 %v9205
  %9989 = vmatprep.subr.bf16.mxu0 0
  %9990 = vmatpush1.bf16.msra.mxu0 %v9202
  %9991 = vmatprep.subr.bf16.mxu0 0
  %9992 = vmatpush1.bf16.msra.mxu0 %v9199
  %9993 = vmatprep.subr.bf16.mxu0 0
  %9994 = vmatpush1.bf16.msra.mxu0 %v9196
  %9995 = vmatprep.subr.bf16.mxu0 0
  %9996 = vmatpush1.bf16.msra.mxu0 %v9193
  %9997 = vmatprep.subr.bf16.mxu0 0
  %9998 = vmatpush1.bf16.msra.mxu0 %v9190
  %9999 = vmatprep.subr.bf16.mxu0 0
  %10000 = vmatpush1.bf16.msra.mxu0 %v9187
  %10001 = vmatprep.subr.bf16.mxu0 0
  %10002 = vmatpush1.bf16.msra.mxu0 %v9184
  %10003 = vmatprep.subr.bf16.mxu0 0
  %10004 = vmatpush2.bf16.msra.mxu0 %v9229
  %10005 = vmatprep.subr.bf16.mxu0 0
  %10006 = vmatpush2.bf16.msra.mxu0 %v9226
  %10007 = vmatprep.subr.bf16.mxu0 0
  %10008 = vmatpush2.bf16.msra.mxu0 %v9223
  %10009 = vmatprep.subr.bf16.mxu0 0
  %10010 = vmatpush2.bf16.msra.mxu0 %v9220
  %10011 = vmatprep.subr.bf16.mxu0 0
  %10012 = vmatpush2.bf16.msra.mxu0 %v9217
  %10013 = vmatprep.subr.bf16.mxu0 0
  %10014 = vmatpush2.bf16.msra.mxu0 %v9214
  %10015 = vmatprep.subr.bf16.mxu0 0
  %10016 = vmatpush2.bf16.msra.mxu0 %v9211
  %10017 = vmatprep.subr.bf16.mxu0 0
  %10018 = vmatpush2.bf16.msra.mxu0 %v9208
  %10019 = vmatprep.mubr.bf16.mxu0 %v4784
  %10020 = vmatmul.mubr.bf16.gmra.mxu0 %v4783
  %v10021 = vpop.f32.mrf.mxu0
  %v10022 = vadd.f32 %v9895, %v10021
  %v10023 = vpop.f32.mrf.mxu0
  %v10024 = vpop.f32.mrf.mxu0
  %v10025 = vadd.f32 %v9898, %v10024
  %v10026 = vpop.f32.mrf.mxu0
  %10027 = vmatprep.mubr.bf16.mxu0 %v4796
  %10028 = vmatmul.mubr.bf16.gmra.mxu0 %v4795
  %v10029 = vpop.f32.mrf.mxu0
  %v10030 = vadd.f32 %v9903, %v10029
  %v10031 = vpop.f32.mrf.mxu0
  %v10032 = vpop.f32.mrf.mxu0
  %v10033 = vadd.f32 %v9906, %v10032
  %v10034 = vpop.f32.mrf.mxu0
  %10035 = vmatprep.mubr.bf16.mxu0 %v4808
  %10036 = vmatmul.mubr.bf16.gmra.mxu0 %v4807
  %v10037 = vpop.f32.mrf.mxu0
  %v10038 = vadd.f32 %v9911, %v10037
  %v10039 = vpop.f32.mrf.mxu0
  %v10040 = vpop.f32.mrf.mxu0
  %v10041 = vadd.f32 %v9914, %v10040
  %v10042 = vpop.f32.mrf.mxu0
  %10043 = vmatprep.mubr.bf16.mxu0 %v4820
  %10044 = vmatmul.mubr.bf16.gmra.mxu0 %v4819
  %v10045 = vpop.f32.mrf.mxu0
  %v10046 = vadd.f32 %v9919, %v10045
  %v10047 = vpop.f32.mrf.mxu0
  %v10048 = vpop.f32.mrf.mxu0
  %v10049 = vadd.f32 %v9922, %v10048
  %v10050 = vpop.f32.mrf.mxu0
  %10051 = vmatprep.mubr.bf16.mxu0 %v4832
  %10052 = vmatmul.mubr.bf16.gmra.mxu0 %v4831
  %v10053 = vpop.f32.mrf.mxu0
  %v10054 = vadd.f32 %v9927, %v10053
  %v10055 = vpop.f32.mrf.mxu0
  %v10056 = vpop.f32.mrf.mxu0
  %v10057 = vadd.f32 %v9930, %v10056
  %v10058 = vpop.f32.mrf.mxu0
  %10059 = vmatprep.mubr.bf16.mxu0 %v4844
  %10060 = vmatmul.mubr.bf16.gmra.mxu0 %v4843
  %v10061 = vpop.f32.mrf.mxu0
  %v10062 = vadd.f32 %v9935, %v10061
  %v10063 = vpop.f32.mrf.mxu0
  %v10064 = vpop.f32.mrf.mxu0
  %v10065 = vadd.f32 %v9938, %v10064
  %v10066 = vpop.f32.mrf.mxu0
  %10067 = vmatprep.mubr.bf16.mxu0 %v4856
  %10068 = vmatmul.mubr.bf16.gmra.mxu0 %v4855
  %v10069 = vpop.f32.mrf.mxu0
  %v10070 = vadd.f32 %v9943, %v10069
  %v10071 = vpop.f32.mrf.mxu0
  %v10072 = vpop.f32.mrf.mxu0
  %v10073 = vadd.f32 %v9946, %v10072
  %v10074 = vpop.f32.mrf.mxu0
  %10075 = vmatprep.mubr.bf16.mxu0 %v4868
  %10076 = vmatmul.mubr.bf16.gmra.mxu0 %v4867
  %v10077 = vpop.f32.mrf.mxu0
  %v10078 = vadd.f32 %v9951, %v10077
  %v10079 = vpop.f32.mrf.mxu0
  %v10080 = vpop.f32.mrf.mxu0
  %v10081 = vadd.f32 %v9954, %v10080
  %v10082 = vpop.f32.mrf.mxu0
  %10083 = vmatprep.mubr.bf16.mxu0 %v4880
  %10084 = vmatmul.mubr.bf16.gmra.mxu0 %v4879
  %v10085 = vpop.f32.mrf.mxu0
  %v10086 = vadd.f32 %v9959, %v10085
  %v10087 = vpop.f32.mrf.mxu0
  %v10088 = vpop.f32.mrf.mxu0
  %v10089 = vadd.f32 %v9962, %v10088
  %v10090 = vpop.f32.mrf.mxu0
  %10091 = vmatprep.mubr.bf16.mxu0 %v4892
  %10092 = vmatmul.mubr.bf16.gmra.mxu0 %v4891
  %v10093 = vpop.f32.mrf.mxu0
  %v10094 = vadd.f32 %v9967, %v10093
  %v10095 = vpop.f32.mrf.mxu0
  %v10096 = vpop.f32.mrf.mxu0
  %v10097 = vadd.f32 %v9970, %v10096
  %v10098 = vpop.f32.mrf.mxu0
  %10099 = vmatprep.mubr.bf16.mxu0 %v4904
  %10100 = vmatmul.mubr.bf16.gmra.mxu0 %v4903
  %v10101 = vpop.f32.mrf.mxu0
  %v10102 = vadd.f32 %v9975, %v10101
  %v10103 = vpop.f32.mrf.mxu0
  %v10104 = vpop.f32.mrf.mxu0
  %v10105 = vadd.f32 %v9978, %v10104
  %v10106 = vpop.f32.mrf.mxu0
  %10107 = vmatprep.mubr.bf16.mxu0 %v4916
  %10108 = vmatmul.mubr.bf16.gmra.mxu0 %v4915
  %v10109 = vpop.f32.mrf.mxu0
  %v10110 = vpop.f32.mrf.mxu0
  %v10111 = vpop.f32.mrf.mxu0
  %v10112 = vpop.f32.mrf.mxu0
  %10113 = vdwg.mxu0
  %10114 = vmatprep.subr.bf16.mxu0 0
  %10115 = vmatpush1.bf16.msra.mxu0 %v9253
  %10116 = vmatprep.subr.bf16.mxu0 0
  %10117 = vmatpush1.bf16.msra.mxu0 %v9250
  %10118 = vmatprep.subr.bf16.mxu0 0
  %10119 = vmatpush1.bf16.msra.mxu0 %v9247
  %10120 = vmatprep.subr.bf16.mxu0 0
  %10121 = vmatpush1.bf16.msra.mxu0 %v9244
  %10122 = vmatprep.subr.bf16.mxu0 0
  %10123 = vmatpush1.bf16.msra.mxu0 %v9241
  %10124 = vmatprep.subr.bf16.mxu0 0
  %10125 = vmatpush1.bf16.msra.mxu0 %v9238
  %10126 = vmatprep.subr.bf16.mxu0 0
  %10127 = vmatpush1.bf16.msra.mxu0 %v9235
  %10128 = vmatprep.subr.bf16.mxu0 0
  %10129 = vmatpush1.bf16.msra.mxu0 %v9232
  %10130 = vmatprep.subr.bf16.mxu0 0
  %10131 = vmatpush2.bf16.msra.mxu0 0
  %10132 = vmatprep.subr.bf16.mxu0 0
  %10133 = vmatpush2.bf16.msra.mxu0 0
  %10134 = vmatprep.subr.bf16.mxu0 0
  %10135 = vmatpush2.bf16.msra.mxu0 %v9271
  %10136 = vmatprep.subr.bf16.mxu0 0
  %10137 = vmatpush2.bf16.msra.mxu0 %v9268
  %10138 = vmatprep.subr.bf16.mxu0 0
  %10139 = vmatpush2.bf16.msra.mxu0 %v9265
  %10140 = vmatprep.subr.bf16.mxu0 0
  %10141 = vmatpush2.bf16.msra.mxu0 %v9262
  %10142 = vmatprep.subr.bf16.mxu0 0
  %10143 = vmatpush2.bf16.msra.mxu0 %v9259
  %10144 = vmatprep.subr.bf16.mxu0 0
  %10145 = vmatpush2.bf16.msra.mxu0 %v9256
  %10146 = vmatprep.mubr.bf16.mxu0 %v7629
  %10147 = vmatmul.mubr.bf16.gmra.mxu0 %v4785
  %v10148 = vpop.f32.mrf.mxu0
  %v10149 = vadd.f32 %v10022, %v10148
  %v10150 = vpop.f32.mrf.mxu0
  %v10151 = vpop.f32.mrf.mxu0
  %v10152 = vadd.f32 %v10025, %v10151
  %v10153 = vpop.f32.mrf.mxu0
  %10154 = vmatprep.mubr.bf16.mxu0 %v7632
  %10155 = vmatmul.mubr.bf16.gmra.mxu0 %v4797
  %v10156 = vpop.f32.mrf.mxu0
  %v10157 = vadd.f32 %v10030, %v10156
  %v10158 = vpop.f32.mrf.mxu0
  %v10159 = vpop.f32.mrf.mxu0
  %v10160 = vadd.f32 %v10033, %v10159
  %v10161 = vpop.f32.mrf.mxu0
  %10162 = vmatprep.mubr.bf16.mxu0 %v7635
  %10163 = vmatmul.mubr.bf16.gmra.mxu0 %v4809
  %v10164 = vpop.f32.mrf.mxu0
  %v10165 = vadd.f32 %v10038, %v10164
  %v10166 = vpop.f32.mrf.mxu0
  %v10167 = vpop.f32.mrf.mxu0
  %v10168 = vadd.f32 %v10041, %v10167
  %v10169 = vpop.f32.mrf.mxu0
  %10170 = vmatprep.mubr.bf16.mxu0 %v7638
  %10171 = vmatmul.mubr.bf16.gmra.mxu0 %v4821
  %v10172 = vpop.f32.mrf.mxu0
  %v10173 = vadd.f32 %v10046, %v10172
  %v10174 = vpop.f32.mrf.mxu0
  %v10175 = vpop.f32.mrf.mxu0
  %v10176 = vadd.f32 %v10049, %v10175
  %v10177 = vpop.f32.mrf.mxu0
  %10178 = vmatprep.mubr.bf16.mxu0 %v7641
  %10179 = vmatmul.mubr.bf16.gmra.mxu0 %v4833
  %v10180 = vpop.f32.mrf.mxu0
  %v10181 = vadd.f32 %v10054, %v10180
  %v10182 = vpop.f32.mrf.mxu0
  %v10183 = vpop.f32.mrf.mxu0
  %v10184 = vadd.f32 %v10057, %v10183
  %v10185 = vpop.f32.mrf.mxu0
  %10186 = vmatprep.mubr.bf16.mxu0 %v7644
  %10187 = vmatmul.mubr.bf16.gmra.mxu0 %v4845
  %v10188 = vpop.f32.mrf.mxu0
  %v10189 = vadd.f32 %v10062, %v10188
  %v10190 = vpop.f32.mrf.mxu0
  %v10191 = vpop.f32.mrf.mxu0
  %v10192 = vadd.f32 %v10065, %v10191
  %v10193 = vpop.f32.mrf.mxu0
  %10194 = vmatprep.mubr.bf16.mxu0 %v7647
  %10195 = vmatmul.mubr.bf16.gmra.mxu0 %v4857
  %v10196 = vpop.f32.mrf.mxu0
  %v10197 = vadd.f32 %v10070, %v10196
  %v10198 = vpop.f32.mrf.mxu0
  %v10199 = vpop.f32.mrf.mxu0
  %v10200 = vadd.f32 %v10073, %v10199
  %v10201 = vpop.f32.mrf.mxu0
  %10202 = vmatprep.mubr.bf16.mxu0 %v7650
  %10203 = vmatmul.mubr.bf16.gmra.mxu0 %v4869
  %v10204 = vpop.f32.mrf.mxu0
  %v10205 = vadd.f32 %v10078, %v10204
  %v10206 = vpop.f32.mrf.mxu0
  %v10207 = vpop.f32.mrf.mxu0
  %v10208 = vadd.f32 %v10081, %v10207
  %v10209 = vpop.f32.mrf.mxu0
  %10210 = vmatprep.mubr.bf16.mxu0 %v7653
  %10211 = vmatmul.mubr.bf16.gmra.mxu0 %v4881
  %v10212 = vpop.f32.mrf.mxu0
  %v10213 = vadd.f32 %v10086, %v10212
  %v10214 = vpop.f32.mrf.mxu0
  %v10215 = vpop.f32.mrf.mxu0
  %v10216 = vadd.f32 %v10089, %v10215
  %v10217 = vpop.f32.mrf.mxu0
  %10218 = vmatprep.mubr.bf16.mxu0 %v7656
  %10219 = vmatmul.mubr.bf16.gmra.mxu0 %v4893
  %v10220 = vpop.f32.mrf.mxu0
  %v10221 = vadd.f32 %v10094, %v10220
  %v10222 = vpop.f32.mrf.mxu0
  %v10223 = vpop.f32.mrf.mxu0
  %v10224 = vadd.f32 %v10097, %v10223
  %v10225 = vpop.f32.mrf.mxu0
  %10226 = vmatprep.mubr.bf16.mxu0 %v7659
  %10227 = vmatmul.mubr.bf16.gmra.mxu0 %v4905
  %v10228 = vpop.f32.mrf.mxu0
  %v10229 = vadd.f32 %v10102, %v10228
  %v10230 = vpop.f32.mrf.mxu0
  %v10231 = vpop.f32.mrf.mxu0
  %v10232 = vadd.f32 %v10105, %v10231
  %v10233 = vpop.f32.mrf.mxu0
  %10234 = vmatprep.mubr.bf16.mxu0 %v9411
  %10235 = vmatmul.mubr.bf16.gmra.mxu0 %v4917
  %v10236 = vpop.f32.mrf.mxu0
  %v10237 = vpop.f32.mrf.mxu0
  %v10238 = vpop.f32.mrf.mxu0
  %v10239 = vpop.f32.mrf.mxu0
  %10240 = vdwg.mxu0
  %v10241 = vadd.f32 %v7994, %v9746
  %v10242 = vadd.f32 %v7996, %v9748
  %v10243 = vadd.f32 %v8397, %v10149
  %v10244 = vadd.f32 %v7998, %v9750
  %v10245 = vadd.f32 %v8000, %v9752
  %v10246 = vadd.f32 %v8400, %v10152
  %v10247 = vadd.f32 %v8004, %v9756
  %v10248 = vadd.f32 %v8006, %v9758
  %v10249 = vadd.f32 %v8405, %v10157
  %v10250 = vadd.f32 %v8008, %v9760
  %v10251 = vadd.f32 %v8010, %v9762
  %v10252 = vadd.f32 %v8408, %v10160
  %v10253 = vadd.f32 %v8014, %v9766
  %v10254 = vadd.f32 %v8016, %v9768
  %v10255 = vadd.f32 %v8413, %v10165
  %v10256 = vadd.f32 %v8018, %v9770
  %v10257 = vadd.f32 %v8020, %v9772
  %v10258 = vadd.f32 %v8416, %v10168
  %v10259 = vadd.f32 %v8024, %v9776
  %v10260 = vadd.f32 %v8026, %v9778
  %v10261 = vadd.f32 %v8421, %v10173
  %v10262 = vadd.f32 %v8028, %v9780
  %v10263 = vadd.f32 %v8030, %v9782
  %v10264 = vadd.f32 %v8424, %v10176
  %v10265 = vadd.f32 %v8034, %v9786
  %v10266 = vadd.f32 %v8036, %v9788
  %v10267 = vadd.f32 %v8429, %v10181
  %v10268 = vadd.f32 %v8038, %v9790
  %v10269 = vadd.f32 %v8040, %v9792
  %v10270 = vadd.f32 %v8432, %v10184
  %v10271 = vadd.f32 %v8044, %v9796
  %v10272 = vadd.f32 %v8046, %v9798
  %v10273 = vadd.f32 %v8437, %v10189
  %v10274 = vadd.f32 %v8048, %v9800
  %v10275 = vadd.f32 %v8050, %v9802
  %v10276 = vadd.f32 %v8440, %v10192
  %v10277 = vadd.f32 %v8054, %v9806
  %v10278 = vadd.f32 %v8056, %v9808
  %v10279 = vadd.f32 %v8445, %v10197
  %v10280 = vadd.f32 %v8058, %v9810
  %v10281 = vadd.f32 %v8060, %v9812
  %v10282 = vadd.f32 %v8448, %v10200
  %v10283 = vadd.f32 %v8064, %v9816
  %v10284 = vadd.f32 %v8066, %v9818
  %v10285 = vadd.f32 %v8453, %v10205
  %v10286 = vadd.f32 %v8068, %v9820
  %v10287 = vadd.f32 %v8070, %v9822
  %v10288 = vadd.f32 %v8456, %v10208
  %v10289 = vadd.f32 %v8074, %v9826
  %v10290 = vadd.f32 %v8076, %v9828
  %v10291 = vadd.f32 %v8461, %v10213
  %v10292 = vadd.f32 %v8078, %v9830
  %v10293 = vadd.f32 %v8080, %v9832
  %v10294 = vadd.f32 %v8464, %v10216
  %v10295 = vadd.f32 %v8084, %v9836
  %v10296 = vadd.f32 %v8086, %v9838
  %v10297 = vadd.f32 %v8469, %v10221
  %v10298 = vadd.f32 %v8088, %v9840
  %v10299 = vadd.f32 %v8090, %v9842
  %v10300 = vadd.f32 %v8472, %v10224
  %v10301 = vadd.f32 %v8094, %v9846
  %v10302 = vadd.f32 %v8096, %v9848
  %v10303 = vadd.f32 %v8477, %v10229
  %v10304 = vadd.f32 %v8098, %v9850
  %v10305 = vadd.f32 %v8100, %v9852
  %v10306 = vadd.f32 %v8480, %v10232
  %v10307 = vld [vmem:[%s4] sm:$0x7]
  %v10309 = vlaneseq
  %v10310 = vshrl.u32 %v10309, 7
  %v10311 = vsub.s32 0, %v10310
  %v10312 = vrot.slane %v10307, %v10311
  %v10313 = vlaneseq
  %v10314 = vshrl.u32 %v10313, 7
  %v10315 = vsub.s32 1, %v10314
  %v10316 = vrot.slane %v10307, %v10315
  %v10317 = vlaneseq
  %v10318 = vshrl.u32 %v10317, 7
  %v10319 = vsub.s32 2, %v10318
  %v10320 = vrot.slane %v10307, %v10319
  %v10324 = vadd.f32 %v10241, %v10312
  %v10325 = vadd.f32 %v10242, %v10316
  %v10326 = vadd.f32 %v10243, %v10320
  %v10327 = vadd.f32 %v10244, %v10312
  %v10328 = vadd.f32 %v10245, %v10316
  %v10329 = vadd.f32 %v10246, %v10320
  %v10330 = vadd.f32 %v10247, %v10312
  %v10331 = vadd.f32 %v10248, %v10316
  %v10332 = vadd.f32 %v10249, %v10320
  %v10333 = vadd.f32 %v10250, %v10312
  %v10334 = vadd.f32 %v10251, %v10316
  %v10335 = vadd.f32 %v10252, %v10320
  %v10336 = vadd.f32 %v10253, %v10312
  %v10337 = vadd.f32 %v10254, %v10316
  %v10338 = vadd.f32 %v10255, %v10320
  %v10339 = vadd.f32 %v10256, %v10312
  %v10340 = vadd.f32 %v10257, %v10316
  %v10341 = vadd.f32 %v10258, %v10320
  %v10342 = vadd.f32 %v10259, %v10312
  %v10343 = vadd.f32 %v10260, %v10316
  %v10344 = vadd.f32 %v10261, %v10320
  %v10345 = vadd.f32 %v10262, %v10312
  %v10346 = vadd.f32 %v10263, %v10316
  %v10347 = vadd.f32 %v10264, %v10320
  %v10348 = vadd.f32 %v10265, %v10312
  %v10349 = vadd.f32 %v10266, %v10316
  %v10350 = vadd.f32 %v10267, %v10320
  %v10351 = vadd.f32 %v10268, %v10312
  %v10352 = vadd.f32 %v10269, %v10316
  %v10353 = vadd.f32 %v10270, %v10320
  %v10354 = vadd.f32 %v10271, %v10312
  %v10355 = vadd.f32 %v10272, %v10316
  %v10356 = vadd.f32 %v10273, %v10320
  %v10357 = vadd.f32 %v10274, %v10312
  %v10358 = vadd.f32 %v10275, %v10316
  %v10359 = vadd.f32 %v10276, %v10320
  %v10360 = vadd.f32 %v10277, %v10312
  %v10361 = vadd.f32 %v10278, %v10316
  %v10362 = vadd.f32 %v10279, %v10320
  %v10363 = vadd.f32 %v10280, %v10312
  %v10364 = vadd.f32 %v10281, %v10316
  %v10365 = vadd.f32 %v10282, %v10320
  %v10366 = vadd.f32 %v10283, %v10312
  %v10367 = vadd.f32 %v10284, %v10316
  %v10368 = vadd.f32 %v10285, %v10320
  %v10369 = vadd.f32 %v10286, %v10312
  %v10370 = vadd.f32 %v10287, %v10316
  %v10371 = vadd.f32 %v10288, %v10320
  %v10372 = vadd.f32 %v10289, %v10312
  %v10373 = vadd.f32 %v10290, %v10316
  %v10374 = vadd.f32 %v10291, %v10320
  %v10375 = vadd.f32 %v10292, %v10312
  %v10376 = vadd.f32 %v10293, %v10316
  %v10377 = vadd.f32 %v10294, %v10320
  %v10378 = vadd.f32 %v10295, %v10312
  %v10379 = vadd.f32 %v10296, %v10316
  %v10380 = vadd.f32 %v10297, %v10320
  %v10381 = vadd.f32 %v10298, %v10312
  %v10382 = vadd.f32 %v10299, %v10316
  %v10383 = vadd.f32 %v10300, %v10320
  %v10384 = vadd.f32 %v10301, %v10312
  %v10385 = vadd.f32 %v10302, %v10316
  %v10386 = vadd.f32 %v10303, %v10320
  %v10387 = vadd.f32 %v10304, %v10312
  %v10388 = vadd.f32 %v10305, %v10316
  %v10389 = vadd.f32 %v10306, %v10320
  %v10390 = vmul.f32 %v10324, 0.2
  %v10391 = vmul.f32 %v10325, 0.2
  %v10392 = vmul.f32 %v10326, 0.2
  %v10393 = vmul.f32 %v10327, 0.2
  %v10394 = vmul.f32 %v10328, 0.2
  %v10395 = vmul.f32 %v10329, 0.2
  %v10396 = vmul.f32 %v10330, 0.2
  %v10397 = vmul.f32 %v10331, 0.2
  %v10398 = vmul.f32 %v10332, 0.2
  %v10399 = vmul.f32 %v10333, 0.2
  %v10400 = vmul.f32 %v10334, 0.2
  %v10401 = vmul.f32 %v10335, 0.2
  %v10402 = vmul.f32 %v10336, 0.2
  %v10403 = vmul.f32 %v10337, 0.2
  %v10404 = vmul.f32 %v10338, 0.2
  %v10405 = vmul.f32 %v10339, 0.2
  %v10406 = vmul.f32 %v10340, 0.2
  %v10407 = vmul.f32 %v10341, 0.2
  %v10408 = vmul.f32 %v10342, 0.2
  %v10409 = vmul.f32 %v10343, 0.2
  %v10410 = vmul.f32 %v10344, 0.2
  %v10411 = vmul.f32 %v10345, 0.2
  %v10412 = vmul.f32 %v10346, 0.2
  %v10413 = vmul.f32 %v10347, 0.2
  %v10414 = vmul.f32 %v10348, 0.2
  %v10415 = vmul.f32 %v10349, 0.2
  %v10416 = vmul.f32 %v10350, 0.2
  %v10417 = vmul.f32 %v10351, 0.2
  %v10418 = vmul.f32 %v10352, 0.2
  %v10419 = vmul.f32 %v10353, 0.2
  %v10420 = vmul.f32 %v10354, 0.2
  %v10421 = vmul.f32 %v10355, 0.2
  %v10422 = vmul.f32 %v10356, 0.2
  %v10423 = vmul.f32 %v10357, 0.2
  %v10424 = vmul.f32 %v10358, 0.2
  %v10425 = vmul.f32 %v10359, 0.2
  %v10426 = vmul.f32 %v10360, 0.2
  %v10427 = vmul.f32 %v10361, 0.2
  %v10428 = vmul.f32 %v10362, 0.2
  %v10429 = vmul.f32 %v10363, 0.2
  %v10430 = vmul.f32 %v10364, 0.2
  %v10431 = vmul.f32 %v10365, 0.2
  %v10432 = vmul.f32 %v10366, 0.2
  %v10433 = vmul.f32 %v10367, 0.2
  %v10434 = vmul.f32 %v10368, 0.2
  %v10435 = vmul.f32 %v10369, 0.2
  %v10436 = vmul.f32 %v10370, 0.2
  %v10437 = vmul.f32 %v10371, 0.2
  %v10438 = vmul.f32 %v10372, 0.2
  %v10439 = vmul.f32 %v10373, 0.2
  %v10440 = vmul.f32 %v10374, 0.2
  %v10441 = vmul.f32 %v10375, 0.2
  %v10442 = vmul.f32 %v10376, 0.2
  %v10443 = vmul.f32 %v10377, 0.2
  %v10444 = vmul.f32 %v10378, 0.2
  %v10445 = vmul.f32 %v10379, 0.2
  %v10446 = vmul.f32 %v10380, 0.2
  %v10447 = vmul.f32 %v10381, 0.2
  %v10448 = vmul.f32 %v10382, 0.2
  %v10449 = vmul.f32 %v10383, 0.2
  %v10450 = vmul.f32 %v10384, 0.2
  %v10451 = vmul.f32 %v10385, 0.2
  %v10452 = vmul.f32 %v10386, 0.2
  %v10453 = vmul.f32 %v10387, 0.2
  %v10454 = vmul.f32 %v10388, 0.2
  %v10455 = vmul.f32 %v10389, 0.2
  %v10456 = vmax.f32 %v10324, %v10390
  %v10457 = vmax.f32 %v10325, %v10391
  %v10458 = vmax.f32 %v10326, %v10392
  %v10459 = vmax.f32 %v10327, %v10393
  %v10460 = vmax.f32 %v10328, %v10394
  %v10461 = vmax.f32 %v10329, %v10395
  %v10462 = vmax.f32 %v10330, %v10396
  %v10463 = vmax.f32 %v10331, %v10397
  %v10464 = vmax.f32 %v10332, %v10398
  %v10465 = vmax.f32 %v10333, %v10399
  %v10466 = vmax.f32 %v10334, %v10400
  %v10467 = vmax.f32 %v10335, %v10401
  %v10468 = vmax.f32 %v10336, %v10402
  %v10469 = vmax.f32 %v10337, %v10403
  %v10470 = vmax.f32 %v10338, %v10404
  %v10471 = vmax.f32 %v10339, %v10405
  %v10472 = vmax.f32 %v10340, %v10406
  %v10473 = vmax.f32 %v10341, %v10407
  %v10474 = vmax.f32 %v10342, %v10408
  %v10475 = vmax.f32 %v10343, %v10409
  %v10476 = vmax.f32 %v10344, %v10410
  %v10477 = vmax.f32 %v10345, %v10411
  %v10478 = vmax.f32 %v10346, %v10412
  %v10479 = vmax.f32 %v10347, %v10413
  %v10480 = vmax.f32 %v10348, %v10414
  %v10481 = vmax.f32 %v10349, %v10415
  %v10482 = vmax.f32 %v10350, %v10416
  %v10483 = vmax.f32 %v10351, %v10417
  %v10484 = vmax.f32 %v10352, %v10418
  %v10485 = vmax.f32 %v10353, %v10419
  %v10486 = vmax.f32 %v10354, %v10420
  %v10487 = vmax.f32 %v10355, %v10421
  %v10488 = vmax.f32 %v10356, %v10422
  %v10489 = vmax.f32 %v10357, %v10423
  %v10490 = vmax.f32 %v10358, %v10424
  %v10491 = vmax.f32 %v10359, %v10425
  %v10492 = vmax.f32 %v10360, %v10426
  %v10493 = vmax.f32 %v10361, %v10427
  %v10494 = vmax.f32 %v10362, %v10428
  %v10495 = vmax.f32 %v10363, %v10429
  %v10496 = vmax.f32 %v10364, %v10430
  %v10497 = vmax.f32 %v10365, %v10431
  %v10498 = vmax.f32 %v10366, %v10432
  %v10499 = vmax.f32 %v10367, %v10433
  %v10500 = vmax.f32 %v10368, %v10434
  %v10501 = vmax.f32 %v10369, %v10435
  %v10502 = vmax.f32 %v10370, %v10436
  %v10503 = vmax.f32 %v10371, %v10437
  %v10504 = vmax.f32 %v10372, %v10438
  %v10505 = vmax.f32 %v10373, %v10439
  %v10506 = vmax.f32 %v10374, %v10440
  %v10507 = vmax.f32 %v10375, %v10441
  %v10508 = vmax.f32 %v10376, %v10442
  %v10509 = vmax.f32 %v10377, %v10443
  %v10510 = vmax.f32 %v10378, %v10444
  %v10511 = vmax.f32 %v10379, %v10445
  %v10512 = vmax.f32 %v10380, %v10446
  %v10513 = vmax.f32 %v10381, %v10447
  %v10514 = vmax.f32 %v10382, %v10448
  %v10515 = vmax.f32 %v10383, %v10449
  %v10516 = vmax.f32 %v10384, %v10450
  %v10517 = vmax.f32 %v10385, %v10451
  %v10518 = vmax.f32 %v10386, %v10452
  %v10519 = vmax.f32 %v10387, %v10453
  %v10520 = vmax.f32 %v10388, %v10454
  %v10521 = vmax.f32 %v10389, %v10455
  %v10522 = vpack.c.bf16 %v10459, %v10456
  %v10523 = vpack.c.bf16 %v10460, %v10457
  %v10524 = vpack.c.bf16 %v10461, %v10458
  %v10525 = vpack.c.bf16 %v10465, %v10462
  %v10526 = vpack.c.bf16 %v10466, %v10463
  %v10527 = vpack.c.bf16 %v10467, %v10464
  %v10528 = vpack.c.bf16 %v10471, %v10468
  %v10529 = vpack.c.bf16 %v10472, %v10469
  %v10530 = vpack.c.bf16 %v10473, %v10470
  %v10531 = vpack.c.bf16 %v10477, %v10474
  %v10532 = vpack.c.bf16 %v10478, %v10475
  %v10533 = vpack.c.bf16 %v10479, %v10476
  %v10534 = vpack.c.bf16 %v10483, %v10480
  %v10535 = vpack.c.bf16 %v10484, %v10481
  %v10536 = vpack.c.bf16 %v10485, %v10482
  %v10537 = vpack.c.bf16 %v10489, %v10486
  %v10538 = vpack.c.bf16 %v10490, %v10487
  %v10539 = vpack.c.bf16 %v10491, %v10488
  %v10540 = vpack.c.bf16 %v10495, %v10492
  %v10541 = vpack.c.bf16 %v10496, %v10493
  %v10542 = vpack.c.bf16 %v10497, %v10494
  %v10543 = vpack.c.bf16 %v10501, %v10498
  %v10544 = vpack.c.bf16 %v10502, %v10499
  %v10545 = vpack.c.bf16 %v10503, %v10500
  %v10546 = vpack.c.bf16 %v10507, %v10504
  %v10547 = vpack.c.bf16 %v10508, %v10505
  %v10548 = vpack.c.bf16 %v10509, %v10506
  %v10549 = vpack.c.bf16 %v10513, %v10510
  %v10550 = vpack.c.bf16 %v10514, %v10511
  %v10551 = vpack.c.bf16 %v10515, %v10512
  %v10552 = vpack.c.bf16 %v10519, %v10516
  %v10553 = vpack.c.bf16 %v10520, %v10517
  %v10554 = vpack.c.bf16 %v10521, %v10518
  %v10555 = vld [vmem:[%s5] sm:$0xff]
  %v10556 = vld [vmem:[%s5 + $0x8] sm:$0xff]
  %v10557 = vld [vmem:[%s5 + $0x10] sm:$0xff]
  %v10558 = vld [vmem:[%s5 + $0x18] sm:$0xff]
  %v10559 = vld [vmem:[%s5 + $0x20] sm:$0xff]
  %v10560 = vld [vmem:[%s5 + $0x28] sm:$0xff]
  %v10561 = vld [vmem:[%s5 + $0x30] sm:$0xff]
  %v10562 = vld [vmem:[%s5 + $0x38] sm:$0xff]
  %v10563 = vld [vmem:[%s5 + $0x40] sm:$0xff]
  %v10564 = vld [vmem:[%s5 + $0x48] sm:$0xff]
  %v10565 = vld [vmem:[%s5 + $0x50] sm:$0xff]
  %v10566 = vld [vmem:[%s5 + $0x58] sm:$0xff]
  %v10567 = vld [vmem:[%s5 + $0x60] sm:$0xff]
  %v10568 = vld [vmem:[%s5 + $0x68] sm:$0xff]
  %v10569 = vld [vmem:[%s5 + $0x70] sm:$0xff]
  %v10570 = vld [vmem:[%s5 + $0x78] sm:$0xff]
  %v10571 = vld [vmem:[%s5 + $0x80] sm:$0xff]
  %v10572 = vld [vmem:[%s5 + $0x88] sm:$0xff]
  %v10573 = vld [vmem:[%s5 + $0x90] sm:$0xff]
  %v10574 = vld [vmem:[%s5 + $0x98] sm:$0xff]
  %v10575 = vld [vmem:[%s5 + $0xa0] sm:$0xff]
  %v10576 = vld [vmem:[%s5 + $0xa8] sm:$0xff]
  %v10577 = vld [vmem:[%s5 + $0xb0] sm:$0xff]
  %v10578 = vld [vmem:[%s5 + $0xb8] sm:$0xff]
  %v10579 = vld [vmem:[%s5 + $0xc0] sm:$0xff]
  %v10580 = vld [vmem:[%s5 + $0xc8] sm:$0xff]
  %v10581 = vld [vmem:[%s5 + $0xd0] sm:$0xff]
  %v10582 = vld [vmem:[%s5 + $0xd8] sm:$0xff]
  %v10583 = vld [vmem:[%s5 + $0xe0] sm:$0xff]
  %v10584 = vld [vmem:[%s5 + $0xe8] sm:$0xff]
  %v10585 = vld [vmem:[%s5 + $0xf0] sm:$0xff]
  %v10586 = vld [vmem:[%s5 + $0xf8] sm:$0xff]
  %v10587 = vld [vmem:[%s5 + $0x100] sm:$0xff]
  %v10588 = vld [vmem:[%s5 + $0x108] sm:$0xff]
  %v10589 = vld [vmem:[%s5 + $0x110] sm:$0xff]
  %v10590 = vld [vmem:[%s5 + $0x118] sm:$0xff]
  %v10591 = vld [vmem:[%s5 + $0x120] sm:$0xff]
  %v10592 = vld [vmem:[%s5 + $0x128] sm:$0xff]
  %v10593 = vld [vmem:[%s5 + $0x130] sm:$0xff]
  %v10594 = vld [vmem:[%s5 + $0x138] sm:$0xff]
  %v10595 = vld [vmem:[%s5 + $0x140] sm:$0xff]
  %v10596 = vld [vmem:[%s5 + $0x148] sm:$0xff]
  %v10597 = vld [vmem:[%s5 + $0x150] sm:$0xff]
  %v10598 = vld [vmem:[%s5 + $0x158] sm:$0xff]
  %s10599 = scalar_lea.vmem %s5, 352
  %v10600 = vld [vmem:[%s10599] sm:$0xff]
  %v10601 = vld [vmem:[%s10599 + $0x8] sm:$0xff]
  %v10602 = vld [vmem:[%s10599 + $0x10] sm:$0xff]
  %v10603 = vld [vmem:[%s10599 + $0x18] sm:$0xff]
  %v10604 = vld [vmem:[%s10599 + $0x20] sm:$0xff]
  %v10605 = vld [vmem:[%s10599 + $0x28] sm:$0xff]
  %v10606 = vld [vmem:[%s10599 + $0x30] sm:$0xff]
  %v10607 = vld [vmem:[%s10599 + $0x38] sm:$0xff]
  %v10608 = vld [vmem:[%s10599 + $0x40] sm:$0xff]
  %v10609 = vld [vmem:[%s10599 + $0x48] sm:$0xff]
  %v10610 = vld [vmem:[%s10599 + $0x50] sm:$0xff]
  %v10611 = vld [vmem:[%s10599 + $0x58] sm:$0xff]
  %v10612 = vld [vmem:[%s10599 + $0x60] sm:$0xff]
  %v10613 = vld [vmem:[%s10599 + $0x68] sm:$0xff]
  %v10614 = vld [vmem:[%s10599 + $0x70] sm:$0xff]
  %v10615 = vld [vmem:[%s10599 + $0x78] sm:$0xff]
  %v10616 = vld [vmem:[%s10599 + $0x80] sm:$0xff]
  %v10617 = vld [vmem:[%s10599 + $0x88] sm:$0xff]
  %v10618 = vld [vmem:[%s10599 + $0x90] sm:$0xff]
  %v10619 = vld [vmem:[%s10599 + $0x98] sm:$0xff]
  %v10620 = vld [vmem:[%s10599 + $0xa0] sm:$0xff]
  %v10621 = vld [vmem:[%s10599 + $0xa8] sm:$0xff]
  %v10622 = vld [vmem:[%s10599 + $0xb0] sm:$0xff]
  %v10623 = vld [vmem:[%s10599 + $0xb8] sm:$0xff]
  %v10624 = vld [vmem:[%s10599 + $0xc0] sm:$0xff]
  %v10625 = vld [vmem:[%s10599 + $0xc8] sm:$0xff]
  %v10626 = vld [vmem:[%s10599 + $0xd0] sm:$0xff]
  %v10627 = vld [vmem:[%s10599 + $0xd8] sm:$0xff]
  %v10628 = vld [vmem:[%s10599 + $0xe0] sm:$0xff]
  %v10629 = vld [vmem:[%s10599 + $0xe8] sm:$0xff]
  %v10630 = vld [vmem:[%s10599 + $0xf0] sm:$0xff]
  %v10631 = vld [vmem:[%s10599 + $0xf8] sm:$0xff]
  %v10632 = vld [vmem:[%s10599 + $0x100] sm:$0xff]
  %v10633 = vld [vmem:[%s10599 + $0x108] sm:$0xff]
  %v10634 = vld [vmem:[%s10599 + $0x110] sm:$0xff]
  %v10635 = vld [vmem:[%s10599 + $0x118] sm:$0xff]
  %v10636 = vld [vmem:[%s10599 + $0x120] sm:$0xff]
  %v10637 = vld [vmem:[%s10599 + $0x128] sm:$0xff]
  %v10638 = vld [vmem:[%s10599 + $0x130] sm:$0xff]
  %v10639 = vld [vmem:[%s10599 + $0x138] sm:$0xff]
  %v10640 = vld [vmem:[%s10599 + $0x140] sm:$0xff]
  %v10641 = vld [vmem:[%s10599 + $0x148] sm:$0xff]
  %v10642 = vld [vmem:[%s10599 + $0x150] sm:$0xff]
  %v10643 = vld [vmem:[%s10599 + $0x158] sm:$0xff]
  %v10688 = vunpack.c.l.b16 %v10600
  %v10689 = vunpack.c.h.b16 %v10600
  %v10690 = vunpack.c.l.b16 %v10601
  %v10691 = vunpack.c.h.b16 %v10601
  %v10692 = vunpack.c.l.b16 %v10602
  %v10693 = vunpack.c.h.b16 %v10602
  %v10694 = vunpack.c.l.b16 %v10603
  %v10695 = vunpack.c.h.b16 %v10603
  %v10696 = vunpack.c.l.b16 %v10604
  %v10697 = vunpack.c.h.b16 %v10604
  %v10698 = vunpack.c.l.b16 %v10605
  %v10699 = vunpack.c.h.b16 %v10605
  %v10700 = vunpack.c.l.b16 %v10606
  %v10701 = vunpack.c.h.b16 %v10606
  %v10702 = vunpack.c.l.b16 %v10607
  %v10703 = vunpack.c.h.b16 %v10607
  %v10704 = vunpack.c.l.b16 %v10608
  %v10705 = vunpack.c.h.b16 %v10608
  %v10706 = vunpack.c.l.b16 %v10609
  %v10707 = vunpack.c.h.b16 %v10609
  %v10708 = vunpack.c.l.b16 %v10610
  %v10709 = vunpack.c.h.b16 %v10610
  %v10710 = vunpack.c.l.b16 %v10611
  %v10711 = vunpack.c.h.b16 %v10611
  %v10712 = vunpack.c.l.b16 %v10612
  %v10713 = vunpack.c.h.b16 %v10612
  %v10714 = vunpack.c.l.b16 %v10613
  %v10715 = vunpack.c.h.b16 %v10613
  %v10716 = vunpack.c.l.b16 %v10614
  %v10717 = vunpack.c.h.b16 %v10614
  %v10718 = vunpack.c.l.b16 %v10615
  %v10719 = vunpack.c.h.b16 %v10615
  %v10720 = vunpack.c.l.b16 %v10616
  %v10721 = vunpack.c.h.b16 %v10616
  %v10722 = vunpack.c.l.b16 %v10617
  %v10723 = vunpack.c.h.b16 %v10617
  %v10724 = vunpack.c.l.b16 %v10618
  %v10725 = vunpack.c.h.b16 %v10618
  %v10726 = vunpack.c.l.b16 %v10619
  %v10727 = vunpack.c.h.b16 %v10619
  %v10728 = vunpack.c.l.b16 %v10620
  %v10729 = vunpack.c.h.b16 %v10620
  %v10730 = vunpack.c.l.b16 %v10621
  %v10731 = vunpack.c.h.b16 %v10621
  %v10732 = vunpack.c.l.b16 %v10622
  %v10733 = vunpack.c.h.b16 %v10622
  %v10734 = vunpack.c.l.b16 %v10623
  %v10735 = vunpack.c.h.b16 %v10623
  %v10736 = vunpack.c.l.b16 %v10624
  %v10737 = vunpack.c.h.b16 %v10624
  %v10738 = vunpack.c.l.b16 %v10625
  %v10739 = vunpack.c.h.b16 %v10625
  %v10740 = vunpack.c.l.b16 %v10626
  %v10741 = vunpack.c.h.b16 %v10626
  %v10742 = vunpack.c.l.b16 %v10627
  %v10743 = vunpack.c.h.b16 %v10627
  %v10744 = vunpack.c.l.b16 %v10628
  %v10745 = vunpack.c.h.b16 %v10628
  %v10746 = vunpack.c.l.b16 %v10629
  %v10747 = vunpack.c.h.b16 %v10629
  %v10748 = vunpack.c.l.b16 %v10630
  %v10749 = vunpack.c.h.b16 %v10630
  %v10750 = vunpack.c.l.b16 %v10631
  %v10751 = vunpack.c.h.b16 %v10631
  %v10752 = vunpack.c.l.b16 %v10632
  %v10753 = vunpack.c.h.b16 %v10632
  %v10754 = vunpack.c.l.b16 %v10633
  %v10755 = vunpack.c.h.b16 %v10633
  %v10756 = vunpack.c.l.b16 %v10634
  %v10757 = vunpack.c.h.b16 %v10634
  %v10758 = vunpack.c.l.b16 %v10635
  %v10759 = vunpack.c.h.b16 %v10635
  %v10760 = vunpack.c.l.b16 %v10636
  %v10761 = vunpack.c.h.b16 %v10636
  %v10762 = vunpack.c.l.b16 %v10637
  %v10763 = vunpack.c.h.b16 %v10637
  %v10764 = vunpack.c.l.b16 %v10638
  %v10765 = vunpack.c.h.b16 %v10638
  %v10766 = vunpack.c.l.b16 %v10639
  %v10767 = vunpack.c.h.b16 %v10639
  %v10768 = vunpack.c.l.b16 %v10640
  %v10769 = vunpack.c.h.b16 %v10640
  %v10770 = vunpack.c.l.b16 %v10641
  %v10771 = vunpack.c.h.b16 %v10641
  %v10772 = vunpack.c.l.b16 %v10642
  %v10773 = vunpack.c.h.b16 %v10642
  %v10774 = vunpack.c.l.b16 %v10643
  %v10775 = vunpack.c.h.b16 %v10643
  %v10776 = vpack.c.b16 %v10690, %v10688
  %v10777 = vpack.c.b16 %v10691, %v10689
  %v10778 = vpack.c.b16 %v10694, %v10692
  %v10779 = vpack.c.b16 %v10695, %v10693
  %v10780 = vpack.c.b16 %v10698, %v10696
  %v10781 = vpack.c.b16 %v10699, %v10697
  %v10782 = vpack.c.b16 %v10702, %v10700
  %v10783 = vpack.c.b16 %v10703, %v10701
  %v10784 = vpack.c.b16 %v10706, %v10704
  %v10785 = vpack.c.b16 %v10707, %v10705
  %v10786 = vpack.c.b16 %v10710, %v10708
  %v10787 = vpack.c.b16 %v10711, %v10709
  %v10788 = vpack.c.b16 %v10714, %v10712
  %v10789 = vpack.c.b16 %v10715, %v10713
  %v10790 = vpack.c.b16 %v10718, %v10716
  %v10791 = vpack.c.b16 %v10719, %v10717
  %v10792 = vpack.c.b16 %v10722, %v10720
  %v10793 = vpack.c.b16 %v10723, %v10721
  %v10794 = vpack.c.b16 %v10726, %v10724
  %v10795 = vpack.c.b16 %v10727, %v10725
  %v10796 = vpack.c.b16 %v10730, %v10728
  %v10797 = vpack.c.b16 %v10731, %v10729
  %v10798 = vpack.c.b16 %v10734, %v10732
  %v10799 = vpack.c.b16 %v10735, %v10733
  %v10800 = vpack.c.b16 %v10738, %v10736
  %v10801 = vpack.c.b16 %v10739, %v10737
  %v10802 = vpack.c.b16 %v10742, %v10740
  %v10803 = vpack.c.b16 %v10743, %v10741
  %v10804 = vpack.c.b16 %v10746, %v10744
  %v10805 = vpack.c.b16 %v10747, %v10745
  %v10806 = vpack.c.b16 %v10750, %v10748
  %v10807 = vpack.c.b16 %v10751, %v10749
  %v10808 = vpack.c.b16 %v10754, %v10752
  %v10809 = vpack.c.b16 %v10755, %v10753
  %v10810 = vpack.c.b16 %v10758, %v10756
  %v10811 = vpack.c.b16 %v10759, %v10757
  %v10812 = vpack.c.b16 %v10762, %v10760
  %v10813 = vpack.c.b16 %v10763, %v10761
  %v10814 = vpack.c.b16 %v10766, %v10764
  %v10815 = vpack.c.b16 %v10767, %v10765
  %v10816 = vpack.c.b16 %v10770, %v10768
  %v10817 = vpack.c.b16 %v10771, %v10769
  %v10818 = vpack.c.b16 %v10774, %v10772
  %v10819 = vpack.c.b16 %v10775, %v10773
  %v10865 = vsel %vm6024, %v10527, 0
  %v10868 = vsel %vm6024, %v10533, 0
  %v10871 = vsel %vm6024, %v10539, 0
  %v10874 = vsel %vm6024, %v10545, 0
  %v10877 = vsel %vm6024, %v10551, 0
  %10879 = vmatprep.subr.bf16.mxu0 %v10791
  %10880 = vmatpush1.bf16.msra.mxu0 %v10790
  %10881 = vmatprep.subr.bf16.mxu0 %v10789
  %10882 = vmatpush1.bf16.msra.mxu0 %v10788
  %10883 = vmatprep.subr.bf16.mxu0 %v10787
  %10884 = vmatpush1.bf16.msra.mxu0 %v10786
  %10885 = vmatprep.subr.bf16.mxu0 %v10785
  %10886 = vmatpush1.bf16.msra.mxu0 %v10784
  %10887 = vmatprep.subr.bf16.mxu0 %v10783
  %10888 = vmatpush1.bf16.msra.mxu0 %v10782
  %10889 = vmatprep.subr.bf16.mxu0 %v10781
  %10890 = vmatpush1.bf16.msra.mxu0 %v10780
  %10891 = vmatprep.subr.bf16.mxu0 %v10779
  %10892 = vmatpush1.bf16.msra.mxu0 %v10778
  %10893 = vmatprep.subr.bf16.mxu0 %v10777
  %10894 = vmatpush1.bf16.msra.mxu0 %v10776
  %10895 = vmatprep.subr.bf16.mxu0 %v10807
  %10896 = vmatpush2.bf16.msra.mxu0 %v10806
  %10897 = vmatprep.subr.bf16.mxu0 %v10805
  %10898 = vmatpush2.bf16.msra.mxu0 %v10804
  %10899 = vmatprep.subr.bf16.mxu0 %v10803
  %10900 = vmatpush2.bf16.msra.mxu0 %v10802
  %10901 = vmatprep.subr.bf16.mxu0 %v10801
  %10902 = vmatpush2.bf16.msra.mxu0 %v10800
  %10903 = vmatprep.subr.bf16.mxu0 %v10799
  %10904 = vmatpush2.bf16.msra.mxu0 %v10798
  %10905 = vmatprep.subr.bf16.mxu0 %v10797
  %10906 = vmatpush2.bf16.msra.mxu0 %v10796
  %10907 = vmatprep.subr.bf16.mxu0 %v10795
  %10908 = vmatpush2.bf16.msra.mxu0 %v10794
  %10909 = vmatprep.subr.bf16.mxu0 %v10793
  %10910 = vmatpush2.bf16.msra.mxu0 %v10792
  %10911 = vmatprep.mubr.bf16.mxu0 %v10526
  %10912 = vmatmul.mubr.bf16.gmra.mxu0 %v10525
  %v10913 = vpop.f32.mrf.mxu0
  %v10914 = vadd.f32 0.0, %v10913
  %v10915 = vpop.f32.mrf.mxu0
  %v10916 = vadd.f32 0.0, %v10915
  %v10917 = vpop.f32.mrf.mxu0
  %v10918 = vadd.f32 0.0, %v10917
  %v10919 = vpop.f32.mrf.mxu0
  %v10920 = vadd.f32 0.0, %v10919
  %10921 = vmatprep.mubr.bf16.mxu0 %v10532
  %10922 = vmatmul.mubr.bf16.gmra.mxu0 %v10531
  %v10923 = vpop.f32.mrf.mxu0
  %v10924 = vadd.f32 0.0, %v10923
  %v10925 = vpop.f32.mrf.mxu0
  %v10926 = vadd.f32 0.0, %v10925
  %v10927 = vpop.f32.mrf.mxu0
  %v10928 = vadd.f32 0.0, %v10927
  %v10929 = vpop.f32.mrf.mxu0
  %v10930 = vadd.f32 0.0, %v10929
  %10931 = vmatprep.mubr.bf16.mxu0 %v10538
  %10932 = vmatmul.mubr.bf16.gmra.mxu0 %v10537
  %v10933 = vpop.f32.mrf.mxu0
  %v10934 = vadd.f32 0.0, %v10933
  %v10935 = vpop.f32.mrf.mxu0
  %v10936 = vadd.f32 0.0, %v10935
  %v10937 = vpop.f32.mrf.mxu0
  %v10938 = vadd.f32 0.0, %v10937
  %v10939 = vpop.f32.mrf.mxu0
  %v10940 = vadd.f32 0.0, %v10939
  %10941 = vmatprep.mubr.bf16.mxu0 %v10544
  %10942 = vmatmul.mubr.bf16.gmra.mxu0 %v10543
  %v10943 = vpop.f32.mrf.mxu0
  %v10944 = vadd.f32 0.0, %v10943
  %v10945 = vpop.f32.mrf.mxu0
  %v10946 = vadd.f32 0.0, %v10945
  %v10947 = vpop.f32.mrf.mxu0
  %v10948 = vadd.f32 0.0, %v10947
  %v10949 = vpop.f32.mrf.mxu0
  %v10950 = vadd.f32 0.0, %v10949
  %10951 = vmatprep.mubr.bf16.mxu0 %v10550
  %10952 = vmatmul.mubr.bf16.gmra.mxu0 %v10549
  %v10953 = vpop.f32.mrf.mxu0
  %v10954 = vadd.f32 0.0, %v10953
  %v10955 = vpop.f32.mrf.mxu0
  %v10956 = vadd.f32 0.0, %v10955
  %v10957 = vpop.f32.mrf.mxu0
  %v10958 = vadd.f32 0.0, %v10957
  %v10959 = vpop.f32.mrf.mxu0
  %v10960 = vadd.f32 0.0, %v10959
  %10961 = vdwg.mxu0
  %10962 = vmatprep.subr.bf16.mxu0 0
  %10963 = vmatpush1.bf16.msra.mxu0 0
  %10964 = vmatprep.subr.bf16.mxu0 0
  %10965 = vmatpush1.bf16.msra.mxu0 0
  %10966 = vmatprep.subr.bf16.mxu0 %v10819
  %10967 = vmatpush1.bf16.msra.mxu0 %v10818
  %10968 = vmatprep.subr.bf16.mxu0 %v10817
  %10969 = vmatpush1.bf16.msra.mxu0 %v10816
  %10970 = vmatprep.subr.bf16.mxu0 %v10815
  %10971 = vmatpush1.bf16.msra.mxu0 %v10814
  %10972 = vmatprep.subr.bf16.mxu0 %v10813
  %10973 = vmatpush1.bf16.msra.mxu0 %v10812
  %10974 = vmatprep.subr.bf16.mxu0 %v10811
  %10975 = vmatpush1.bf16.msra.mxu0 %v10810
  %10976 = vmatprep.subr.bf16.mxu0 %v10809
  %10977 = vmatpush1.bf16.msra.mxu0 %v10808
  %10978 = vmatprep.subr.bf16.mxu0 0
  %10979 = vmatpush2.bf16.msra.mxu0 0
  %10980 = vmatprep.subr.bf16.mxu0 0
  %10981 = vmatpush2.bf16.msra.mxu0 0
  %10982 = vmatprep.subr.bf16.mxu0 0
  %10983 = vmatpush2.bf16.msra.mxu0 0
  %10984 = vmatprep.subr.bf16.mxu0 0
  %10985 = vmatpush2.bf16.msra.mxu0 0
  %10986 = vmatprep.subr.bf16.mxu0 0
  %10987 = vmatpush2.bf16.msra.mxu0 0
  %10988 = vmatprep.subr.bf16.mxu0 0
  %10989 = vmatpush2.bf16.msra.mxu0 0
  %10990 = vmatprep.subr.bf16.mxu0 0
  %10991 = vmatpush2.bf16.msra.mxu0 0
  %10992 = vmatprep.subr.bf16.mxu0 0
  %10993 = vmatpush2.bf16.msra.mxu0 0
  %10994 = vmatprep.mubr.bf16.mxu0 0
  %10995 = vmatmul.mubr.bf16.gmra.mxu0 %v10865
  %v10996 = vpop.f32.mrf.mxu0
  %v10997 = vadd.f32 %v10914, %v10996
  %v10998 = vpop.f32.mrf.mxu0
  %v10999 = vadd.f32 %v10916, %v10998
  %v11000 = vpop.f32.mrf.mxu0
  %v11001 = vadd.f32 %v10918, %v11000
  %v11002 = vpop.f32.mrf.mxu0
  %v11003 = vadd.f32 %v10920, %v11002
  %11004 = vmatprep.mubr.bf16.mxu0 0
  %11005 = vmatmul.mubr.bf16.gmra.mxu0 %v10868
  %v11006 = vpop.f32.mrf.mxu0
  %v11007 = vadd.f32 %v10924, %v11006
  %v11008 = vpop.f32.mrf.mxu0
  %v11009 = vadd.f32 %v10926, %v11008
  %v11010 = vpop.f32.mrf.mxu0
  %v11011 = vadd.f32 %v10928, %v11010
  %v11012 = vpop.f32.mrf.mxu0
  %v11013 = vadd.f32 %v10930, %v11012
  %11014 = vmatprep.mubr.bf16.mxu0 0
  %11015 = vmatmul.mubr.bf16.gmra.mxu0 %v10871
  %v11016 = vpop.f32.mrf.mxu0
  %v11017 = vadd.f32 %v10934, %v11016
  %v11018 = vpop.f32.mrf.mxu0
  %v11019 = vadd.f32 %v10936, %v11018
  %v11020 = vpop.f32.mrf.mxu0
  %v11021 = vadd.f32 %v10938, %v11020
  %v11022 = vpop.f32.mrf.mxu0
  %v11023 = vadd.f32 %v10940, %v11022
  %11024 = vmatprep.mubr.bf16.mxu0 0
  %11025 = vmatmul.mubr.bf16.gmra.mxu0 %v10874
  %v11026 = vpop.f32.mrf.mxu0
  %v11027 = vadd.f32 %v10944, %v11026
  %v11028 = vpop.f32.mrf.mxu0
  %v11029 = vadd.f32 %v10946, %v11028
  %v11030 = vpop.f32.mrf.mxu0
  %v11031 = vadd.f32 %v10948, %v11030
  %v11032 = vpop.f32.mrf.mxu0
  %v11033 = vadd.f32 %v10950, %v11032
  %11034 = vmatprep.mubr.bf16.mxu0 0
  %11035 = vmatmul.mubr.bf16.gmra.mxu0 %v10877
  %v11036 = vpop.f32.mrf.mxu0
  %v11037 = vadd.f32 %v10954, %v11036
  %v11038 = vpop.f32.mrf.mxu0
  %v11039 = vadd.f32 %v10956, %v11038
  %v11040 = vpop.f32.mrf.mxu0
  %v11041 = vadd.f32 %v10958, %v11040
  %v11042 = vpop.f32.mrf.mxu0
  %v11043 = vadd.f32 %v10960, %v11042
  %11044 = vdwg.mxu0
  %v11089 = vunpack.c.l.b16 %v10555
  %v11090 = vunpack.c.h.b16 %v10555
  %v11091 = vunpack.c.l.b16 %v10556
  %v11092 = vunpack.c.h.b16 %v10556
  %v11093 = vunpack.c.l.b16 %v10557
  %v11094 = vunpack.c.h.b16 %v10557
  %v11095 = vunpack.c.l.b16 %v10558
  %v11096 = vunpack.c.h.b16 %v10558
  %v11097 = vunpack.c.l.b16 %v10559
  %v11098 = vunpack.c.h.b16 %v10559
  %v11099 = vunpack.c.l.b16 %v10560
  %v11100 = vunpack.c.h.b16 %v10560
  %v11101 = vunpack.c.l.b16 %v10561
  %v11102 = vunpack.c.h.b16 %v10561
  %v11103 = vunpack.c.l.b16 %v10562
  %v11104 = vunpack.c.h.b16 %v10562
  %v11105 = vunpack.c.l.b16 %v10563
  %v11106 = vunpack.c.h.b16 %v10563
  %v11107 = vunpack.c.l.b16 %v10564
  %v11108 = vunpack.c.h.b16 %v10564
  %v11109 = vunpack.c.l.b16 %v10565
  %v11110 = vunpack.c.h.b16 %v10565
  %v11111 = vunpack.c.l.b16 %v10566
  %v11112 = vunpack.c.h.b16 %v10566
  %v11113 = vunpack.c.l.b16 %v10567
  %v11114 = vunpack.c.h.b16 %v10567
  %v11115 = vunpack.c.l.b16 %v10568
  %v11116 = vunpack.c.h.b16 %v10568
  %v11117 = vunpack.c.l.b16 %v10569
  %v11118 = vunpack.c.h.b16 %v10569
  %v11119 = vunpack.c.l.b16 %v10570
  %v11120 = vunpack.c.h.b16 %v10570
  %v11121 = vunpack.c.l.b16 %v10571
  %v11122 = vunpack.c.h.b16 %v10571
  %v11123 = vunpack.c.l.b16 %v10572
  %v11124 = vunpack.c.h.b16 %v10572
  %v11125 = vunpack.c.l.b16 %v10573
  %v11126 = vunpack.c.h.b16 %v10573
  %v11127 = vunpack.c.l.b16 %v10574
  %v11128 = vunpack.c.h.b16 %v10574
  %v11129 = vunpack.c.l.b16 %v10575
  %v11130 = vunpack.c.h.b16 %v10575
  %v11131 = vunpack.c.l.b16 %v10576
  %v11132 = vunpack.c.h.b16 %v10576
  %v11133 = vunpack.c.l.b16 %v10577
  %v11134 = vunpack.c.h.b16 %v10577
  %v11135 = vunpack.c.l.b16 %v10578
  %v11136 = vunpack.c.h.b16 %v10578
  %v11137 = vunpack.c.l.b16 %v10579
  %v11138 = vunpack.c.h.b16 %v10579
  %v11139 = vunpack.c.l.b16 %v10580
  %v11140 = vunpack.c.h.b16 %v10580
  %v11141 = vunpack.c.l.b16 %v10581
  %v11142 = vunpack.c.h.b16 %v10581
  %v11143 = vunpack.c.l.b16 %v10582
  %v11144 = vunpack.c.h.b16 %v10582
  %v11145 = vunpack.c.l.b16 %v10583
  %v11146 = vunpack.c.h.b16 %v10583
  %v11147 = vunpack.c.l.b16 %v10584
  %v11148 = vunpack.c.h.b16 %v10584
  %v11149 = vunpack.c.l.b16 %v10585
  %v11150 = vunpack.c.h.b16 %v10585
  %v11151 = vunpack.c.l.b16 %v10586
  %v11152 = vunpack.c.h.b16 %v10586
  %v11153 = vunpack.c.l.b16 %v10587
  %v11154 = vunpack.c.h.b16 %v10587
  %v11155 = vunpack.c.l.b16 %v10588
  %v11156 = vunpack.c.h.b16 %v10588
  %v11157 = vunpack.c.l.b16 %v10589
  %v11158 = vunpack.c.h.b16 %v10589
  %v11159 = vunpack.c.l.b16 %v10590
  %v11160 = vunpack.c.h.b16 %v10590
  %v11161 = vunpack.c.l.b16 %v10591
  %v11162 = vunpack.c.h.b16 %v10591
  %v11163 = vunpack.c.l.b16 %v10592
  %v11164 = vunpack.c.h.b16 %v10592
  %v11165 = vunpack.c.l.b16 %v10593
  %v11166 = vunpack.c.h.b16 %v10593
  %v11167 = vunpack.c.l.b16 %v10594
  %v11168 = vunpack.c.h.b16 %v10594
  %v11169 = vunpack.c.l.b16 %v10595
  %v11170 = vunpack.c.h.b16 %v10595
  %v11171 = vunpack.c.l.b16 %v10596
  %v11172 = vunpack.c.h.b16 %v10596
  %v11173 = vunpack.c.l.b16 %v10597
  %v11174 = vunpack.c.h.b16 %v10597
  %v11175 = vunpack.c.l.b16 %v10598
  %v11176 = vunpack.c.h.b16 %v10598
  %v11177 = vpack.c.b16 %v11091, %v11089
  %v11178 = vpack.c.b16 %v11092, %v11090
  %v11179 = vpack.c.b16 %v11095, %v11093
  %v11180 = vpack.c.b16 %v11096, %v11094
  %v11181 = vpack.c.b16 %v11099, %v11097
  %v11182 = vpack.c.b16 %v11100, %v11098
  %v11183 = vpack.c.b16 %v11103, %v11101
  %v11184 = vpack.c.b16 %v11104, %v11102
  %v11185 = vpack.c.b16 %v11107, %v11105
  %v11186 = vpack.c.b16 %v11108, %v11106
  %v11187 = vpack.c.b16 %v11111, %v11109
  %v11188 = vpack.c.b16 %v11112, %v11110
  %v11189 = vpack.c.b16 %v11115, %v11113
  %v11190 = vpack.c.b16 %v11116, %v11114
  %v11191 = vpack.c.b16 %v11119, %v11117
  %v11192 = vpack.c.b16 %v11120, %v11118
  %v11193 = vpack.c.b16 %v11123, %v11121
  %v11194 = vpack.c.b16 %v11124, %v11122
  %v11195 = vpack.c.b16 %v11127, %v11125
  %v11196 = vpack.c.b16 %v11128, %v11126
  %v11197 = vpack.c.b16 %v11131, %v11129
  %v11198 = vpack.c.b16 %v11132, %v11130
  %v11199 = vpack.c.b16 %v11135, %v11133
  %v11200 = vpack.c.b16 %v11136, %v11134
  %v11201 = vpack.c.b16 %v11139, %v11137
  %v11202 = vpack.c.b16 %v11140, %v11138
  %v11203 = vpack.c.b16 %v11143, %v11141
  %v11204 = vpack.c.b16 %v11144, %v11142
  %v11205 = vpack.c.b16 %v11147, %v11145
  %v11206 = vpack.c.b16 %v11148, %v11146
  %v11207 = vpack.c.b16 %v11151, %v11149
  %v11208 = vpack.c.b16 %v11152, %v11150
  %v11209 = vpack.c.b16 %v11155, %v11153
  %v11210 = vpack.c.b16 %v11156, %v11154
  %v11211 = vpack.c.b16 %v11159, %v11157
  %v11212 = vpack.c.b16 %v11160, %v11158
  %v11213 = vpack.c.b16 %v11163, %v11161
  %v11214 = vpack.c.b16 %v11164, %v11162
  %v11215 = vpack.c.b16 %v11167, %v11165
  %v11216 = vpack.c.b16 %v11168, %v11166
  %v11217 = vpack.c.b16 %v11171, %v11169
  %v11218 = vpack.c.b16 %v11172, %v11170
  %v11219 = vpack.c.b16 %v11175, %v11173
  %v11220 = vpack.c.b16 %v11176, %v11174
  %v11266 = vsel %vm6024, %v10524, 0
  %v11269 = vsel %vm6024, %v10530, 0
  %v11272 = vsel %vm6024, %v10536, 0
  %v11275 = vsel %vm6024, %v10542, 0
  %v11278 = vsel %vm6024, %v10548, 0
  %11280 = vmatprep.subr.bf16.mxu0 %v11192
  %11281 = vmatpush1.bf16.msra.mxu0 %v11191
  %11282 = vmatprep.subr.bf16.mxu0 %v11190
  %11283 = vmatpush1.bf16.msra.mxu0 %v11189
  %11284 = vmatprep.subr.bf16.mxu0 %v11188
  %11285 = vmatpush1.bf16.msra.mxu0 %v11187
  %11286 = vmatprep.subr.bf16.mxu0 %v11186
  %11287 = vmatpush1.bf16.msra.mxu0 %v11185
  %11288 = vmatprep.subr.bf16.mxu0 %v11184
  %11289 = vmatpush1.bf16.msra.mxu0 %v11183
  %11290 = vmatprep.subr.bf16.mxu0 %v11182
  %11291 = vmatpush1.bf16.msra.mxu0 %v11181
  %11292 = vmatprep.subr.bf16.mxu0 %v11180
  %11293 = vmatpush1.bf16.msra.mxu0 %v11179
  %11294 = vmatprep.subr.bf16.mxu0 %v11178
  %11295 = vmatpush1.bf16.msra.mxu0 %v11177
  %11296 = vmatprep.subr.bf16.mxu0 %v11208
  %11297 = vmatpush2.bf16.msra.mxu0 %v11207
  %11298 = vmatprep.subr.bf16.mxu0 %v11206
  %11299 = vmatpush2.bf16.msra.mxu0 %v11205
  %11300 = vmatprep.subr.bf16.mxu0 %v11204
  %11301 = vmatpush2.bf16.msra.mxu0 %v11203
  %11302 = vmatprep.subr.bf16.mxu0 %v11202
  %11303 = vmatpush2.bf16.msra.mxu0 %v11201
  %11304 = vmatprep.subr.bf16.mxu0 %v11200
  %11305 = vmatpush2.bf16.msra.mxu0 %v11199
  %11306 = vmatprep.subr.bf16.mxu0 %v11198
  %11307 = vmatpush2.bf16.msra.mxu0 %v11197
  %11308 = vmatprep.subr.bf16.mxu0 %v11196
  %11309 = vmatpush2.bf16.msra.mxu0 %v11195
  %11310 = vmatprep.subr.bf16.mxu0 %v11194
  %11311 = vmatpush2.bf16.msra.mxu0 %v11193
  %11312 = vmatprep.mubr.bf16.mxu0 %v10523
  %11313 = vmatmul.mubr.bf16.gmra.mxu0 %v10522
  %v11314 = vpop.f32.mrf.mxu0
  %v11315 = vadd.f32 %v10997, %v11314
  %v11316 = vpop.f32.mrf.mxu0
  %v11317 = vadd.f32 %v10999, %v11316
  %v11318 = vpop.f32.mrf.mxu0
  %v11319 = vadd.f32 %v11001, %v11318
  %v11320 = vpop.f32.mrf.mxu0
  %v11321 = vadd.f32 %v11003, %v11320
  %11322 = vmatprep.mubr.bf16.mxu0 %v10529
  %11323 = vmatmul.mubr.bf16.gmra.mxu0 %v10528
  %v11324 = vpop.f32.mrf.mxu0
  %v11325 = vadd.f32 %v11007, %v11324
  %v11326 = vpop.f32.mrf.mxu0
  %v11327 = vadd.f32 %v11009, %v11326
  %v11328 = vpop.f32.mrf.mxu0
  %v11329 = vadd.f32 %v11011, %v11328
  %v11330 = vpop.f32.mrf.mxu0
  %v11331 = vadd.f32 %v11013, %v11330
  %11332 = vmatprep.mubr.bf16.mxu0 %v10535
  %11333 = vmatmul.mubr.bf16.gmra.mxu0 %v10534
  %v11334 = vpop.f32.mrf.mxu0
  %v11335 = vadd.f32 %v11017, %v11334
  %v11336 = vpop.f32.mrf.mxu0
  %v11337 = vadd.f32 %v11019, %v11336
  %v11338 = vpop.f32.mrf.mxu0
  %v11339 = vadd.f32 %v11021, %v11338
  %v11340 = vpop.f32.mrf.mxu0
  %v11341 = vadd.f32 %v11023, %v11340
  %11342 = vmatprep.mubr.bf16.mxu0 %v10541
  %11343 = vmatmul.mubr.bf16.gmra.mxu0 %v10540
  %v11344 = vpop.f32.mrf.mxu0
  %v11345 = vadd.f32 %v11027, %v11344
  %v11346 = vpop.f32.mrf.mxu0
  %v11347 = vadd.f32 %v11029, %v11346
  %v11348 = vpop.f32.mrf.mxu0
  %v11349 = vadd.f32 %v11031, %v11348
  %v11350 = vpop.f32.mrf.mxu0
  %v11351 = vadd.f32 %v11033, %v11350
  %11352 = vmatprep.mubr.bf16.mxu0 %v10547
  %11353 = vmatmul.mubr.bf16.gmra.mxu0 %v10546
  %v11354 = vpop.f32.mrf.mxu0
  %v11355 = vadd.f32 %v11037, %v11354
  %v11356 = vpop.f32.mrf.mxu0
  %v11357 = vadd.f32 %v11039, %v11356
  %v11358 = vpop.f32.mrf.mxu0
  %v11359 = vadd.f32 %v11041, %v11358
  %v11360 = vpop.f32.mrf.mxu0
  %v11361 = vadd.f32 %v11043, %v11360
  %11362 = vdwg.mxu0
  %11363 = vmatprep.subr.bf16.mxu0 0
  %11364 = vmatpush1.bf16.msra.mxu0 0
  %11365 = vmatprep.subr.bf16.mxu0 0
  %11366 = vmatpush1.bf16.msra.mxu0 0
  %11367 = vmatprep.subr.bf16.mxu0 %v11220
  %11368 = vmatpush1.bf16.msra.mxu0 %v11219
  %11369 = vmatprep.subr.bf16.mxu0 %v11218
  %11370 = vmatpush1.bf16.msra.mxu0 %v11217
  %11371 = vmatprep.subr.bf16.mxu0 %v11216
  %11372 = vmatpush1.bf16.msra.mxu0 %v11215
  %11373 = vmatprep.subr.bf16.mxu0 %v11214
  %11374 = vmatpush1.bf16.msra.mxu0 %v11213
  %11375 = vmatprep.subr.bf16.mxu0 %v11212
  %11376 = vmatpush1.bf16.msra.mxu0 %v11211
  %11377 = vmatprep.subr.bf16.mxu0 %v11210
  %11378 = vmatpush1.bf16.msra.mxu0 %v11209
  %11379 = vmatprep.subr.bf16.mxu0 0
  %11380 = vmatpush2.bf16.msra.mxu0 0
  %11381 = vmatprep.subr.bf16.mxu0 0
  %11382 = vmatpush2.bf16.msra.mxu0 0
  %11383 = vmatprep.subr.bf16.mxu0 0
  %11384 = vmatpush2.bf16.msra.mxu0 0
  %11385 = vmatprep.subr.bf16.mxu0 0
  %11386 = vmatpush2.bf16.msra.mxu0 0
  %11387 = vmatprep.subr.bf16.mxu0 0
  %11388 = vmatpush2.bf16.msra.mxu0 0
  %11389 = vmatprep.subr.bf16.mxu0 0
  %11390 = vmatpush2.bf16.msra.mxu0 0
  %11391 = vmatprep.subr.bf16.mxu0 0
  %11392 = vmatpush2.bf16.msra.mxu0 0
  %11393 = vmatprep.subr.bf16.mxu0 0
  %11394 = vmatpush2.bf16.msra.mxu0 0
  %11395 = vmatprep.mubr.bf16.mxu0 0
  %11396 = vmatmul.mubr.bf16.gmra.mxu0 %v11266
  %v11397 = vpop.f32.mrf.mxu0
  %v11398 = vadd.f32 %v11315, %v11397
  %v11399 = vpop.f32.mrf.mxu0
  %v11400 = vadd.f32 %v11317, %v11399
  %v11401 = vpop.f32.mrf.mxu0
  %v11402 = vadd.f32 %v11319, %v11401
  %v11403 = vpop.f32.mrf.mxu0
  %v11404 = vadd.f32 %v11321, %v11403
  %11405 = vmatprep.mubr.bf16.mxu0 0
  %11406 = vmatmul.mubr.bf16.gmra.mxu0 %v11269
  %v11407 = vpop.f32.mrf.mxu0
  %v11408 = vadd.f32 %v11325, %v11407
  %v11409 = vpop.f32.mrf.mxu0
  %v11410 = vadd.f32 %v11327, %v11409
  %v11411 = vpop.f32.mrf.mxu0
  %v11412 = vadd.f32 %v11329, %v11411
  %v11413 = vpop.f32.mrf.mxu0
  %v11414 = vadd.f32 %v11331, %v11413
  %11415 = vmatprep.mubr.bf16.mxu0 0
  %11416 = vmatmul.mubr.bf16.gmra.mxu0 %v11272
  %v11417 = vpop.f32.mrf.mxu0
  %v11418 = vadd.f32 %v11335, %v11417
  %v11419 = vpop.f32.mrf.mxu0
  %v11420 = vadd.f32 %v11337, %v11419
  %v11421 = vpop.f32.mrf.mxu0
  %v11422 = vadd.f32 %v11339, %v11421
  %v11423 = vpop.f32.mrf.mxu0
  %v11424 = vadd.f32 %v11341, %v11423
  %11425 = vmatprep.mubr.bf16.mxu0 0
  %11426 = vmatmul.mubr.bf16.gmra.mxu0 %v11275
  %v11427 = vpop.f32.mrf.mxu0
  %v11428 = vadd.f32 %v11345, %v11427
  %v11429 = vpop.f32.mrf.mxu0
  %v11430 = vadd.f32 %v11347, %v11429
  %v11431 = vpop.f32.mrf.mxu0
  %v11432 = vadd.f32 %v11349, %v11431
  %v11433 = vpop.f32.mrf.mxu0
  %v11434 = vadd.f32 %v11351, %v11433
  %11435 = vmatprep.mubr.bf16.mxu0 0
  %11436 = vmatmul.mubr.bf16.gmra.mxu0 %v11278
  %v11437 = vpop.f32.mrf.mxu0
  %v11438 = vadd.f32 %v11355, %v11437
  %v11439 = vpop.f32.mrf.mxu0
  %v11440 = vadd.f32 %v11357, %v11439
  %v11441 = vpop.f32.mrf.mxu0
  %v11442 = vadd.f32 %v11359, %v11441
  %v11443 = vpop.f32.mrf.mxu0
  %v11444 = vadd.f32 %v11361, %v11443
  %11445 = vdwg.mxu0
  %s11446 = scalar_lea.vmem %s5, 704
  %v11447 = vld [vmem:[%s11446] sm:$0xff]
  %v11448 = vld [vmem:[%s11446 + $0x8] sm:$0xff]
  %v11449 = vld [vmem:[%s11446 + $0x10] sm:$0xff]
  %v11450 = vld [vmem:[%s11446 + $0x18] sm:$0xff]
  %v11451 = vld [vmem:[%s11446 + $0x20] sm:$0xff]
  %v11452 = vld [vmem:[%s11446 + $0x28] sm:$0xff]
  %v11453 = vld [vmem:[%s11446 + $0x30] sm:$0xff]
  %v11454 = vld [vmem:[%s11446 + $0x38] sm:$0xff]
  %v11455 = vld [vmem:[%s11446 + $0x40] sm:$0xff]
  %v11456 = vld [vmem:[%s11446 + $0x48] sm:$0xff]
  %v11457 = vld [vmem:[%s11446 + $0x50] sm:$0xff]
  %v11458 = vld [vmem:[%s11446 + $0x58] sm:$0xff]
  %v11459 = vld [vmem:[%s11446 + $0x60] sm:$0xff]
  %v11460 = vld [vmem:[%s11446 + $0x68] sm:$0xff]
  %v11461 = vld [vmem:[%s11446 + $0x70] sm:$0xff]
  %v11462 = vld [vmem:[%s11446 + $0x78] sm:$0xff]
  %v11463 = vld [vmem:[%s11446 + $0x80] sm:$0xff]
  %v11464 = vld [vmem:[%s11446 + $0x88] sm:$0xff]
  %v11465 = vld [vmem:[%s11446 + $0x90] sm:$0xff]
  %v11466 = vld [vmem:[%s11446 + $0x98] sm:$0xff]
  %v11467 = vld [vmem:[%s11446 + $0xa0] sm:$0xff]
  %v11468 = vld [vmem:[%s11446 + $0xa8] sm:$0xff]
  %v11469 = vld [vmem:[%s11446 + $0xb0] sm:$0xff]
  %v11470 = vld [vmem:[%s11446 + $0xb8] sm:$0xff]
  %v11471 = vld [vmem:[%s11446 + $0xc0] sm:$0xff]
  %v11472 = vld [vmem:[%s11446 + $0xc8] sm:$0xff]
  %v11473 = vld [vmem:[%s11446 + $0xd0] sm:$0xff]
  %v11474 = vld [vmem:[%s11446 + $0xd8] sm:$0xff]
  %v11475 = vld [vmem:[%s11446 + $0xe0] sm:$0xff]
  %v11476 = vld [vmem:[%s11446 + $0xe8] sm:$0xff]
  %v11477 = vld [vmem:[%s11446 + $0xf0] sm:$0xff]
  %v11478 = vld [vmem:[%s11446 + $0xf8] sm:$0xff]
  %v11479 = vld [vmem:[%s11446 + $0x100] sm:$0xff]
  %v11480 = vld [vmem:[%s11446 + $0x108] sm:$0xff]
  %v11481 = vld [vmem:[%s11446 + $0x110] sm:$0xff]
  %v11482 = vld [vmem:[%s11446 + $0x118] sm:$0xff]
  %v11483 = vld [vmem:[%s11446 + $0x120] sm:$0xff]
  %v11484 = vld [vmem:[%s11446 + $0x128] sm:$0xff]
  %v11485 = vld [vmem:[%s11446 + $0x130] sm:$0xff]
  %v11486 = vld [vmem:[%s11446 + $0x138] sm:$0xff]
  %v11487 = vld [vmem:[%s11446 + $0x140] sm:$0xff]
  %v11488 = vld [vmem:[%s11446 + $0x148] sm:$0xff]
  %v11489 = vld [vmem:[%s11446 + $0x150] sm:$0xff]
  %v11490 = vld [vmem:[%s11446 + $0x158] sm:$0xff]
  %v11535 = vunpack.c.l.b16 %v11447
  %v11536 = vunpack.c.h.b16 %v11447
  %v11537 = vunpack.c.l.b16 %v11448
  %v11538 = vunpack.c.h.b16 %v11448
  %v11539 = vunpack.c.l.b16 %v11449
  %v11540 = vunpack.c.h.b16 %v11449
  %v11541 = vunpack.c.l.b16 %v11450
  %v11542 = vunpack.c.h.b16 %v11450
  %v11543 = vunpack.c.l.b16 %v11451
  %v11544 = vunpack.c.h.b16 %v11451
  %v11545 = vunpack.c.l.b16 %v11452
  %v11546 = vunpack.c.h.b16 %v11452
  %v11547 = vunpack.c.l.b16 %v11453
  %v11548 = vunpack.c.h.b16 %v11453
  %v11549 = vunpack.c.l.b16 %v11454
  %v11550 = vunpack.c.h.b16 %v11454
  %v11551 = vunpack.c.l.b16 %v11455
  %v11552 = vunpack.c.h.b16 %v11455
  %v11553 = vunpack.c.l.b16 %v11456
  %v11554 = vunpack.c.h.b16 %v11456
  %v11555 = vunpack.c.l.b16 %v11457
  %v11556 = vunpack.c.h.b16 %v11457
  %v11557 = vunpack.c.l.b16 %v11458
  %v11558 = vunpack.c.h.b16 %v11458
  %v11559 = vunpack.c.l.b16 %v11459
  %v11560 = vunpack.c.h.b16 %v11459
  %v11561 = vunpack.c.l.b16 %v11460
  %v11562 = vunpack.c.h.b16 %v11460
  %v11563 = vunpack.c.l.b16 %v11461
  %v11564 = vunpack.c.h.b16 %v11461
  %v11565 = vunpack.c.l.b16 %v11462
  %v11566 = vunpack.c.h.b16 %v11462
  %v11567 = vunpack.c.l.b16 %v11463
  %v11568 = vunpack.c.h.b16 %v11463
  %v11569 = vunpack.c.l.b16 %v11464
  %v11570 = vunpack.c.h.b16 %v11464
  %v11571 = vunpack.c.l.b16 %v11465
  %v11572 = vunpack.c.h.b16 %v11465
  %v11573 = vunpack.c.l.b16 %v11466
  %v11574 = vunpack.c.h.b16 %v11466
  %v11575 = vunpack.c.l.b16 %v11467
  %v11576 = vunpack.c.h.b16 %v11467
  %v11577 = vunpack.c.l.b16 %v11468
  %v11578 = vunpack.c.h.b16 %v11468
  %v11579 = vunpack.c.l.b16 %v11469
  %v11580 = vunpack.c.h.b16 %v11469
  %v11581 = vunpack.c.l.b16 %v11470
  %v11582 = vunpack.c.h.b16 %v11470
  %v11583 = vunpack.c.l.b16 %v11471
  %v11584 = vunpack.c.h.b16 %v11471
  %v11585 = vunpack.c.l.b16 %v11472
  %v11586 = vunpack.c.h.b16 %v11472
  %v11587 = vunpack.c.l.b16 %v11473
  %v11588 = vunpack.c.h.b16 %v11473
  %v11589 = vunpack.c.l.b16 %v11474
  %v11590 = vunpack.c.h.b16 %v11474
  %v11591 = vunpack.c.l.b16 %v11475
  %v11592 = vunpack.c.h.b16 %v11475
  %v11593 = vunpack.c.l.b16 %v11476
  %v11594 = vunpack.c.h.b16 %v11476
  %v11595 = vunpack.c.l.b16 %v11477
  %v11596 = vunpack.c.h.b16 %v11477
  %v11597 = vunpack.c.l.b16 %v11478
  %v11598 = vunpack.c.h.b16 %v11478
  %v11599 = vunpack.c.l.b16 %v11479
  %v11600 = vunpack.c.h.b16 %v11479
  %v11601 = vunpack.c.l.b16 %v11480
  %v11602 = vunpack.c.h.b16 %v11480
  %v11603 = vunpack.c.l.b16 %v11481
  %v11604 = vunpack.c.h.b16 %v11481
  %v11605 = vunpack.c.l.b16 %v11482
  %v11606 = vunpack.c.h.b16 %v11482
  %v11607 = vunpack.c.l.b16 %v11483
  %v11608 = vunpack.c.h.b16 %v11483
  %v11609 = vunpack.c.l.b16 %v11484
  %v11610 = vunpack.c.h.b16 %v11484
  %v11611 = vunpack.c.l.b16 %v11485
  %v11612 = vunpack.c.h.b16 %v11485
  %v11613 = vunpack.c.l.b16 %v11486
  %v11614 = vunpack.c.h.b16 %v11486
  %v11615 = vunpack.c.l.b16 %v11487
  %v11616 = vunpack.c.h.b16 %v11487
  %v11617 = vunpack.c.l.b16 %v11488
  %v11618 = vunpack.c.h.b16 %v11488
  %v11619 = vunpack.c.l.b16 %v11489
  %v11620 = vunpack.c.h.b16 %v11489
  %v11621 = vunpack.c.l.b16 %v11490
  %v11622 = vunpack.c.h.b16 %v11490
  %v11623 = vpack.c.b16 %v11537, %v11535
  %v11624 = vpack.c.b16 %v11538, %v11536
  %v11625 = vpack.c.b16 %v11541, %v11539
  %v11626 = vpack.c.b16 %v11542, %v11540
  %v11627 = vpack.c.b16 %v11545, %v11543
  %v11628 = vpack.c.b16 %v11546, %v11544
  %v11629 = vpack.c.b16 %v11549, %v11547
  %v11630 = vpack.c.b16 %v11550, %v11548
  %v11631 = vpack.c.b16 %v11553, %v11551
  %v11632 = vpack.c.b16 %v11554, %v11552
  %v11633 = vpack.c.b16 %v11557, %v11555
  %v11634 = vpack.c.b16 %v11558, %v11556
  %v11635 = vpack.c.b16 %v11561, %v11559
  %v11636 = vpack.c.b16 %v11562, %v11560
  %v11637 = vpack.c.b16 %v11565, %v11563
  %v11638 = vpack.c.b16 %v11566, %v11564
  %v11639 = vpack.c.b16 %v11569, %v11567
  %v11640 = vpack.c.b16 %v11570, %v11568
  %v11641 = vpack.c.b16 %v11573, %v11571
  %v11642 = vpack.c.b16 %v11574, %v11572
  %v11643 = vpack.c.b16 %v11577, %v11575
  %v11644 = vpack.c.b16 %v11578, %v11576
  %v11645 = vpack.c.b16 %v11581, %v11579
  %v11646 = vpack.c.b16 %v11582, %v11580
  %v11647 = vpack.c.b16 %v11585, %v11583
  %v11648 = vpack.c.b16 %v11586, %v11584
  %v11649 = vpack.c.b16 %v11589, %v11587
  %v11650 = vpack.c.b16 %v11590, %v11588
  %v11651 = vpack.c.b16 %v11593, %v11591
  %v11652 = vpack.c.b16 %v11594, %v11592
  %v11653 = vpack.c.b16 %v11597, %v11595
  %v11654 = vpack.c.b16 %v11598, %v11596
  %v11655 = vpack.c.b16 %v11601, %v11599
  %v11656 = vpack.c.b16 %v11602, %v11600
  %v11657 = vpack.c.b16 %v11605, %v11603
  %v11658 = vpack.c.b16 %v11606, %v11604
  %v11659 = vpack.c.b16 %v11609, %v11607
  %v11660 = vpack.c.b16 %v11610, %v11608
  %v11661 = vpack.c.b16 %v11613, %v11611
  %v11662 = vpack.c.b16 %v11614, %v11612
  %v11663 = vpack.c.b16 %v11617, %v11615
  %v11664 = vpack.c.b16 %v11618, %v11616
  %v11665 = vpack.c.b16 %v11621, %v11619
  %v11666 = vpack.c.b16 %v11622, %v11620
  %v11712 = vsel %vm6024, %v10554, 0
  %11714 = vmatprep.subr.bf16.mxu0 %v11638
  %11715 = vmatpush1.bf16.msra.mxu0 %v11637
  %11716 = vmatprep.subr.bf16.mxu0 %v11636
  %11717 = vmatpush1.bf16.msra.mxu0 %v11635
  %11718 = vmatprep.subr.bf16.mxu0 %v11634
  %11719 = vmatpush1.bf16.msra.mxu0 %v11633
  %11720 = vmatprep.subr.bf16.mxu0 %v11632
  %11721 = vmatpush1.bf16.msra.mxu0 %v11631
  %11722 = vmatprep.subr.bf16.mxu0 %v11630
  %11723 = vmatpush1.bf16.msra.mxu0 %v11629
  %11724 = vmatprep.subr.bf16.mxu0 %v11628
  %11725 = vmatpush1.bf16.msra.mxu0 %v11627
  %11726 = vmatprep.subr.bf16.mxu0 %v11626
  %11727 = vmatpush1.bf16.msra.mxu0 %v11625
  %11728 = vmatprep.subr.bf16.mxu0 %v11624
  %11729 = vmatpush1.bf16.msra.mxu0 %v11623
  %11730 = vmatprep.subr.bf16.mxu0 %v11654
  %11731 = vmatpush2.bf16.msra.mxu0 %v11653
  %11732 = vmatprep.subr.bf16.mxu0 %v11652
  %11733 = vmatpush2.bf16.msra.mxu0 %v11651
  %11734 = vmatprep.subr.bf16.mxu0 %v11650
  %11735 = vmatpush2.bf16.msra.mxu0 %v11649
  %11736 = vmatprep.subr.bf16.mxu0 %v11648
  %11737 = vmatpush2.bf16.msra.mxu0 %v11647
  %11738 = vmatprep.subr.bf16.mxu0 %v11646
  %11739 = vmatpush2.bf16.msra.mxu0 %v11645
  %11740 = vmatprep.subr.bf16.mxu0 %v11644
  %11741 = vmatpush2.bf16.msra.mxu0 %v11643
  %11742 = vmatprep.subr.bf16.mxu0 %v11642
  %11743 = vmatpush2.bf16.msra.mxu0 %v11641
  %11744 = vmatprep.subr.bf16.mxu0 %v11640
  %11745 = vmatpush2.bf16.msra.mxu0 %v11639
  %11746 = vmatprep.mubr.bf16.mxu0 %v10529
  %11747 = vmatmul.mubr.bf16.gmra.mxu0 %v10528
  %v11748 = vpop.f32.mrf.mxu0
  %v11749 = vadd.f32 0.0, %v11748
  %v11750 = vpop.f32.mrf.mxu0
  %v11751 = vadd.f32 0.0, %v11750
  %v11752 = vpop.f32.mrf.mxu0
  %v11753 = vadd.f32 0.0, %v11752
  %v11754 = vpop.f32.mrf.mxu0
  %v11755 = vadd.f32 0.0, %v11754
  %11756 = vmatprep.mubr.bf16.mxu0 %v10535
  %11757 = vmatmul.mubr.bf16.gmra.mxu0 %v10534
  %v11758 = vpop.f32.mrf.mxu0
  %v11759 = vadd.f32 0.0, %v11758
  %v11760 = vpop.f32.mrf.mxu0
  %v11761 = vadd.f32 0.0, %v11760
  %v11762 = vpop.f32.mrf.mxu0
  %v11763 = vadd.f32 0.0, %v11762
  %v11764 = vpop.f32.mrf.mxu0
  %v11765 = vadd.f32 0.0, %v11764
  %11766 = vmatprep.mubr.bf16.mxu0 %v10541
  %11767 = vmatmul.mubr.bf16.gmra.mxu0 %v10540
  %v11768 = vpop.f32.mrf.mxu0
  %v11769 = vadd.f32 0.0, %v11768
  %v11770 = vpop.f32.mrf.mxu0
  %v11771 = vadd.f32 0.0, %v11770
  %v11772 = vpop.f32.mrf.mxu0
  %v11773 = vadd.f32 0.0, %v11772
  %v11774 = vpop.f32.mrf.mxu0
  %v11775 = vadd.f32 0.0, %v11774
  %11776 = vmatprep.mubr.bf16.mxu0 %v10547
  %11777 = vmatmul.mubr.bf16.gmra.mxu0 %v10546
  %v11778 = vpop.f32.mrf.mxu0
  %v11779 = vadd.f32 0.0, %v11778
  %v11780 = vpop.f32.mrf.mxu0
  %v11781 = vadd.f32 0.0, %v11780
  %v11782 = vpop.f32.mrf.mxu0
  %v11783 = vadd.f32 0.0, %v11782
  %v11784 = vpop.f32.mrf.mxu0
  %v11785 = vadd.f32 0.0, %v11784
  %11786 = vmatprep.mubr.bf16.mxu0 %v10553
  %11787 = vmatmul.mubr.bf16.gmra.mxu0 %v10552
  %v11788 = vpop.f32.mrf.mxu0
  %v11789 = vadd.f32 0.0, %v11788
  %v11790 = vpop.f32.mrf.mxu0
  %v11791 = vadd.f32 0.0, %v11790
  %v11792 = vpop.f32.mrf.mxu0
  %v11793 = vadd.f32 0.0, %v11792
  %v11794 = vpop.f32.mrf.mxu0
  %v11795 = vadd.f32 0.0, %v11794
  %11796 = vdwg.mxu0
  %11797 = vmatprep.subr.bf16.mxu0 0
  %11798 = vmatpush1.bf16.msra.mxu0 0
  %11799 = vmatprep.subr.bf16.mxu0 0
  %11800 = vmatpush1.bf16.msra.mxu0 0
  %11801 = vmatprep.subr.bf16.mxu0 %v11666
  %11802 = vmatpush1.bf16.msra.mxu0 %v11665
  %11803 = vmatprep.subr.bf16.mxu0 %v11664
  %11804 = vmatpush1.bf16.msra.mxu0 %v11663
  %11805 = vmatprep.subr.bf16.mxu0 %v11662
  %11806 = vmatpush1.bf16.msra.mxu0 %v11661
  %11807 = vmatprep.subr.bf16.mxu0 %v11660
  %11808 = vmatpush1.bf16.msra.mxu0 %v11659
  %11809 = vmatprep.subr.bf16.mxu0 %v11658
  %11810 = vmatpush1.bf16.msra.mxu0 %v11657
  %11811 = vmatprep.subr.bf16.mxu0 %v11656
  %11812 = vmatpush1.bf16.msra.mxu0 %v11655
  %11813 = vmatprep.subr.bf16.mxu0 0
  %11814 = vmatpush2.bf16.msra.mxu0 0
  %11815 = vmatprep.subr.bf16.mxu0 0
  %11816 = vmatpush2.bf16.msra.mxu0 0
  %11817 = vmatprep.subr.bf16.mxu0 0
  %11818 = vmatpush2.bf16.msra.mxu0 0
  %11819 = vmatprep.subr.bf16.mxu0 0
  %11820 = vmatpush2.bf16.msra.mxu0 0
  %11821 = vmatprep.subr.bf16.mxu0 0
  %11822 = vmatpush2.bf16.msra.mxu0 0
  %11823 = vmatprep.subr.bf16.mxu0 0
  %11824 = vmatpush2.bf16.msra.mxu0 0
  %11825 = vmatprep.subr.bf16.mxu0 0
  %11826 = vmatpush2.bf16.msra.mxu0 0
  %11827 = vmatprep.subr.bf16.mxu0 0
  %11828 = vmatpush2.bf16.msra.mxu0 0
  %11829 = vmatprep.mubr.bf16.mxu0 0
  %11830 = vmatmul.mubr.bf16.gmra.mxu0 %v11269
  %v11831 = vpop.f32.mrf.mxu0
  %v11832 = vadd.f32 %v11749, %v11831
  %v11833 = vpop.f32.mrf.mxu0
  %v11834 = vadd.f32 %v11751, %v11833
  %v11835 = vpop.f32.mrf.mxu0
  %v11836 = vadd.f32 %v11753, %v11835
  %v11837 = vpop.f32.mrf.mxu0
  %v11838 = vadd.f32 %v11755, %v11837
  %11839 = vmatprep.mubr.bf16.mxu0 0
  %11840 = vmatmul.mubr.bf16.gmra.mxu0 %v11272
  %v11841 = vpop.f32.mrf.mxu0
  %v11842 = vadd.f32 %v11759, %v11841
  %v11843 = vpop.f32.mrf.mxu0
  %v11844 = vadd.f32 %v11761, %v11843
  %v11845 = vpop.f32.mrf.mxu0
  %v11846 = vadd.f32 %v11763, %v11845
  %v11847 = vpop.f32.mrf.mxu0
  %v11848 = vadd.f32 %v11765, %v11847
  %11849 = vmatprep.mubr.bf16.mxu0 0
  %11850 = vmatmul.mubr.bf16.gmra.mxu0 %v11275
  %v11851 = vpop.f32.mrf.mxu0
  %v11852 = vadd.f32 %v11769, %v11851
  %v11853 = vpop.f32.mrf.mxu0
  %v11854 = vadd.f32 %v11771, %v11853
  %v11855 = vpop.f32.mrf.mxu0
  %v11856 = vadd.f32 %v11773, %v11855
  %v11857 = vpop.f32.mrf.mxu0
  %v11858 = vadd.f32 %v11775, %v11857
  %11859 = vmatprep.mubr.bf16.mxu0 0
  %11860 = vmatmul.mubr.bf16.gmra.mxu0 %v11278
  %v11861 = vpop.f32.mrf.mxu0
  %v11862 = vadd.f32 %v11779, %v11861
  %v11863 = vpop.f32.mrf.mxu0
  %v11864 = vadd.f32 %v11781, %v11863
  %v11865 = vpop.f32.mrf.mxu0
  %v11866 = vadd.f32 %v11783, %v11865
  %v11867 = vpop.f32.mrf.mxu0
  %v11868 = vadd.f32 %v11785, %v11867
  %11869 = vmatprep.mubr.bf16.mxu0 0
  %11870 = vmatmul.mubr.bf16.gmra.mxu0 %v11712
  %v11871 = vpop.f32.mrf.mxu0
  %v11872 = vadd.f32 %v11789, %v11871
  %v11873 = vpop.f32.mrf.mxu0
  %v11874 = vadd.f32 %v11791, %v11873
  %v11875 = vpop.f32.mrf.mxu0
  %v11876 = vadd.f32 %v11793, %v11875
  %v11877 = vpop.f32.mrf.mxu0
  %v11878 = vadd.f32 %v11795, %v11877
  %11879 = vdwg.mxu0
  %v11880 = vadd.f32 %v11398, %v11832
  %v11881 = vadd.f32 %v11400, %v11834
  %v11882 = vadd.f32 %v11402, %v11836
  %v11883 = vadd.f32 %v11404, %v11838
  %v11884 = vadd.f32 %v11408, %v11842
  %v11885 = vadd.f32 %v11410, %v11844
  %v11886 = vadd.f32 %v11412, %v11846
  %v11887 = vadd.f32 %v11414, %v11848
  %v11888 = vadd.f32 %v11418, %v11852
  %v11889 = vadd.f32 %v11420, %v11854
  %v11890 = vadd.f32 %v11422, %v11856
  %v11891 = vadd.f32 %v11424, %v11858
  %v11892 = vadd.f32 %v11428, %v11862
  %v11893 = vadd.f32 %v11430, %v11864
  %v11894 = vadd.f32 %v11432, %v11866
  %v11895 = vadd.f32 %v11434, %v11868
  %v11896 = vadd.f32 %v11438, %v11872
  %v11897 = vadd.f32 %v11440, %v11874
  %v11898 = vadd.f32 %v11442, %v11876
  %v11899 = vadd.f32 %v11444, %v11878
  %v11900 = vld [vmem:[%s6] sm:$0x3]
  %v11902 = vlaneseq
  %v11903 = vshrl.u32 %v11902, 7
  %v11904 = vsub.s32 0, %v11903
  %v11905 = vrot.slane %v11900, %v11904
  %v11906 = vlaneseq
  %v11907 = vshrl.u32 %v11906, 7
  %v11908 = vsub.s32 1, %v11907
  %v11909 = vrot.slane %v11900, %v11908
  %v11912 = vadd.f32 %v11880, %v11905
  %v11913 = vadd.f32 %v11881, %v11909
  %v11914 = vadd.f32 %v11882, %v11905
  %v11915 = vadd.f32 %v11883, %v11909
  %v11916 = vadd.f32 %v11884, %v11905
  %v11917 = vadd.f32 %v11885, %v11909
  %v11918 = vadd.f32 %v11886, %v11905
  %v11919 = vadd.f32 %v11887, %v11909
  %v11920 = vadd.f32 %v11888, %v11905
  %v11921 = vadd.f32 %v11889, %v11909
  %v11922 = vadd.f32 %v11890, %v11905
  %v11923 = vadd.f32 %v11891, %v11909
  %v11924 = vadd.f32 %v11892, %v11905
  %v11925 = vadd.f32 %v11893, %v11909
  %v11926 = vadd.f32 %v11894, %v11905
  %v11927 = vadd.f32 %v11895, %v11909
  %v11928 = vadd.f32 %v11896, %v11905
  %v11929 = vadd.f32 %v11897, %v11909
  %v11930 = vadd.f32 %v11898, %v11905
  %v11931 = vadd.f32 %v11899, %v11909
  %v11932 = vmul.f32 %v11912, 0.2
  %v11933 = vmul.f32 %v11913, 0.2
  %v11934 = vmul.f32 %v11914, 0.2
  %v11935 = vmul.f32 %v11915, 0.2
  %v11936 = vmul.f32 %v11916, 0.2
  %v11937 = vmul.f32 %v11917, 0.2
  %v11938 = vmul.f32 %v11918, 0.2
  %v11939 = vmul.f32 %v11919, 0.2
  %v11940 = vmul.f32 %v11920, 0.2
  %v11941 = vmul.f32 %v11921, 0.2
  %v11942 = vmul.f32 %v11922, 0.2
  %v11943 = vmul.f32 %v11923, 0.2
  %v11944 = vmul.f32 %v11924, 0.2
  %v11945 = vmul.f32 %v11925, 0.2
  %v11946 = vmul.f32 %v11926, 0.2
  %v11947 = vmul.f32 %v11927, 0.2
  %v11948 = vmul.f32 %v11928, 0.2
  %v11949 = vmul.f32 %v11929, 0.2
  %v11950 = vmul.f32 %v11930, 0.2
  %v11951 = vmul.f32 %v11931, 0.2
  %v11952 = vmax.f32 %v11912, %v11932
  %v11953 = vmax.f32 %v11913, %v11933
  %v11954 = vmax.f32 %v11914, %v11934
  %v11955 = vmax.f32 %v11915, %v11935
  %v11956 = vmax.f32 %v11916, %v11936
  %v11957 = vmax.f32 %v11917, %v11937
  %v11958 = vmax.f32 %v11918, %v11938
  %v11959 = vmax.f32 %v11919, %v11939
  %v11960 = vmax.f32 %v11920, %v11940
  %v11961 = vmax.f32 %v11921, %v11941
  %v11962 = vmax.f32 %v11922, %v11942
  %v11963 = vmax.f32 %v11923, %v11943
  %v11964 = vmax.f32 %v11924, %v11944
  %v11965 = vmax.f32 %v11925, %v11945
  %v11966 = vmax.f32 %v11926, %v11946
  %v11967 = vmax.f32 %v11927, %v11947
  %v11968 = vmax.f32 %v11928, %v11948
  %v11969 = vmax.f32 %v11929, %v11949
  %v11970 = vmax.f32 %v11930, %v11950
  %v11971 = vmax.f32 %v11931, %v11951
  %v11972 = vpack.c.bf16 %v11954, %v11952
  %v11973 = vpack.c.bf16 %v11955, %v11953
  %v11974 = vpack.c.bf16 %v11958, %v11956
  %v11975 = vpack.c.bf16 %v11959, %v11957
  %v11976 = vpack.c.bf16 %v11962, %v11960
  %v11977 = vpack.c.bf16 %v11963, %v11961
  %v11978 = vpack.c.bf16 %v11966, %v11964
  %v11979 = vpack.c.bf16 %v11967, %v11965
  %v11980 = vpack.c.bf16 %v11970, %v11968
  %v11981 = vpack.c.bf16 %v11971, %v11969
  %v11982 = vld [vmem:[%s8] sm:$0x1]
  %v11983 = vld [vmem:[%s7] sm:$0xf]
  %v11984 = vld [vmem:[%s7 + $0x4] sm:$0xf]
  %v11985 = vld [vmem:[%s7 + $0x8] sm:$0xf]
  %v11986 = vld [vmem:[%s7 + $0xc] sm:$0xf]
  %v11987 = vld [vmem:[%s7 + $0x10] sm:$0xf]
  %v11988 = vld [vmem:[%s7 + $0x14] sm:$0xf]
  %v11989 = vld [vmem:[%s7 + $0x18] sm:$0xf]
  %v11990 = vld [vmem:[%s7 + $0x1c] sm:$0xf]
  %v11991 = vld [vmem:[%s7 + $0x20] sm:$0xf]
  %v11992 = vld [vmem:[%s7 + $0x24] sm:$0xf]
  %v11993 = vld [vmem:[%s7 + $0x28] sm:$0xf]
  %v11994 = vld [vmem:[%s7 + $0x2c] sm:$0xf]
  %v11995 = vld [vmem:[%s7 + $0x30] sm:$0xf]
  %v11996 = vld [vmem:[%s7 + $0x34] sm:$0xf]
  %v11997 = vld [vmem:[%s7 + $0x38] sm:$0xf]
  %v11998 = vld [vmem:[%s7 + $0x3c] sm:$0xf]
  %v11999 = vld [vmem:[%s7 + $0x40] sm:$0xf]
  %v12000 = vld [vmem:[%s7 + $0x44] sm:$0xf]
  %v12001 = vld [vmem:[%s7 + $0x48] sm:$0xf]
  %v12002 = vld [vmem:[%s7 + $0x4c] sm:$0xf]
  %v12023 = vunpack.c.l.b16 %v11983
  %v12024 = vunpack.c.l.b16 %v11984
  %v12025 = vunpack.c.l.b16 %v11985
  %v12026 = vunpack.c.l.b16 %v11986
  %v12027 = vunpack.c.l.b16 %v11987
  %v12028 = vunpack.c.l.b16 %v11988
  %v12029 = vunpack.c.l.b16 %v11989
  %v12030 = vunpack.c.l.b16 %v11990
  %v12031 = vunpack.c.l.b16 %v11991
  %v12032 = vunpack.c.l.b16 %v11992
  %v12033 = vunpack.c.l.b16 %v11993
  %v12034 = vunpack.c.l.b16 %v11994
  %v12035 = vunpack.c.l.b16 %v11995
  %v12036 = vunpack.c.l.b16 %v11996
  %v12037 = vunpack.c.l.b16 %v11997
  %v12038 = vunpack.c.l.b16 %v11998
  %v12039 = vunpack.c.l.b16 %v11999
  %v12040 = vunpack.c.l.b16 %v12000
  %v12041 = vunpack.c.l.b16 %v12001
  %v12042 = vunpack.c.l.b16 %v12002
  %v12043 = vpack.c.b16 %v12024, %v12023
  %v12044 = vpack.c.b16 %v12026, %v12025
  %v12045 = vpack.c.b16 %v12028, %v12027
  %v12046 = vpack.c.b16 %v12030, %v12029
  %v12047 = vpack.c.b16 %v12032, %v12031
  %v12048 = vpack.c.b16 %v12034, %v12033
  %v12049 = vpack.c.b16 %v12036, %v12035
  %v12050 = vpack.c.b16 %v12038, %v12037
  %v12051 = vpack.c.b16 %v12040, %v12039
  %v12052 = vpack.c.b16 %v12042, %v12041
  %vm12063 = vcmask 261120
  %v12065 = vsel %vm12063, %v11973, 0
  %12067 = vmatprep.subr.bf16.mxu0 0
  %12068 = vmatpush1.bf16.msra.mxu0 %v12050
  %12069 = vmatprep.subr.bf16.mxu0 0
  %12070 = vmatpush1.bf16.msra.mxu0 %v12049
  %12071 = vmatprep.subr.bf16.mxu0 0
  %12072 = vmatpush1.bf16.msra.mxu0 %v12048
  %12073 = vmatprep.subr.bf16.mxu0 0
  %12074 = vmatpush1.bf16.msra.mxu0 %v12047
  %12075 = vmatprep.subr.bf16.mxu0 0
  %12076 = vmatpush1.bf16.msra.mxu0 %v12046
  %12077 = vmatprep.subr.bf16.mxu0 0
  %12078 = vmatpush1.bf16.msra.mxu0 %v12045
  %12079 = vmatprep.subr.bf16.mxu0 0
  %12080 = vmatpush1.bf16.msra.mxu0 %v12044
  %12081 = vmatprep.subr.bf16.mxu0 0
  %12082 = vmatpush1.bf16.msra.mxu0 %v12043
  %12083 = vmatprep.subr.bf16.mxu0 0
  %12084 = vmatpush2.bf16.msra.mxu0 0
  %12085 = vmatprep.subr.bf16.mxu0 0
  %12086 = vmatpush2.bf16.msra.mxu0 0
  %12087 = vmatprep.subr.bf16.mxu0 0
  %12088 = vmatpush2.bf16.msra.mxu0 0
  %12089 = vmatprep.subr.bf16.mxu0 0
  %12090 = vmatpush2.bf16.msra.mxu0 0
  %12091 = vmatprep.subr.bf16.mxu0 0
  %12092 = vmatpush2.bf16.msra.mxu0 0
  %12093 = vmatprep.subr.bf16.mxu0 0
  %12094 = vmatpush2.bf16.msra.mxu0 0
  %12095 = vmatprep.subr.bf16.mxu0 0
  %12096 = vmatpush2.bf16.msra.mxu0 %v12052
  %12097 = vmatprep.subr.bf16.mxu0 0
  %12098 = vmatpush2.bf16.msra.mxu0 %v12051
  %12099 = vmatprep.mubr.bf16.mxu0 %v12065
  %12100 = vmatmul.mubr.bf16.gmra.mxu0 %v11972
  %v12101 = vpop.f32.mrf.mxu0
  %v12102 = vadd.f32 0.0, %v12101
  %v12103 = vpop.f32.mrf.mxu0
  %v12104 = vpop.f32.mrf.mxu0
  %v12105 = vadd.f32 0.0, %v12104
  %v12106 = vpop.f32.mrf.mxu0
  %12107 = vdwg.mxu0
  %v12109 = vlaneseq
  %v12110 = vshrl.u32 %v12109, 7
  %v12111 = vsub.s32 0, %v12110
  %v12112 = vrot.slane %v11982, %v12111
  %v12114 = vadd.f32 %v12112, %v12102
  %v12115 = vadd.f32 %v12112, %v12105
  %s12116 = scalar_lea.vmem %s7, 80
  %v12117 = vld [vmem:[%s12116] sm:$0xf]
  %v12118 = vld [vmem:[%s12116 + $0x4] sm:$0xf]
  %v12119 = vld [vmem:[%s12116 + $0x8] sm:$0xf]
  %v12120 = vld [vmem:[%s12116 + $0xc] sm:$0xf]
  %v12121 = vld [vmem:[%s12116 + $0x10] sm:$0xf]
  %v12122 = vld [vmem:[%s12116 + $0x14] sm:$0xf]
  %v12123 = vld [vmem:[%s12116 + $0x18] sm:$0xf]
  %v12124 = vld [vmem:[%s12116 + $0x1c] sm:$0xf]
  %v12125 = vld [vmem:[%s12116 + $0x20] sm:$0xf]
  %v12126 = vld [vmem:[%s12116 + $0x24] sm:$0xf]
  %v12127 = vld [vmem:[%s12116 + $0x28] sm:$0xf]
  %v12128 = vld [vmem:[%s12116 + $0x2c] sm:$0xf]
  %v12129 = vld [vmem:[%s12116 + $0x30] sm:$0xf]
  %v12130 = vld [vmem:[%s12116 + $0x34] sm:$0xf]
  %v12131 = vld [vmem:[%s12116 + $0x38] sm:$0xf]
  %v12132 = vld [vmem:[%s12116 + $0x3c] sm:$0xf]
  %v12133 = vld [vmem:[%s12116 + $0x40] sm:$0xf]
  %v12134 = vld [vmem:[%s12116 + $0x44] sm:$0xf]
  %v12135 = vld [vmem:[%s12116 + $0x48] sm:$0xf]
  %v12136 = vld [vmem:[%s12116 + $0x4c] sm:$0xf]
  %v12157 = vunpack.c.l.b16 %v12117
  %v12158 = vunpack.c.l.b16 %v12118
  %v12159 = vunpack.c.l.b16 %v12119
  %v12160 = vunpack.c.l.b16 %v12120
  %v12161 = vunpack.c.l.b16 %v12121
  %v12162 = vunpack.c.l.b16 %v12122
  %v12163 = vunpack.c.l.b16 %v12123
  %v12164 = vunpack.c.l.b16 %v12124
  %v12165 = vunpack.c.l.b16 %v12125
  %v12166 = vunpack.c.l.b16 %v12126
  %v12167 = vunpack.c.l.b16 %v12127
  %v12168 = vunpack.c.l.b16 %v12128
  %v12169 = vunpack.c.l.b16 %v12129
  %v12170 = vunpack.c.l.b16 %v12130
  %v12171 = vunpack.c.l.b16 %v12131
  %v12172 = vunpack.c.l.b16 %v12132
  %v12173 = vunpack.c.l.b16 %v12133
  %v12174 = vunpack.c.l.b16 %v12134
  %v12175 = vunpack.c.l.b16 %v12135
  %v12176 = vunpack.c.l.b16 %v12136
  %v12177 = vpack.c.b16 %v12158, %v12157
  %v12178 = vpack.c.b16 %v12160, %v12159
  %v12179 = vpack.c.b16 %v12162, %v12161
  %v12180 = vpack.c.b16 %v12164, %v12163
  %v12181 = vpack.c.b16 %v12166, %v12165
  %v12182 = vpack.c.b16 %v12168, %v12167
  %v12183 = vpack.c.b16 %v12170, %v12169
  %v12184 = vpack.c.b16 %v12172, %v12171
  %v12185 = vpack.c.b16 %v12174, %v12173
  %v12186 = vpack.c.b16 %v12176, %v12175
  %v12198 = vsel %vm12063, %v11975, 0
  %12200 = vmatprep.subr.bf16.mxu0 0
  %12201 = vmatpush1.bf16.msra.mxu0 %v12184
  %12202 = vmatprep.subr.bf16.mxu0 0
  %12203 = vmatpush1.bf16.msra.mxu0 %v12183
  %12204 = vmatprep.subr.bf16.mxu0 0
  %12205 = vmatpush1.bf16.msra.mxu0 %v12182
  %12206 = vmatprep.subr.bf16.mxu0 0
  %12207 = vmatpush1.bf16.msra.mxu0 %v12181
  %12208 = vmatprep.subr.bf16.mxu0 0
  %12209 = vmatpush1.bf16.msra.mxu0 %v12180
  %12210 = vmatprep.subr.bf16.mxu0 0
  %12211 = vmatpush1.bf16.msra.mxu0 %v12179
  %12212 = vmatprep.subr.bf16.mxu0 0
  %12213 = vmatpush1.bf16.msra.mxu0 %v12178
  %12214 = vmatprep.subr.bf16.mxu0 0
  %12215 = vmatpush1.bf16.msra.mxu0 %v12177
  %12216 = vmatprep.subr.bf16.mxu0 0
  %12217 = vmatpush2.bf16.msra.mxu0 0
  %12218 = vmatprep.subr.bf16.mxu0 0
  %12219 = vmatpush2.bf16.msra.mxu0 0
  %12220 = vmatprep.subr.bf16.mxu0 0
  %12221 = vmatpush2.bf16.msra.mxu0 0
  %12222 = vmatprep.subr.bf16.mxu0 0
  %12223 = vmatpush2.bf16.msra.mxu0 0
  %12224 = vmatprep.subr.bf16.mxu0 0
  %12225 = vmatpush2.bf16.msra.mxu0 0
  %12226 = vmatprep.subr.bf16.mxu0 0
  %12227 = vmatpush2.bf16.msra.mxu0 0
  %12228 = vmatprep.subr.bf16.mxu0 0
  %12229 = vmatpush2.bf16.msra.mxu0 %v12186
  %12230 = vmatprep.subr.bf16.mxu0 0
  %12231 = vmatpush2.bf16.msra.mxu0 %v12185
  %12232 = vmatprep.mubr.bf16.mxu0 %v12198
  %12233 = vmatmul.mubr.bf16.gmra.mxu0 %v11974
  %v12234 = vpop.f32.mrf.mxu0
  %v12235 = vadd.f32 0.0, %v12234
  %v12236 = vpop.f32.mrf.mxu0
  %v12237 = vpop.f32.mrf.mxu0
  %v12238 = vadd.f32 0.0, %v12237
  %v12239 = vpop.f32.mrf.mxu0
  %12240 = vdwg.mxu0
  %v12241 = vadd.f32 %v12114, %v12235
  %v12242 = vadd.f32 %v12115, %v12238
  %s12243 = scalar_lea.vmem %s7, 160
  %v12244 = vld [vmem:[%s12243] sm:$0xf]
  %v12245 = vld [vmem:[%s12243 + $0x4] sm:$0xf]
  %v12246 = vld [vmem:[%s12243 + $0x8] sm:$0xf]
  %v12247 = vld [vmem:[%s12243 + $0xc] sm:$0xf]
  %v12248 = vld [vmem:[%s12243 + $0x10] sm:$0xf]
  %v12249 = vld [vmem:[%s12243 + $0x14] sm:$0xf]
  %v12250 = vld [vmem:[%s12243 + $0x18] sm:$0xf]
  %v12251 = vld [vmem:[%s12243 + $0x1c] sm:$0xf]
  %v12252 = vld [vmem:[%s12243 + $0x20] sm:$0xf]
  %v12253 = vld [vmem:[%s12243 + $0x24] sm:$0xf]
  %v12254 = vld [vmem:[%s12243 + $0x28] sm:$0xf]
  %v12255 = vld [vmem:[%s12243 + $0x2c] sm:$0xf]
  %v12256 = vld [vmem:[%s12243 + $0x30] sm:$0xf]
  %v12257 = vld [vmem:[%s12243 + $0x34] sm:$0xf]
  %v12258 = vld [vmem:[%s12243 + $0x38] sm:$0xf]
  %v12259 = vld [vmem:[%s12243 + $0x3c] sm:$0xf]
  %v12260 = vld [vmem:[%s12243 + $0x40] sm:$0xf]
  %v12261 = vld [vmem:[%s12243 + $0x44] sm:$0xf]
  %v12262 = vld [vmem:[%s12243 + $0x48] sm:$0xf]
  %v12263 = vld [vmem:[%s12243 + $0x4c] sm:$0xf]
  %v12284 = vunpack.c.l.b16 %v12244
  %v12285 = vunpack.c.l.b16 %v12245
  %v12286 = vunpack.c.l.b16 %v12246
  %v12287 = vunpack.c.l.b16 %v12247
  %v12288 = vunpack.c.l.b16 %v12248
  %v12289 = vunpack.c.l.b16 %v12249
  %v12290 = vunpack.c.l.b16 %v12250
  %v12291 = vunpack.c.l.b16 %v12251
  %v12292 = vunpack.c.l.b16 %v12252
  %v12293 = vunpack.c.l.b16 %v12253
  %v12294 = vunpack.c.l.b16 %v12254
  %v12295 = vunpack.c.l.b16 %v12255
  %v12296 = vunpack.c.l.b16 %v12256
  %v12297 = vunpack.c.l.b16 %v12257
  %v12298 = vunpack.c.l.b16 %v12258
  %v12299 = vunpack.c.l.b16 %v12259
  %v12300 = vunpack.c.l.b16 %v12260
  %v12301 = vunpack.c.l.b16 %v12261
  %v12302 = vunpack.c.l.b16 %v12262
  %v12303 = vunpack.c.l.b16 %v12263
  %v12304 = vpack.c.b16 %v12285, %v12284
  %v12305 = vpack.c.b16 %v12287, %v12286
  %v12306 = vpack.c.b16 %v12289, %v12288
  %v12307 = vpack.c.b16 %v12291, %v12290
  %v12308 = vpack.c.b16 %v12293, %v12292
  %v12309 = vpack.c.b16 %v12295, %v12294
  %v12310 = vpack.c.b16 %v12297, %v12296
  %v12311 = vpack.c.b16 %v12299, %v12298
  %v12312 = vpack.c.b16 %v12301, %v12300
  %v12313 = vpack.c.b16 %v12303, %v12302
  %v12325 = vsel %vm12063, %v11977, 0
  %12327 = vmatprep.subr.bf16.mxu0 0
  %12328 = vmatpush1.bf16.msra.mxu0 %v12311
  %12329 = vmatprep.subr.bf16.mxu0 0
  %12330 = vmatpush1.bf16.msra.mxu0 %v12310
  %12331 = vmatprep.subr.bf16.mxu0 0
  %12332 = vmatpush1.bf16.msra.mxu0 %v12309
  %12333 = vmatprep.subr.bf16.mxu0 0
  %12334 = vmatpush1.bf16.msra.mxu0 %v12308
  %12335 = vmatprep.subr.bf16.mxu0 0
  %12336 = vmatpush1.bf16.msra.mxu0 %v12307
  %12337 = vmatprep.subr.bf16.mxu0 0
  %12338 = vmatpush1.bf16.msra.mxu0 %v12306
  %12339 = vmatprep.subr.bf16.mxu0 0
  %12340 = vmatpush1.bf16.msra.mxu0 %v12305
  %12341 = vmatprep.subr.bf16.mxu0 0
  %12342 = vmatpush1.bf16.msra.mxu0 %v12304
  %12343 = vmatprep.subr.bf16.mxu0 0
  %12344 = vmatpush2.bf16.msra.mxu0 0
  %12345 = vmatprep.subr.bf16.mxu0 0
  %12346 = vmatpush2.bf16.msra.mxu0 0
  %12347 = vmatprep.subr.bf16.mxu0 0
  %12348 = vmatpush2.bf16.msra.mxu0 0
  %12349 = vmatprep.subr.bf16.mxu0 0
  %12350 = vmatpush2.bf16.msra.mxu0 0
  %12351 = vmatprep.subr.bf16.mxu0 0
  %12352 = vmatpush2.bf16.msra.mxu0 0
  %12353 = vmatprep.subr.bf16.mxu0 0
  %12354 = vmatpush2.bf16.msra.mxu0 0
  %12355 = vmatprep.subr.bf16.mxu0 0
  %12356 = vmatpush2.bf16.msra.mxu0 %v12313
  %12357 = vmatprep.subr.bf16.mxu0 0
  %12358 = vmatpush2.bf16.msra.mxu0 %v12312
  %12359 = vmatprep.mubr.bf16.mxu0 %v12325
  %12360 = vmatmul.mubr.bf16.gmra.mxu0 %v11976
  %v12361 = vpop.f32.mrf.mxu0
  %v12362 = vadd.f32 0.0, %v12361
  %v12363 = vpop.f32.mrf.mxu0
  %v12364 = vpop.f32.mrf.mxu0
  %v12365 = vadd.f32 0.0, %v12364
  %v12366 = vpop.f32.mrf.mxu0
  %12367 = vdwg.mxu0
  %v12368 = vadd.f32 %v12241, %v12362
  %v12369 = vadd.f32 %v12242, %v12365
  %s12370 = scalar_lea.vmem %s7, 240
  %v12371 = vld [vmem:[%s12370] sm:$0xf]
  %v12372 = vld [vmem:[%s12370 + $0x4] sm:$0xf]
  %v12373 = vld [vmem:[%s12370 + $0x8] sm:$0xf]
  %v12374 = vld [vmem:[%s12370 + $0xc] sm:$0xf]
  %v12375 = vld [vmem:[%s12370 + $0x10] sm:$0xf]
  %v12376 = vld [vmem:[%s12370 + $0x14] sm:$0xf]
  %v12377 = vld [vmem:[%s12370 + $0x18] sm:$0xf]
  %v12378 = vld [vmem:[%s12370 + $0x1c] sm:$0xf]
  %v12379 = vld [vmem:[%s12370 + $0x20] sm:$0xf]
  %v12380 = vld [vmem:[%s12370 + $0x24] sm:$0xf]
  %v12381 = vld [vmem:[%s12370 + $0x28] sm:$0xf]
  %v12382 = vld [vmem:[%s12370 + $0x2c] sm:$0xf]
  %v12383 = vld [vmem:[%s12370 + $0x30] sm:$0xf]
  %v12384 = vld [vmem:[%s12370 + $0x34] sm:$0xf]
  %v12385 = vld [vmem:[%s12370 + $0x38] sm:$0xf]
  %v12386 = vld [vmem:[%s12370 + $0x3c] sm:$0xf]
  %v12387 = vld [vmem:[%s12370 + $0x40] sm:$0xf]
  %v12388 = vld [vmem:[%s12370 + $0x44] sm:$0xf]
  %v12389 = vld [vmem:[%s12370 + $0x48] sm:$0xf]
  %v12390 = vld [vmem:[%s12370 + $0x4c] sm:$0xf]
  %v12411 = vunpack.c.l.b16 %v12371
  %v12412 = vunpack.c.l.b16 %v12372
  %v12413 = vunpack.c.l.b16 %v12373
  %v12414 = vunpack.c.l.b16 %v12374
  %v12415 = vunpack.c.l.b16 %v12375
  %v12416 = vunpack.c.l.b16 %v12376
  %v12417 = vunpack.c.l.b16 %v12377
  %v12418 = vunpack.c.l.b16 %v12378
  %v12419 = vunpack.c.l.b16 %v12379
  %v12420 = vunpack.c.l.b16 %v12380
  %v12421 = vunpack.c.l.b16 %v12381
  %v12422 = vunpack.c.l.b16 %v12382
  %v12423 = vunpack.c.l.b16 %v12383
  %v12424 = vunpack.c.l.b16 %v12384
  %v12425 = vunpack.c.l.b16 %v12385
  %v12426 = vunpack.c.l.b16 %v12386
  %v12427 = vunpack.c.l.b16 %v12387
  %v12428 = vunpack.c.l.b16 %v12388
  %v12429 = vunpack.c.l.b16 %v12389
  %v12430 = vunpack.c.l.b16 %v12390
  %v12431 = vpack.c.b16 %v12412, %v12411
  %v12432 = vpack.c.b16 %v12414, %v12413
  %v12433 = vpack.c.b16 %v12416, %v12415
  %v12434 = vpack.c.b16 %v12418, %v12417
  %v12435 = vpack.c.b16 %v12420, %v12419
  %v12436 = vpack.c.b16 %v12422, %v12421
  %v12437 = vpack.c.b16 %v12424, %v12423
  %v12438 = vpack.c.b16 %v12426, %v12425
  %v12439 = vpack.c.b16 %v12428, %v12427
  %v12440 = vpack.c.b16 %v12430, %v12429
  %v12452 = vsel %vm12063, %v11979, 0
  %12454 = vmatprep.subr.bf16.mxu0 0
  %12455 = vmatpush1.bf16.msra.mxu0 %v12438
  %12456 = vmatprep.subr.bf16.mxu0 0
  %12457 = vmatpush1.bf16.msra.mxu0 %v12437
  %12458 = vmatprep.subr.bf16.mxu0 0
  %12459 = vmatpush1.bf16.msra.mxu0 %v12436
  %12460 = vmatprep.subr.bf16.mxu0 0
  %12461 = vmatpush1.bf16.msra.mxu0 %v12435
  %12462 = vmatprep.subr.bf16.mxu0 0
  %12463 = vmatpush1.bf16.msra.mxu0 %v12434
  %12464 = vmatprep.subr.bf16.mxu0 0
  %12465 = vmatpush1.bf16.msra.mxu0 %v12433
  %12466 = vmatprep.subr.bf16.mxu0 0
  %12467 = vmatpush1.bf16.msra.mxu0 %v12432
  %12468 = vmatprep.subr.bf16.mxu0 0
  %12469 = vmatpush1.bf16.msra.mxu0 %v12431
  %12470 = vmatprep.subr.bf16.mxu0 0
  %12471 = vmatpush2.bf16.msra.mxu0 0
  %12472 = vmatprep.subr.bf16.mxu0 0
  %12473 = vmatpush2.bf16.msra.mxu0 0
  %12474 = vmatprep.subr.bf16.mxu0 0
  %12475 = vmatpush2.bf16.msra.mxu0 0
  %12476 = vmatprep.subr.bf16.mxu0 0
  %12477 = vmatpush2.bf16.msra.mxu0 0
  %12478 = vmatprep.subr.bf16.mxu0 0
  %12479 = vmatpush2.bf16.msra.mxu0 0
  %12480 = vmatprep.subr.bf16.mxu0 0
  %12481 = vmatpush2.bf16.msra.mxu0 0
  %12482 = vmatprep.subr.bf16.mxu0 0
  %12483 = vmatpush2.bf16.msra.mxu0 %v12440
  %12484 = vmatprep.subr.bf16.mxu0 0
  %12485 = vmatpush2.bf16.msra.mxu0 %v12439
  %12486 = vmatprep.mubr.bf16.mxu0 %v12452
  %12487 = vmatmul.mubr.bf16.gmra.mxu0 %v11978
  %v12488 = vpop.f32.mrf.mxu0
  %v12489 = vadd.f32 0.0, %v12488
  %v12490 = vpop.f32.mrf.mxu0
  %v12491 = vpop.f32.mrf.mxu0
  %v12492 = vadd.f32 0.0, %v12491
  %v12493 = vpop.f32.mrf.mxu0
  %12494 = vdwg.mxu0
  %v12495 = vadd.f32 %v12368, %v12489
  %v12496 = vadd.f32 %v12369, %v12492
  %s12497 = scalar_lea.vmem %s7, 320
  %v12498 = vld [vmem:[%s12497] sm:$0xf]
  %v12499 = vld [vmem:[%s12497 + $0x4] sm:$0xf]
  %v12500 = vld [vmem:[%s12497 + $0x8] sm:$0xf]
  %v12501 = vld [vmem:[%s12497 + $0xc] sm:$0xf]
  %v12502 = vld [vmem:[%s12497 + $0x10] sm:$0xf]
  %v12503 = vld [vmem:[%s12497 + $0x14] sm:$0xf]
  %v12504 = vld [vmem:[%s12497 + $0x18] sm:$0xf]
  %v12505 = vld [vmem:[%s12497 + $0x1c] sm:$0xf]
  %v12506 = vld [vmem:[%s12497 + $0x20] sm:$0xf]
  %v12507 = vld [vmem:[%s12497 + $0x24] sm:$0xf]
  %v12508 = vld [vmem:[%s12497 + $0x28] sm:$0xf]
  %v12509 = vld [vmem:[%s12497 + $0x2c] sm:$0xf]
  %v12510 = vld [vmem:[%s12497 + $0x30] sm:$0xf]
  %v12511 = vld [vmem:[%s12497 + $0x34] sm:$0xf]
  %v12512 = vld [vmem:[%s12497 + $0x38] sm:$0xf]
  %v12513 = vld [vmem:[%s12497 + $0x3c] sm:$0xf]
  %v12514 = vld [vmem:[%s12497 + $0x40] sm:$0xf]
  %v12515 = vld [vmem:[%s12497 + $0x44] sm:$0xf]
  %v12516 = vld [vmem:[%s12497 + $0x48] sm:$0xf]
  %v12517 = vld [vmem:[%s12497 + $0x4c] sm:$0xf]
  %v12538 = vunpack.c.l.b16 %v12498
  %v12539 = vunpack.c.l.b16 %v12499
  %v12540 = vunpack.c.l.b16 %v12500
  %v12541 = vunpack.c.l.b16 %v12501
  %v12542 = vunpack.c.l.b16 %v12502
  %v12543 = vunpack.c.l.b16 %v12503
  %v12544 = vunpack.c.l.b16 %v12504
  %v12545 = vunpack.c.l.b16 %v12505
  %v12546 = vunpack.c.l.b16 %v12506
  %v12547 = vunpack.c.l.b16 %v12507
  %v12548 = vunpack.c.l.b16 %v12508
  %v12549 = vunpack.c.l.b16 %v12509
  %v12550 = vunpack.c.l.b16 %v12510
  %v12551 = vunpack.c.l.b16 %v12511
  %v12552 = vunpack.c.l.b16 %v12512
  %v12553 = vunpack.c.l.b16 %v12513
  %v12554 = vunpack.c.l.b16 %v12514
  %v12555 = vunpack.c.l.b16 %v12515
  %v12556 = vunpack.c.l.b16 %v12516
  %v12557 = vunpack.c.l.b16 %v12517
  %v12558 = vpack.c.b16 %v12539, %v12538
  %v12559 = vpack.c.b16 %v12541, %v12540
  %v12560 = vpack.c.b16 %v12543, %v12542
  %v12561 = vpack.c.b16 %v12545, %v12544
  %v12562 = vpack.c.b16 %v12547, %v12546
  %v12563 = vpack.c.b16 %v12549, %v12548
  %v12564 = vpack.c.b16 %v12551, %v12550
  %v12565 = vpack.c.b16 %v12553, %v12552
  %v12566 = vpack.c.b16 %v12555, %v12554
  %v12567 = vpack.c.b16 %v12557, %v12556
  %v12579 = vsel %vm12063, %v11981, 0
  %12581 = vmatprep.subr.bf16.mxu0 0
  %12582 = vmatpush1.bf16.msra.mxu0 %v12565
  %12583 = vmatprep.subr.bf16.mxu0 0
  %12584 = vmatpush1.bf16.msra.mxu0 %v12564
  %12585 = vmatprep.subr.bf16.mxu0 0
  %12586 = vmatpush1.bf16.msra.mxu0 %v12563
  %12587 = vmatprep.subr.bf16.mxu0 0
  %12588 = vmatpush1.bf16.msra.mxu0 %v12562
  %12589 = vmatprep.subr.bf16.mxu0 0
  %12590 = vmatpush1.bf16.msra.mxu0 %v12561
  %12591 = vmatprep.subr.bf16.mxu0 0
  %12592 = vmatpush1.bf16.msra.mxu0 %v12560
  %12593 = vmatprep.subr.bf16.mxu0 0
  %12594 = vmatpush1.bf16.msra.mxu0 %v12559
  %12595 = vmatprep.subr.bf16.mxu0 0
  %12596 = vmatpush1.bf16.msra.mxu0 %v12558
  %12597 = vmatprep.subr.bf16.mxu0 0
  %12598 = vmatpush2.bf16.msra.mxu0 0
  %12599 = vmatprep.subr.bf16.mxu0 0
  %12600 = vmatpush2.bf16.msra.mxu0 0
  %12601 = vmatprep.subr.bf16.mxu0 0
  %12602 = vmatpush2.bf16.msra.mxu0 0
  %12603 = vmatprep.subr.bf16.mxu0 0
  %12604 = vmatpush2.bf16.msra.mxu0 0
  %12605 = vmatprep.subr.bf16.mxu0 0
  %12606 = vmatpush2.bf16.msra.mxu0 0
  %12607 = vmatprep.subr.bf16.mxu0 0
  %12608 = vmatpush2.bf16.msra.mxu0 0
  %12609 = vmatprep.subr.bf16.mxu0 0
  %12610 = vmatpush2.bf16.msra.mxu0 %v12567
  %12611 = vmatprep.subr.bf16.mxu0 0
  %12612 = vmatpush2.bf16.msra.mxu0 %v12566
  %12613 = vmatprep.mubr.bf16.mxu0 %v12579
  %12614 = vmatmul.mubr.bf16.gmra.mxu0 %v11980
  %v12615 = vpop.f32.mrf.mxu0
  %v12616 = vadd.f32 0.0, %v12615
  %v12617 = vpop.f32.mrf.mxu0
  %v12618 = vpop.f32.mrf.mxu0
  %v12619 = vadd.f32 0.0, %v12618
  %v12620 = vpop.f32.mrf.mxu0
  %12621 = vdwg.mxu0
  %v12622 = vadd.f32 %v12495, %v12616
  %v12623 = vadd.f32 %v12496, %v12619
  %v12624 = vmul.f32 %v12622, 0.2
  %v12625 = vmul.f32 %v12623, 0.2
  %v12626 = vmax.f32 %v12622, %v12624
  %v12627 = vmax.f32 %v12623, %v12625
  %v12628 = vpack.c.bf16 %v12627, %v12626
  %v12629 = vld [vmem:[%s9] sm:$0xf]
  %v12630 = vld [vmem:[%s9 + $0x4] sm:$0xf]
  %v12631 = vld [vmem:[%s9 + $0x8] sm:$0xf]
  %v12632 = vld [vmem:[%s9 + $0xc] sm:$0xf]
  %v12633 = vld [vmem:[%s9 + $0x10] sm:$0xf]
  %v12634 = vld [vmem:[%s9 + $0x14] sm:$0xf]
  %v12635 = vld [vmem:[%s9 + $0x18] sm:$0xf]
  %v12636 = vld [vmem:[%s9 + $0x1c] sm:$0xf]
  %v12637 = vld [vmem:[%s9 + $0x20] sm:$0xf]
  %v12638 = vld [vmem:[%s9 + $0x24] sm:$0xf]
  %v12639 = vld [vmem:[%s9 + $0x28] sm:$0xf]
  %v12640 = vld [vmem:[%s9 + $0x2c] sm:$0xf]
  %v12641 = vld [vmem:[%s9 + $0x30] sm:$0xf]
  %v12642 = vld [vmem:[%s9 + $0x34] sm:$0xf]
  %v12643 = vld [vmem:[%s9 + $0x38] sm:$0xf]
  %v12644 = vld [vmem:[%s9 + $0x3c] sm:$0xf]
  %v12645 = vld [vmem:[%s10] sm:$0x1]
  %v12647 = vlaneseq
  %v12648 = vshrl.u32 %v12647, 7
  %v12649 = vsub.s32 0, %v12648
  %v12650 = vrot.slane %v12645, %v12649
  %v12668 = vunpack.c.l.b16 %v12629
  %v12669 = vunpack.c.l.b16 %v12630
  %v12670 = vunpack.c.l.b16 %v12631
  %v12671 = vunpack.c.l.b16 %v12632
  %v12672 = vunpack.c.l.b16 %v12633
  %v12673 = vunpack.c.l.b16 %v12634
  %v12674 = vunpack.c.l.b16 %v12635
  %v12675 = vunpack.c.l.b16 %v12636
  %v12676 = vunpack.c.l.b16 %v12637
  %v12677 = vunpack.c.l.b16 %v12638
  %v12678 = vunpack.c.l.b16 %v12639
  %v12679 = vunpack.c.l.b16 %v12640
  %v12680 = vunpack.c.l.b16 %v12641
  %v12681 = vunpack.c.l.b16 %v12642
  %v12682 = vunpack.c.l.b16 %v12643
  %v12683 = vunpack.c.l.b16 %v12644
  %v12684 = vpack.c.b16 %v12669, %v12668
  %v12685 = vpack.c.b16 %v12671, %v12670
  %v12686 = vpack.c.b16 %v12673, %v12672
  %v12687 = vpack.c.b16 %v12675, %v12674
  %v12688 = vpack.c.b16 %v12677, %v12676
  %v12689 = vpack.c.b16 %v12679, %v12678
  %v12690 = vpack.c.b16 %v12681, %v12680
  %v12691 = vpack.c.b16 %v12683, %v12682
  %12700 = vmatprep.subr.bf16.mxu0 0
  %12701 = vmatpush1.bf16.msra.mxu0 %v12691
  %12702 = vmatprep.subr.bf16.mxu0 0
  %12703 = vmatpush1.bf16.msra.mxu0 %v12690
  %12704 = vmatprep.subr.bf16.mxu0 0
  %12705 = vmatpush1.bf16.msra.mxu0 %v12689
  %12706 = vmatprep.subr.bf16.mxu0 0
  %12707 = vmatpush1.bf16.msra.mxu0 %v12688
  %12708 = vmatprep.subr.bf16.mxu0 0
  %12709 = vmatpush1.bf16.msra.mxu0 %v12687
  %12710 = vmatprep.subr.bf16.mxu0 0
  %12711 = vmatpush1.bf16.msra.mxu0 %v12686
  %12712 = vmatprep.subr.bf16.mxu0 0
  %12713 = vmatpush1.bf16.msra.mxu0 %v12685
  %12714 = vmatprep.subr.bf16.mxu0 0
  %12715 = vmatpush1.bf16.msra.mxu0 %v12684
  %12716 = vmatprep.subr.bf16.mxu0 0
  %12717 = vmatpush2.bf16.msra.mxu0 0
  %12718 = vmatprep.subr.bf16.mxu0 0
  %12719 = vmatpush2.bf16.msra.mxu0 0
  %12720 = vmatprep.subr.bf16.mxu0 0
  %12721 = vmatpush2.bf16.msra.mxu0 0
  %12722 = vmatprep.subr.bf16.mxu0 0
  %12723 = vmatpush2.bf16.msra.mxu0 0
  %12724 = vmatprep.subr.bf16.mxu0 0
  %12725 = vmatpush2.bf16.msra.mxu0 0
  %12726 = vmatprep.subr.bf16.mxu0 0
  %12727 = vmatpush2.bf16.msra.mxu0 0
  %12728 = vmatprep.subr.bf16.mxu0 0
  %12729 = vmatpush2.bf16.msra.mxu0 0
  %12730 = vmatprep.subr.bf16.mxu0 0
  %12731 = vmatpush2.bf16.msra.mxu0 0
  %12732 = vmatprep.mubr.bf16.mxu0 0
  %12733 = vmatmul.mubr.bf16.gmra.mxu0 %v12628
  %v12734 = vpop.f32.mrf.mxu0
  %v12735 = vadd.f32 %v12650, %v12734
  %v12736 = vpop.f32.mrf.mxu0
  %v12737 = vpop.f32.mrf.mxu0
  %v12738 = vadd.f32 %v12650, %v12737
  %v12739 = vpop.f32.mrf.mxu0
  %12740 = vdwg.mxu0
  %v12741 = vsub.f32 0.0, %v12735
  %v12742 = vsub.f32 0.0, %v12738
  %v12743 = vmul.f32 %v12741, 1.442695
  %v12744 = vpow.pop %v12743
  %v12745 = vmul.f32 %v12742, 1.442695
  %v12746 = vpow.pop %v12745
  %v12747 = vadd.f32 %v12744, 1.0
  %v12748 = vadd.f32 %v12746, 1.0
  %v12749 = vrcp.pop %v12747
  %v12750 = vmul.f32 1.0, %v12749
  %v12751 = vrcp.pop %v12748
  %v12752 = vmul.f32 1.0, %v12751
  %12753 = vst [vmem:[%s11] sm:$0xff] %v12750
  %12754 = vst [vmem:[%s11 + $0x8] sm:$0xff] %v12752
  // Predicated region
  $region46: #{discriminator_forward.1} parent=0 // pred_check
    _
  $region47: #{discriminator_forward.1} parent=0 // pred_check_branch
    %12756 = sbr.rel (0) target = $region49
  $region48: #{discriminator_forward.1} parent=0 // pred_region
    _
  $region49: #{discriminator_forward.1} parent=0 // pred_fallthru
    _
  // Predicated region
  $region50: #{discriminator_forward.1} parent=0 // pred_check
    _
  $region51: #{discriminator_forward.1} parent=0 // pred_check_branch
    %12758 = sbr.rel (0) target = $region53
  $region52: #{discriminator_forward.1} parent=0 // pred_region
    _
  $region53: #{discriminator_forward.1} parent=0 // pred_fallthru
    _

</llo_original>
